<compile_context>
chip_gen: v5e
topology: v5e:2x2
jax: 0.10.0
libtpu: 0.0.40
codegen_flags: <defaults>
</compile_context>

<pallas_src>
import functools

import jax
import jax.numpy as jnp
from jax import lax
from jax.experimental import pallas as pl
from jax.experimental.pallas import tpu as pltpu

NUM_LAYERS = 6


# ------------------------------ fused kernel ----------------------------------------
def _fused_lstm_mlp_kernel(x_ref, wih0_ref, wihr_ref, whh_ref, b_ref,
                           w1, b1, w2, b2, w3, b3, w4, b4,
                           out_ref, hn_ref, cn_ref,
                           act_sc,
                           *, T, Bp, H, L):
    f32 = jnp.float32

    # Static lane mask over one (Bp, 4H) gate tile: lanes [2H, 3H) are the 'g' gate
    # (tanh); i/f/o lanes use sigmoid, computed from the SAME tanh via
    # sigmoid(x) = 0.5 * (1 + tanh(x/2))  -> one EUP op per cell instead of two.
    lane = lax.broadcasted_iota(jnp.int32, (Bp, 4 * H), 1)
    g_mask = (lane >= 2 * H) & (lane < 3 * H)

    def gate_act(g):
        g2 = jnp.where(g_mask, g, 0.5 * g)
        tg = jnp.tanh(g2)
        return jnp.where(g_mask, tg, 0.5 * tg + 0.5)

    # Hoist bias broadcasts out of the unrolled cell bodies (broadcasts are not CSE'd).
    bias = [jnp.broadcast_to(b_ref[l], (Bp, 4 * H)) for l in range(L)]

    # Layer 0 input projection hoisted over the whole sequence: one MXU pass,
    # straight from x_ref (no padding, no slab copy).  Includes layer-0 bias.
    gx0 = jnp.dot(x_ref[...], wih0_ref[...],
                  preferred_element_type=f32) + b_ref[0]          # (T*Bp, 4H)

    zeros = jnp.zeros((Bp, H), f32)
    h = [zeros] * L
    c = [zeros] * L

    # -------- wavefront over diagonals d = t + l: cells on one diagonal are
    # -------- mutually independent, so their matmul/EUP chains can overlap.
    for d in range(T + L - 1):
        h_snap = list(h)                       # layer outputs as of diagonal d-1
        c_snap = list(c)
        for l in range(L):
            t = d - l
            if t < 0 or t >= T:
                continue
            if l == 0:
                g = gx0[t * Bp:(t + 1) * Bp, :] + jnp.dot(
                    h_snap[0], whh_ref[0], preferred_element_type=f32)
            else:
                g = (jnp.dot(h_snap[l - 1], wihr_ref[l - 1],
                             preferred_element_type=f32)
                     + jnp.dot(h_snap[l], whh_ref[l],
                               preferred_element_type=f32)
                     + bias[l])
            act = gate_act(g)                  # (Bp, 4H) -- exactly one vreg
            i_g = act[:, 0:H]
            f_g = act[:, H:2 * H]
            g_g = act[:, 2 * H:3 * H]
            o_g = act[:, 3 * H:4 * H]
            c_new = f_g * c_snap[l] + i_g * g_g
            h_new = o_g * jnp.tanh(c_new)
            h[l] = h_new
            c[l] = c_new
            if l == L - 1:                     # last layer's output feeds the MLP
                act_sc[t * Bp:(t + 1) * Bp, :] = h_new
            if t == T - 1:                     # final states (written once per layer)
                hn_ref[l] = h_new
                cn_ref[l] = c_new

    # ---- MLP head, fused: consumes the VMEM-resident last-layer output directly ----
    def lrelu(v):                              # LeakyReLU, default negative_slope=0.01
        return jnp.where(v > 0, v, 0.01 * v)

    feats = act_sc[...]                        # (T*Bp, H)
    h1 = lrelu(jnp.dot(feats, w1[...], preferred_element_type=f32) + b1[...])
    h2 = lrelu(jnp.dot(h1, w2[...], preferred_element_type=f32) + b2[...])
    h3 = lrelu(jnp.dot(h2, w3[...], preferred_element_type=f32) + b3[...])
    # w4/b4 are zero-padded to 128 lanes -> this store is full-width / unmasked.
    out_ref[...] = (jnp.dot(h3, w4[...], preferred_element_type=f32)
                    + b4[...]).astype(out_ref.dtype)


# ------------------------------- wrapper / packing -----------------------------------
def pack_params(params, input_size, hidden_size, output_size):
    """Stack per-layer LSTM weights (layer 0 kept separate, unpadded) and lane-pad
    the final MLP projection to a multiple of 128 output columns."""
    lstm = params["lstm"]
    L = len(lstm)
    wih0 = lstm[0][0]                                            # (D, 4H)
    wih_rest = jnp.stack([lstm[l][0] for l in range(1, L)])      # (L-1, H, 4H)
    whh = jnp.stack([lstm[l][1] for l in range(L)])              # (L, H, 4H)
    b = jnp.stack([lstm[l][2] for l in range(L)])                # (L, 1, 4H)

    w1, b1, w2, b2, w3, b3, w4, b4 = params["mlp"]
    o_pad = ((output_size + 127) // 128) * 128                   # lane-dense output
    pad = o_pad - output_size
    w4p = jnp.pad(w4, ((0, 0), (0, pad)))
    b4p = jnp.pad(b4, ((0, 0), (0, pad)))
    return {"wih0": wih0, "wih_rest": wih_rest, "whh": whh, "b": b,
            "mlp": (w1, b1, w2, b2, w3, b3, w4p, b4p)}


def lstm_model_forward(x, packed, hidden_size, output_size):
    """Equivalent of LSTMModel.forward(x, lstm_states=None). Returns (output, (h_n, c_n))."""
    B, T, D = x.shape
    H = hidden_size
    L = packed["whh"].shape[0]
    Bp = ((B + 7) // 8) * 8                    # pad batch to a full sublane tile
    o_pad = packed["mlp"][-2].shape[-1]

    x_tm = jnp.transpose(x, (1, 0, 2))         # (T, B, D) time-major
    if Bp != B:
        x_tm = jnp.pad(x_tm, ((0, 0), (0, Bp - B), (0, 0)))
    x2d = x_tm.reshape(T * Bp, D)

    kernel = functools.partial(_fused_lstm_mlp_kernel, T=T, Bp=Bp, H=H, L=L)
    out2d, h_n, c_n = pl.pallas_call(
        kernel,
        out_shape=(
            jax.ShapeDtypeStruct((T * Bp, o_pad), jnp.float32),
            jax.ShapeDtypeStruct((L, Bp, H), jnp.float32),
            jax.ShapeDtypeStruct((L, Bp, H), jnp.float32),
        ),
        scratch_shapes=[
            pltpu.VMEM((T * Bp, H), jnp.float32),   # last-layer outputs for the MLP
        ],
    )(x2d, packed["wih0"], packed["wih_rest"], packed["whh"], packed["b"],
      *packed["mlp"])

    out = out2d[:, :output_size].reshape(T, Bp, output_size)[:, :B]
    output = jnp.transpose(out, (1, 0, 2))     # (B, T, O)
    return output, (h_n[:, :B], c_n[:, :B])


# ------------------------------ parameter construction -------------------------------
def init_params(key, input_size, hidden_size, output_size, num_layers=NUM_LAYERS):
    H = hidden_size

    def uni(k, shape, bound):
        return jax.random.uniform(k, shape, jnp.float32, -bound, bound)

    lstm_params = []
    k_lstm = 1.0 / jnp.sqrt(H)
    for l in range(num_layers):
        d_in = input_size if l == 0 else H
        key, k1, k2, k3, k4 = jax.random.split(key, 5)
        w_ih = uni(k1, (d_in, 4 * H), k_lstm)          # pre-transposed: (D_in, 4H)
        w_hh = uni(k2, (H, 4 * H), k_lstm)             # pre-transposed: (H, 4H)
        b = (uni(k3, (1, 4 * H), k_lstm) + uni(k4, (1, 4 * H), k_lstm))  # b_ih + b_hh
        lstm_params.append((w_ih, w_hh, b))

    dims = [(H, 2 * H), (2 * H, 2 * H), (2 * H, H), (H, output_size)]
    mlp_params = []
    for (din, dout) in dims:
        key, k1, k2 = jax.random.split(key, 3)
        bound = 1.0 / jnp.sqrt(din)
        mlp_params.append(uni(k1, (din, dout), bound))  # W (already (in, out))
        mlp_params.append(uni(k2, (1, dout), bound))    # b
    return {"lstm": lstm_params, "mlp": tuple(mlp_params)}


# --------------------------------- pure-JAX reference --------------------------------
def reference_forward(x, params, H, O):
    B, T, _ = x.shape
    inp = x
    h_fs, c_fs = [], []
    for (w_ih, w_hh, b) in params["lstm"]:
        h = jnp.zeros((B, H), jnp.float32)
        c = jnp.zeros((B, H), jnp.float32)
        ys = []
        for t in range(T):
            g = inp[:, t] @ w_ih + h @ w_hh + b[0]
            i = jax.nn.sigmoid(g[:, :H])
            f = jax.nn.sigmoid(g[:, H:2 * H])
            gg = jnp.tanh(g[:, 2 * H:3 * H])
            o = jax.nn.sigmoid(g[:, 3 * H:])
            c = f * c + i * gg
            h = o * jnp.tanh(c)
            ys.append(h)
        inp = jnp.stack(ys, axis=1)
        h_fs.append(h)
        c_fs.append(c)
    w1, b1, w2, b2, w3, b3, w4, b4 = params["mlp"]

    def lrelu(v):
        return jnp.where(v > 0, v, 0.01 * v)

    y = lrelu(inp @ w1 + b1)
    y = lrelu(y @ w2 + b2)
    y = lrelu(y @ w3 + b3)
    y = y @ w4 + b4
    return y, (jnp.stack(h_fs, 0), jnp.stack(c_fs, 0))


if __name__ == "__main__":
    B, T = 2, 8
    INPUT_SIZE, HIDDEN_SIZE, OUTPUT_SIZE = 16, 32, 8

    key = jax.random.PRNGKey(0)
    key, kx = jax.random.split(key)
    x = jax.random.normal(kx, (B, T, INPUT_SIZE), jnp.float32)
    params = init_params(key, INPUT_SIZE, HIDDEN_SIZE, OUTPUT_SIZE, NUM_LAYERS)
    packed = pack_params(params, INPUT_SIZE, HIDDEN_SIZE, OUTPUT_SIZE)

    fwd = jax.jit(functools.partial(lstm_model_forward,
                                    hidden_size=HIDDEN_SIZE,
                                    output_size=OUTPUT_SIZE))
    output, (h_n, c_n) = fwd(x, packed)
    jax.block_until_ready((output, h_n, c_n))

    ref_out, (ref_h, ref_c) = reference_forward(x, params, HIDDEN_SIZE, OUTPUT_SIZE)
    assert output.shape == (B, T, OUTPUT_SIZE)
    assert h_n.shape == (NUM_LAYERS, B, HIDDEN_SIZE)
    assert c_n.shape == (NUM_LAYERS, B, HIDDEN_SIZE)
    assert jnp.allclose(output, ref_out, atol=5e-3, rtol=5e-3)
    assert jnp.allclose(h_n, ref_h, atol=5e-3, rtol=5e-3)
    assert jnp.allclose(c_n, ref_c, atol=5e-3, rtol=5e-3)

    print("KERNEL_OK")
</pallas_src>

<mosaic_0001>
module attributes {stable_mosaic.version = 11 : i64} {
  func.func @_fused_lstm_mlp_kernel(%arg0: memref<64x16xf32, #tpu.memory_space<vmem>>, %arg1: memref<16x128xf32, #tpu.memory_space<vmem>>, %arg2: memref<5x32x128xf32, #tpu.memory_space<vmem>>, %arg3: memref<6x32x128xf32, #tpu.memory_space<vmem>>, %arg4: memref<6x1x128xf32, #tpu.memory_space<vmem>>, %arg5: memref<32x64xf32, #tpu.memory_space<vmem>>, %arg6: memref<1x64xf32, #tpu.memory_space<vmem>>, %arg7: memref<64x64xf32, #tpu.memory_space<vmem>>, %arg8: memref<1x64xf32, #tpu.memory_space<vmem>>, %arg9: memref<64x32xf32, #tpu.memory_space<vmem>>, %arg10: memref<1x32xf32, #tpu.memory_space<vmem>>, %arg11: memref<32x128xf32, #tpu.memory_space<vmem>>, %arg12: memref<1x128xf32, #tpu.memory_space<vmem>>, %arg13: memref<64x128xf32, #tpu.memory_space<vmem>>, %arg14: memref<6x8x32xf32, #tpu.memory_space<vmem>>, %arg15: memref<6x8x32xf32, #tpu.memory_space<vmem>>, %arg16: memref<64x32xf32, #tpu.memory_space<vmem>>) attributes {dimension_semantics = [], scalar_prefetch = 0 : i64, scratch_operands = 1 : i64, tpu.core_type = #tpu.core_type<tc>} {
    %0 = tpu.iota {dimensions = array<i32: 1>} : vector<8x128xi32>
    %c64_i32 = arith.constant 64 : i32
    %1 = vector.broadcast %c64_i32 : i32 to vector<8x128xi32>
    %2 = arith.cmpi sge, %0, %1 : vector<8x128xi32>
    %c96_i32 = arith.constant 96 : i32
    %3 = vector.broadcast %c96_i32 : i32 to vector<8x128xi32>
    %4 = arith.cmpi slt, %0, %3 : vector<8x128xi32>
    %5 = arith.andi %2, %4 : vector<8x128xi1>
    %c1 = arith.constant 1 : index
    %c0 = arith.constant 0 : index
    %c0_0 = arith.constant 0 : index
    %6 = vector.load %arg4[%c1, %c0, %c0_0] : memref<6x1x128xf32, #tpu.memory_space<vmem>>, vector<1x1x128xf32>
    %7 = vector.shape_cast %6 : vector<1x1x128xf32> to vector<1x128xf32>
    %8 = vector.shape_cast %7 : vector<1x128xf32> to vector<1x128xf32>
    %9 = vector.broadcast %8 : vector<1x128xf32> to vector<8x128xf32>
    %c2 = arith.constant 2 : index
    %c0_1 = arith.constant 0 : index
    %c0_2 = arith.constant 0 : index
    %10 = vector.load %arg4[%c2, %c0_1, %c0_2] : memref<6x1x128xf32, #tpu.memory_space<vmem>>, vector<1x1x128xf32>
    %11 = vector.shape_cast %10 : vector<1x1x128xf32> to vector<1x128xf32>
    %12 = vector.shape_cast %11 : vector<1x128xf32> to vector<1x128xf32>
    %13 = vector.broadcast %12 : vector<1x128xf32> to vector<8x128xf32>
    %c3 = arith.constant 3 : index
    %c0_3 = arith.constant 0 : index
    %c0_4 = arith.constant 0 : index
    %14 = vector.load %arg4[%c3, %c0_3, %c0_4] : memref<6x1x128xf32, #tpu.memory_space<vmem>>, vector<1x1x128xf32>
    %15 = vector.shape_cast %14 : vector<1x1x128xf32> to vector<1x128xf32>
    %16 = vector.shape_cast %15 : vector<1x128xf32> to vector<1x128xf32>
    %17 = vector.broadcast %16 : vector<1x128xf32> to vector<8x128xf32>
    %c4 = arith.constant 4 : index
    %c0_5 = arith.constant 0 : index
    %c0_6 = arith.constant 0 : index
    %18 = vector.load %arg4[%c4, %c0_5, %c0_6] : memref<6x1x128xf32, #tpu.memory_space<vmem>>, vector<1x1x128xf32>
    %19 = vector.shape_cast %18 : vector<1x1x128xf32> to vector<1x128xf32>
    %20 = vector.shape_cast %19 : vector<1x128xf32> to vector<1x128xf32>
    %21 = vector.broadcast %20 : vector<1x128xf32> to vector<8x128xf32>
    %c5 = arith.constant 5 : index
    %c0_7 = arith.constant 0 : index
    %c0_8 = arith.constant 0 : index
    %22 = vector.load %arg4[%c5, %c0_7, %c0_8] : memref<6x1x128xf32, #tpu.memory_space<vmem>>, vector<1x1x128xf32>
    %23 = vector.shape_cast %22 : vector<1x1x128xf32> to vector<1x128xf32>
    %24 = vector.shape_cast %23 : vector<1x128xf32> to vector<1x128xf32>
    %25 = vector.broadcast %24 : vector<1x128xf32> to vector<8x128xf32>
    %c0_9 = arith.constant 0 : index
    %c0_10 = arith.constant 0 : index
    %26 = vector.load %arg0[%c0_9, %c0_10] : memref<64x16xf32, #tpu.memory_space<vmem>>, vector<64x16xf32>
    %c0_11 = arith.constant 0 : index
    %c0_12 = arith.constant 0 : index
    %27 = vector.load %arg1[%c0_11, %c0_12] : memref<16x128xf32, #tpu.memory_space<vmem>>, vector<16x128xf32>
    %cst = arith.constant dense<0.000000e+00> : vector<64x128xf32>
    %28 = tpu.matmul %26, %27, %cst {dimension_numbers = #tpu.dot_dimension_numbers<[1], [0], [0], [1], [0, 0, 1, 1], [], []>} : vector<64x16xf32>, vector<16x128xf32>, vector<64x128xf32> -> vector<64x128xf32>
    %c0_13 = arith.constant 0 : index
    %c0_14 = arith.constant 0 : index
    %c0_15 = arith.constant 0 : index
    %29 = vector.load %arg4[%c0_13, %c0_14, %c0_15] : memref<6x1x128xf32, #tpu.memory_space<vmem>>, vector<1x1x128xf32>
    %30 = vector.shape_cast %29 : vector<1x1x128xf32> to vector<1x128xf32>
    %31 = vector.broadcast %30 : vector<1x128xf32> to vector<64x128xf32>
    %32 = arith.addf %28, %31 : vector<64x128xf32>
    %cst_16 = arith.constant 0.000000e+00 : f32
    %33 = vector.broadcast %cst_16 : f32 to vector<8x32xf32>
    %34 = vector.extract_strided_slice %32 {offsets = [0, 0], sizes = [8, 128], strides = [1, 1]} : vector<64x128xf32> to vector<8x128xf32>
    %c0_17 = arith.constant 0 : index
    %c0_18 = arith.constant 0 : index
    %c0_19 = arith.constant 0 : index
    %35 = vector.load %arg3[%c0_17, %c0_18, %c0_19] : memref<6x32x128xf32, #tpu.memory_space<vmem>>, vector<1x32x128xf32>
    %36 = vector.shape_cast %35 : vector<1x32x128xf32> to vector<32x128xf32>
    %cst_20 = arith.constant dense<0.000000e+00> : vector<8x128xf32>
    %37 = tpu.matmul %33, %36, %cst_20 {dimension_numbers = #tpu.dot_dimension_numbers<[1], [0], [0], [1], [0, 0, 1, 1], [], []>} : vector<8x32xf32>, vector<32x128xf32>, vector<8x128xf32> -> vector<8x128xf32>
    %38 = arith.addf %34, %37 : vector<8x128xf32>
    %cst_21 = arith.constant 5.000000e-01 : f32
    %39 = vector.broadcast %cst_21 : f32 to vector<8x128xf32>
    %40 = arith.mulf %39, %38 : vector<8x128xf32>
    %41 = arith.select %5, %38, %40 : vector<8x128xi1>, vector<8x128xf32>
    %42 = math.tanh %41 : vector<8x128xf32>
    %cst_22 = arith.constant 5.000000e-01 : f32
    %43 = vector.broadcast %cst_22 : f32 to vector<8x128xf32>
    %44 = arith.mulf %43, %42 : vector<8x128xf32>
    %cst_23 = arith.constant 5.000000e-01 : f32
    %45 = vector.broadcast %cst_23 : f32 to vector<8x128xf32>
    %46 = arith.addf %44, %45 : vector<8x128xf32>
    %47 = arith.select %5, %42, %46 : vector<8x128xi1>, vector<8x128xf32>
    %48 = vector.extract_strided_slice %47 {offsets = [0, 0], sizes = [8, 32], strides = [1, 1]} : vector<8x128xf32> to vector<8x32xf32>
    %49 = vector.extract_strided_slice %47 {offsets = [0, 32], sizes = [8, 32], strides = [1, 1]} : vector<8x128xf32> to vector<8x32xf32>
    %50 = vector.extract_strided_slice %47 {offsets = [0, 64], sizes = [8, 32], strides = [1, 1]} : vector<8x128xf32> to vector<8x32xf32>
    %51 = vector.extract_strided_slice %47 {offsets = [0, 96], sizes = [8, 32], strides = [1, 1]} : vector<8x128xf32> to vector<8x32xf32>
    %52 = arith.mulf %49, %33 : vector<8x32xf32>
    %53 = arith.mulf %48, %50 : vector<8x32xf32>
    %54 = arith.addf %52, %53 : vector<8x32xf32>
    %55 = math.tanh %54 : vector<8x32xf32>
    %56 = arith.mulf %51, %55 : vector<8x32xf32>
    %57 = vector.extract_strided_slice %32 {offsets = [8, 0], sizes = [8, 128], strides = [1, 1]} : vector<64x128xf32> to vector<8x128xf32>
    %c0_24 = arith.constant 0 : index
    %c0_25 = arith.constant 0 : index
    %c0_26 = arith.constant 0 : index
    %58 = vector.load %arg3[%c0_24, %c0_25, %c0_26] : memref<6x32x128xf32, #tpu.memory_space<vmem>>, vector<1x32x128xf32>
    %59 = vector.shape_cast %58 : vector<1x32x128xf32> to vector<32x128xf32>
    %cst_27 = arith.constant dense<0.000000e+00> : vector<8x128xf32>
    %60 = tpu.matmul %56, %59, %cst_27 {dimension_numbers = #tpu.dot_dimension_numbers<[1], [0], [0], [1], [0, 0, 1, 1], [], []>} : vector<8x32xf32>, vector<32x128xf32>, vector<8x128xf32> -> vector<8x128xf32>
    %61 = arith.addf %57, %60 : vector<8x128xf32>
    %cst_28 = arith.constant 5.000000e-01 : f32
    %62 = vector.broadcast %cst_28 : f32 to vector<8x128xf32>
    %63 = arith.mulf %62, %61 : vector<8x128xf32>
    %64 = arith.select %5, %61, %63 : vector<8x128xi1>, vector<8x128xf32>
    %65 = math.tanh %64 : vector<8x128xf32>
    %cst_29 = arith.constant 5.000000e-01 : f32
    %66 = vector.broadcast %cst_29 : f32 to vector<8x128xf32>
    %67 = arith.mulf %66, %65 : vector<8x128xf32>
    %cst_30 = arith.constant 5.000000e-01 : f32
    %68 = vector.broadcast %cst_30 : f32 to vector<8x128xf32>
    %69 = arith.addf %67, %68 : vector<8x128xf32>
    %70 = arith.select %5, %65, %69 : vector<8x128xi1>, vector<8x128xf32>
    %71 = vector.extract_strided_slice %70 {offsets = [0, 0], sizes = [8, 32], strides = [1, 1]} : vector<8x128xf32> to vector<8x32xf32>
    %72 = vector.extract_strided_slice %70 {offsets = [0, 32], sizes = [8, 32], strides = [1, 1]} : vector<8x128xf32> to vector<8x32xf32>
    %73 = vector.extract_strided_slice %70 {offsets = [0, 64], sizes = [8, 32], strides = [1, 1]} : vector<8x128xf32> to vector<8x32xf32>
    %74 = vector.extract_strided_slice %70 {offsets = [0, 96], sizes = [8, 32], strides = [1, 1]} : vector<8x128xf32> to vector<8x32xf32>
    %75 = arith.mulf %72, %54 : vector<8x32xf32>
    %76 = arith.mulf %71, %73 : vector<8x32xf32>
    %77 = arith.addf %75, %76 : vector<8x32xf32>
    %78 = math.tanh %77 : vector<8x32xf32>
    %79 = arith.mulf %74, %78 : vector<8x32xf32>
    %c0_31 = arith.constant 0 : index
    %c0_32 = arith.constant 0 : index
    %c0_33 = arith.constant 0 : index
    %80 = vector.load %arg2[%c0_31, %c0_32, %c0_33] : memref<5x32x128xf32, #tpu.memory_space<vmem>>, vector<1x32x128xf32>
    %81 = vector.shape_cast %80 : vector<1x32x128xf32> to vector<32x128xf32>
    %cst_34 = arith.constant dense<0.000000e+00> : vector<8x128xf32>
    %82 = tpu.matmul %56, %81, %cst_34 {dimension_numbers = #tpu.dot_dimension_numbers<[1], [0], [0], [1], [0, 0, 1, 1], [], []>} : vector<8x32xf32>, vector<32x128xf32>, vector<8x128xf32> -> vector<8x128xf32>
    %c1_35 = arith.constant 1 : index
    %c0_36 = arith.constant 0 : index
    %c0_37 = arith.constant 0 : index
    %83 = vector.load %arg3[%c1_35, %c0_36, %c0_37] : memref<6x32x128xf32, #tpu.memory_space<vmem>>, vector<1x32x128xf32>
    %84 = vector.shape_cast %83 : vector<1x32x128xf32> to vector<32x128xf32>
    %cst_38 = arith.constant dense<0.000000e+00> : vector<8x128xf32>
    %85 = tpu.matmul %33, %84, %cst_38 {dimension_numbers = #tpu.dot_dimension_numbers<[1], [0], [0], [1], [0, 0, 1, 1], [], []>} : vector<8x32xf32>, vector<32x128xf32>, vector<8x128xf32> -> vector<8x128xf32>
    %86 = arith.addf %82, %85 : vector<8x128xf32>
    %87 = arith.addf %86, %9 : vector<8x128xf32>
    %cst_39 = arith.constant 5.000000e-01 : f32
    %88 = vector.broadcast %cst_39 : f32 to vector<8x128xf32>
    %89 = arith.mulf %88, %87 : vector<8x128xf32>
    %90 = arith.select %5, %87, %89 : vector<8x128xi1>, vector<8x128xf32>
    %91 = math.tanh %90 : vector<8x128xf32>
    %cst_40 = arith.constant 5.000000e-01 : f32
    %92 = vector.broadcast %cst_40 : f32 to vector<8x128xf32>
    %93 = arith.mulf %92, %91 : vector<8x128xf32>
    %cst_41 = arith.constant 5.000000e-01 : f32
    %94 = vector.broadcast %cst_41 : f32 to vector<8x128xf32>
    %95 = arith.addf %93, %94 : vector<8x128xf32>
    %96 = arith.select %5, %91, %95 : vector<8x128xi1>, vector<8x128xf32>
    %97 = vector.extract_strided_slice %96 {offsets = [0, 0], sizes = [8, 32], strides = [1, 1]} : vector<8x128xf32> to vector<8x32xf32>
    %98 = vector.extract_strided_slice %96 {offsets = [0, 32], sizes = [8, 32], strides = [1, 1]} : vector<8x128xf32> to vector<8x32xf32>
    %99 = vector.extract_strided_slice %96 {offsets = [0, 64], sizes = [8, 32], strides = [1, 1]} : vector<8x128xf32> to vector<8x32xf32>
    %100 = vector.extract_strided_slice %96 {offsets = [0, 96], sizes = [8, 32], strides = [1, 1]} : vector<8x128xf32> to vector<8x32xf32>
    %101 = arith.mulf %98, %33 : vector<8x32xf32>
    %102 = arith.mulf %97, %99 : vector<8x32xf32>
    %103 = arith.addf %101, %102 : vector<8x32xf32>
    %104 = math.tanh %103 : vector<8x32xf32>
    %105 = arith.mulf %100, %104 : vector<8x32xf32>
    %106 = vector.extract_strided_slice %32 {offsets = [16, 0], sizes = [8, 128], strides = [1, 1]} : vector<64x128xf32> to vector<8x128xf32>
    %c0_42 = arith.constant 0 : index
    %c0_43 = arith.constant 0 : index
    %c0_44 = arith.constant 0 : index
    %107 = vector.load %arg3[%c0_42, %c0_43, %c0_44] : memref<6x32x128xf32, #tpu.memory_space<vmem>>, vector<1x32x128xf32>
    %108 = vector.shape_cast %107 : vector<1x32x128xf32> to vector<32x128xf32>
    %cst_45 = arith.constant dense<0.000000e+00> : vector<8x128xf32>
    %109 = tpu.matmul %79, %108, %cst_45 {dimension_numbers = #tpu.dot_dimension_numbers<[1], [0], [0], [1], [0, 0, 1, 1], [], []>} : vector<8x32xf32>, vector<32x128xf32>, vector<8x128xf32> -> vector<8x128xf32>
    %110 = arith.addf %106, %109 : vector<8x128xf32>
    %cst_46 = arith.constant 5.000000e-01 : f32
    %111 = vector.broadcast %cst_46 : f32 to vector<8x128xf32>
    %112 = arith.mulf %111, %110 : vector<8x128xf32>
    %113 = arith.select %5, %110, %112 : vector<8x128xi1>, vector<8x128xf32>
    %114 = math.tanh %113 : vector<8x128xf32>
    %cst_47 = arith.constant 5.000000e-01 : f32
    %115 = vector.broadcast %cst_47 : f32 to vector<8x128xf32>
    %116 = arith.mulf %115, %114 : vector<8x128xf32>
    %cst_48 = arith.constant 5.000000e-01 : f32
    %117 = vector.broadcast %cst_48 : f32 to vector<8x128xf32>
    %118 = arith.addf %116, %117 : vector<8x128xf32>
    %119 = arith.select %5, %114, %118 : vector<8x128xi1>, vector<8x128xf32>
    %120 = vector.extract_strided_slice %119 {offsets = [0, 0], sizes = [8, 32], strides = [1, 1]} : vector<8x128xf32> to vector<8x32xf32>
    %121 = vector.extract_strided_slice %119 {offsets = [0, 32], sizes = [8, 32], strides = [1, 1]} : vector<8x128xf32> to vector<8x32xf32>
    %122 = vector.extract_strided_slice %119 {offsets = [0, 64], sizes = [8, 32], strides = [1, 1]} : vector<8x128xf32> to vector<8x32xf32>
    %123 = vector.extract_strided_slice %119 {offsets = [0, 96], sizes = [8, 32], strides = [1, 1]} : vector<8x128xf32> to vector<8x32xf32>
    %124 = arith.mulf %121, %77 : vector<8x32xf32>
    %125 = arith.mulf %120, %122 : vector<8x32xf32>
    %126 = arith.addf %124, %125 : vector<8x32xf32>
    %127 = math.tanh %126 : vector<8x32xf32>
    %128 = arith.mulf %123, %127 : vector<8x32xf32>
    %c0_49 = arith.constant 0 : index
    %c0_50 = arith.constant 0 : index
    %c0_51 = arith.constant 0 : index
    %129 = vector.load %arg2[%c0_49, %c0_50, %c0_51] : memref<5x32x128xf32, #tpu.memory_space<vmem>>, vector<1x32x128xf32>
    %130 = vector.shape_cast %129 : vector<1x32x128xf32> to vector<32x128xf32>
    %cst_52 = arith.constant dense<0.000000e+00> : vector<8x128xf32>
    %131 = tpu.matmul %79, %130, %cst_52 {dimension_numbers = #tpu.dot_dimension_numbers<[1], [0], [0], [1], [0, 0, 1, 1], [], []>} : vector<8x32xf32>, vector<32x128xf32>, vector<8x128xf32> -> vector<8x128xf32>
    %c1_53 = arith.constant 1 : index
    %c0_54 = arith.constant 0 : index
    %c0_55 = arith.constant 0 : index
    %132 = vector.load %arg3[%c1_53, %c0_54, %c0_55] : memref<6x32x128xf32, #tpu.memory_space<vmem>>, vector<1x32x128xf32>
    %133 = vector.shape_cast %132 : vector<1x32x128xf32> to vector<32x128xf32>
    %cst_56 = arith.constant dense<0.000000e+00> : vector<8x128xf32>
    %134 = tpu.matmul %105, %133, %cst_56 {dimension_numbers = #tpu.dot_dimension_numbers<[1], [0], [0], [1], [0, 0, 1, 1], [], []>} : vector<8x32xf32>, vector<32x128xf32>, vector<8x128xf32> -> vector<8x128xf32>
    %135 = arith.addf %131, %134 : vector<8x128xf32>
    %136 = arith.addf %135, %9 : vector<8x128xf32>
    %cst_57 = arith.constant 5.000000e-01 : f32
    %137 = vector.broadcast %cst_57 : f32 to vector<8x128xf32>
    %138 = arith.mulf %137, %136 : vector<8x128xf32>
    %139 = arith.select %5, %136, %138 : vector<8x128xi1>, vector<8x128xf32>
    %140 = math.tanh %139 : vector<8x128xf32>
    %cst_58 = arith.constant 5.000000e-01 : f32
    %141 = vector.broadcast %cst_58 : f32 to vector<8x128xf32>
    %142 = arith.mulf %141, %140 : vector<8x128xf32>
    %cst_59 = arith.constant 5.000000e-01 : f32
    %143 = vector.broadcast %cst_59 : f32 to vector<8x128xf32>
    %144 = arith.addf %142, %143 : vector<8x128xf32>
    %145 = arith.select %5, %140, %144 : vector<8x128xi1>, vector<8x128xf32>
    %146 = vector.extract_strided_slice %145 {offsets = [0, 0], sizes = [8, 32], strides = [1, 1]} : vector<8x128xf32> to vector<8x32xf32>
    %147 = vector.extract_strided_slice %145 {offsets = [0, 32], sizes = [8, 32], strides = [1, 1]} : vector<8x128xf32> to vector<8x32xf32>
    %148 = vector.extract_strided_slice %145 {offsets = [0, 64], sizes = [8, 32], strides = [1, 1]} : vector<8x128xf32> to vector<8x32xf32>
    %149 = vector.extract_strided_slice %145 {offsets = [0, 96], sizes = [8, 32], strides = [1, 1]} : vector<8x128xf32> to vector<8x32xf32>
    %150 = arith.mulf %147, %103 : vector<8x32xf32>
    %151 = arith.mulf %146, %148 : vector<8x32xf32>
    %152 = arith.addf %150, %151 : vector<8x32xf32>
    %153 = math.tanh %152 : vector<8x32xf32>
    %154 = arith.mulf %149, %153 : vector<8x32xf32>
    %c1_60 = arith.constant 1 : index
    %c0_61 = arith.constant 0 : index
    %c0_62 = arith.constant 0 : index
    %155 = vector.load %arg2[%c1_60, %c0_61, %c0_62] : memref<5x32x128xf32, #tpu.memory_space<vmem>>, vector<1x32x128xf32>
    %156 = vector.shape_cast %155 : vector<1x32x128xf32> to vector<32x128xf32>
    %cst_63 = arith.constant dense<0.000000e+00> : vector<8x128xf32>
    %157 = tpu.matmul %105, %156, %cst_63 {dimension_numbers = #tpu.dot_dimension_numbers<[1], [0], [0], [1], [0, 0, 1, 1], [], []>} : vector<8x32xf32>, vector<32x128xf32>, vector<8x128xf32> -> vector<8x128xf32>
    %c2_64 = arith.constant 2 : index
    %c0_65 = arith.constant 0 : index
    %c0_66 = arith.constant 0 : index
    %158 = vector.load %arg3[%c2_64, %c0_65, %c0_66] : memref<6x32x128xf32, #tpu.memory_space<vmem>>, vector<1x32x128xf32>
    %159 = vector.shape_cast %158 : vector<1x32x128xf32> to vector<32x128xf32>
    %cst_67 = arith.constant dense<0.000000e+00> : vector<8x128xf32>
    %160 = tpu.matmul %33, %159, %cst_67 {dimension_numbers = #tpu.dot_dimension_numbers<[1], [0], [0], [1], [0, 0, 1, 1], [], []>} : vector<8x32xf32>, vector<32x128xf32>, vector<8x128xf32> -> vector<8x128xf32>
    %161 = arith.addf %157, %160 : vector<8x128xf32>
    %162 = arith.addf %161, %13 : vector<8x128xf32>
    %cst_68 = arith.constant 5.000000e-01 : f32
    %163 = vector.broadcast %cst_68 : f32 to vector<8x128xf32>
    %164 = arith.mulf %163, %162 : vector<8x128xf32>
    %165 = arith.select %5, %162, %164 : vector<8x128xi1>, vector<8x128xf32>
    %166 = math.tanh %165 : vector<8x128xf32>
    %cst_69 = arith.constant 5.000000e-01 : f32
    %167 = vector.broadcast %cst_69 : f32 to vector<8x128xf32>
    %168 = arith.mulf %167, %166 : vector<8x128xf32>
    %cst_70 = arith.constant 5.000000e-01 : f32
    %169 = vector.broadcast %cst_70 : f32 to vector<8x128xf32>
    %170 = arith.addf %168, %169 : vector<8x128xf32>
    %171 = arith.select %5, %166, %170 : vector<8x128xi1>, vector<8x128xf32>
    %172 = vector.extract_strided_slice %171 {offsets = [0, 0], sizes = [8, 32], strides = [1, 1]} : vector<8x128xf32> to vector<8x32xf32>
    %173 = vector.extract_strided_slice %171 {offsets = [0, 32], sizes = [8, 32], strides = [1, 1]} : vector<8x128xf32> to vector<8x32xf32>
    %174 = vector.extract_strided_slice %171 {offsets = [0, 64], sizes = [8, 32], strides = [1, 1]} : vector<8x128xf32> to vector<8x32xf32>
    %175 = vector.extract_strided_slice %171 {offsets = [0, 96], sizes = [8, 32], strides = [1, 1]} : vector<8x128xf32> to vector<8x32xf32>
    %176 = arith.mulf %173, %33 : vector<8x32xf32>
    %177 = arith.mulf %172, %174 : vector<8x32xf32>
    %178 = arith.addf %176, %177 : vector<8x32xf32>
    %179 = math.tanh %178 : vector<8x32xf32>
    %180 = arith.mulf %175, %179 : vector<8x32xf32>
    %181 = vector.extract_strided_slice %32 {offsets = [24, 0], sizes = [8, 128], strides = [1, 1]} : vector<64x128xf32> to vector<8x128xf32>
    %c0_71 = arith.constant 0 : index
    %c0_72 = arith.constant 0 : index
    %c0_73 = arith.constant 0 : index
    %182 = vector.load %arg3[%c0_71, %c0_72, %c0_73] : memref<6x32x128xf32, #tpu.memory_space<vmem>>, vector<1x32x128xf32>
    %183 = vector.shape_cast %182 : vector<1x32x128xf32> to vector<32x128xf32>
    %cst_74 = arith.constant dense<0.000000e+00> : vector<8x128xf32>
    %184 = tpu.matmul %128, %183, %cst_74 {dimension_numbers = #tpu.dot_dimension_numbers<[1], [0], [0], [1], [0, 0, 1, 1], [], []>} : vector<8x32xf32>, vector<32x128xf32>, vector<8x128xf32> -> vector<8x128xf32>
    %185 = arith.addf %181, %184 : vector<8x128xf32>
    %cst_75 = arith.constant 5.000000e-01 : f32
    %186 = vector.broadcast %cst_75 : f32 to vector<8x128xf32>
    %187 = arith.mulf %186, %185 : vector<8x128xf32>
    %188 = arith.select %5, %185, %187 : vector<8x128xi1>, vector<8x128xf32>
    %189 = math.tanh %188 : vector<8x128xf32>
    %cst_76 = arith.constant 5.000000e-01 : f32
    %190 = vector.broadcast %cst_76 : f32 to vector<8x128xf32>
    %191 = arith.mulf %190, %189 : vector<8x128xf32>
    %cst_77 = arith.constant 5.000000e-01 : f32
    %192 = vector.broadcast %cst_77 : f32 to vector<8x128xf32>
    %193 = arith.addf %191, %192 : vector<8x128xf32>
    %194 = arith.select %5, %189, %193 : vector<8x128xi1>, vector<8x128xf32>
    %195 = vector.extract_strided_slice %194 {offsets = [0, 0], sizes = [8, 32], strides = [1, 1]} : vector<8x128xf32> to vector<8x32xf32>
    %196 = vector.extract_strided_slice %194 {offsets = [0, 32], sizes = [8, 32], strides = [1, 1]} : vector<8x128xf32> to vector<8x32xf32>
    %197 = vector.extract_strided_slice %194 {offsets = [0, 64], sizes = [8, 32], strides = [1, 1]} : vector<8x128xf32> to vector<8x32xf32>
    %198 = vector.extract_strided_slice %194 {offsets = [0, 96], sizes = [8, 32], strides = [1, 1]} : vector<8x128xf32> to vector<8x32xf32>
    %199 = arith.mulf %196, %126 : vector<8x32xf32>
    %200 = arith.mulf %195, %197 : vector<8x32xf32>
    %201 = arith.addf %199, %200 : vector<8x32xf32>
    %202 = math.tanh %201 : vector<8x32xf32>
    %203 = arith.mulf %198, %202 : vector<8x32xf32>
    %c0_78 = arith.constant 0 : index
    %c0_79 = arith.constant 0 : index
    %c0_80 = arith.constant 0 : index
    %204 = vector.load %arg2[%c0_78, %c0_79, %c0_80] : memref<5x32x128xf32, #tpu.memory_space<vmem>>, vector<1x32x128xf32>
    %205 = vector.shape_cast %204 : vector<1x32x128xf32> to vector<32x128xf32>
    %cst_81 = arith.constant dense<0.000000e+00> : vector<8x128xf32>
    %206 = tpu.matmul %128, %205, %cst_81 {dimension_numbers = #tpu.dot_dimension_numbers<[1], [0], [0], [1], [0, 0, 1, 1], [], []>} : vector<8x32xf32>, vector<32x128xf32>, vector<8x128xf32> -> vector<8x128xf32>
    %c1_82 = arith.constant 1 : index
    %c0_83 = arith.constant 0 : index
    %c0_84 = arith.constant 0 : index
    %207 = vector.load %arg3[%c1_82, %c0_83, %c0_84] : memref<6x32x128xf32, #tpu.memory_space<vmem>>, vector<1x32x128xf32>
    %208 = vector.shape_cast %207 : vector<1x32x128xf32> to vector<32x128xf32>
    %cst_85 = arith.constant dense<0.000000e+00> : vector<8x128xf32>
    %209 = tpu.matmul %154, %208, %cst_85 {dimension_numbers = #tpu.dot_dimension_numbers<[1], [0], [0], [1], [0, 0, 1, 1], [], []>} : vector<8x32xf32>, vector<32x128xf32>, vector<8x128xf32> -> vector<8x128xf32>
    %210 = arith.addf %206, %209 : vector<8x128xf32>
    %211 = arith.addf %210, %9 : vector<8x128xf32>
    %cst_86 = arith.constant 5.000000e-01 : f32
    %212 = vector.broadcast %cst_86 : f32 to vector<8x128xf32>
    %213 = arith.mulf %212, %211 : vector<8x128xf32>
    %214 = arith.select %5, %211, %213 : vector<8x128xi1>, vector<8x128xf32>
    %215 = math.tanh %214 : vector<8x128xf32>
    %cst_87 = arith.constant 5.000000e-01 : f32
    %216 = vector.broadcast %cst_87 : f32 to vector<8x128xf32>
    %217 = arith.mulf %216, %215 : vector<8x128xf32>
    %cst_88 = arith.constant 5.000000e-01 : f32
    %218 = vector.broadcast %cst_88 : f32 to vector<8x128xf32>
    %219 = arith.addf %217, %218 : vector<8x128xf32>
    %220 = arith.select %5, %215, %219 : vector<8x128xi1>, vector<8x128xf32>
    %221 = vector.extract_strided_slice %220 {offsets = [0, 0], sizes = [8, 32], strides = [1, 1]} : vector<8x128xf32> to vector<8x32xf32>
    %222 = vector.extract_strided_slice %220 {offsets = [0, 32], sizes = [8, 32], strides = [1, 1]} : vector<8x128xf32> to vector<8x32xf32>
    %223 = vector.extract_strided_slice %220 {offsets = [0, 64], sizes = [8, 32], strides = [1, 1]} : vector<8x128xf32> to vector<8x32xf32>
    %224 = vector.extract_strided_slice %220 {offsets = [0, 96], sizes = [8, 32], strides = [1, 1]} : vector<8x128xf32> to vector<8x32xf32>
    %225 = arith.mulf %222, %152 : vector<8x32xf32>
    %226 = arith.mulf %221, %223 : vector<8x32xf32>
    %227 = arith.addf %225, %226 : vector<8x32xf32>
    %228 = math.tanh %227 : vector<8x32xf32>
    %229 = arith.mulf %224, %228 : vector<8x32xf32>
    %c1_89 = arith.constant 1 : index
    %c0_90 = arith.constant 0 : index
    %c0_91 = arith.constant 0 : index
    %230 = vector.load %arg2[%c1_89, %c0_90, %c0_91] : memref<5x32x128xf32, #tpu.memory_space<vmem>>, vector<1x32x128xf32>
    %231 = vector.shape_cast %230 : vector<1x32x128xf32> to vector<32x128xf32>
    %cst_92 = arith.constant dense<0.000000e+00> : vector<8x128xf32>
    %232 = tpu.matmul %154, %231, %cst_92 {dimension_numbers = #tpu.dot_dimension_numbers<[1], [0], [0], [1], [0, 0, 1, 1], [], []>} : vector<8x32xf32>, vector<32x128xf32>, vector<8x128xf32> -> vector<8x128xf32>
    %c2_93 = arith.constant 2 : index
    %c0_94 = arith.constant 0 : index
    %c0_95 = arith.constant 0 : index
    %233 = vector.load %arg3[%c2_93, %c0_94, %c0_95] : memref<6x32x128xf32, #tpu.memory_space<vmem>>, vector<1x32x128xf32>
    %234 = vector.shape_cast %233 : vector<1x32x128xf32> to vector<32x128xf32>
    %cst_96 = arith.constant dense<0.000000e+00> : vector<8x128xf32>
    %235 = tpu.matmul %180, %234, %cst_96 {dimension_numbers = #tpu.dot_dimension_numbers<[1], [0], [0], [1], [0, 0, 1, 1], [], []>} : vector<8x32xf32>, vector<32x128xf32>, vector<8x128xf32> -> vector<8x128xf32>
    %236 = arith.addf %232, %235 : vector<8x128xf32>
    %237 = arith.addf %236, %13 : vector<8x128xf32>
    %cst_97 = arith.constant 5.000000e-01 : f32
    %238 = vector.broadcast %cst_97 : f32 to vector<8x128xf32>
    %239 = arith.mulf %238, %237 : vector<8x128xf32>
    %240 = arith.select %5, %237, %239 : vector<8x128xi1>, vector<8x128xf32>
    %241 = math.tanh %240 : vector<8x128xf32>
    %cst_98 = arith.constant 5.000000e-01 : f32
    %242 = vector.broadcast %cst_98 : f32 to vector<8x128xf32>
    %243 = arith.mulf %242, %241 : vector<8x128xf32>
    %cst_99 = arith.constant 5.000000e-01 : f32
    %244 = vector.broadcast %cst_99 : f32 to vector<8x128xf32>
    %245 = arith.addf %243, %244 : vector<8x128xf32>
    %246 = arith.select %5, %241, %245 : vector<8x128xi1>, vector<8x128xf32>
    %247 = vector.extract_strided_slice %246 {offsets = [0, 0], sizes = [8, 32], strides = [1, 1]} : vector<8x128xf32> to vector<8x32xf32>
    %248 = vector.extract_strided_slice %246 {offsets = [0, 32], sizes = [8, 32], strides = [1, 1]} : vector<8x128xf32> to vector<8x32xf32>
    %249 = vector.extract_strided_slice %246 {offsets = [0, 64], sizes = [8, 32], strides = [1, 1]} : vector<8x128xf32> to vector<8x32xf32>
    %250 = vector.extract_strided_slice %246 {offsets = [0, 96], sizes = [8, 32], strides = [1, 1]} : vector<8x128xf32> to vector<8x32xf32>
    %251 = arith.mulf %248, %178 : vector<8x32xf32>
    %252 = arith.mulf %247, %249 : vector<8x32xf32>
    %253 = arith.addf %251, %252 : vector<8x32xf32>
    %254 = math.tanh %253 : vector<8x32xf32>
    %255 = arith.mulf %250, %254 : vector<8x32xf32>
    %c2_100 = arith.constant 2 : index
    %c0_101 = arith.constant 0 : index
    %c0_102 = arith.constant 0 : index
    %256 = vector.load %arg2[%c2_100, %c0_101, %c0_102] : memref<5x32x128xf32, #tpu.memory_space<vmem>>, vector<1x32x128xf32>
    %257 = vector.shape_cast %256 : vector<1x32x128xf32> to vector<32x128xf32>
    %cst_103 = arith.constant dense<0.000000e+00> : vector<8x128xf32>
    %258 = tpu.matmul %180, %257, %cst_103 {dimension_numbers = #tpu.dot_dimension_numbers<[1], [0], [0], [1], [0, 0, 1, 1], [], []>} : vector<8x32xf32>, vector<32x128xf32>, vector<8x128xf32> -> vector<8x128xf32>
    %c3_104 = arith.constant 3 : index
    %c0_105 = arith.constant 0 : index
    %c0_106 = arith.constant 0 : index
    %259 = vector.load %arg3[%c3_104, %c0_105, %c0_106] : memref<6x32x128xf32, #tpu.memory_space<vmem>>, vector<1x32x128xf32>
    %260 = vector.shape_cast %259 : vector<1x32x128xf32> to vector<32x128xf32>
    %cst_107 = arith.constant dense<0.000000e+00> : vector<8x128xf32>
    %261 = tpu.matmul %33, %260, %cst_107 {dimension_numbers = #tpu.dot_dimension_numbers<[1], [0], [0], [1], [0, 0, 1, 1], [], []>} : vector<8x32xf32>, vector<32x128xf32>, vector<8x128xf32> -> vector<8x128xf32>
    %262 = arith.addf %258, %261 : vector<8x128xf32>
    %263 = arith.addf %262, %17 : vector<8x128xf32>
    %cst_108 = arith.constant 5.000000e-01 : f32
    %264 = vector.broadcast %cst_108 : f32 to vector<8x128xf32>
    %265 = arith.mulf %264, %263 : vector<8x128xf32>
    %266 = arith.select %5, %263, %265 : vector<8x128xi1>, vector<8x128xf32>
    %267 = math.tanh %266 : vector<8x128xf32>
    %cst_109 = arith.constant 5.000000e-01 : f32
    %268 = vector.broadcast %cst_109 : f32 to vector<8x128xf32>
    %269 = arith.mulf %268, %267 : vector<8x128xf32>
    %cst_110 = arith.constant 5.000000e-01 : f32
    %270 = vector.broadcast %cst_110 : f32 to vector<8x128xf32>
    %271 = arith.addf %269, %270 : vector<8x128xf32>
    %272 = arith.select %5, %267, %271 : vector<8x128xi1>, vector<8x128xf32>
    %273 = vector.extract_strided_slice %272 {offsets = [0, 0], sizes = [8, 32], strides = [1, 1]} : vector<8x128xf32> to vector<8x32xf32>
    %274 = vector.extract_strided_slice %272 {offsets = [0, 32], sizes = [8, 32], strides = [1, 1]} : vector<8x128xf32> to vector<8x32xf32>
    %275 = vector.extract_strided_slice %272 {offsets = [0, 64], sizes = [8, 32], strides = [1, 1]} : vector<8x128xf32> to vector<8x32xf32>
    %276 = vector.extract_strided_slice %272 {offsets = [0, 96], sizes = [8, 32], strides = [1, 1]} : vector<8x128xf32> to vector<8x32xf32>
    %277 = arith.mulf %274, %33 : vector<8x32xf32>
    %278 = arith.mulf %273, %275 : vector<8x32xf32>
    %279 = arith.addf %277, %278 : vector<8x32xf32>
    %280 = math.tanh %279 : vector<8x32xf32>
    %281 = arith.mulf %276, %280 : vector<8x32xf32>
    %282 = vector.extract_strided_slice %32 {offsets = [32, 0], sizes = [8, 128], strides = [1, 1]} : vector<64x128xf32> to vector<8x128xf32>
    %c0_111 = arith.constant 0 : index
    %c0_112 = arith.constant 0 : index
    %c0_113 = arith.constant 0 : index
    %283 = vector.load %arg3[%c0_111, %c0_112, %c0_113] : memref<6x32x128xf32, #tpu.memory_space<vmem>>, vector<1x32x128xf32>
    %284 = vector.shape_cast %283 : vector<1x32x128xf32> to vector<32x128xf32>
    %cst_114 = arith.constant dense<0.000000e+00> : vector<8x128xf32>
    %285 = tpu.matmul %203, %284, %cst_114 {dimension_numbers = #tpu.dot_dimension_numbers<[1], [0], [0], [1], [0, 0, 1, 1], [], []>} : vector<8x32xf32>, vector<32x128xf32>, vector<8x128xf32> -> vector<8x128xf32>
    %286 = arith.addf %282, %285 : vector<8x128xf32>
    %cst_115 = arith.constant 5.000000e-01 : f32
    %287 = vector.broadcast %cst_115 : f32 to vector<8x128xf32>
    %288 = arith.mulf %287, %286 : vector<8x128xf32>
    %289 = arith.select %5, %286, %288 : vector<8x128xi1>, vector<8x128xf32>
    %290 = math.tanh %289 : vector<8x128xf32>
    %cst_116 = arith.constant 5.000000e-01 : f32
    %291 = vector.broadcast %cst_116 : f32 to vector<8x128xf32>
    %292 = arith.mulf %291, %290 : vector<8x128xf32>
    %cst_117 = arith.constant 5.000000e-01 : f32
    %293 = vector.broadcast %cst_117 : f32 to vector<8x128xf32>
    %294 = arith.addf %292, %293 : vector<8x128xf32>
    %295 = arith.select %5, %290, %294 : vector<8x128xi1>, vector<8x128xf32>
    %296 = vector.extract_strided_slice %295 {offsets = [0, 0], sizes = [8, 32], strides = [1, 1]} : vector<8x128xf32> to vector<8x32xf32>
    %297 = vector.extract_strided_slice %295 {offsets = [0, 32], sizes = [8, 32], strides = [1, 1]} : vector<8x128xf32> to vector<8x32xf32>
    %298 = vector.extract_strided_slice %295 {offsets = [0, 64], sizes = [8, 32], strides = [1, 1]} : vector<8x128xf32> to vector<8x32xf32>
    %299 = vector.extract_strided_slice %295 {offsets = [0, 96], sizes = [8, 32], strides = [1, 1]} : vector<8x128xf32> to vector<8x32xf32>
    %300 = arith.mulf %297, %201 : vector<8x32xf32>
    %301 = arith.mulf %296, %298 : vector<8x32xf32>
    %302 = arith.addf %300, %301 : vector<8x32xf32>
    %303 = math.tanh %302 : vector<8x32xf32>
    %304 = arith.mulf %299, %303 : vector<8x32xf32>
    %c0_118 = arith.constant 0 : index
    %c0_119 = arith.constant 0 : index
    %c0_120 = arith.constant 0 : index
    %305 = vector.load %arg2[%c0_118, %c0_119, %c0_120] : memref<5x32x128xf32, #tpu.memory_space<vmem>>, vector<1x32x128xf32>
    %306 = vector.shape_cast %305 : vector<1x32x128xf32> to vector<32x128xf32>
    %cst_121 = arith.constant dense<0.000000e+00> : vector<8x128xf32>
    %307 = tpu.matmul %203, %306, %cst_121 {dimension_numbers = #tpu.dot_dimension_numbers<[1], [0], [0], [1], [0, 0, 1, 1], [], []>} : vector<8x32xf32>, vector<32x128xf32>, vector<8x128xf32> -> vector<8x128xf32>
    %c1_122 = arith.constant 1 : index
    %c0_123 = arith.constant 0 : index
    %c0_124 = arith.constant 0 : index
    %308 = vector.load %arg3[%c1_122, %c0_123, %c0_124] : memref<6x32x128xf32, #tpu.memory_space<vmem>>, vector<1x32x128xf32>
    %309 = vector.shape_cast %308 : vector<1x32x128xf32> to vector<32x128xf32>
    %cst_125 = arith.constant dense<0.000000e+00> : vector<8x128xf32>
    %310 = tpu.matmul %229, %309, %cst_125 {dimension_numbers = #tpu.dot_dimension_numbers<[1], [0], [0], [1], [0, 0, 1, 1], [], []>} : vector<8x32xf32>, vector<32x128xf32>, vector<8x128xf32> -> vector<8x128xf32>
    %311 = arith.addf %307, %310 : vector<8x128xf32>
    %312 = arith.addf %311, %9 : vector<8x128xf32>
    %cst_126 = arith.constant 5.000000e-01 : f32
    %313 = vector.broadcast %cst_126 : f32 to vector<8x128xf32>
    %314 = arith.mulf %313, %312 : vector<8x128xf32>
    %315 = arith.select %5, %312, %314 : vector<8x128xi1>, vector<8x128xf32>
    %316 = math.tanh %315 : vector<8x128xf32>
    %cst_127 = arith.constant 5.000000e-01 : f32
    %317 = vector.broadcast %cst_127 : f32 to vector<8x128xf32>
    %318 = arith.mulf %317, %316 : vector<8x128xf32>
    %cst_128 = arith.constant 5.000000e-01 : f32
    %319 = vector.broadcast %cst_128 : f32 to vector<8x128xf32>
    %320 = arith.addf %318, %319 : vector<8x128xf32>
    %321 = arith.select %5, %316, %320 : vector<8x128xi1>, vector<8x128xf32>
    %322 = vector.extract_strided_slice %321 {offsets = [0, 0], sizes = [8, 32], strides = [1, 1]} : vector<8x128xf32> to vector<8x32xf32>
    %323 = vector.extract_strided_slice %321 {offsets = [0, 32], sizes = [8, 32], strides = [1, 1]} : vector<8x128xf32> to vector<8x32xf32>
    %324 = vector.extract_strided_slice %321 {offsets = [0, 64], sizes = [8, 32], strides = [1, 1]} : vector<8x128xf32> to vector<8x32xf32>
    %325 = vector.extract_strided_slice %321 {offsets = [0, 96], sizes = [8, 32], strides = [1, 1]} : vector<8x128xf32> to vector<8x32xf32>
    %326 = arith.mulf %323, %227 : vector<8x32xf32>
    %327 = arith.mulf %322, %324 : vector<8x32xf32>
    %328 = arith.addf %326, %327 : vector<8x32xf32>
    %329 = math.tanh %328 : vector<8x32xf32>
    %330 = arith.mulf %325, %329 : vector<8x32xf32>
    %c1_129 = arith.constant 1 : index
    %c0_130 = arith.constant 0 : index
    %c0_131 = arith.constant 0 : index
    %331 = vector.load %arg2[%c1_129, %c0_130, %c0_131] : memref<5x32x128xf32, #tpu.memory_space<vmem>>, vector<1x32x128xf32>
    %332 = vector.shape_cast %331 : vector<1x32x128xf32> to vector<32x128xf32>
    %cst_132 = arith.constant dense<0.000000e+00> : vector<8x128xf32>
    %333 = tpu.matmul %229, %332, %cst_132 {dimension_numbers = #tpu.dot_dimension_numbers<[1], [0], [0], [1], [0, 0, 1, 1], [], []>} : vector<8x32xf32>, vector<32x128xf32>, vector<8x128xf32> -> vector<8x128xf32>
    %c2_133 = arith.constant 2 : index
    %c0_134 = arith.constant 0 : index
    %c0_135 = arith.constant 0 : index
    %334 = vector.load %arg3[%c2_133, %c0_134, %c0_135] : memref<6x32x128xf32, #tpu.memory_space<vmem>>, vector<1x32x128xf32>
    %335 = vector.shape_cast %334 : vector<1x32x128xf32> to vector<32x128xf32>
    %cst_136 = arith.constant dense<0.000000e+00> : vector<8x128xf32>
    %336 = tpu.matmul %255, %335, %cst_136 {dimension_numbers = #tpu.dot_dimension_numbers<[1], [0], [0], [1], [0, 0, 1, 1], [], []>} : vector<8x32xf32>, vector<32x128xf32>, vector<8x128xf32> -> vector<8x128xf32>
    %337 = arith.addf %333, %336 : vector<8x128xf32>
    %338 = arith.addf %337, %13 : vector<8x128xf32>
    %cst_137 = arith.constant 5.000000e-01 : f32
    %339 = vector.broadcast %cst_137 : f32 to vector<8x128xf32>
    %340 = arith.mulf %339, %338 : vector<8x128xf32>
    %341 = arith.select %5, %338, %340 : vector<8x128xi1>, vector<8x128xf32>
    %342 = math.tanh %341 : vector<8x128xf32>
    %cst_138 = arith.constant 5.000000e-01 : f32
    %343 = vector.broadcast %cst_138 : f32 to vector<8x128xf32>
    %344 = arith.mulf %343, %342 : vector<8x128xf32>
    %cst_139 = arith.constant 5.000000e-01 : f32
    %345 = vector.broadcast %cst_139 : f32 to vector<8x128xf32>
    %346 = arith.addf %344, %345 : vector<8x128xf32>
    %347 = arith.select %5, %342, %346 : vector<8x128xi1>, vector<8x128xf32>
    %348 = vector.extract_strided_slice %347 {offsets = [0, 0], sizes = [8, 32], strides = [1, 1]} : vector<8x128xf32> to vector<8x32xf32>
    %349 = vector.extract_strided_slice %347 {offsets = [0, 32], sizes = [8, 32], strides = [1, 1]} : vector<8x128xf32> to vector<8x32xf32>
    %350 = vector.extract_strided_slice %347 {offsets = [0, 64], sizes = [8, 32], strides = [1, 1]} : vector<8x128xf32> to vector<8x32xf32>
    %351 = vector.extract_strided_slice %347 {offsets = [0, 96], sizes = [8, 32], strides = [1, 1]} : vector<8x128xf32> to vector<8x32xf32>
    %352 = arith.mulf %349, %253 : vector<8x32xf32>
    %353 = arith.mulf %348, %350 : vector<8x32xf32>
    %354 = arith.addf %352, %353 : vector<8x32xf32>
    %355 = math.tanh %354 : vector<8x32xf32>
    %356 = arith.mulf %351, %355 : vector<8x32xf32>
    %c2_140 = arith.constant 2 : index
    %c0_141 = arith.constant 0 : index
    %c0_142 = arith.constant 0 : index
    %357 = vector.load %arg2[%c2_140, %c0_141, %c0_142] : memref<5x32x128xf32, #tpu.memory_space<vmem>>, vector<1x32x128xf32>
    %358 = vector.shape_cast %357 : vector<1x32x128xf32> to vector<32x128xf32>
    %cst_143 = arith.constant dense<0.000000e+00> : vector<8x128xf32>
    %359 = tpu.matmul %255, %358, %cst_143 {dimension_numbers = #tpu.dot_dimension_numbers<[1], [0], [0], [1], [0, 0, 1, 1], [], []>} : vector<8x32xf32>, vector<32x128xf32>, vector<8x128xf32> -> vector<8x128xf32>
    %c3_144 = arith.constant 3 : index
    %c0_145 = arith.constant 0 : index
    %c0_146 = arith.constant 0 : index
    %360 = vector.load %arg3[%c3_144, %c0_145, %c0_146] : memref<6x32x128xf32, #tpu.memory_space<vmem>>, vector<1x32x128xf32>
    %361 = vector.shape_cast %360 : vector<1x32x128xf32> to vector<32x128xf32>
    %cst_147 = arith.constant dense<0.000000e+00> : vector<8x128xf32>
    %362 = tpu.matmul %281, %361, %cst_147 {dimension_numbers = #tpu.dot_dimension_numbers<[1], [0], [0], [1], [0, 0, 1, 1], [], []>} : vector<8x32xf32>, vector<32x128xf32>, vector<8x128xf32> -> vector<8x128xf32>
    %363 = arith.addf %359, %362 : vector<8x128xf32>
    %364 = arith.addf %363, %17 : vector<8x128xf32>
    %cst_148 = arith.constant 5.000000e-01 : f32
    %365 = vector.broadcast %cst_148 : f32 to vector<8x128xf32>
    %366 = arith.mulf %365, %364 : vector<8x128xf32>
    %367 = arith.select %5, %364, %366 : vector<8x128xi1>, vector<8x128xf32>
    %368 = math.tanh %367 : vector<8x128xf32>
    %cst_149 = arith.constant 5.000000e-01 : f32
    %369 = vector.broadcast %cst_149 : f32 to vector<8x128xf32>
    %370 = arith.mulf %369, %368 : vector<8x128xf32>
    %cst_150 = arith.constant 5.000000e-01 : f32
    %371 = vector.broadcast %cst_150 : f32 to vector<8x128xf32>
    %372 = arith.addf %370, %371 : vector<8x128xf32>
    %373 = arith.select %5, %368, %372 : vector<8x128xi1>, vector<8x128xf32>
    %374 = vector.extract_strided_slice %373 {offsets = [0, 0], sizes = [8, 32], strides = [1, 1]} : vector<8x128xf32> to vector<8x32xf32>
    %375 = vector.extract_strided_slice %373 {offsets = [0, 32], sizes = [8, 32], strides = [1, 1]} : vector<8x128xf32> to vector<8x32xf32>
    %376 = vector.extract_strided_slice %373 {offsets = [0, 64], sizes = [8, 32], strides = [1, 1]} : vector<8x128xf32> to vector<8x32xf32>
    %377 = vector.extract_strided_slice %373 {offsets = [0, 96], sizes = [8, 32], strides = [1, 1]} : vector<8x128xf32> to vector<8x32xf32>
    %378 = arith.mulf %375, %279 : vector<8x32xf32>
    %379 = arith.mulf %374, %376 : vector<8x32xf32>
    %380 = arith.addf %378, %379 : vector<8x32xf32>
    %381 = math.tanh %380 : vector<8x32xf32>
    %382 = arith.mulf %377, %381 : vector<8x32xf32>
    %c3_151 = arith.constant 3 : index
    %c0_152 = arith.constant 0 : index
    %c0_153 = arith.constant 0 : index
    %383 = vector.load %arg2[%c3_151, %c0_152, %c0_153] : memref<5x32x128xf32, #tpu.memory_space<vmem>>, vector<1x32x128xf32>
    %384 = vector.shape_cast %383 : vector<1x32x128xf32> to vector<32x128xf32>
    %cst_154 = arith.constant dense<0.000000e+00> : vector<8x128xf32>
    %385 = tpu.matmul %281, %384, %cst_154 {dimension_numbers = #tpu.dot_dimension_numbers<[1], [0], [0], [1], [0, 0, 1, 1], [], []>} : vector<8x32xf32>, vector<32x128xf32>, vector<8x128xf32> -> vector<8x128xf32>
    %c4_155 = arith.constant 4 : index
    %c0_156 = arith.constant 0 : index
    %c0_157 = arith.constant 0 : index
    %386 = vector.load %arg3[%c4_155, %c0_156, %c0_157] : memref<6x32x128xf32, #tpu.memory_space<vmem>>, vector<1x32x128xf32>
    %387 = vector.shape_cast %386 : vector<1x32x128xf32> to vector<32x128xf32>
    %cst_158 = arith.constant dense<0.000000e+00> : vector<8x128xf32>
    %388 = tpu.matmul %33, %387, %cst_158 {dimension_numbers = #tpu.dot_dimension_numbers<[1], [0], [0], [1], [0, 0, 1, 1], [], []>} : vector<8x32xf32>, vector<32x128xf32>, vector<8x128xf32> -> vector<8x128xf32>
    %389 = arith.addf %385, %388 : vector<8x128xf32>
    %390 = arith.addf %389, %21 : vector<8x128xf32>
    %cst_159 = arith.constant 5.000000e-01 : f32
    %391 = vector.broadcast %cst_159 : f32 to vector<8x128xf32>
    %392 = arith.mulf %391, %390 : vector<8x128xf32>
    %393 = arith.select %5, %390, %392 : vector<8x128xi1>, vector<8x128xf32>
    %394 = math.tanh %393 : vector<8x128xf32>
    %cst_160 = arith.constant 5.000000e-01 : f32
    %395 = vector.broadcast %cst_160 : f32 to vector<8x128xf32>
    %396 = arith.mulf %395, %394 : vector<8x128xf32>
    %cst_161 = arith.constant 5.000000e-01 : f32
    %397 = vector.broadcast %cst_161 : f32 to vector<8x128xf32>
    %398 = arith.addf %396, %397 : vector<8x128xf32>
    %399 = arith.select %5, %394, %398 : vector<8x128xi1>, vector<8x128xf32>
    %400 = vector.extract_strided_slice %399 {offsets = [0, 0], sizes = [8, 32], strides = [1, 1]} : vector<8x128xf32> to vector<8x32xf32>
    %401 = vector.extract_strided_slice %399 {offsets = [0, 32], sizes = [8, 32], strides = [1, 1]} : vector<8x128xf32> to vector<8x32xf32>
    %402 = vector.extract_strided_slice %399 {offsets = [0, 64], sizes = [8, 32], strides = [1, 1]} : vector<8x128xf32> to vector<8x32xf32>
    %403 = vector.extract_strided_slice %399 {offsets = [0, 96], sizes = [8, 32], strides = [1, 1]} : vector<8x128xf32> to vector<8x32xf32>
    %404 = arith.mulf %401, %33 : vector<8x32xf32>
    %405 = arith.mulf %400, %402 : vector<8x32xf32>
    %406 = arith.addf %404, %405 : vector<8x32xf32>
    %407 = math.tanh %406 : vector<8x32xf32>
    %408 = arith.mulf %403, %407 : vector<8x32xf32>
    %409 = vector.extract_strided_slice %32 {offsets = [40, 0], sizes = [8, 128], strides = [1, 1]} : vector<64x128xf32> to vector<8x128xf32>
    %c0_162 = arith.constant 0 : index
    %c0_163 = arith.constant 0 : index
    %c0_164 = arith.constant 0 : index
    %410 = vector.load %arg3[%c0_162, %c0_163, %c0_164] : memref<6x32x128xf32, #tpu.memory_space<vmem>>, vector<1x32x128xf32>
    %411 = vector.shape_cast %410 : vector<1x32x128xf32> to vector<32x128xf32>
    %cst_165 = arith.constant dense<0.000000e+00> : vector<8x128xf32>
    %412 = tpu.matmul %304, %411, %cst_165 {dimension_numbers = #tpu.dot_dimension_numbers<[1], [0], [0], [1], [0, 0, 1, 1], [], []>} : vector<8x32xf32>, vector<32x128xf32>, vector<8x128xf32> -> vector<8x128xf32>
    %413 = arith.addf %409, %412 : vector<8x128xf32>
    %cst_166 = arith.constant 5.000000e-01 : f32
    %414 = vector.broadcast %cst_166 : f32 to vector<8x128xf32>
    %415 = arith.mulf %414, %413 : vector<8x128xf32>
    %416 = arith.select %5, %413, %415 : vector<8x128xi1>, vector<8x128xf32>
    %417 = math.tanh %416 : vector<8x128xf32>
    %cst_167 = arith.constant 5.000000e-01 : f32
    %418 = vector.broadcast %cst_167 : f32 to vector<8x128xf32>
    %419 = arith.mulf %418, %417 : vector<8x128xf32>
    %cst_168 = arith.constant 5.000000e-01 : f32
    %420 = vector.broadcast %cst_168 : f32 to vector<8x128xf32>
    %421 = arith.addf %419, %420 : vector<8x128xf32>
    %422 = arith.select %5, %417, %421 : vector<8x128xi1>, vector<8x128xf32>
    %423 = vector.extract_strided_slice %422 {offsets = [0, 0], sizes = [8, 32], strides = [1, 1]} : vector<8x128xf32> to vector<8x32xf32>
    %424 = vector.extract_strided_slice %422 {offsets = [0, 32], sizes = [8, 32], strides = [1, 1]} : vector<8x128xf32> to vector<8x32xf32>
    %425 = vector.extract_strided_slice %422 {offsets = [0, 64], sizes = [8, 32], strides = [1, 1]} : vector<8x128xf32> to vector<8x32xf32>
    %426 = vector.extract_strided_slice %422 {offsets = [0, 96], sizes = [8, 32], strides = [1, 1]} : vector<8x128xf32> to vector<8x32xf32>
    %427 = arith.mulf %424, %302 : vector<8x32xf32>
    %428 = arith.mulf %423, %425 : vector<8x32xf32>
    %429 = arith.addf %427, %428 : vector<8x32xf32>
    %430 = math.tanh %429 : vector<8x32xf32>
    %431 = arith.mulf %426, %430 : vector<8x32xf32>
    %c0_169 = arith.constant 0 : index
    %c0_170 = arith.constant 0 : index
    %c0_171 = arith.constant 0 : index
    %432 = vector.load %arg2[%c0_169, %c0_170, %c0_171] : memref<5x32x128xf32, #tpu.memory_space<vmem>>, vector<1x32x128xf32>
    %433 = vector.shape_cast %432 : vector<1x32x128xf32> to vector<32x128xf32>
    %cst_172 = arith.constant dense<0.000000e+00> : vector<8x128xf32>
    %434 = tpu.matmul %304, %433, %cst_172 {dimension_numbers = #tpu.dot_dimension_numbers<[1], [0], [0], [1], [0, 0, 1, 1], [], []>} : vector<8x32xf32>, vector<32x128xf32>, vector<8x128xf32> -> vector<8x128xf32>
    %c1_173 = arith.constant 1 : index
    %c0_174 = arith.constant 0 : index
    %c0_175 = arith.constant 0 : index
    %435 = vector.load %arg3[%c1_173, %c0_174, %c0_175] : memref<6x32x128xf32, #tpu.memory_space<vmem>>, vector<1x32x128xf32>
    %436 = vector.shape_cast %435 : vector<1x32x128xf32> to vector<32x128xf32>
    %cst_176 = arith.constant dense<0.000000e+00> : vector<8x128xf32>
    %437 = tpu.matmul %330, %436, %cst_176 {dimension_numbers = #tpu.dot_dimension_numbers<[1], [0], [0], [1], [0, 0, 1, 1], [], []>} : vector<8x32xf32>, vector<32x128xf32>, vector<8x128xf32> -> vector<8x128xf32>
    %438 = arith.addf %434, %437 : vector<8x128xf32>
    %439 = arith.addf %438, %9 : vector<8x128xf32>
    %cst_177 = arith.constant 5.000000e-01 : f32
    %440 = vector.broadcast %cst_177 : f32 to vector<8x128xf32>
    %441 = arith.mulf %440, %439 : vector<8x128xf32>
    %442 = arith.select %5, %439, %441 : vector<8x128xi1>, vector<8x128xf32>
    %443 = math.tanh %442 : vector<8x128xf32>
    %cst_178 = arith.constant 5.000000e-01 : f32
    %444 = vector.broadcast %cst_178 : f32 to vector<8x128xf32>
    %445 = arith.mulf %444, %443 : vector<8x128xf32>
    %cst_179 = arith.constant 5.000000e-01 : f32
    %446 = vector.broadcast %cst_179 : f32 to vector<8x128xf32>
    %447 = arith.addf %445, %446 : vector<8x128xf32>
    %448 = arith.select %5, %443, %447 : vector<8x128xi1>, vector<8x128xf32>
    %449 = vector.extract_strided_slice %448 {offsets = [0, 0], sizes = [8, 32], strides = [1, 1]} : vector<8x128xf32> to vector<8x32xf32>
    %450 = vector.extract_strided_slice %448 {offsets = [0, 32], sizes = [8, 32], strides = [1, 1]} : vector<8x128xf32> to vector<8x32xf32>
    %451 = vector.extract_strided_slice %448 {offsets = [0, 64], sizes = [8, 32], strides = [1, 1]} : vector<8x128xf32> to vector<8x32xf32>
    %452 = vector.extract_strided_slice %448 {offsets = [0, 96], sizes = [8, 32], strides = [1, 1]} : vector<8x128xf32> to vector<8x32xf32>
    %453 = arith.mulf %450, %328 : vector<8x32xf32>
    %454 = arith.mulf %449, %451 : vector<8x32xf32>
    %455 = arith.addf %453, %454 : vector<8x32xf32>
    %456 = math.tanh %455 : vector<8x32xf32>
    %457 = arith.mulf %452, %456 : vector<8x32xf32>
    %c1_180 = arith.constant 1 : index
    %c0_181 = arith.constant 0 : index
    %c0_182 = arith.constant 0 : index
    %458 = vector.load %arg2[%c1_180, %c0_181, %c0_182] : memref<5x32x128xf32, #tpu.memory_space<vmem>>, vector<1x32x128xf32>
    %459 = vector.shape_cast %458 : vector<1x32x128xf32> to vector<32x128xf32>
    %cst_183 = arith.constant dense<0.000000e+00> : vector<8x128xf32>
    %460 = tpu.matmul %330, %459, %cst_183 {dimension_numbers = #tpu.dot_dimension_numbers<[1], [0], [0], [1], [0, 0, 1, 1], [], []>} : vector<8x32xf32>, vector<32x128xf32>, vector<8x128xf32> -> vector<8x128xf32>
    %c2_184 = arith.constant 2 : index
    %c0_185 = arith.constant 0 : index
    %c0_186 = arith.constant 0 : index
    %461 = vector.load %arg3[%c2_184, %c0_185, %c0_186] : memref<6x32x128xf32, #tpu.memory_space<vmem>>, vector<1x32x128xf32>
    %462 = vector.shape_cast %461 : vector<1x32x128xf32> to vector<32x128xf32>
    %cst_187 = arith.constant dense<0.000000e+00> : vector<8x128xf32>
    %463 = tpu.matmul %356, %462, %cst_187 {dimension_numbers = #tpu.dot_dimension_numbers<[1], [0], [0], [1], [0, 0, 1, 1], [], []>} : vector<8x32xf32>, vector<32x128xf32>, vector<8x128xf32> -> vector<8x128xf32>
    %464 = arith.addf %460, %463 : vector<8x128xf32>
    %465 = arith.addf %464, %13 : vector<8x128xf32>
    %cst_188 = arith.constant 5.000000e-01 : f32
    %466 = vector.broadcast %cst_188 : f32 to vector<8x128xf32>
    %467 = arith.mulf %466, %465 : vector<8x128xf32>
    %468 = arith.select %5, %465, %467 : vector<8x128xi1>, vector<8x128xf32>
    %469 = math.tanh %468 : vector<8x128xf32>
    %cst_189 = arith.constant 5.000000e-01 : f32
    %470 = vector.broadcast %cst_189 : f32 to vector<8x128xf32>
    %471 = arith.mulf %470, %469 : vector<8x128xf32>
    %cst_190 = arith.constant 5.000000e-01 : f32
    %472 = vector.broadcast %cst_190 : f32 to vector<8x128xf32>
    %473 = arith.addf %471, %472 : vector<8x128xf32>
    %474 = arith.select %5, %469, %473 : vector<8x128xi1>, vector<8x128xf32>
    %475 = vector.extract_strided_slice %474 {offsets = [0, 0], sizes = [8, 32], strides = [1, 1]} : vector<8x128xf32> to vector<8x32xf32>
    %476 = vector.extract_strided_slice %474 {offsets = [0, 32], sizes = [8, 32], strides = [1, 1]} : vector<8x128xf32> to vector<8x32xf32>
    %477 = vector.extract_strided_slice %474 {offsets = [0, 64], sizes = [8, 32], strides = [1, 1]} : vector<8x128xf32> to vector<8x32xf32>
    %478 = vector.extract_strided_slice %474 {offsets = [0, 96], sizes = [8, 32], strides = [1, 1]} : vector<8x128xf32> to vector<8x32xf32>
    %479 = arith.mulf %476, %354 : vector<8x32xf32>
    %480 = arith.mulf %475, %477 : vector<8x32xf32>
    %481 = arith.addf %479, %480 : vector<8x32xf32>
    %482 = math.tanh %481 : vector<8x32xf32>
    %483 = arith.mulf %478, %482 : vector<8x32xf32>
    %c2_191 = arith.constant 2 : index
    %c0_192 = arith.constant 0 : index
    %c0_193 = arith.constant 0 : index
    %484 = vector.load %arg2[%c2_191, %c0_192, %c0_193] : memref<5x32x128xf32, #tpu.memory_space<vmem>>, vector<1x32x128xf32>
    %485 = vector.shape_cast %484 : vector<1x32x128xf32> to vector<32x128xf32>
    %cst_194 = arith.constant dense<0.000000e+00> : vector<8x128xf32>
    %486 = tpu.matmul %356, %485, %cst_194 {dimension_numbers = #tpu.dot_dimension_numbers<[1], [0], [0], [1], [0, 0, 1, 1], [], []>} : vector<8x32xf32>, vector<32x128xf32>, vector<8x128xf32> -> vector<8x128xf32>
    %c3_195 = arith.constant 3 : index
    %c0_196 = arith.constant 0 : index
    %c0_197 = arith.constant 0 : index
    %487 = vector.load %arg3[%c3_195, %c0_196, %c0_197] : memref<6x32x128xf32, #tpu.memory_space<vmem>>, vector<1x32x128xf32>
    %488 = vector.shape_cast %487 : vector<1x32x128xf32> to vector<32x128xf32>
    %cst_198 = arith.constant dense<0.000000e+00> : vector<8x128xf32>
    %489 = tpu.matmul %382, %488, %cst_198 {dimension_numbers = #tpu.dot_dimension_numbers<[1], [0], [0], [1], [0, 0, 1, 1], [], []>} : vector<8x32xf32>, vector<32x128xf32>, vector<8x128xf32> -> vector<8x128xf32>
    %490 = arith.addf %486, %489 : vector<8x128xf32>
    %491 = arith.addf %490, %17 : vector<8x128xf32>
    %cst_199 = arith.constant 5.000000e-01 : f32
    %492 = vector.broadcast %cst_199 : f32 to vector<8x128xf32>
    %493 = arith.mulf %492, %491 : vector<8x128xf32>
    %494 = arith.select %5, %491, %493 : vector<8x128xi1>, vector<8x128xf32>
    %495 = math.tanh %494 : vector<8x128xf32>
    %cst_200 = arith.constant 5.000000e-01 : f32
    %496 = vector.broadcast %cst_200 : f32 to vector<8x128xf32>
    %497 = arith.mulf %496, %495 : vector<8x128xf32>
    %cst_201 = arith.constant 5.000000e-01 : f32
    %498 = vector.broadcast %cst_201 : f32 to vector<8x128xf32>
    %499 = arith.addf %497, %498 : vector<8x128xf32>
    %500 = arith.select %5, %495, %499 : vector<8x128xi1>, vector<8x128xf32>
    %501 = vector.extract_strided_slice %500 {offsets = [0, 0], sizes = [8, 32], strides = [1, 1]} : vector<8x128xf32> to vector<8x32xf32>
    %502 = vector.extract_strided_slice %500 {offsets = [0, 32], sizes = [8, 32], strides = [1, 1]} : vector<8x128xf32> to vector<8x32xf32>
    %503 = vector.extract_strided_slice %500 {offsets = [0, 64], sizes = [8, 32], strides = [1, 1]} : vector<8x128xf32> to vector<8x32xf32>
    %504 = vector.extract_strided_slice %500 {offsets = [0, 96], sizes = [8, 32], strides = [1, 1]} : vector<8x128xf32> to vector<8x32xf32>
    %505 = arith.mulf %502, %380 : vector<8x32xf32>
    %506 = arith.mulf %501, %503 : vector<8x32xf32>
    %507 = arith.addf %505, %506 : vector<8x32xf32>
    %508 = math.tanh %507 : vector<8x32xf32>
    %509 = arith.mulf %504, %508 : vector<8x32xf32>
    %c3_202 = arith.constant 3 : index
    %c0_203 = arith.constant 0 : index
    %c0_204 = arith.constant 0 : index
    %510 = vector.load %arg2[%c3_202, %c0_203, %c0_204] : memref<5x32x128xf32, #tpu.memory_space<vmem>>, vector<1x32x128xf32>
    %511 = vector.shape_cast %510 : vector<1x32x128xf32> to vector<32x128xf32>
    %cst_205 = arith.constant dense<0.000000e+00> : vector<8x128xf32>
    %512 = tpu.matmul %382, %511, %cst_205 {dimension_numbers = #tpu.dot_dimension_numbers<[1], [0], [0], [1], [0, 0, 1, 1], [], []>} : vector<8x32xf32>, vector<32x128xf32>, vector<8x128xf32> -> vector<8x128xf32>
    %c4_206 = arith.constant 4 : index
    %c0_207 = arith.constant 0 : index
    %c0_208 = arith.constant 0 : index
    %513 = vector.load %arg3[%c4_206, %c0_207, %c0_208] : memref<6x32x128xf32, #tpu.memory_space<vmem>>, vector<1x32x128xf32>
    %514 = vector.shape_cast %513 : vector<1x32x128xf32> to vector<32x128xf32>
    %cst_209 = arith.constant dense<0.000000e+00> : vector<8x128xf32>
    %515 = tpu.matmul %408, %514, %cst_209 {dimension_numbers = #tpu.dot_dimension_numbers<[1], [0], [0], [1], [0, 0, 1, 1], [], []>} : vector<8x32xf32>, vector<32x128xf32>, vector<8x128xf32> -> vector<8x128xf32>
    %516 = arith.addf %512, %515 : vector<8x128xf32>
    %517 = arith.addf %516, %21 : vector<8x128xf32>
    %cst_210 = arith.constant 5.000000e-01 : f32
    %518 = vector.broadcast %cst_210 : f32 to vector<8x128xf32>
    %519 = arith.mulf %518, %517 : vector<8x128xf32>
    %520 = arith.select %5, %517, %519 : vector<8x128xi1>, vector<8x128xf32>
    %521 = math.tanh %520 : vector<8x128xf32>
    %cst_211 = arith.constant 5.000000e-01 : f32
    %522 = vector.broadcast %cst_211 : f32 to vector<8x128xf32>
    %523 = arith.mulf %522, %521 : vector<8x128xf32>
    %cst_212 = arith.constant 5.000000e-01 : f32
    %524 = vector.broadcast %cst_212 : f32 to vector<8x128xf32>
    %525 = arith.addf %523, %524 : vector<8x128xf32>
    %526 = arith.select %5, %521, %525 : vector<8x128xi1>, vector<8x128xf32>
    %527 = vector.extract_strided_slice %526 {offsets = [0, 0], sizes = [8, 32], strides = [1, 1]} : vector<8x128xf32> to vector<8x32xf32>
    %528 = vector.extract_strided_slice %526 {offsets = [0, 32], sizes = [8, 32], strides = [1, 1]} : vector<8x128xf32> to vector<8x32xf32>
    %529 = vector.extract_strided_slice %526 {offsets = [0, 64], sizes = [8, 32], strides = [1, 1]} : vector<8x128xf32> to vector<8x32xf32>
    %530 = vector.extract_strided_slice %526 {offsets = [0, 96], sizes = [8, 32], strides = [1, 1]} : vector<8x128xf32> to vector<8x32xf32>
    %531 = arith.mulf %528, %406 : vector<8x32xf32>
    %532 = arith.mulf %527, %529 : vector<8x32xf32>
    %533 = arith.addf %531, %532 : vector<8x32xf32>
    %534 = math.tanh %533 : vector<8x32xf32>
    %535 = arith.mulf %530, %534 : vector<8x32xf32>
    %c4_213 = arith.constant 4 : index
    %c0_214 = arith.constant 0 : index
    %c0_215 = arith.constant 0 : index
    %536 = vector.load %arg2[%c4_213, %c0_214, %c0_215] : memref<5x32x128xf32, #tpu.memory_space<vmem>>, vector<1x32x128xf32>
    %537 = vector.shape_cast %536 : vector<1x32x128xf32> to vector<32x128xf32>
    %cst_216 = arith.constant dense<0.000000e+00> : vector<8x128xf32>
    %538 = tpu.matmul %408, %537, %cst_216 {dimension_numbers = #tpu.dot_dimension_numbers<[1], [0], [0], [1], [0, 0, 1, 1], [], []>} : vector<8x32xf32>, vector<32x128xf32>, vector<8x128xf32> -> vector<8x128xf32>
    %c5_217 = arith.constant 5 : index
    %c0_218 = arith.constant 0 : index
    %c0_219 = arith.constant 0 : index
    %539 = vector.load %arg3[%c5_217, %c0_218, %c0_219] : memref<6x32x128xf32, #tpu.memory_space<vmem>>, vector<1x32x128xf32>
    %540 = vector.shape_cast %539 : vector<1x32x128xf32> to vector<32x128xf32>
    %cst_220 = arith.constant dense<0.000000e+00> : vector<8x128xf32>
    %541 = tpu.matmul %33, %540, %cst_220 {dimension_numbers = #tpu.dot_dimension_numbers<[1], [0], [0], [1], [0, 0, 1, 1], [], []>} : vector<8x32xf32>, vector<32x128xf32>, vector<8x128xf32> -> vector<8x128xf32>
    %542 = arith.addf %538, %541 : vector<8x128xf32>
    %543 = arith.addf %542, %25 : vector<8x128xf32>
    %cst_221 = arith.constant 5.000000e-01 : f32
    %544 = vector.broadcast %cst_221 : f32 to vector<8x128xf32>
    %545 = arith.mulf %544, %543 : vector<8x128xf32>
    %546 = arith.select %5, %543, %545 : vector<8x128xi1>, vector<8x128xf32>
    %547 = math.tanh %546 : vector<8x128xf32>
    %cst_222 = arith.constant 5.000000e-01 : f32
    %548 = vector.broadcast %cst_222 : f32 to vector<8x128xf32>
    %549 = arith.mulf %548, %547 : vector<8x128xf32>
    %cst_223 = arith.constant 5.000000e-01 : f32
    %550 = vector.broadcast %cst_223 : f32 to vector<8x128xf32>
    %551 = arith.addf %549, %550 : vector<8x128xf32>
    %552 = arith.select %5, %547, %551 : vector<8x128xi1>, vector<8x128xf32>
    %553 = vector.extract_strided_slice %552 {offsets = [0, 0], sizes = [8, 32], strides = [1, 1]} : vector<8x128xf32> to vector<8x32xf32>
    %554 = vector.extract_strided_slice %552 {offsets = [0, 32], sizes = [8, 32], strides = [1, 1]} : vector<8x128xf32> to vector<8x32xf32>
    %555 = vector.extract_strided_slice %552 {offsets = [0, 64], sizes = [8, 32], strides = [1, 1]} : vector<8x128xf32> to vector<8x32xf32>
    %556 = vector.extract_strided_slice %552 {offsets = [0, 96], sizes = [8, 32], strides = [1, 1]} : vector<8x128xf32> to vector<8x32xf32>
    %557 = arith.mulf %554, %33 : vector<8x32xf32>
    %558 = arith.mulf %553, %555 : vector<8x32xf32>
    %559 = arith.addf %557, %558 : vector<8x32xf32>
    %560 = math.tanh %559 : vector<8x32xf32>
    %561 = arith.mulf %556, %560 : vector<8x32xf32>
    %c0_224 = arith.constant 0 : index
    %c0_225 = arith.constant 0 : index
    %562 = vector.load %arg16[%c0_224, %c0_225] : memref<64x32xf32, #tpu.memory_space<vmem>>, vector<8x32xf32>
    tpu.vector_store %arg16[%c0_224, %c0_225], %561 {strides = array<i32>} : memref<64x32xf32, #tpu.memory_space<vmem>>, vector<8x32xf32>,
    %563 = vector.extract_strided_slice %32 {offsets = [48, 0], sizes = [8, 128], strides = [1, 1]} : vector<64x128xf32> to vector<8x128xf32>
    %c0_226 = arith.constant 0 : index
    %c0_227 = arith.constant 0 : index
    %c0_228 = arith.constant 0 : index
    %564 = vector.load %arg3[%c0_226, %c0_227, %c0_228] : memref<6x32x128xf32, #tpu.memory_space<vmem>>, vector<1x32x128xf32>
    %565 = vector.shape_cast %564 : vector<1x32x128xf32> to vector<32x128xf32>
    %cst_229 = arith.constant dense<0.000000e+00> : vector<8x128xf32>
    %566 = tpu.matmul %431, %565, %cst_229 {dimension_numbers = #tpu.dot_dimension_numbers<[1], [0], [0], [1], [0, 0, 1, 1], [], []>} : vector<8x32xf32>, vector<32x128xf32>, vector<8x128xf32> -> vector<8x128xf32>
    %567 = arith.addf %563, %566 : vector<8x128xf32>
    %cst_230 = arith.constant 5.000000e-01 : f32
    %568 = vector.broadcast %cst_230 : f32 to vector<8x128xf32>
    %569 = arith.mulf %568, %567 : vector<8x128xf32>
    %570 = arith.select %5, %567, %569 : vector<8x128xi1>, vector<8x128xf32>
    %571 = math.tanh %570 : vector<8x128xf32>
    %cst_231 = arith.constant 5.000000e-01 : f32
    %572 = vector.broadcast %cst_231 : f32 to vector<8x128xf32>
    %573 = arith.mulf %572, %571 : vector<8x128xf32>
    %cst_232 = arith.constant 5.000000e-01 : f32
    %574 = vector.broadcast %cst_232 : f32 to vector<8x128xf32>
    %575 = arith.addf %573, %574 : vector<8x128xf32>
    %576 = arith.select %5, %571, %575 : vector<8x128xi1>, vector<8x128xf32>
    %577 = vector.extract_strided_slice %576 {offsets = [0, 0], sizes = [8, 32], strides = [1, 1]} : vector<8x128xf32> to vector<8x32xf32>
    %578 = vector.extract_strided_slice %576 {offsets = [0, 32], sizes = [8, 32], strides = [1, 1]} : vector<8x128xf32> to vector<8x32xf32>
    %579 = vector.extract_strided_slice %576 {offsets = [0, 64], sizes = [8, 32], strides = [1, 1]} : vector<8x128xf32> to vector<8x32xf32>
    %580 = vector.extract_strided_slice %576 {offsets = [0, 96], sizes = [8, 32], strides = [1, 1]} : vector<8x128xf32> to vector<8x32xf32>
    %581 = arith.mulf %578, %429 : vector<8x32xf32>
    %582 = arith.mulf %577, %579 : vector<8x32xf32>
    %583 = arith.addf %581, %582 : vector<8x32xf32>
    %584 = math.tanh %583 : vector<8x32xf32>
    %585 = arith.mulf %580, %584 : vector<8x32xf32>
    %c0_233 = arith.constant 0 : index
    %c0_234 = arith.constant 0 : index
    %c0_235 = arith.constant 0 : index
    %586 = vector.load %arg2[%c0_233, %c0_234, %c0_235] : memref<5x32x128xf32, #tpu.memory_space<vmem>>, vector<1x32x128xf32>
    %587 = vector.shape_cast %586 : vector<1x32x128xf32> to vector<32x128xf32>
    %cst_236 = arith.constant dense<0.000000e+00> : vector<8x128xf32>
    %588 = tpu.matmul %431, %587, %cst_236 {dimension_numbers = #tpu.dot_dimension_numbers<[1], [0], [0], [1], [0, 0, 1, 1], [], []>} : vector<8x32xf32>, vector<32x128xf32>, vector<8x128xf32> -> vector<8x128xf32>
    %c1_237 = arith.constant 1 : index
    %c0_238 = arith.constant 0 : index
    %c0_239 = arith.constant 0 : index
    %589 = vector.load %arg3[%c1_237, %c0_238, %c0_239] : memref<6x32x128xf32, #tpu.memory_space<vmem>>, vector<1x32x128xf32>
    %590 = vector.shape_cast %589 : vector<1x32x128xf32> to vector<32x128xf32>
    %cst_240 = arith.constant dense<0.000000e+00> : vector<8x128xf32>
    %591 = tpu.matmul %457, %590, %cst_240 {dimension_numbers = #tpu.dot_dimension_numbers<[1], [0], [0], [1], [0, 0, 1, 1], [], []>} : vector<8x32xf32>, vector<32x128xf32>, vector<8x128xf32> -> vector<8x128xf32>
    %592 = arith.addf %588, %591 : vector<8x128xf32>
    %593 = arith.addf %592, %9 : vector<8x128xf32>
    %cst_241 = arith.constant 5.000000e-01 : f32
    %594 = vector.broadcast %cst_241 : f32 to vector<8x128xf32>
    %595 = arith.mulf %594, %593 : vector<8x128xf32>
    %596 = arith.select %5, %593, %595 : vector<8x128xi1>, vector<8x128xf32>
    %597 = math.tanh %596 : vector<8x128xf32>
    %cst_242 = arith.constant 5.000000e-01 : f32
    %598 = vector.broadcast %cst_242 : f32 to vector<8x128xf32>
    %599 = arith.mulf %598, %597 : vector<8x128xf32>
    %cst_243 = arith.constant 5.000000e-01 : f32
    %600 = vector.broadcast %cst_243 : f32 to vector<8x128xf32>
    %601 = arith.addf %599, %600 : vector<8x128xf32>
    %602 = arith.select %5, %597, %601 : vector<8x128xi1>, vector<8x128xf32>
    %603 = vector.extract_strided_slice %602 {offsets = [0, 0], sizes = [8, 32], strides = [1, 1]} : vector<8x128xf32> to vector<8x32xf32>
    %604 = vector.extract_strided_slice %602 {offsets = [0, 32], sizes = [8, 32], strides = [1, 1]} : vector<8x128xf32> to vector<8x32xf32>
    %605 = vector.extract_strided_slice %602 {offsets = [0, 64], sizes = [8, 32], strides = [1, 1]} : vector<8x128xf32> to vector<8x32xf32>
    %606 = vector.extract_strided_slice %602 {offsets = [0, 96], sizes = [8, 32], strides = [1, 1]} : vector<8x128xf32> to vector<8x32xf32>
    %607 = arith.mulf %604, %455 : vector<8x32xf32>
    %608 = arith.mulf %603, %605 : vector<8x32xf32>
    %609 = arith.addf %607, %608 : vector<8x32xf32>
    %610 = math.tanh %609 : vector<8x32xf32>
    %611 = arith.mulf %606, %610 : vector<8x32xf32>
    %c1_244 = arith.constant 1 : index
    %c0_245 = arith.constant 0 : index
    %c0_246 = arith.constant 0 : index
    %612 = vector.load %arg2[%c1_244, %c0_245, %c0_246] : memref<5x32x128xf32, #tpu.memory_space<vmem>>, vector<1x32x128xf32>
    %613 = vector.shape_cast %612 : vector<1x32x128xf32> to vector<32x128xf32>
    %cst_247 = arith.constant dense<0.000000e+00> : vector<8x128xf32>
    %614 = tpu.matmul %457, %613, %cst_247 {dimension_numbers = #tpu.dot_dimension_numbers<[1], [0], [0], [1], [0, 0, 1, 1], [], []>} : vector<8x32xf32>, vector<32x128xf32>, vector<8x128xf32> -> vector<8x128xf32>
    %c2_248 = arith.constant 2 : index
    %c0_249 = arith.constant 0 : index
    %c0_250 = arith.constant 0 : index
    %615 = vector.load %arg3[%c2_248, %c0_249, %c0_250] : memref<6x32x128xf32, #tpu.memory_space<vmem>>, vector<1x32x128xf32>
    %616 = vector.shape_cast %615 : vector<1x32x128xf32> to vector<32x128xf32>
    %cst_251 = arith.constant dense<0.000000e+00> : vector<8x128xf32>
    %617 = tpu.matmul %483, %616, %cst_251 {dimension_numbers = #tpu.dot_dimension_numbers<[1], [0], [0], [1], [0, 0, 1, 1], [], []>} : vector<8x32xf32>, vector<32x128xf32>, vector<8x128xf32> -> vector<8x128xf32>
    %618 = arith.addf %614, %617 : vector<8x128xf32>
    %619 = arith.addf %618, %13 : vector<8x128xf32>
    %cst_252 = arith.constant 5.000000e-01 : f32
    %620 = vector.broadcast %cst_252 : f32 to vector<8x128xf32>
    %621 = arith.mulf %620, %619 : vector<8x128xf32>
    %622 = arith.select %5, %619, %621 : vector<8x128xi1>, vector<8x128xf32>
    %623 = math.tanh %622 : vector<8x128xf32>
    %cst_253 = arith.constant 5.000000e-01 : f32
    %624 = vector.broadcast %cst_253 : f32 to vector<8x128xf32>
    %625 = arith.mulf %624, %623 : vector<8x128xf32>
    %cst_254 = arith.constant 5.000000e-01 : f32
    %626 = vector.broadcast %cst_254 : f32 to vector<8x128xf32>
    %627 = arith.addf %625, %626 : vector<8x128xf32>
    %628 = arith.select %5, %623, %627 : vector<8x128xi1>, vector<8x128xf32>
    %629 = vector.extract_strided_slice %628 {offsets = [0, 0], sizes = [8, 32], strides = [1, 1]} : vector<8x128xf32> to vector<8x32xf32>
    %630 = vector.extract_strided_slice %628 {offsets = [0, 32], sizes = [8, 32], strides = [1, 1]} : vector<8x128xf32> to vector<8x32xf32>
    %631 = vector.extract_strided_slice %628 {offsets = [0, 64], sizes = [8, 32], strides = [1, 1]} : vector<8x128xf32> to vector<8x32xf32>
    %632 = vector.extract_strided_slice %628 {offsets = [0, 96], sizes = [8, 32], strides = [1, 1]} : vector<8x128xf32> to vector<8x32xf32>
    %633 = arith.mulf %630, %481 : vector<8x32xf32>
    %634 = arith.mulf %629, %631 : vector<8x32xf32>
    %635 = arith.addf %633, %634 : vector<8x32xf32>
    %636 = math.tanh %635 : vector<8x32xf32>
    %637 = arith.mulf %632, %636 : vector<8x32xf32>
    %c2_255 = arith.constant 2 : index
    %c0_256 = arith.constant 0 : index
    %c0_257 = arith.constant 0 : index
    %638 = vector.load %arg2[%c2_255, %c0_256, %c0_257] : memref<5x32x128xf32, #tpu.memory_space<vmem>>, vector<1x32x128xf32>
    %639 = vector.shape_cast %638 : vector<1x32x128xf32> to vector<32x128xf32>
    %cst_258 = arith.constant dense<0.000000e+00> : vector<8x128xf32>
    %640 = tpu.matmul %483, %639, %cst_258 {dimension_numbers = #tpu.dot_dimension_numbers<[1], [0], [0], [1], [0, 0, 1, 1], [], []>} : vector<8x32xf32>, vector<32x128xf32>, vector<8x128xf32> -> vector<8x128xf32>
    %c3_259 = arith.constant 3 : index
    %c0_260 = arith.constant 0 : index
    %c0_261 = arith.constant 0 : index
    %641 = vector.load %arg3[%c3_259, %c0_260, %c0_261] : memref<6x32x128xf32, #tpu.memory_space<vmem>>, vector<1x32x128xf32>
    %642 = vector.shape_cast %641 : vector<1x32x128xf32> to vector<32x128xf32>
    %cst_262 = arith.constant dense<0.000000e+00> : vector<8x128xf32>
    %643 = tpu.matmul %509, %642, %cst_262 {dimension_numbers = #tpu.dot_dimension_numbers<[1], [0], [0], [1], [0, 0, 1, 1], [], []>} : vector<8x32xf32>, vector<32x128xf32>, vector<8x128xf32> -> vector<8x128xf32>
    %644 = arith.addf %640, %643 : vector<8x128xf32>
    %645 = arith.addf %644, %17 : vector<8x128xf32>
    %cst_263 = arith.constant 5.000000e-01 : f32
    %646 = vector.broadcast %cst_263 : f32 to vector<8x128xf32>
    %647 = arith.mulf %646, %645 : vector<8x128xf32>
    %648 = arith.select %5, %645, %647 : vector<8x128xi1>, vector<8x128xf32>
    %649 = math.tanh %648 : vector<8x128xf32>
    %cst_264 = arith.constant 5.000000e-01 : f32
    %650 = vector.broadcast %cst_264 : f32 to vector<8x128xf32>
    %651 = arith.mulf %650, %649 : vector<8x128xf32>
    %cst_265 = arith.constant 5.000000e-01 : f32
    %652 = vector.broadcast %cst_265 : f32 to vector<8x128xf32>
    %653 = arith.addf %651, %652 : vector<8x128xf32>
    %654 = arith.select %5, %649, %653 : vector<8x128xi1>, vector<8x128xf32>
    %655 = vector.extract_strided_slice %654 {offsets = [0, 0], sizes = [8, 32], strides = [1, 1]} : vector<8x128xf32> to vector<8x32xf32>
    %656 = vector.extract_strided_slice %654 {offsets = [0, 32], sizes = [8, 32], strides = [1, 1]} : vector<8x128xf32> to vector<8x32xf32>
    %657 = vector.extract_strided_slice %654 {offsets = [0, 64], sizes = [8, 32], strides = [1, 1]} : vector<8x128xf32> to vector<8x32xf32>
    %658 = vector.extract_strided_slice %654 {offsets = [0, 96], sizes = [8, 32], strides = [1, 1]} : vector<8x128xf32> to vector<8x32xf32>
    %659 = arith.mulf %656, %507 : vector<8x32xf32>
    %660 = arith.mulf %655, %657 : vector<8x32xf32>
    %661 = arith.addf %659, %660 : vector<8x32xf32>
    %662 = math.tanh %661 : vector<8x32xf32>
    %663 = arith.mulf %658, %662 : vector<8x32xf32>
    %c3_266 = arith.constant 3 : index
    %c0_267 = arith.constant 0 : index
    %c0_268 = arith.constant 0 : index
    %664 = vector.load %arg2[%c3_266, %c0_267, %c0_268] : memref<5x32x128xf32, #tpu.memory_space<vmem>>, vector<1x32x128xf32>
    %665 = vector.shape_cast %664 : vector<1x32x128xf32> to vector<32x128xf32>
    %cst_269 = arith.constant dense<0.000000e+00> : vector<8x128xf32>
    %666 = tpu.matmul %509, %665, %cst_269 {dimension_numbers = #tpu.dot_dimension_numbers<[1], [0], [0], [1], [0, 0, 1, 1], [], []>} : vector<8x32xf32>, vector<32x128xf32>, vector<8x128xf32> -> vector<8x128xf32>
    %c4_270 = arith.constant 4 : index
    %c0_271 = arith.constant 0 : index
    %c0_272 = arith.constant 0 : index
    %667 = vector.load %arg3[%c4_270, %c0_271, %c0_272] : memref<6x32x128xf32, #tpu.memory_space<vmem>>, vector<1x32x128xf32>
    %668 = vector.shape_cast %667 : vector<1x32x128xf32> to vector<32x128xf32>
    %cst_273 = arith.constant dense<0.000000e+00> : vector<8x128xf32>
    %669 = tpu.matmul %535, %668, %cst_273 {dimension_numbers = #tpu.dot_dimension_numbers<[1], [0], [0], [1], [0, 0, 1, 1], [], []>} : vector<8x32xf32>, vector<32x128xf32>, vector<8x128xf32> -> vector<8x128xf32>
    %670 = arith.addf %666, %669 : vector<8x128xf32>
    %671 = arith.addf %670, %21 : vector<8x128xf32>
    %cst_274 = arith.constant 5.000000e-01 : f32
    %672 = vector.broadcast %cst_274 : f32 to vector<8x128xf32>
    %673 = arith.mulf %672, %671 : vector<8x128xf32>
    %674 = arith.select %5, %671, %673 : vector<8x128xi1>, vector<8x128xf32>
    %675 = math.tanh %674 : vector<8x128xf32>
    %cst_275 = arith.constant 5.000000e-01 : f32
    %676 = vector.broadcast %cst_275 : f32 to vector<8x128xf32>
    %677 = arith.mulf %676, %675 : vector<8x128xf32>
    %cst_276 = arith.constant 5.000000e-01 : f32
    %678 = vector.broadcast %cst_276 : f32 to vector<8x128xf32>
    %679 = arith.addf %677, %678 : vector<8x128xf32>
    %680 = arith.select %5, %675, %679 : vector<8x128xi1>, vector<8x128xf32>
    %681 = vector.extract_strided_slice %680 {offsets = [0, 0], sizes = [8, 32], strides = [1, 1]} : vector<8x128xf32> to vector<8x32xf32>
    %682 = vector.extract_strided_slice %680 {offsets = [0, 32], sizes = [8, 32], strides = [1, 1]} : vector<8x128xf32> to vector<8x32xf32>
    %683 = vector.extract_strided_slice %680 {offsets = [0, 64], sizes = [8, 32], strides = [1, 1]} : vector<8x128xf32> to vector<8x32xf32>
    %684 = vector.extract_strided_slice %680 {offsets = [0, 96], sizes = [8, 32], strides = [1, 1]} : vector<8x128xf32> to vector<8x32xf32>
    %685 = arith.mulf %682, %533 : vector<8x32xf32>
    %686 = arith.mulf %681, %683 : vector<8x32xf32>
    %687 = arith.addf %685, %686 : vector<8x32xf32>
    %688 = math.tanh %687 : vector<8x32xf32>
    %689 = arith.mulf %684, %688 : vector<8x32xf32>
    %c4_277 = arith.constant 4 : index
    %c0_278 = arith.constant 0 : index
    %c0_279 = arith.constant 0 : index
    %690 = vector.load %arg2[%c4_277, %c0_278, %c0_279] : memref<5x32x128xf32, #tpu.memory_space<vmem>>, vector<1x32x128xf32>
    %691 = vector.shape_cast %690 : vector<1x32x128xf32> to vector<32x128xf32>
    %cst_280 = arith.constant dense<0.000000e+00> : vector<8x128xf32>
    %692 = tpu.matmul %535, %691, %cst_280 {dimension_numbers = #tpu.dot_dimension_numbers<[1], [0], [0], [1], [0, 0, 1, 1], [], []>} : vector<8x32xf32>, vector<32x128xf32>, vector<8x128xf32> -> vector<8x128xf32>
    %c5_281 = arith.constant 5 : index
    %c0_282 = arith.constant 0 : index
    %c0_283 = arith.constant 0 : index
    %693 = vector.load %arg3[%c5_281, %c0_282, %c0_283] : memref<6x32x128xf32, #tpu.memory_space<vmem>>, vector<1x32x128xf32>
    %694 = vector.shape_cast %693 : vector<1x32x128xf32> to vector<32x128xf32>
    %cst_284 = arith.constant dense<0.000000e+00> : vector<8x128xf32>
    %695 = tpu.matmul %561, %694, %cst_284 {dimension_numbers = #tpu.dot_dimension_numbers<[1], [0], [0], [1], [0, 0, 1, 1], [], []>} : vector<8x32xf32>, vector<32x128xf32>, vector<8x128xf32> -> vector<8x128xf32>
    %696 = arith.addf %692, %695 : vector<8x128xf32>
    %697 = arith.addf %696, %25 : vector<8x128xf32>
    %cst_285 = arith.constant 5.000000e-01 : f32
    %698 = vector.broadcast %cst_285 : f32 to vector<8x128xf32>
    %699 = arith.mulf %698, %697 : vector<8x128xf32>
    %700 = arith.select %5, %697, %699 : vector<8x128xi1>, vector<8x128xf32>
    %701 = math.tanh %700 : vector<8x128xf32>
    %cst_286 = arith.constant 5.000000e-01 : f32
    %702 = vector.broadcast %cst_286 : f32 to vector<8x128xf32>
    %703 = arith.mulf %702, %701 : vector<8x128xf32>
    %cst_287 = arith.constant 5.000000e-01 : f32
    %704 = vector.broadcast %cst_287 : f32 to vector<8x128xf32>
    %705 = arith.addf %703, %704 : vector<8x128xf32>
    %706 = arith.select %5, %701, %705 : vector<8x128xi1>, vector<8x128xf32>
    %707 = vector.extract_strided_slice %706 {offsets = [0, 0], sizes = [8, 32], strides = [1, 1]} : vector<8x128xf32> to vector<8x32xf32>
    %708 = vector.extract_strided_slice %706 {offsets = [0, 32], sizes = [8, 32], strides = [1, 1]} : vector<8x128xf32> to vector<8x32xf32>
    %709 = vector.extract_strided_slice %706 {offsets = [0, 64], sizes = [8, 32], strides = [1, 1]} : vector<8x128xf32> to vector<8x32xf32>
    %710 = vector.extract_strided_slice %706 {offsets = [0, 96], sizes = [8, 32], strides = [1, 1]} : vector<8x128xf32> to vector<8x32xf32>
    %711 = arith.mulf %708, %559 : vector<8x32xf32>
    %712 = arith.mulf %707, %709 : vector<8x32xf32>
    %713 = arith.addf %711, %712 : vector<8x32xf32>
    %714 = math.tanh %713 : vector<8x32xf32>
    %715 = arith.mulf %710, %714 : vector<8x32xf32>
    %c8 = arith.constant 8 : index
    %c0_288 = arith.constant 0 : index
    %716 = vector.load %arg16[%c8, %c0_288] : memref<64x32xf32, #tpu.memory_space<vmem>>, vector<8x32xf32>
    tpu.vector_store %arg16[%c8, %c0_288], %715 {strides = array<i32>} : memref<64x32xf32, #tpu.memory_space<vmem>>, vector<8x32xf32>,
    %717 = vector.extract_strided_slice %32 {offsets = [56, 0], sizes = [8, 128], strides = [1, 1]} : vector<64x128xf32> to vector<8x128xf32>
    %c0_289 = arith.constant 0 : index
    %c0_290 = arith.constant 0 : index
    %c0_291 = arith.constant 0 : index
    %718 = vector.load %arg3[%c0_289, %c0_290, %c0_291] : memref<6x32x128xf32, #tpu.memory_space<vmem>>, vector<1x32x128xf32>
    %719 = vector.shape_cast %718 : vector<1x32x128xf32> to vector<32x128xf32>
    %cst_292 = arith.constant dense<0.000000e+00> : vector<8x128xf32>
    %720 = tpu.matmul %585, %719, %cst_292 {dimension_numbers = #tpu.dot_dimension_numbers<[1], [0], [0], [1], [0, 0, 1, 1], [], []>} : vector<8x32xf32>, vector<32x128xf32>, vector<8x128xf32> -> vector<8x128xf32>
    %721 = arith.addf %717, %720 : vector<8x128xf32>
    %cst_293 = arith.constant 5.000000e-01 : f32
    %722 = vector.broadcast %cst_293 : f32 to vector<8x128xf32>
    %723 = arith.mulf %722, %721 : vector<8x128xf32>
    %724 = arith.select %5, %721, %723 : vector<8x128xi1>, vector<8x128xf32>
    %725 = math.tanh %724 : vector<8x128xf32>
    %cst_294 = arith.constant 5.000000e-01 : f32
    %726 = vector.broadcast %cst_294 : f32 to vector<8x128xf32>
    %727 = arith.mulf %726, %725 : vector<8x128xf32>
    %cst_295 = arith.constant 5.000000e-01 : f32
    %728 = vector.broadcast %cst_295 : f32 to vector<8x128xf32>
    %729 = arith.addf %727, %728 : vector<8x128xf32>
    %730 = arith.select %5, %725, %729 : vector<8x128xi1>, vector<8x128xf32>
    %731 = vector.extract_strided_slice %730 {offsets = [0, 0], sizes = [8, 32], strides = [1, 1]} : vector<8x128xf32> to vector<8x32xf32>
    %732 = vector.extract_strided_slice %730 {offsets = [0, 32], sizes = [8, 32], strides = [1, 1]} : vector<8x128xf32> to vector<8x32xf32>
    %733 = vector.extract_strided_slice %730 {offsets = [0, 64], sizes = [8, 32], strides = [1, 1]} : vector<8x128xf32> to vector<8x32xf32>
    %734 = vector.extract_strided_slice %730 {offsets = [0, 96], sizes = [8, 32], strides = [1, 1]} : vector<8x128xf32> to vector<8x32xf32>
    %735 = arith.mulf %732, %583 : vector<8x32xf32>
    %736 = arith.mulf %731, %733 : vector<8x32xf32>
    %737 = arith.addf %735, %736 : vector<8x32xf32>
    %738 = math.tanh %737 : vector<8x32xf32>
    %739 = arith.mulf %734, %738 : vector<8x32xf32>
    %c0_296 = arith.constant 0 : index
    %c0_297 = arith.constant 0 : index
    %c0_298 = arith.constant 0 : index
    %740 = vector.load %arg14[%c0_296, %c0_297, %c0_298] : memref<6x8x32xf32, #tpu.memory_space<vmem>>, vector<1x8x32xf32>
    %741 = vector.shape_cast %740 : vector<1x8x32xf32> to vector<8x32xf32>
    %742 = vector.shape_cast %739 : vector<8x32xf32> to vector<1x8x32xf32>
    tpu.vector_store %arg14[%c0_296, %c0_297, %c0_298], %742 {strides = array<i32>} : memref<6x8x32xf32, #tpu.memory_space<vmem>>, vector<1x8x32xf32>,
    %c0_299 = arith.constant 0 : index
    %c0_300 = arith.constant 0 : index
    %c0_301 = arith.constant 0 : index
    %743 = vector.load %arg15[%c0_299, %c0_300, %c0_301] : memref<6x8x32xf32, #tpu.memory_space<vmem>>, vector<1x8x32xf32>
    %744 = vector.shape_cast %743 : vector<1x8x32xf32> to vector<8x32xf32>
    %745 = vector.shape_cast %737 : vector<8x32xf32> to vector<1x8x32xf32>
    tpu.vector_store %arg15[%c0_299, %c0_300, %c0_301], %745 {strides = array<i32>} : memref<6x8x32xf32, #tpu.memory_space<vmem>>, vector<1x8x32xf32>,
    %c0_302 = arith.constant 0 : index
    %c0_303 = arith.constant 0 : index
    %c0_304 = arith.constant 0 : index
    %746 = vector.load %arg2[%c0_302, %c0_303, %c0_304] : memref<5x32x128xf32, #tpu.memory_space<vmem>>, vector<1x32x128xf32>
    %747 = vector.shape_cast %746 : vector<1x32x128xf32> to vector<32x128xf32>
    %cst_305 = arith.constant dense<0.000000e+00> : vector<8x128xf32>
    %748 = tpu.matmul %585, %747, %cst_305 {dimension_numbers = #tpu.dot_dimension_numbers<[1], [0], [0], [1], [0, 0, 1, 1], [], []>} : vector<8x32xf32>, vector<32x128xf32>, vector<8x128xf32> -> vector<8x128xf32>
    %c1_306 = arith.constant 1 : index
    %c0_307 = arith.constant 0 : index
    %c0_308 = arith.constant 0 : index
    %749 = vector.load %arg3[%c1_306, %c0_307, %c0_308] : memref<6x32x128xf32, #tpu.memory_space<vmem>>, vector<1x32x128xf32>
    %750 = vector.shape_cast %749 : vector<1x32x128xf32> to vector<32x128xf32>
    %cst_309 = arith.constant dense<0.000000e+00> : vector<8x128xf32>
    %751 = tpu.matmul %611, %750, %cst_309 {dimension_numbers = #tpu.dot_dimension_numbers<[1], [0], [0], [1], [0, 0, 1, 1], [], []>} : vector<8x32xf32>, vector<32x128xf32>, vector<8x128xf32> -> vector<8x128xf32>
    %752 = arith.addf %748, %751 : vector<8x128xf32>
    %753 = arith.addf %752, %9 : vector<8x128xf32>
    %cst_310 = arith.constant 5.000000e-01 : f32
    %754 = vector.broadcast %cst_310 : f32 to vector<8x128xf32>
    %755 = arith.mulf %754, %753 : vector<8x128xf32>
    %756 = arith.select %5, %753, %755 : vector<8x128xi1>, vector<8x128xf32>
    %757 = math.tanh %756 : vector<8x128xf32>
    %cst_311 = arith.constant 5.000000e-01 : f32
    %758 = vector.broadcast %cst_311 : f32 to vector<8x128xf32>
    %759 = arith.mulf %758, %757 : vector<8x128xf32>
    %cst_312 = arith.constant 5.000000e-01 : f32
    %760 = vector.broadcast %cst_312 : f32 to vector<8x128xf32>
    %761 = arith.addf %759, %760 : vector<8x128xf32>
    %762 = arith.select %5, %757, %761 : vector<8x128xi1>, vector<8x128xf32>
    %763 = vector.extract_strided_slice %762 {offsets = [0, 0], sizes = [8, 32], strides = [1, 1]} : vector<8x128xf32> to vector<8x32xf32>
    %764 = vector.extract_strided_slice %762 {offsets = [0, 32], sizes = [8, 32], strides = [1, 1]} : vector<8x128xf32> to vector<8x32xf32>
    %765 = vector.extract_strided_slice %762 {offsets = [0, 64], sizes = [8, 32], strides = [1, 1]} : vector<8x128xf32> to vector<8x32xf32>
    %766 = vector.extract_strided_slice %762 {offsets = [0, 96], sizes = [8, 32], strides = [1, 1]} : vector<8x128xf32> to vector<8x32xf32>
    %767 = arith.mulf %764, %609 : vector<8x32xf32>
    %768 = arith.mulf %763, %765 : vector<8x32xf32>
    %769 = arith.addf %767, %768 : vector<8x32xf32>
    %770 = math.tanh %769 : vector<8x32xf32>
    %771 = arith.mulf %766, %770 : vector<8x32xf32>
    %c1_313 = arith.constant 1 : index
    %c0_314 = arith.constant 0 : index
    %c0_315 = arith.constant 0 : index
    %772 = vector.load %arg2[%c1_313, %c0_314, %c0_315] : memref<5x32x128xf32, #tpu.memory_space<vmem>>, vector<1x32x128xf32>
    %773 = vector.shape_cast %772 : vector<1x32x128xf32> to vector<32x128xf32>
    %cst_316 = arith.constant dense<0.000000e+00> : vector<8x128xf32>
    %774 = tpu.matmul %611, %773, %cst_316 {dimension_numbers = #tpu.dot_dimension_numbers<[1], [0], [0], [1], [0, 0, 1, 1], [], []>} : vector<8x32xf32>, vector<32x128xf32>, vector<8x128xf32> -> vector<8x128xf32>
    %c2_317 = arith.constant 2 : index
    %c0_318 = arith.constant 0 : index
    %c0_319 = arith.constant 0 : index
    %775 = vector.load %arg3[%c2_317, %c0_318, %c0_319] : memref<6x32x128xf32, #tpu.memory_space<vmem>>, vector<1x32x128xf32>
    %776 = vector.shape_cast %775 : vector<1x32x128xf32> to vector<32x128xf32>
    %cst_320 = arith.constant dense<0.000000e+00> : vector<8x128xf32>
    %777 = tpu.matmul %637, %776, %cst_320 {dimension_numbers = #tpu.dot_dimension_numbers<[1], [0], [0], [1], [0, 0, 1, 1], [], []>} : vector<8x32xf32>, vector<32x128xf32>, vector<8x128xf32> -> vector<8x128xf32>
    %778 = arith.addf %774, %777 : vector<8x128xf32>
    %779 = arith.addf %778, %13 : vector<8x128xf32>
    %cst_321 = arith.constant 5.000000e-01 : f32
    %780 = vector.broadcast %cst_321 : f32 to vector<8x128xf32>
    %781 = arith.mulf %780, %779 : vector<8x128xf32>
    %782 = arith.select %5, %779, %781 : vector<8x128xi1>, vector<8x128xf32>
    %783 = math.tanh %782 : vector<8x128xf32>
    %cst_322 = arith.constant 5.000000e-01 : f32
    %784 = vector.broadcast %cst_322 : f32 to vector<8x128xf32>
    %785 = arith.mulf %784, %783 : vector<8x128xf32>
    %cst_323 = arith.constant 5.000000e-01 : f32
    %786 = vector.broadcast %cst_323 : f32 to vector<8x128xf32>
    %787 = arith.addf %785, %786 : vector<8x128xf32>
    %788 = arith.select %5, %783, %787 : vector<8x128xi1>, vector<8x128xf32>
    %789 = vector.extract_strided_slice %788 {offsets = [0, 0], sizes = [8, 32], strides = [1, 1]} : vector<8x128xf32> to vector<8x32xf32>
    %790 = vector.extract_strided_slice %788 {offsets = [0, 32], sizes = [8, 32], strides = [1, 1]} : vector<8x128xf32> to vector<8x32xf32>
    %791 = vector.extract_strided_slice %788 {offsets = [0, 64], sizes = [8, 32], strides = [1, 1]} : vector<8x128xf32> to vector<8x32xf32>
    %792 = vector.extract_strided_slice %788 {offsets = [0, 96], sizes = [8, 32], strides = [1, 1]} : vector<8x128xf32> to vector<8x32xf32>
    %793 = arith.mulf %790, %635 : vector<8x32xf32>
    %794 = arith.mulf %789, %791 : vector<8x32xf32>
    %795 = arith.addf %793, %794 : vector<8x32xf32>
    %796 = math.tanh %795 : vector<8x32xf32>
    %797 = arith.mulf %792, %796 : vector<8x32xf32>
    %c2_324 = arith.constant 2 : index
    %c0_325 = arith.constant 0 : index
    %c0_326 = arith.constant 0 : index
    %798 = vector.load %arg2[%c2_324, %c0_325, %c0_326] : memref<5x32x128xf32, #tpu.memory_space<vmem>>, vector<1x32x128xf32>
    %799 = vector.shape_cast %798 : vector<1x32x128xf32> to vector<32x128xf32>
    %cst_327 = arith.constant dense<0.000000e+00> : vector<8x128xf32>
    %800 = tpu.matmul %637, %799, %cst_327 {dimension_numbers = #tpu.dot_dimension_numbers<[1], [0], [0], [1], [0, 0, 1, 1], [], []>} : vector<8x32xf32>, vector<32x128xf32>, vector<8x128xf32> -> vector<8x128xf32>
    %c3_328 = arith.constant 3 : index
    %c0_329 = arith.constant 0 : index
    %c0_330 = arith.constant 0 : index
    %801 = vector.load %arg3[%c3_328, %c0_329, %c0_330] : memref<6x32x128xf32, #tpu.memory_space<vmem>>, vector<1x32x128xf32>
    %802 = vector.shape_cast %801 : vector<1x32x128xf32> to vector<32x128xf32>
    %cst_331 = arith.constant dense<0.000000e+00> : vector<8x128xf32>
    %803 = tpu.matmul %663, %802, %cst_331 {dimension_numbers = #tpu.dot_dimension_numbers<[1], [0], [0], [1], [0, 0, 1, 1], [], []>} : vector<8x32xf32>, vector<32x128xf32>, vector<8x128xf32> -> vector<8x128xf32>
    %804 = arith.addf %800, %803 : vector<8x128xf32>
    %805 = arith.addf %804, %17 : vector<8x128xf32>
    %cst_332 = arith.constant 5.000000e-01 : f32
    %806 = vector.broadcast %cst_332 : f32 to vector<8x128xf32>
    %807 = arith.mulf %806, %805 : vector<8x128xf32>
    %808 = arith.select %5, %805, %807 : vector<8x128xi1>, vector<8x128xf32>
    %809 = math.tanh %808 : vector<8x128xf32>
    %cst_333 = arith.constant 5.000000e-01 : f32
    %810 = vector.broadcast %cst_333 : f32 to vector<8x128xf32>
    %811 = arith.mulf %810, %809 : vector<8x128xf32>
    %cst_334 = arith.constant 5.000000e-01 : f32
    %812 = vector.broadcast %cst_334 : f32 to vector<8x128xf32>
    %813 = arith.addf %811, %812 : vector<8x128xf32>
    %814 = arith.select %5, %809, %813 : vector<8x128xi1>, vector<8x128xf32>
    %815 = vector.extract_strided_slice %814 {offsets = [0, 0], sizes = [8, 32], strides = [1, 1]} : vector<8x128xf32> to vector<8x32xf32>
    %816 = vector.extract_strided_slice %814 {offsets = [0, 32], sizes = [8, 32], strides = [1, 1]} : vector<8x128xf32> to vector<8x32xf32>
    %817 = vector.extract_strided_slice %814 {offsets = [0, 64], sizes = [8, 32], strides = [1, 1]} : vector<8x128xf32> to vector<8x32xf32>
    %818 = vector.extract_strided_slice %814 {offsets = [0, 96], sizes = [8, 32], strides = [1, 1]} : vector<8x128xf32> to vector<8x32xf32>
    %819 = arith.mulf %816, %661 : vector<8x32xf32>
    %820 = arith.mulf %815, %817 : vector<8x32xf32>
    %821 = arith.addf %819, %820 : vector<8x32xf32>
    %822 = math.tanh %821 : vector<8x32xf32>
    %823 = arith.mulf %818, %822 : vector<8x32xf32>
    %c3_335 = arith.constant 3 : index
    %c0_336 = arith.constant 0 : index
    %c0_337 = arith.constant 0 : index
    %824 = vector.load %arg2[%c3_335, %c0_336, %c0_337] : memref<5x32x128xf32, #tpu.memory_space<vmem>>, vector<1x32x128xf32>
    %825 = vector.shape_cast %824 : vector<1x32x128xf32> to vector<32x128xf32>
    %cst_338 = arith.constant dense<0.000000e+00> : vector<8x128xf32>
    %826 = tpu.matmul %663, %825, %cst_338 {dimension_numbers = #tpu.dot_dimension_numbers<[1], [0], [0], [1], [0, 0, 1, 1], [], []>} : vector<8x32xf32>, vector<32x128xf32>, vector<8x128xf32> -> vector<8x128xf32>
    %c4_339 = arith.constant 4 : index
    %c0_340 = arith.constant 0 : index
    %c0_341 = arith.constant 0 : index
    %827 = vector.load %arg3[%c4_339, %c0_340, %c0_341] : memref<6x32x128xf32, #tpu.memory_space<vmem>>, vector<1x32x128xf32>
    %828 = vector.shape_cast %827 : vector<1x32x128xf32> to vector<32x128xf32>
    %cst_342 = arith.constant dense<0.000000e+00> : vector<8x128xf32>
    %829 = tpu.matmul %689, %828, %cst_342 {dimension_numbers = #tpu.dot_dimension_numbers<[1], [0], [0], [1], [0, 0, 1, 1], [], []>} : vector<8x32xf32>, vector<32x128xf32>, vector<8x128xf32> -> vector<8x128xf32>
    %830 = arith.addf %826, %829 : vector<8x128xf32>
    %831 = arith.addf %830, %21 : vector<8x128xf32>
    %cst_343 = arith.constant 5.000000e-01 : f32
    %832 = vector.broadcast %cst_343 : f32 to vector<8x128xf32>
    %833 = arith.mulf %832, %831 : vector<8x128xf32>
    %834 = arith.select %5, %831, %833 : vector<8x128xi1>, vector<8x128xf32>
    %835 = math.tanh %834 : vector<8x128xf32>
    %cst_344 = arith.constant 5.000000e-01 : f32
    %836 = vector.broadcast %cst_344 : f32 to vector<8x128xf32>
    %837 = arith.mulf %836, %835 : vector<8x128xf32>
    %cst_345 = arith.constant 5.000000e-01 : f32
    %838 = vector.broadcast %cst_345 : f32 to vector<8x128xf32>
    %839 = arith.addf %837, %838 : vector<8x128xf32>
    %840 = arith.select %5, %835, %839 : vector<8x128xi1>, vector<8x128xf32>
    %841 = vector.extract_strided_slice %840 {offsets = [0, 0], sizes = [8, 32], strides = [1, 1]} : vector<8x128xf32> to vector<8x32xf32>
    %842 = vector.extract_strided_slice %840 {offsets = [0, 32], sizes = [8, 32], strides = [1, 1]} : vector<8x128xf32> to vector<8x32xf32>
    %843 = vector.extract_strided_slice %840 {offsets = [0, 64], sizes = [8, 32], strides = [1, 1]} : vector<8x128xf32> to vector<8x32xf32>
    %844 = vector.extract_strided_slice %840 {offsets = [0, 96], sizes = [8, 32], strides = [1, 1]} : vector<8x128xf32> to vector<8x32xf32>
    %845 = arith.mulf %842, %687 : vector<8x32xf32>
    %846 = arith.mulf %841, %843 : vector<8x32xf32>
    %847 = arith.addf %845, %846 : vector<8x32xf32>
    %848 = math.tanh %847 : vector<8x32xf32>
    %849 = arith.mulf %844, %848 : vector<8x32xf32>
    %c4_346 = arith.constant 4 : index
    %c0_347 = arith.constant 0 : index
    %c0_348 = arith.constant 0 : index
    %850 = vector.load %arg2[%c4_346, %c0_347, %c0_348] : memref<5x32x128xf32, #tpu.memory_space<vmem>>, vector<1x32x128xf32>
    %851 = vector.shape_cast %850 : vector<1x32x128xf32> to vector<32x128xf32>
    %cst_349 = arith.constant dense<0.000000e+00> : vector<8x128xf32>
    %852 = tpu.matmul %689, %851, %cst_349 {dimension_numbers = #tpu.dot_dimension_numbers<[1], [0], [0], [1], [0, 0, 1, 1], [], []>} : vector<8x32xf32>, vector<32x128xf32>, vector<8x128xf32> -> vector<8x128xf32>
    %c5_350 = arith.constant 5 : index
    %c0_351 = arith.constant 0 : index
    %c0_352 = arith.constant 0 : index
    %853 = vector.load %arg3[%c5_350, %c0_351, %c0_352] : memref<6x32x128xf32, #tpu.memory_space<vmem>>, vector<1x32x128xf32>
    %854 = vector.shape_cast %853 : vector<1x32x128xf32> to vector<32x128xf32>
    %cst_353 = arith.constant dense<0.000000e+00> : vector<8x128xf32>
    %855 = tpu.matmul %715, %854, %cst_353 {dimension_numbers = #tpu.dot_dimension_numbers<[1], [0], [0], [1], [0, 0, 1, 1], [], []>} : vector<8x32xf32>, vector<32x128xf32>, vector<8x128xf32> -> vector<8x128xf32>
    %856 = arith.addf %852, %855 : vector<8x128xf32>
    %857 = arith.addf %856, %25 : vector<8x128xf32>
    %cst_354 = arith.constant 5.000000e-01 : f32
    %858 = vector.broadcast %cst_354 : f32 to vector<8x128xf32>
    %859 = arith.mulf %858, %857 : vector<8x128xf32>
    %860 = arith.select %5, %857, %859 : vector<8x128xi1>, vector<8x128xf32>
    %861 = math.tanh %860 : vector<8x128xf32>
    %cst_355 = arith.constant 5.000000e-01 : f32
    %862 = vector.broadcast %cst_355 : f32 to vector<8x128xf32>
    %863 = arith.mulf %862, %861 : vector<8x128xf32>
    %cst_356 = arith.constant 5.000000e-01 : f32
    %864 = vector.broadcast %cst_356 : f32 to vector<8x128xf32>
    %865 = arith.addf %863, %864 : vector<8x128xf32>
    %866 = arith.select %5, %861, %865 : vector<8x128xi1>, vector<8x128xf32>
    %867 = vector.extract_strided_slice %866 {offsets = [0, 0], sizes = [8, 32], strides = [1, 1]} : vector<8x128xf32> to vector<8x32xf32>
    %868 = vector.extract_strided_slice %866 {offsets = [0, 32], sizes = [8, 32], strides = [1, 1]} : vector<8x128xf32> to vector<8x32xf32>
    %869 = vector.extract_strided_slice %866 {offsets = [0, 64], sizes = [8, 32], strides = [1, 1]} : vector<8x128xf32> to vector<8x32xf32>
    %870 = vector.extract_strided_slice %866 {offsets = [0, 96], sizes = [8, 32], strides = [1, 1]} : vector<8x128xf32> to vector<8x32xf32>
    %871 = arith.mulf %868, %713 : vector<8x32xf32>
    %872 = arith.mulf %867, %869 : vector<8x32xf32>
    %873 = arith.addf %871, %872 : vector<8x32xf32>
    %874 = math.tanh %873 : vector<8x32xf32>
    %875 = arith.mulf %870, %874 : vector<8x32xf32>
    %c16 = arith.constant 16 : index
    %c0_357 = arith.constant 0 : index
    %876 = vector.load %arg16[%c16, %c0_357] : memref<64x32xf32, #tpu.memory_space<vmem>>, vector<8x32xf32>
    tpu.vector_store %arg16[%c16, %c0_357], %875 {strides = array<i32>} : memref<64x32xf32, #tpu.memory_space<vmem>>, vector<8x32xf32>,
    %c0_358 = arith.constant 0 : index
    %c0_359 = arith.constant 0 : index
    %c0_360 = arith.constant 0 : index
    %877 = vector.load %arg2[%c0_358, %c0_359, %c0_360] : memref<5x32x128xf32, #tpu.memory_space<vmem>>, vector<1x32x128xf32>
    %878 = vector.shape_cast %877 : vector<1x32x128xf32> to vector<32x128xf32>
    %cst_361 = arith.constant dense<0.000000e+00> : vector<8x128xf32>
    %879 = tpu.matmul %739, %878, %cst_361 {dimension_numbers = #tpu.dot_dimension_numbers<[1], [0], [0], [1], [0, 0, 1, 1], [], []>} : vector<8x32xf32>, vector<32x128xf32>, vector<8x128xf32> -> vector<8x128xf32>
    %c1_362 = arith.constant 1 : index
    %c0_363 = arith.constant 0 : index
    %c0_364 = arith.constant 0 : index
    %880 = vector.load %arg3[%c1_362, %c0_363, %c0_364] : memref<6x32x128xf32, #tpu.memory_space<vmem>>, vector<1x32x128xf32>
    %881 = vector.shape_cast %880 : vector<1x32x128xf32> to vector<32x128xf32>
    %cst_365 = arith.constant dense<0.000000e+00> : vector<8x128xf32>
    %882 = tpu.matmul %771, %881, %cst_365 {dimension_numbers = #tpu.dot_dimension_numbers<[1], [0], [0], [1], [0, 0, 1, 1], [], []>} : vector<8x32xf32>, vector<32x128xf32>, vector<8x128xf32> -> vector<8x128xf32>
    %883 = arith.addf %879, %882 : vector<8x128xf32>
    %884 = arith.addf %883, %9 : vector<8x128xf32>
    %cst_366 = arith.constant 5.000000e-01 : f32
    %885 = vector.broadcast %cst_366 : f32 to vector<8x128xf32>
    %886 = arith.mulf %885, %884 : vector<8x128xf32>
    %887 = arith.select %5, %884, %886 : vector<8x128xi1>, vector<8x128xf32>
    %888 = math.tanh %887 : vector<8x128xf32>
    %cst_367 = arith.constant 5.000000e-01 : f32
    %889 = vector.broadcast %cst_367 : f32 to vector<8x128xf32>
    %890 = arith.mulf %889, %888 : vector<8x128xf32>
    %cst_368 = arith.constant 5.000000e-01 : f32
    %891 = vector.broadcast %cst_368 : f32 to vector<8x128xf32>
    %892 = arith.addf %890, %891 : vector<8x128xf32>
    %893 = arith.select %5, %888, %892 : vector<8x128xi1>, vector<8x128xf32>
    %894 = vector.extract_strided_slice %893 {offsets = [0, 0], sizes = [8, 32], strides = [1, 1]} : vector<8x128xf32> to vector<8x32xf32>
    %895 = vector.extract_strided_slice %893 {offsets = [0, 32], sizes = [8, 32], strides = [1, 1]} : vector<8x128xf32> to vector<8x32xf32>
    %896 = vector.extract_strided_slice %893 {offsets = [0, 64], sizes = [8, 32], strides = [1, 1]} : vector<8x128xf32> to vector<8x32xf32>
    %897 = vector.extract_strided_slice %893 {offsets = [0, 96], sizes = [8, 32], strides = [1, 1]} : vector<8x128xf32> to vector<8x32xf32>
    %898 = arith.mulf %895, %769 : vector<8x32xf32>
    %899 = arith.mulf %894, %896 : vector<8x32xf32>
    %900 = arith.addf %898, %899 : vector<8x32xf32>
    %901 = math.tanh %900 : vector<8x32xf32>
    %902 = arith.mulf %897, %901 : vector<8x32xf32>
    %c1_369 = arith.constant 1 : index
    %c0_370 = arith.constant 0 : index
    %c0_371 = arith.constant 0 : index
    %903 = vector.load %arg14[%c1_369, %c0_370, %c0_371] : memref<6x8x32xf32, #tpu.memory_space<vmem>>, vector<1x8x32xf32>
    %904 = vector.shape_cast %903 : vector<1x8x32xf32> to vector<8x32xf32>
    %905 = vector.shape_cast %902 : vector<8x32xf32> to vector<1x8x32xf32>
    tpu.vector_store %arg14[%c1_369, %c0_370, %c0_371], %905 {strides = array<i32>} : memref<6x8x32xf32, #tpu.memory_space<vmem>>, vector<1x8x32xf32>,
    %c1_372 = arith.constant 1 : index
    %c0_373 = arith.constant 0 : index
    %c0_374 = arith.constant 0 : index
    %906 = vector.load %arg15[%c1_372, %c0_373, %c0_374] : memref<6x8x32xf32, #tpu.memory_space<vmem>>, vector<1x8x32xf32>
    %907 = vector.shape_cast %906 : vector<1x8x32xf32> to vector<8x32xf32>
    %908 = vector.shape_cast %900 : vector<8x32xf32> to vector<1x8x32xf32>
    tpu.vector_store %arg15[%c1_372, %c0_373, %c0_374], %908 {strides = array<i32>} : memref<6x8x32xf32, #tpu.memory_space<vmem>>, vector<1x8x32xf32>,
    %c1_375 = arith.constant 1 : index
    %c0_376 = arith.constant 0 : index
    %c0_377 = arith.constant 0 : index
    %909 = vector.load %arg2[%c1_375, %c0_376, %c0_377] : memref<5x32x128xf32, #tpu.memory_space<vmem>>, vector<1x32x128xf32>
    %910 = vector.shape_cast %909 : vector<1x32x128xf32> to vector<32x128xf32>
    %cst_378 = arith.constant dense<0.000000e+00> : vector<8x128xf32>
    %911 = tpu.matmul %771, %910, %cst_378 {dimension_numbers = #tpu.dot_dimension_numbers<[1], [0], [0], [1], [0, 0, 1, 1], [], []>} : vector<8x32xf32>, vector<32x128xf32>, vector<8x128xf32> -> vector<8x128xf32>
    %c2_379 = arith.constant 2 : index
    %c0_380 = arith.constant 0 : index
    %c0_381 = arith.constant 0 : index
    %912 = vector.load %arg3[%c2_379, %c0_380, %c0_381] : memref<6x32x128xf32, #tpu.memory_space<vmem>>, vector<1x32x128xf32>
    %913 = vector.shape_cast %912 : vector<1x32x128xf32> to vector<32x128xf32>
    %cst_382 = arith.constant dense<0.000000e+00> : vector<8x128xf32>
    %914 = tpu.matmul %797, %913, %cst_382 {dimension_numbers = #tpu.dot_dimension_numbers<[1], [0], [0], [1], [0, 0, 1, 1], [], []>} : vector<8x32xf32>, vector<32x128xf32>, vector<8x128xf32> -> vector<8x128xf32>
    %915 = arith.addf %911, %914 : vector<8x128xf32>
    %916 = arith.addf %915, %13 : vector<8x128xf32>
    %cst_383 = arith.constant 5.000000e-01 : f32
    %917 = vector.broadcast %cst_383 : f32 to vector<8x128xf32>
    %918 = arith.mulf %917, %916 : vector<8x128xf32>
    %919 = arith.select %5, %916, %918 : vector<8x128xi1>, vector<8x128xf32>
    %920 = math.tanh %919 : vector<8x128xf32>
    %cst_384 = arith.constant 5.000000e-01 : f32
    %921 = vector.broadcast %cst_384 : f32 to vector<8x128xf32>
    %922 = arith.mulf %921, %920 : vector<8x128xf32>
    %cst_385 = arith.constant 5.000000e-01 : f32
    %923 = vector.broadcast %cst_385 : f32 to vector<8x128xf32>
    %924 = arith.addf %922, %923 : vector<8x128xf32>
    %925 = arith.select %5, %920, %924 : vector<8x128xi1>, vector<8x128xf32>
    %926 = vector.extract_strided_slice %925 {offsets = [0, 0], sizes = [8, 32], strides = [1, 1]} : vector<8x128xf32> to vector<8x32xf32>
    %927 = vector.extract_strided_slice %925 {offsets = [0, 32], sizes = [8, 32], strides = [1, 1]} : vector<8x128xf32> to vector<8x32xf32>
    %928 = vector.extract_strided_slice %925 {offsets = [0, 64], sizes = [8, 32], strides = [1, 1]} : vector<8x128xf32> to vector<8x32xf32>
    %929 = vector.extract_strided_slice %925 {offsets = [0, 96], sizes = [8, 32], strides = [1, 1]} : vector<8x128xf32> to vector<8x32xf32>
    %930 = arith.mulf %927, %795 : vector<8x32xf32>
    %931 = arith.mulf %926, %928 : vector<8x32xf32>
    %932 = arith.addf %930, %931 : vector<8x32xf32>
    %933 = math.tanh %932 : vector<8x32xf32>
    %934 = arith.mulf %929, %933 : vector<8x32xf32>
    %c2_386 = arith.constant 2 : index
    %c0_387 = arith.constant 0 : index
    %c0_388 = arith.constant 0 : index
    %935 = vector.load %arg2[%c2_386, %c0_387, %c0_388] : memref<5x32x128xf32, #tpu.memory_space<vmem>>, vector<1x32x128xf32>
    %936 = vector.shape_cast %935 : vector<1x32x128xf32> to vector<32x128xf32>
    %cst_389 = arith.constant dense<0.000000e+00> : vector<8x128xf32>
    %937 = tpu.matmul %797, %936, %cst_389 {dimension_numbers = #tpu.dot_dimension_numbers<[1], [0], [0], [1], [0, 0, 1, 1], [], []>} : vector<8x32xf32>, vector<32x128xf32>, vector<8x128xf32> -> vector<8x128xf32>
    %c3_390 = arith.constant 3 : index
    %c0_391 = arith.constant 0 : index
    %c0_392 = arith.constant 0 : index
    %938 = vector.load %arg3[%c3_390, %c0_391, %c0_392] : memref<6x32x128xf32, #tpu.memory_space<vmem>>, vector<1x32x128xf32>
    %939 = vector.shape_cast %938 : vector<1x32x128xf32> to vector<32x128xf32>
    %cst_393 = arith.constant dense<0.000000e+00> : vector<8x128xf32>
    %940 = tpu.matmul %823, %939, %cst_393 {dimension_numbers = #tpu.dot_dimension_numbers<[1], [0], [0], [1], [0, 0, 1, 1], [], []>} : vector<8x32xf32>, vector<32x128xf32>, vector<8x128xf32> -> vector<8x128xf32>
    %941 = arith.addf %937, %940 : vector<8x128xf32>
    %942 = arith.addf %941, %17 : vector<8x128xf32>
    %cst_394 = arith.constant 5.000000e-01 : f32
    %943 = vector.broadcast %cst_394 : f32 to vector<8x128xf32>
    %944 = arith.mulf %943, %942 : vector<8x128xf32>
    %945 = arith.select %5, %942, %944 : vector<8x128xi1>, vector<8x128xf32>
    %946 = math.tanh %945 : vector<8x128xf32>
    %cst_395 = arith.constant 5.000000e-01 : f32
    %947 = vector.broadcast %cst_395 : f32 to vector<8x128xf32>
    %948 = arith.mulf %947, %946 : vector<8x128xf32>
    %cst_396 = arith.constant 5.000000e-01 : f32
    %949 = vector.broadcast %cst_396 : f32 to vector<8x128xf32>
    %950 = arith.addf %948, %949 : vector<8x128xf32>
    %951 = arith.select %5, %946, %950 : vector<8x128xi1>, vector<8x128xf32>
    %952 = vector.extract_strided_slice %951 {offsets = [0, 0], sizes = [8, 32], strides = [1, 1]} : vector<8x128xf32> to vector<8x32xf32>
    %953 = vector.extract_strided_slice %951 {offsets = [0, 32], sizes = [8, 32], strides = [1, 1]} : vector<8x128xf32> to vector<8x32xf32>
    %954 = vector.extract_strided_slice %951 {offsets = [0, 64], sizes = [8, 32], strides = [1, 1]} : vector<8x128xf32> to vector<8x32xf32>
    %955 = vector.extract_strided_slice %951 {offsets = [0, 96], sizes = [8, 32], strides = [1, 1]} : vector<8x128xf32> to vector<8x32xf32>
    %956 = arith.mulf %953, %821 : vector<8x32xf32>
    %957 = arith.mulf %952, %954 : vector<8x32xf32>
    %958 = arith.addf %956, %957 : vector<8x32xf32>
    %959 = math.tanh %958 : vector<8x32xf32>
    %960 = arith.mulf %955, %959 : vector<8x32xf32>
    %c3_397 = arith.constant 3 : index
    %c0_398 = arith.constant 0 : index
    %c0_399 = arith.constant 0 : index
    %961 = vector.load %arg2[%c3_397, %c0_398, %c0_399] : memref<5x32x128xf32, #tpu.memory_space<vmem>>, vector<1x32x128xf32>
    %962 = vector.shape_cast %961 : vector<1x32x128xf32> to vector<32x128xf32>
    %cst_400 = arith.constant dense<0.000000e+00> : vector<8x128xf32>
    %963 = tpu.matmul %823, %962, %cst_400 {dimension_numbers = #tpu.dot_dimension_numbers<[1], [0], [0], [1], [0, 0, 1, 1], [], []>} : vector<8x32xf32>, vector<32x128xf32>, vector<8x128xf32> -> vector<8x128xf32>
    %c4_401 = arith.constant 4 : index
    %c0_402 = arith.constant 0 : index
    %c0_403 = arith.constant 0 : index
    %964 = vector.load %arg3[%c4_401, %c0_402, %c0_403] : memref<6x32x128xf32, #tpu.memory_space<vmem>>, vector<1x32x128xf32>
    %965 = vector.shape_cast %964 : vector<1x32x128xf32> to vector<32x128xf32>
    %cst_404 = arith.constant dense<0.000000e+00> : vector<8x128xf32>
    %966 = tpu.matmul %849, %965, %cst_404 {dimension_numbers = #tpu.dot_dimension_numbers<[1], [0], [0], [1], [0, 0, 1, 1], [], []>} : vector<8x32xf32>, vector<32x128xf32>, vector<8x128xf32> -> vector<8x128xf32>
    %967 = arith.addf %963, %966 : vector<8x128xf32>
    %968 = arith.addf %967, %21 : vector<8x128xf32>
    %cst_405 = arith.constant 5.000000e-01 : f32
    %969 = vector.broadcast %cst_405 : f32 to vector<8x128xf32>
    %970 = arith.mulf %969, %968 : vector<8x128xf32>
    %971 = arith.select %5, %968, %970 : vector<8x128xi1>, vector<8x128xf32>
    %972 = math.tanh %971 : vector<8x128xf32>
    %cst_406 = arith.constant 5.000000e-01 : f32
    %973 = vector.broadcast %cst_406 : f32 to vector<8x128xf32>
    %974 = arith.mulf %973, %972 : vector<8x128xf32>
    %cst_407 = arith.constant 5.000000e-01 : f32
    %975 = vector.broadcast %cst_407 : f32 to vector<8x128xf32>
    %976 = arith.addf %974, %975 : vector<8x128xf32>
    %977 = arith.select %5, %972, %976 : vector<8x128xi1>, vector<8x128xf32>
    %978 = vector.extract_strided_slice %977 {offsets = [0, 0], sizes = [8, 32], strides = [1, 1]} : vector<8x128xf32> to vector<8x32xf32>
    %979 = vector.extract_strided_slice %977 {offsets = [0, 32], sizes = [8, 32], strides = [1, 1]} : vector<8x128xf32> to vector<8x32xf32>
    %980 = vector.extract_strided_slice %977 {offsets = [0, 64], sizes = [8, 32], strides = [1, 1]} : vector<8x128xf32> to vector<8x32xf32>
    %981 = vector.extract_strided_slice %977 {offsets = [0, 96], sizes = [8, 32], strides = [1, 1]} : vector<8x128xf32> to vector<8x32xf32>
    %982 = arith.mulf %979, %847 : vector<8x32xf32>
    %983 = arith.mulf %978, %980 : vector<8x32xf32>
    %984 = arith.addf %982, %983 : vector<8x32xf32>
    %985 = math.tanh %984 : vector<8x32xf32>
    %986 = arith.mulf %981, %985 : vector<8x32xf32>
    %c4_408 = arith.constant 4 : index
    %c0_409 = arith.constant 0 : index
    %c0_410 = arith.constant 0 : index
    %987 = vector.load %arg2[%c4_408, %c0_409, %c0_410] : memref<5x32x128xf32, #tpu.memory_space<vmem>>, vector<1x32x128xf32>
    %988 = vector.shape_cast %987 : vector<1x32x128xf32> to vector<32x128xf32>
    %cst_411 = arith.constant dense<0.000000e+00> : vector<8x128xf32>
    %989 = tpu.matmul %849, %988, %cst_411 {dimension_numbers = #tpu.dot_dimension_numbers<[1], [0], [0], [1], [0, 0, 1, 1], [], []>} : vector<8x32xf32>, vector<32x128xf32>, vector<8x128xf32> -> vector<8x128xf32>
    %c5_412 = arith.constant 5 : index
    %c0_413 = arith.constant 0 : index
    %c0_414 = arith.constant 0 : index
    %990 = vector.load %arg3[%c5_412, %c0_413, %c0_414] : memref<6x32x128xf32, #tpu.memory_space<vmem>>, vector<1x32x128xf32>
    %991 = vector.shape_cast %990 : vector<1x32x128xf32> to vector<32x128xf32>
    %cst_415 = arith.constant dense<0.000000e+00> : vector<8x128xf32>
    %992 = tpu.matmul %875, %991, %cst_415 {dimension_numbers = #tpu.dot_dimension_numbers<[1], [0], [0], [1], [0, 0, 1, 1], [], []>} : vector<8x32xf32>, vector<32x128xf32>, vector<8x128xf32> -> vector<8x128xf32>
    %993 = arith.addf %989, %992 : vector<8x128xf32>
    %994 = arith.addf %993, %25 : vector<8x128xf32>
    %cst_416 = arith.constant 5.000000e-01 : f32
    %995 = vector.broadcast %cst_416 : f32 to vector<8x128xf32>
    %996 = arith.mulf %995, %994 : vector<8x128xf32>
    %997 = arith.select %5, %994, %996 : vector<8x128xi1>, vector<8x128xf32>
    %998 = math.tanh %997 : vector<8x128xf32>
    %cst_417 = arith.constant 5.000000e-01 : f32
    %999 = vector.broadcast %cst_417 : f32 to vector<8x128xf32>
    %1000 = arith.mulf %999, %998 : vector<8x128xf32>
    %cst_418 = arith.constant 5.000000e-01 : f32
    %1001 = vector.broadcast %cst_418 : f32 to vector<8x128xf32>
    %1002 = arith.addf %1000, %1001 : vector<8x128xf32>
    %1003 = arith.select %5, %998, %1002 : vector<8x128xi1>, vector<8x128xf32>
    %1004 = vector.extract_strided_slice %1003 {offsets = [0, 0], sizes = [8, 32], strides = [1, 1]} : vector<8x128xf32> to vector<8x32xf32>
    %1005 = vector.extract_strided_slice %1003 {offsets = [0, 32], sizes = [8, 32], strides = [1, 1]} : vector<8x128xf32> to vector<8x32xf32>
    %1006 = vector.extract_strided_slice %1003 {offsets = [0, 64], sizes = [8, 32], strides = [1, 1]} : vector<8x128xf32> to vector<8x32xf32>
    %1007 = vector.extract_strided_slice %1003 {offsets = [0, 96], sizes = [8, 32], strides = [1, 1]} : vector<8x128xf32> to vector<8x32xf32>
    %1008 = arith.mulf %1005, %873 : vector<8x32xf32>
    %1009 = arith.mulf %1004, %1006 : vector<8x32xf32>
    %1010 = arith.addf %1008, %1009 : vector<8x32xf32>
    %1011 = math.tanh %1010 : vector<8x32xf32>
    %1012 = arith.mulf %1007, %1011 : vector<8x32xf32>
    %c24 = arith.constant 24 : index
    %c0_419 = arith.constant 0 : index
    %1013 = vector.load %arg16[%c24, %c0_419] : memref<64x32xf32, #tpu.memory_space<vmem>>, vector<8x32xf32>
    tpu.vector_store %arg16[%c24, %c0_419], %1012 {strides = array<i32>} : memref<64x32xf32, #tpu.memory_space<vmem>>, vector<8x32xf32>,
    %c1_420 = arith.constant 1 : index
    %c0_421 = arith.constant 0 : index
    %c0_422 = arith.constant 0 : index
    %1014 = vector.load %arg2[%c1_420, %c0_421, %c0_422] : memref<5x32x128xf32, #tpu.memory_space<vmem>>, vector<1x32x128xf32>
    %1015 = vector.shape_cast %1014 : vector<1x32x128xf32> to vector<32x128xf32>
    %cst_423 = arith.constant dense<0.000000e+00> : vector<8x128xf32>
    %1016 = tpu.matmul %902, %1015, %cst_423 {dimension_numbers = #tpu.dot_dimension_numbers<[1], [0], [0], [1], [0, 0, 1, 1], [], []>} : vector<8x32xf32>, vector<32x128xf32>, vector<8x128xf32> -> vector<8x128xf32>
    %c2_424 = arith.constant 2 : index
    %c0_425 = arith.constant 0 : index
    %c0_426 = arith.constant 0 : index
    %1017 = vector.load %arg3[%c2_424, %c0_425, %c0_426] : memref<6x32x128xf32, #tpu.memory_space<vmem>>, vector<1x32x128xf32>
    %1018 = vector.shape_cast %1017 : vector<1x32x128xf32> to vector<32x128xf32>
    %cst_427 = arith.constant dense<0.000000e+00> : vector<8x128xf32>
    %1019 = tpu.matmul %934, %1018, %cst_427 {dimension_numbers = #tpu.dot_dimension_numbers<[1], [0], [0], [1], [0, 0, 1, 1], [], []>} : vector<8x32xf32>, vector<32x128xf32>, vector<8x128xf32> -> vector<8x128xf32>
    %1020 = arith.addf %1016, %1019 : vector<8x128xf32>
    %1021 = arith.addf %1020, %13 : vector<8x128xf32>
    %cst_428 = arith.constant 5.000000e-01 : f32
    %1022 = vector.broadcast %cst_428 : f32 to vector<8x128xf32>
    %1023 = arith.mulf %1022, %1021 : vector<8x128xf32>
    %1024 = arith.select %5, %1021, %1023 : vector<8x128xi1>, vector<8x128xf32>
    %1025 = math.tanh %1024 : vector<8x128xf32>
    %cst_429 = arith.constant 5.000000e-01 : f32
    %1026 = vector.broadcast %cst_429 : f32 to vector<8x128xf32>
    %1027 = arith.mulf %1026, %1025 : vector<8x128xf32>
    %cst_430 = arith.constant 5.000000e-01 : f32
    %1028 = vector.broadcast %cst_430 : f32 to vector<8x128xf32>
    %1029 = arith.addf %1027, %1028 : vector<8x128xf32>
    %1030 = arith.select %5, %1025, %1029 : vector<8x128xi1>, vector<8x128xf32>
    %1031 = vector.extract_strided_slice %1030 {offsets = [0, 0], sizes = [8, 32], strides = [1, 1]} : vector<8x128xf32> to vector<8x32xf32>
    %1032 = vector.extract_strided_slice %1030 {offsets = [0, 32], sizes = [8, 32], strides = [1, 1]} : vector<8x128xf32> to vector<8x32xf32>
    %1033 = vector.extract_strided_slice %1030 {offsets = [0, 64], sizes = [8, 32], strides = [1, 1]} : vector<8x128xf32> to vector<8x32xf32>
    %1034 = vector.extract_strided_slice %1030 {offsets = [0, 96], sizes = [8, 32], strides = [1, 1]} : vector<8x128xf32> to vector<8x32xf32>
    %1035 = arith.mulf %1032, %932 : vector<8x32xf32>
    %1036 = arith.mulf %1031, %1033 : vector<8x32xf32>
    %1037 = arith.addf %1035, %1036 : vector<8x32xf32>
    %1038 = math.tanh %1037 : vector<8x32xf32>
    %1039 = arith.mulf %1034, %1038 : vector<8x32xf32>
    %c2_431 = arith.constant 2 : index
    %c0_432 = arith.constant 0 : index
    %c0_433 = arith.constant 0 : index
    %1040 = vector.load %arg14[%c2_431, %c0_432, %c0_433] : memref<6x8x32xf32, #tpu.memory_space<vmem>>, vector<1x8x32xf32>
    %1041 = vector.shape_cast %1040 : vector<1x8x32xf32> to vector<8x32xf32>
    %1042 = vector.shape_cast %1039 : vector<8x32xf32> to vector<1x8x32xf32>
    tpu.vector_store %arg14[%c2_431, %c0_432, %c0_433], %1042 {strides = array<i32>} : memref<6x8x32xf32, #tpu.memory_space<vmem>>, vector<1x8x32xf32>,
    %c2_434 = arith.constant 2 : index
    %c0_435 = arith.constant 0 : index
    %c0_436 = arith.constant 0 : index
    %1043 = vector.load %arg15[%c2_434, %c0_435, %c0_436] : memref<6x8x32xf32, #tpu.memory_space<vmem>>, vector<1x8x32xf32>
    %1044 = vector.shape_cast %1043 : vector<1x8x32xf32> to vector<8x32xf32>
    %1045 = vector.shape_cast %1037 : vector<8x32xf32> to vector<1x8x32xf32>
    tpu.vector_store %arg15[%c2_434, %c0_435, %c0_436], %1045 {strides = array<i32>} : memref<6x8x32xf32, #tpu.memory_space<vmem>>, vector<1x8x32xf32>,
    %c2_437 = arith.constant 2 : index
    %c0_438 = arith.constant 0 : index
    %c0_439 = arith.constant 0 : index
    %1046 = vector.load %arg2[%c2_437, %c0_438, %c0_439] : memref<5x32x128xf32, #tpu.memory_space<vmem>>, vector<1x32x128xf32>
    %1047 = vector.shape_cast %1046 : vector<1x32x128xf32> to vector<32x128xf32>
    %cst_440 = arith.constant dense<0.000000e+00> : vector<8x128xf32>
    %1048 = tpu.matmul %934, %1047, %cst_440 {dimension_numbers = #tpu.dot_dimension_numbers<[1], [0], [0], [1], [0, 0, 1, 1], [], []>} : vector<8x32xf32>, vector<32x128xf32>, vector<8x128xf32> -> vector<8x128xf32>
    %c3_441 = arith.constant 3 : index
    %c0_442 = arith.constant 0 : index
    %c0_443 = arith.constant 0 : index
    %1049 = vector.load %arg3[%c3_441, %c0_442, %c0_443] : memref<6x32x128xf32, #tpu.memory_space<vmem>>, vector<1x32x128xf32>
    %1050 = vector.shape_cast %1049 : vector<1x32x128xf32> to vector<32x128xf32>
    %cst_444 = arith.constant dense<0.000000e+00> : vector<8x128xf32>
    %1051 = tpu.matmul %960, %1050, %cst_444 {dimension_numbers = #tpu.dot_dimension_numbers<[1], [0], [0], [1], [0, 0, 1, 1], [], []>} : vector<8x32xf32>, vector<32x128xf32>, vector<8x128xf32> -> vector<8x128xf32>
    %1052 = arith.addf %1048, %1051 : vector<8x128xf32>
    %1053 = arith.addf %1052, %17 : vector<8x128xf32>
    %cst_445 = arith.constant 5.000000e-01 : f32
    %1054 = vector.broadcast %cst_445 : f32 to vector<8x128xf32>
    %1055 = arith.mulf %1054, %1053 : vector<8x128xf32>
    %1056 = arith.select %5, %1053, %1055 : vector<8x128xi1>, vector<8x128xf32>
    %1057 = math.tanh %1056 : vector<8x128xf32>
    %cst_446 = arith.constant 5.000000e-01 : f32
    %1058 = vector.broadcast %cst_446 : f32 to vector<8x128xf32>
    %1059 = arith.mulf %1058, %1057 : vector<8x128xf32>
    %cst_447 = arith.constant 5.000000e-01 : f32
    %1060 = vector.broadcast %cst_447 : f32 to vector<8x128xf32>
    %1061 = arith.addf %1059, %1060 : vector<8x128xf32>
    %1062 = arith.select %5, %1057, %1061 : vector<8x128xi1>, vector<8x128xf32>
    %1063 = vector.extract_strided_slice %1062 {offsets = [0, 0], sizes = [8, 32], strides = [1, 1]} : vector<8x128xf32> to vector<8x32xf32>
    %1064 = vector.extract_strided_slice %1062 {offsets = [0, 32], sizes = [8, 32], strides = [1, 1]} : vector<8x128xf32> to vector<8x32xf32>
    %1065 = vector.extract_strided_slice %1062 {offsets = [0, 64], sizes = [8, 32], strides = [1, 1]} : vector<8x128xf32> to vector<8x32xf32>
    %1066 = vector.extract_strided_slice %1062 {offsets = [0, 96], sizes = [8, 32], strides = [1, 1]} : vector<8x128xf32> to vector<8x32xf32>
    %1067 = arith.mulf %1064, %958 : vector<8x32xf32>
    %1068 = arith.mulf %1063, %1065 : vector<8x32xf32>
    %1069 = arith.addf %1067, %1068 : vector<8x32xf32>
    %1070 = math.tanh %1069 : vector<8x32xf32>
    %1071 = arith.mulf %1066, %1070 : vector<8x32xf32>
    %c3_448 = arith.constant 3 : index
    %c0_449 = arith.constant 0 : index
    %c0_450 = arith.constant 0 : index
    %1072 = vector.load %arg2[%c3_448, %c0_449, %c0_450] : memref<5x32x128xf32, #tpu.memory_space<vmem>>, vector<1x32x128xf32>
    %1073 = vector.shape_cast %1072 : vector<1x32x128xf32> to vector<32x128xf32>
    %cst_451 = arith.constant dense<0.000000e+00> : vector<8x128xf32>
    %1074 = tpu.matmul %960, %1073, %cst_451 {dimension_numbers = #tpu.dot_dimension_numbers<[1], [0], [0], [1], [0, 0, 1, 1], [], []>} : vector<8x32xf32>, vector<32x128xf32>, vector<8x128xf32> -> vector<8x128xf32>
    %c4_452 = arith.constant 4 : index
    %c0_453 = arith.constant 0 : index
    %c0_454 = arith.constant 0 : index
    %1075 = vector.load %arg3[%c4_452, %c0_453, %c0_454] : memref<6x32x128xf32, #tpu.memory_space<vmem>>, vector<1x32x128xf32>
    %1076 = vector.shape_cast %1075 : vector<1x32x128xf32> to vector<32x128xf32>
    %cst_455 = arith.constant dense<0.000000e+00> : vector<8x128xf32>
    %1077 = tpu.matmul %986, %1076, %cst_455 {dimension_numbers = #tpu.dot_dimension_numbers<[1], [0], [0], [1], [0, 0, 1, 1], [], []>} : vector<8x32xf32>, vector<32x128xf32>, vector<8x128xf32> -> vector<8x128xf32>
    %1078 = arith.addf %1074, %1077 : vector<8x128xf32>
    %1079 = arith.addf %1078, %21 : vector<8x128xf32>
    %cst_456 = arith.constant 5.000000e-01 : f32
    %1080 = vector.broadcast %cst_456 : f32 to vector<8x128xf32>
    %1081 = arith.mulf %1080, %1079 : vector<8x128xf32>
    %1082 = arith.select %5, %1079, %1081 : vector<8x128xi1>, vector<8x128xf32>
    %1083 = math.tanh %1082 : vector<8x128xf32>
    %cst_457 = arith.constant 5.000000e-01 : f32
    %1084 = vector.broadcast %cst_457 : f32 to vector<8x128xf32>
    %1085 = arith.mulf %1084, %1083 : vector<8x128xf32>
    %cst_458 = arith.constant 5.000000e-01 : f32
    %1086 = vector.broadcast %cst_458 : f32 to vector<8x128xf32>
    %1087 = arith.addf %1085, %1086 : vector<8x128xf32>
    %1088 = arith.select %5, %1083, %1087 : vector<8x128xi1>, vector<8x128xf32>
    %1089 = vector.extract_strided_slice %1088 {offsets = [0, 0], sizes = [8, 32], strides = [1, 1]} : vector<8x128xf32> to vector<8x32xf32>
    %1090 = vector.extract_strided_slice %1088 {offsets = [0, 32], sizes = [8, 32], strides = [1, 1]} : vector<8x128xf32> to vector<8x32xf32>
    %1091 = vector.extract_strided_slice %1088 {offsets = [0, 64], sizes = [8, 32], strides = [1, 1]} : vector<8x128xf32> to vector<8x32xf32>
    %1092 = vector.extract_strided_slice %1088 {offsets = [0, 96], sizes = [8, 32], strides = [1, 1]} : vector<8x128xf32> to vector<8x32xf32>
    %1093 = arith.mulf %1090, %984 : vector<8x32xf32>
    %1094 = arith.mulf %1089, %1091 : vector<8x32xf32>
    %1095 = arith.addf %1093, %1094 : vector<8x32xf32>
    %1096 = math.tanh %1095 : vector<8x32xf32>
    %1097 = arith.mulf %1092, %1096 : vector<8x32xf32>
    %c4_459 = arith.constant 4 : index
    %c0_460 = arith.constant 0 : index
    %c0_461 = arith.constant 0 : index
    %1098 = vector.load %arg2[%c4_459, %c0_460, %c0_461] : memref<5x32x128xf32, #tpu.memory_space<vmem>>, vector<1x32x128xf32>
    %1099 = vector.shape_cast %1098 : vector<1x32x128xf32> to vector<32x128xf32>
    %cst_462 = arith.constant dense<0.000000e+00> : vector<8x128xf32>
    %1100 = tpu.matmul %986, %1099, %cst_462 {dimension_numbers = #tpu.dot_dimension_numbers<[1], [0], [0], [1], [0, 0, 1, 1], [], []>} : vector<8x32xf32>, vector<32x128xf32>, vector<8x128xf32> -> vector<8x128xf32>
    %c5_463 = arith.constant 5 : index
    %c0_464 = arith.constant 0 : index
    %c0_465 = arith.constant 0 : index
    %1101 = vector.load %arg3[%c5_463, %c0_464, %c0_465] : memref<6x32x128xf32, #tpu.memory_space<vmem>>, vector<1x32x128xf32>
    %1102 = vector.shape_cast %1101 : vector<1x32x128xf32> to vector<32x128xf32>
    %cst_466 = arith.constant dense<0.000000e+00> : vector<8x128xf32>
    %1103 = tpu.matmul %1012, %1102, %cst_466 {dimension_numbers = #tpu.dot_dimension_numbers<[1], [0], [0], [1], [0, 0, 1, 1], [], []>} : vector<8x32xf32>, vector<32x128xf32>, vector<8x128xf32> -> vector<8x128xf32>
    %1104 = arith.addf %1100, %1103 : vector<8x128xf32>
    %1105 = arith.addf %1104, %25 : vector<8x128xf32>
    %cst_467 = arith.constant 5.000000e-01 : f32
    %1106 = vector.broadcast %cst_467 : f32 to vector<8x128xf32>
    %1107 = arith.mulf %1106, %1105 : vector<8x128xf32>
    %1108 = arith.select %5, %1105, %1107 : vector<8x128xi1>, vector<8x128xf32>
    %1109 = math.tanh %1108 : vector<8x128xf32>
    %cst_468 = arith.constant 5.000000e-01 : f32
    %1110 = vector.broadcast %cst_468 : f32 to vector<8x128xf32>
    %1111 = arith.mulf %1110, %1109 : vector<8x128xf32>
    %cst_469 = arith.constant 5.000000e-01 : f32
    %1112 = vector.broadcast %cst_469 : f32 to vector<8x128xf32>
    %1113 = arith.addf %1111, %1112 : vector<8x128xf32>
    %1114 = arith.select %5, %1109, %1113 : vector<8x128xi1>, vector<8x128xf32>
    %1115 = vector.extract_strided_slice %1114 {offsets = [0, 0], sizes = [8, 32], strides = [1, 1]} : vector<8x128xf32> to vector<8x32xf32>
    %1116 = vector.extract_strided_slice %1114 {offsets = [0, 32], sizes = [8, 32], strides = [1, 1]} : vector<8x128xf32> to vector<8x32xf32>
    %1117 = vector.extract_strided_slice %1114 {offsets = [0, 64], sizes = [8, 32], strides = [1, 1]} : vector<8x128xf32> to vector<8x32xf32>
    %1118 = vector.extract_strided_slice %1114 {offsets = [0, 96], sizes = [8, 32], strides = [1, 1]} : vector<8x128xf32> to vector<8x32xf32>
    %1119 = arith.mulf %1116, %1010 : vector<8x32xf32>
    %1120 = arith.mulf %1115, %1117 : vector<8x32xf32>
    %1121 = arith.addf %1119, %1120 : vector<8x32xf32>
    %1122 = math.tanh %1121 : vector<8x32xf32>
    %1123 = arith.mulf %1118, %1122 : vector<8x32xf32>
    %c32 = arith.constant 32 : index
    %c0_470 = arith.constant 0 : index
    %1124 = vector.load %arg16[%c32, %c0_470] : memref<64x32xf32, #tpu.memory_space<vmem>>, vector<8x32xf32>
    tpu.vector_store %arg16[%c32, %c0_470], %1123 {strides = array<i32>} : memref<64x32xf32, #tpu.memory_space<vmem>>, vector<8x32xf32>,
    %c2_471 = arith.constant 2 : index
    %c0_472 = arith.constant 0 : index
    %c0_473 = arith.constant 0 : index
    %1125 = vector.load %arg2[%c2_471, %c0_472, %c0_473] : memref<5x32x128xf32, #tpu.memory_space<vmem>>, vector<1x32x128xf32>
    %1126 = vector.shape_cast %1125 : vector<1x32x128xf32> to vector<32x128xf32>
    %cst_474 = arith.constant dense<0.000000e+00> : vector<8x128xf32>
    %1127 = tpu.matmul %1039, %1126, %cst_474 {dimension_numbers = #tpu.dot_dimension_numbers<[1], [0], [0], [1], [0, 0, 1, 1], [], []>} : vector<8x32xf32>, vector<32x128xf32>, vector<8x128xf32> -> vector<8x128xf32>
    %c3_475 = arith.constant 3 : index
    %c0_476 = arith.constant 0 : index
    %c0_477 = arith.constant 0 : index
    %1128 = vector.load %arg3[%c3_475, %c0_476, %c0_477] : memref<6x32x128xf32, #tpu.memory_space<vmem>>, vector<1x32x128xf32>
    %1129 = vector.shape_cast %1128 : vector<1x32x128xf32> to vector<32x128xf32>
    %cst_478 = arith.constant dense<0.000000e+00> : vector<8x128xf32>
    %1130 = tpu.matmul %1071, %1129, %cst_478 {dimension_numbers = #tpu.dot_dimension_numbers<[1], [0], [0], [1], [0, 0, 1, 1], [], []>} : vector<8x32xf32>, vector<32x128xf32>, vector<8x128xf32> -> vector<8x128xf32>
    %1131 = arith.addf %1127, %1130 : vector<8x128xf32>
    %1132 = arith.addf %1131, %17 : vector<8x128xf32>
    %cst_479 = arith.constant 5.000000e-01 : f32
    %1133 = vector.broadcast %cst_479 : f32 to vector<8x128xf32>
    %1134 = arith.mulf %1133, %1132 : vector<8x128xf32>
    %1135 = arith.select %5, %1132, %1134 : vector<8x128xi1>, vector<8x128xf32>
    %1136 = math.tanh %1135 : vector<8x128xf32>
    %cst_480 = arith.constant 5.000000e-01 : f32
    %1137 = vector.broadcast %cst_480 : f32 to vector<8x128xf32>
    %1138 = arith.mulf %1137, %1136 : vector<8x128xf32>
    %cst_481 = arith.constant 5.000000e-01 : f32
    %1139 = vector.broadcast %cst_481 : f32 to vector<8x128xf32>
    %1140 = arith.addf %1138, %1139 : vector<8x128xf32>
    %1141 = arith.select %5, %1136, %1140 : vector<8x128xi1>, vector<8x128xf32>
    %1142 = vector.extract_strided_slice %1141 {offsets = [0, 0], sizes = [8, 32], strides = [1, 1]} : vector<8x128xf32> to vector<8x32xf32>
    %1143 = vector.extract_strided_slice %1141 {offsets = [0, 32], sizes = [8, 32], strides = [1, 1]} : vector<8x128xf32> to vector<8x32xf32>
    %1144 = vector.extract_strided_slice %1141 {offsets = [0, 64], sizes = [8, 32], strides = [1, 1]} : vector<8x128xf32> to vector<8x32xf32>
    %1145 = vector.extract_strided_slice %1141 {offsets = [0, 96], sizes = [8, 32], strides = [1, 1]} : vector<8x128xf32> to vector<8x32xf32>
    %1146 = arith.mulf %1143, %1069 : vector<8x32xf32>
    %1147 = arith.mulf %1142, %1144 : vector<8x32xf32>
    %1148 = arith.addf %1146, %1147 : vector<8x32xf32>
    %1149 = math.tanh %1148 : vector<8x32xf32>
    %1150 = arith.mulf %1145, %1149 : vector<8x32xf32>
    %c3_482 = arith.constant 3 : index
    %c0_483 = arith.constant 0 : index
    %c0_484 = arith.constant 0 : index
    %1151 = vector.load %arg14[%c3_482, %c0_483, %c0_484] : memref<6x8x32xf32, #tpu.memory_space<vmem>>, vector<1x8x32xf32>
    %1152 = vector.shape_cast %1151 : vector<1x8x32xf32> to vector<8x32xf32>
    %1153 = vector.shape_cast %1150 : vector<8x32xf32> to vector<1x8x32xf32>
    tpu.vector_store %arg14[%c3_482, %c0_483, %c0_484], %1153 {strides = array<i32>} : memref<6x8x32xf32, #tpu.memory_space<vmem>>, vector<1x8x32xf32>,
    %c3_485 = arith.constant 3 : index
    %c0_486 = arith.constant 0 : index
    %c0_487 = arith.constant 0 : index
    %1154 = vector.load %arg15[%c3_485, %c0_486, %c0_487] : memref<6x8x32xf32, #tpu.memory_space<vmem>>, vector<1x8x32xf32>
    %1155 = vector.shape_cast %1154 : vector<1x8x32xf32> to vector<8x32xf32>
    %1156 = vector.shape_cast %1148 : vector<8x32xf32> to vector<1x8x32xf32>
    tpu.vector_store %arg15[%c3_485, %c0_486, %c0_487], %1156 {strides = array<i32>} : memref<6x8x32xf32, #tpu.memory_space<vmem>>, vector<1x8x32xf32>,
    %c3_488 = arith.constant 3 : index
    %c0_489 = arith.constant 0 : index
    %c0_490 = arith.constant 0 : index
    %1157 = vector.load %arg2[%c3_488, %c0_489, %c0_490] : memref<5x32x128xf32, #tpu.memory_space<vmem>>, vector<1x32x128xf32>
    %1158 = vector.shape_cast %1157 : vector<1x32x128xf32> to vector<32x128xf32>
    %cst_491 = arith.constant dense<0.000000e+00> : vector<8x128xf32>
    %1159 = tpu.matmul %1071, %1158, %cst_491 {dimension_numbers = #tpu.dot_dimension_numbers<[1], [0], [0], [1], [0, 0, 1, 1], [], []>} : vector<8x32xf32>, vector<32x128xf32>, vector<8x128xf32> -> vector<8x128xf32>
    %c4_492 = arith.constant 4 : index
    %c0_493 = arith.constant 0 : index
    %c0_494 = arith.constant 0 : index
    %1160 = vector.load %arg3[%c4_492, %c0_493, %c0_494] : memref<6x32x128xf32, #tpu.memory_space<vmem>>, vector<1x32x128xf32>
    %1161 = vector.shape_cast %1160 : vector<1x32x128xf32> to vector<32x128xf32>
    %cst_495 = arith.constant dense<0.000000e+00> : vector<8x128xf32>
    %1162 = tpu.matmul %1097, %1161, %cst_495 {dimension_numbers = #tpu.dot_dimension_numbers<[1], [0], [0], [1], [0, 0, 1, 1], [], []>} : vector<8x32xf32>, vector<32x128xf32>, vector<8x128xf32> -> vector<8x128xf32>
    %1163 = arith.addf %1159, %1162 : vector<8x128xf32>
    %1164 = arith.addf %1163, %21 : vector<8x128xf32>
    %cst_496 = arith.constant 5.000000e-01 : f32
    %1165 = vector.broadcast %cst_496 : f32 to vector<8x128xf32>
    %1166 = arith.mulf %1165, %1164 : vector<8x128xf32>
    %1167 = arith.select %5, %1164, %1166 : vector<8x128xi1>, vector<8x128xf32>
    %1168 = math.tanh %1167 : vector<8x128xf32>
    %cst_497 = arith.constant 5.000000e-01 : f32
    %1169 = vector.broadcast %cst_497 : f32 to vector<8x128xf32>
    %1170 = arith.mulf %1169, %1168 : vector<8x128xf32>
    %cst_498 = arith.constant 5.000000e-01 : f32
    %1171 = vector.broadcast %cst_498 : f32 to vector<8x128xf32>
    %1172 = arith.addf %1170, %1171 : vector<8x128xf32>
    %1173 = arith.select %5, %1168, %1172 : vector<8x128xi1>, vector<8x128xf32>
    %1174 = vector.extract_strided_slice %1173 {offsets = [0, 0], sizes = [8, 32], strides = [1, 1]} : vector<8x128xf32> to vector<8x32xf32>
    %1175 = vector.extract_strided_slice %1173 {offsets = [0, 32], sizes = [8, 32], strides = [1, 1]} : vector<8x128xf32> to vector<8x32xf32>
    %1176 = vector.extract_strided_slice %1173 {offsets = [0, 64], sizes = [8, 32], strides = [1, 1]} : vector<8x128xf32> to vector<8x32xf32>
    %1177 = vector.extract_strided_slice %1173 {offsets = [0, 96], sizes = [8, 32], strides = [1, 1]} : vector<8x128xf32> to vector<8x32xf32>
    %1178 = arith.mulf %1175, %1095 : vector<8x32xf32>
    %1179 = arith.mulf %1174, %1176 : vector<8x32xf32>
    %1180 = arith.addf %1178, %1179 : vector<8x32xf32>
    %1181 = math.tanh %1180 : vector<8x32xf32>
    %1182 = arith.mulf %1177, %1181 : vector<8x32xf32>
    %c4_499 = arith.constant 4 : index
    %c0_500 = arith.constant 0 : index
    %c0_501 = arith.constant 0 : index
    %1183 = vector.load %arg2[%c4_499, %c0_500, %c0_501] : memref<5x32x128xf32, #tpu.memory_space<vmem>>, vector<1x32x128xf32>
    %1184 = vector.shape_cast %1183 : vector<1x32x128xf32> to vector<32x128xf32>
    %cst_502 = arith.constant dense<0.000000e+00> : vector<8x128xf32>
    %1185 = tpu.matmul %1097, %1184, %cst_502 {dimension_numbers = #tpu.dot_dimension_numbers<[1], [0], [0], [1], [0, 0, 1, 1], [], []>} : vector<8x32xf32>, vector<32x128xf32>, vector<8x128xf32> -> vector<8x128xf32>
    %c5_503 = arith.constant 5 : index
    %c0_504 = arith.constant 0 : index
    %c0_505 = arith.constant 0 : index
    %1186 = vector.load %arg3[%c5_503, %c0_504, %c0_505] : memref<6x32x128xf32, #tpu.memory_space<vmem>>, vector<1x32x128xf32>
    %1187 = vector.shape_cast %1186 : vector<1x32x128xf32> to vector<32x128xf32>
    %cst_506 = arith.constant dense<0.000000e+00> : vector<8x128xf32>
    %1188 = tpu.matmul %1123, %1187, %cst_506 {dimension_numbers = #tpu.dot_dimension_numbers<[1], [0], [0], [1], [0, 0, 1, 1], [], []>} : vector<8x32xf32>, vector<32x128xf32>, vector<8x128xf32> -> vector<8x128xf32>
    %1189 = arith.addf %1185, %1188 : vector<8x128xf32>
    %1190 = arith.addf %1189, %25 : vector<8x128xf32>
    %cst_507 = arith.constant 5.000000e-01 : f32
    %1191 = vector.broadcast %cst_507 : f32 to vector<8x128xf32>
    %1192 = arith.mulf %1191, %1190 : vector<8x128xf32>
    %1193 = arith.select %5, %1190, %1192 : vector<8x128xi1>, vector<8x128xf32>
    %1194 = math.tanh %1193 : vector<8x128xf32>
    %cst_508 = arith.constant 5.000000e-01 : f32
    %1195 = vector.broadcast %cst_508 : f32 to vector<8x128xf32>
    %1196 = arith.mulf %1195, %1194 : vector<8x128xf32>
    %cst_509 = arith.constant 5.000000e-01 : f32
    %1197 = vector.broadcast %cst_509 : f32 to vector<8x128xf32>
    %1198 = arith.addf %1196, %1197 : vector<8x128xf32>
    %1199 = arith.select %5, %1194, %1198 : vector<8x128xi1>, vector<8x128xf32>
    %1200 = vector.extract_strided_slice %1199 {offsets = [0, 0], sizes = [8, 32], strides = [1, 1]} : vector<8x128xf32> to vector<8x32xf32>
    %1201 = vector.extract_strided_slice %1199 {offsets = [0, 32], sizes = [8, 32], strides = [1, 1]} : vector<8x128xf32> to vector<8x32xf32>
    %1202 = vector.extract_strided_slice %1199 {offsets = [0, 64], sizes = [8, 32], strides = [1, 1]} : vector<8x128xf32> to vector<8x32xf32>
    %1203 = vector.extract_strided_slice %1199 {offsets = [0, 96], sizes = [8, 32], strides = [1, 1]} : vector<8x128xf32> to vector<8x32xf32>
    %1204 = arith.mulf %1201, %1121 : vector<8x32xf32>
    %1205 = arith.mulf %1200, %1202 : vector<8x32xf32>
    %1206 = arith.addf %1204, %1205 : vector<8x32xf32>
    %1207 = math.tanh %1206 : vector<8x32xf32>
    %1208 = arith.mulf %1203, %1207 : vector<8x32xf32>
    %c40 = arith.constant 40 : index
    %c0_510 = arith.constant 0 : index
    %1209 = vector.load %arg16[%c40, %c0_510] : memref<64x32xf32, #tpu.memory_space<vmem>>, vector<8x32xf32>
    tpu.vector_store %arg16[%c40, %c0_510], %1208 {strides = array<i32>} : memref<64x32xf32, #tpu.memory_space<vmem>>, vector<8x32xf32>,
    %c3_511 = arith.constant 3 : index
    %c0_512 = arith.constant 0 : index
    %c0_513 = arith.constant 0 : index
    %1210 = vector.load %arg2[%c3_511, %c0_512, %c0_513] : memref<5x32x128xf32, #tpu.memory_space<vmem>>, vector<1x32x128xf32>
    %1211 = vector.shape_cast %1210 : vector<1x32x128xf32> to vector<32x128xf32>
    %cst_514 = arith.constant dense<0.000000e+00> : vector<8x128xf32>
    %1212 = tpu.matmul %1150, %1211, %cst_514 {dimension_numbers = #tpu.dot_dimension_numbers<[1], [0], [0], [1], [0, 0, 1, 1], [], []>} : vector<8x32xf32>, vector<32x128xf32>, vector<8x128xf32> -> vector<8x128xf32>
    %c4_515 = arith.constant 4 : index
    %c0_516 = arith.constant 0 : index
    %c0_517 = arith.constant 0 : index
    %1213 = vector.load %arg3[%c4_515, %c0_516, %c0_517] : memref<6x32x128xf32, #tpu.memory_space<vmem>>, vector<1x32x128xf32>
    %1214 = vector.shape_cast %1213 : vector<1x32x128xf32> to vector<32x128xf32>
    %cst_518 = arith.constant dense<0.000000e+00> : vector<8x128xf32>
    %1215 = tpu.matmul %1182, %1214, %cst_518 {dimension_numbers = #tpu.dot_dimension_numbers<[1], [0], [0], [1], [0, 0, 1, 1], [], []>} : vector<8x32xf32>, vector<32x128xf32>, vector<8x128xf32> -> vector<8x128xf32>
    %1216 = arith.addf %1212, %1215 : vector<8x128xf32>
    %1217 = arith.addf %1216, %21 : vector<8x128xf32>
    %cst_519 = arith.constant 5.000000e-01 : f32
    %1218 = vector.broadcast %cst_519 : f32 to vector<8x128xf32>
    %1219 = arith.mulf %1218, %1217 : vector<8x128xf32>
    %1220 = arith.select %5, %1217, %1219 : vector<8x128xi1>, vector<8x128xf32>
    %1221 = math.tanh %1220 : vector<8x128xf32>
    %cst_520 = arith.constant 5.000000e-01 : f32
    %1222 = vector.broadcast %cst_520 : f32 to vector<8x128xf32>
    %1223 = arith.mulf %1222, %1221 : vector<8x128xf32>
    %cst_521 = arith.constant 5.000000e-01 : f32
    %1224 = vector.broadcast %cst_521 : f32 to vector<8x128xf32>
    %1225 = arith.addf %1223, %1224 : vector<8x128xf32>
    %1226 = arith.select %5, %1221, %1225 : vector<8x128xi1>, vector<8x128xf32>
    %1227 = vector.extract_strided_slice %1226 {offsets = [0, 0], sizes = [8, 32], strides = [1, 1]} : vector<8x128xf32> to vector<8x32xf32>
    %1228 = vector.extract_strided_slice %1226 {offsets = [0, 32], sizes = [8, 32], strides = [1, 1]} : vector<8x128xf32> to vector<8x32xf32>
    %1229 = vector.extract_strided_slice %1226 {offsets = [0, 64], sizes = [8, 32], strides = [1, 1]} : vector<8x128xf32> to vector<8x32xf32>
    %1230 = vector.extract_strided_slice %1226 {offsets = [0, 96], sizes = [8, 32], strides = [1, 1]} : vector<8x128xf32> to vector<8x32xf32>
    %1231 = arith.mulf %1228, %1180 : vector<8x32xf32>
    %1232 = arith.mulf %1227, %1229 : vector<8x32xf32>
    %1233 = arith.addf %1231, %1232 : vector<8x32xf32>
    %1234 = math.tanh %1233 : vector<8x32xf32>
    %1235 = arith.mulf %1230, %1234 : vector<8x32xf32>
    %c4_522 = arith.constant 4 : index
    %c0_523 = arith.constant 0 : index
    %c0_524 = arith.constant 0 : index
    %1236 = vector.load %arg14[%c4_522, %c0_523, %c0_524] : memref<6x8x32xf32, #tpu.memory_space<vmem>>, vector<1x8x32xf32>
    %1237 = vector.shape_cast %1236 : vector<1x8x32xf32> to vector<8x32xf32>
    %1238 = vector.shape_cast %1235 : vector<8x32xf32> to vector<1x8x32xf32>
    tpu.vector_store %arg14[%c4_522, %c0_523, %c0_524], %1238 {strides = array<i32>} : memref<6x8x32xf32, #tpu.memory_space<vmem>>, vector<1x8x32xf32>,
    %c4_525 = arith.constant 4 : index
    %c0_526 = arith.constant 0 : index
    %c0_527 = arith.constant 0 : index
    %1239 = vector.load %arg15[%c4_525, %c0_526, %c0_527] : memref<6x8x32xf32, #tpu.memory_space<vmem>>, vector<1x8x32xf32>
    %1240 = vector.shape_cast %1239 : vector<1x8x32xf32> to vector<8x32xf32>
    %1241 = vector.shape_cast %1233 : vector<8x32xf32> to vector<1x8x32xf32>
    tpu.vector_store %arg15[%c4_525, %c0_526, %c0_527], %1241 {strides = array<i32>} : memref<6x8x32xf32, #tpu.memory_space<vmem>>, vector<1x8x32xf32>,
    %c4_528 = arith.constant 4 : index
    %c0_529 = arith.constant 0 : index
    %c0_530 = arith.constant 0 : index
    %1242 = vector.load %arg2[%c4_528, %c0_529, %c0_530] : memref<5x32x128xf32, #tpu.memory_space<vmem>>, vector<1x32x128xf32>
    %1243 = vector.shape_cast %1242 : vector<1x32x128xf32> to vector<32x128xf32>
    %cst_531 = arith.constant dense<0.000000e+00> : vector<8x128xf32>
    %1244 = tpu.matmul %1182, %1243, %cst_531 {dimension_numbers = #tpu.dot_dimension_numbers<[1], [0], [0], [1], [0, 0, 1, 1], [], []>} : vector<8x32xf32>, vector<32x128xf32>, vector<8x128xf32> -> vector<8x128xf32>
    %c5_532 = arith.constant 5 : index
    %c0_533 = arith.constant 0 : index
    %c0_534 = arith.constant 0 : index
    %1245 = vector.load %arg3[%c5_532, %c0_533, %c0_534] : memref<6x32x128xf32, #tpu.memory_space<vmem>>, vector<1x32x128xf32>
    %1246 = vector.shape_cast %1245 : vector<1x32x128xf32> to vector<32x128xf32>
    %cst_535 = arith.constant dense<0.000000e+00> : vector<8x128xf32>
    %1247 = tpu.matmul %1208, %1246, %cst_535 {dimension_numbers = #tpu.dot_dimension_numbers<[1], [0], [0], [1], [0, 0, 1, 1], [], []>} : vector<8x32xf32>, vector<32x128xf32>, vector<8x128xf32> -> vector<8x128xf32>
    %1248 = arith.addf %1244, %1247 : vector<8x128xf32>
    %1249 = arith.addf %1248, %25 : vector<8x128xf32>
    %cst_536 = arith.constant 5.000000e-01 : f32
    %1250 = vector.broadcast %cst_536 : f32 to vector<8x128xf32>
    %1251 = arith.mulf %1250, %1249 : vector<8x128xf32>
    %1252 = arith.select %5, %1249, %1251 : vector<8x128xi1>, vector<8x128xf32>
    %1253 = math.tanh %1252 : vector<8x128xf32>
    %cst_537 = arith.constant 5.000000e-01 : f32
    %1254 = vector.broadcast %cst_537 : f32 to vector<8x128xf32>
    %1255 = arith.mulf %1254, %1253 : vector<8x128xf32>
    %cst_538 = arith.constant 5.000000e-01 : f32
    %1256 = vector.broadcast %cst_538 : f32 to vector<8x128xf32>
    %1257 = arith.addf %1255, %1256 : vector<8x128xf32>
    %1258 = arith.select %5, %1253, %1257 : vector<8x128xi1>, vector<8x128xf32>
    %1259 = vector.extract_strided_slice %1258 {offsets = [0, 0], sizes = [8, 32], strides = [1, 1]} : vector<8x128xf32> to vector<8x32xf32>
    %1260 = vector.extract_strided_slice %1258 {offsets = [0, 32], sizes = [8, 32], strides = [1, 1]} : vector<8x128xf32> to vector<8x32xf32>
    %1261 = vector.extract_strided_slice %1258 {offsets = [0, 64], sizes = [8, 32], strides = [1, 1]} : vector<8x128xf32> to vector<8x32xf32>
    %1262 = vector.extract_strided_slice %1258 {offsets = [0, 96], sizes = [8, 32], strides = [1, 1]} : vector<8x128xf32> to vector<8x32xf32>
    %1263 = arith.mulf %1260, %1206 : vector<8x32xf32>
    %1264 = arith.mulf %1259, %1261 : vector<8x32xf32>
    %1265 = arith.addf %1263, %1264 : vector<8x32xf32>
    %1266 = math.tanh %1265 : vector<8x32xf32>
    %1267 = arith.mulf %1262, %1266 : vector<8x32xf32>
    %c48 = arith.constant 48 : index
    %c0_539 = arith.constant 0 : index
    %1268 = vector.load %arg16[%c48, %c0_539] : memref<64x32xf32, #tpu.memory_space<vmem>>, vector<8x32xf32>
    tpu.vector_store %arg16[%c48, %c0_539], %1267 {strides = array<i32>} : memref<64x32xf32, #tpu.memory_space<vmem>>, vector<8x32xf32>,
    %c4_540 = arith.constant 4 : index
    %c0_541 = arith.constant 0 : index
    %c0_542 = arith.constant 0 : index
    %1269 = vector.load %arg2[%c4_540, %c0_541, %c0_542] : memref<5x32x128xf32, #tpu.memory_space<vmem>>, vector<1x32x128xf32>
    %1270 = vector.shape_cast %1269 : vector<1x32x128xf32> to vector<32x128xf32>
    %cst_543 = arith.constant dense<0.000000e+00> : vector<8x128xf32>
    %1271 = tpu.matmul %1235, %1270, %cst_543 {dimension_numbers = #tpu.dot_dimension_numbers<[1], [0], [0], [1], [0, 0, 1, 1], [], []>} : vector<8x32xf32>, vector<32x128xf32>, vector<8x128xf32> -> vector<8x128xf32>
    %c5_544 = arith.constant 5 : index
    %c0_545 = arith.constant 0 : index
    %c0_546 = arith.constant 0 : index
    %1272 = vector.load %arg3[%c5_544, %c0_545, %c0_546] : memref<6x32x128xf32, #tpu.memory_space<vmem>>, vector<1x32x128xf32>
    %1273 = vector.shape_cast %1272 : vector<1x32x128xf32> to vector<32x128xf32>
    %cst_547 = arith.constant dense<0.000000e+00> : vector<8x128xf32>
    %1274 = tpu.matmul %1267, %1273, %cst_547 {dimension_numbers = #tpu.dot_dimension_numbers<[1], [0], [0], [1], [0, 0, 1, 1], [], []>} : vector<8x32xf32>, vector<32x128xf32>, vector<8x128xf32> -> vector<8x128xf32>
    %1275 = arith.addf %1271, %1274 : vector<8x128xf32>
    %1276 = arith.addf %1275, %25 : vector<8x128xf32>
    %cst_548 = arith.constant 5.000000e-01 : f32
    %1277 = vector.broadcast %cst_548 : f32 to vector<8x128xf32>
    %1278 = arith.mulf %1277, %1276 : vector<8x128xf32>
    %1279 = arith.select %5, %1276, %1278 : vector<8x128xi1>, vector<8x128xf32>
    %1280 = math.tanh %1279 : vector<8x128xf32>
    %cst_549 = arith.constant 5.000000e-01 : f32
    %1281 = vector.broadcast %cst_549 : f32 to vector<8x128xf32>
    %1282 = arith.mulf %1281, %1280 : vector<8x128xf32>
    %cst_550 = arith.constant 5.000000e-01 : f32
    %1283 = vector.broadcast %cst_550 : f32 to vector<8x128xf32>
    %1284 = arith.addf %1282, %1283 : vector<8x128xf32>
    %1285 = arith.select %5, %1280, %1284 : vector<8x128xi1>, vector<8x128xf32>
    %1286 = vector.extract_strided_slice %1285 {offsets = [0, 0], sizes = [8, 32], strides = [1, 1]} : vector<8x128xf32> to vector<8x32xf32>
    %1287 = vector.extract_strided_slice %1285 {offsets = [0, 32], sizes = [8, 32], strides = [1, 1]} : vector<8x128xf32> to vector<8x32xf32>
    %1288 = vector.extract_strided_slice %1285 {offsets = [0, 64], sizes = [8, 32], strides = [1, 1]} : vector<8x128xf32> to vector<8x32xf32>
    %1289 = vector.extract_strided_slice %1285 {offsets = [0, 96], sizes = [8, 32], strides = [1, 1]} : vector<8x128xf32> to vector<8x32xf32>
    %1290 = arith.mulf %1287, %1265 : vector<8x32xf32>
    %1291 = arith.mulf %1286, %1288 : vector<8x32xf32>
    %1292 = arith.addf %1290, %1291 : vector<8x32xf32>
    %1293 = math.tanh %1292 : vector<8x32xf32>
    %1294 = arith.mulf %1289, %1293 : vector<8x32xf32>
    %c56 = arith.constant 56 : index
    %c0_551 = arith.constant 0 : index
    %1295 = vector.load %arg16[%c56, %c0_551] : memref<64x32xf32, #tpu.memory_space<vmem>>, vector<8x32xf32>
    tpu.vector_store %arg16[%c56, %c0_551], %1294 {strides = array<i32>} : memref<64x32xf32, #tpu.memory_space<vmem>>, vector<8x32xf32>,
    %c5_552 = arith.constant 5 : index
    %c0_553 = arith.constant 0 : index
    %c0_554 = arith.constant 0 : index
    %1296 = vector.load %arg14[%c5_552, %c0_553, %c0_554] : memref<6x8x32xf32, #tpu.memory_space<vmem>>, vector<1x8x32xf32>
    %1297 = vector.shape_cast %1296 : vector<1x8x32xf32> to vector<8x32xf32>
    %1298 = vector.shape_cast %1294 : vector<8x32xf32> to vector<1x8x32xf32>
    tpu.vector_store %arg14[%c5_552, %c0_553, %c0_554], %1298 {strides = array<i32>} : memref<6x8x32xf32, #tpu.memory_space<vmem>>, vector<1x8x32xf32>,
    %c5_555 = arith.constant 5 : index
    %c0_556 = arith.constant 0 : index
    %c0_557 = arith.constant 0 : index
    %1299 = vector.load %arg15[%c5_555, %c0_556, %c0_557] : memref<6x8x32xf32, #tpu.memory_space<vmem>>, vector<1x8x32xf32>
    %1300 = vector.shape_cast %1299 : vector<1x8x32xf32> to vector<8x32xf32>
    %1301 = vector.shape_cast %1292 : vector<8x32xf32> to vector<1x8x32xf32>
    tpu.vector_store %arg15[%c5_555, %c0_556, %c0_557], %1301 {strides = array<i32>} : memref<6x8x32xf32, #tpu.memory_space<vmem>>, vector<1x8x32xf32>,
    %c0_558 = arith.constant 0 : index
    %c0_559 = arith.constant 0 : index
    %1302 = vector.load %arg16[%c0_558, %c0_559] : memref<64x32xf32, #tpu.memory_space<vmem>>, vector<64x32xf32>
    %c0_560 = arith.constant 0 : index
    %c0_561 = arith.constant 0 : index
    %1303 = vector.load %arg5[%c0_560, %c0_561] : memref<32x64xf32, #tpu.memory_space<vmem>>, vector<32x64xf32>
    %cst_562 = arith.constant dense<0.000000e+00> : vector<64x64xf32>
    %1304 = tpu.matmul %1302, %1303, %cst_562 {dimension_numbers = #tpu.dot_dimension_numbers<[1], [0], [0], [1], [0, 0, 1, 1], [], []>} : vector<64x32xf32>, vector<32x64xf32>, vector<64x64xf32> -> vector<64x64xf32>
    %c0_563 = arith.constant 0 : index
    %c0_564 = arith.constant 0 : index
    %1305 = vector.load %arg6[%c0_563, %c0_564] : memref<1x64xf32, #tpu.memory_space<vmem>>, vector<1x64xf32>
    %1306 = vector.broadcast %1305 : vector<1x64xf32> to vector<64x64xf32>
    %1307 = arith.addf %1304, %1306 : vector<64x64xf32>
    %cst_565 = arith.constant 0.000000e+00 : f32
    %1308 = vector.broadcast %cst_565 : f32 to vector<64x64xf32>
    %1309 = arith.cmpf ogt, %1307, %1308 : vector<64x64xf32>
    %cst_566 = arith.constant 0.00999999977 : f32
    %1310 = vector.broadcast %cst_566 : f32 to vector<64x64xf32>
    %1311 = arith.mulf %1310, %1307 : vector<64x64xf32>
    %1312 = arith.select %1309, %1307, %1311 : vector<64x64xi1>, vector<64x64xf32>
    %c0_567 = arith.constant 0 : index
    %c0_568 = arith.constant 0 : index
    %1313 = vector.load %arg7[%c0_567, %c0_568] : memref<64x64xf32, #tpu.memory_space<vmem>>, vector<64x64xf32>
    %cst_569 = arith.constant dense<0.000000e+00> : vector<64x64xf32>
    %1314 = tpu.matmul %1312, %1313, %cst_569 {dimension_numbers = #tpu.dot_dimension_numbers<[1], [0], [0], [1], [0, 0, 1, 1], [], []>} : vector<64x64xf32>, vector<64x64xf32>, vector<64x64xf32> -> vector<64x64xf32>
    %c0_570 = arith.constant 0 : index
    %c0_571 = arith.constant 0 : index
    %1315 = vector.load %arg8[%c0_570, %c0_571] : memref<1x64xf32, #tpu.memory_space<vmem>>, vector<1x64xf32>
    %1316 = vector.broadcast %1315 : vector<1x64xf32> to vector<64x64xf32>
    %1317 = arith.addf %1314, %1316 : vector<64x64xf32>
    %cst_572 = arith.constant 0.000000e+00 : f32
    %1318 = vector.broadcast %cst_572 : f32 to vector<64x64xf32>
    %1319 = arith.cmpf ogt, %1317, %1318 : vector<64x64xf32>
    %cst_573 = arith.constant 0.00999999977 : f32
    %1320 = vector.broadcast %cst_573 : f32 to vector<64x64xf32>
    %1321 = arith.mulf %1320, %1317 : vector<64x64xf32>
    %1322 = arith.select %1319, %1317, %1321 : vector<64x64xi1>, vector<64x64xf32>
    %c0_574 = arith.constant 0 : index
    %c0_575 = arith.constant 0 : index
    %1323 = vector.load %arg9[%c0_574, %c0_575] : memref<64x32xf32, #tpu.memory_space<vmem>>, vector<64x32xf32>
    %cst_576 = arith.constant dense<0.000000e+00> : vector<64x32xf32>
    %1324 = tpu.matmul %1322, %1323, %cst_576 {dimension_numbers = #tpu.dot_dimension_numbers<[1], [0], [0], [1], [0, 0, 1, 1], [], []>} : vector<64x64xf32>, vector<64x32xf32>, vector<64x32xf32> -> vector<64x32xf32>
    %c0_577 = arith.constant 0 : index
    %c0_578 = arith.constant 0 : index
    %1325 = vector.load %arg10[%c0_577, %c0_578] : memref<1x32xf32, #tpu.memory_space<vmem>>, vector<1x32xf32>
    %1326 = vector.broadcast %1325 : vector<1x32xf32> to vector<64x32xf32>
    %1327 = arith.addf %1324, %1326 : vector<64x32xf32>
    %cst_579 = arith.constant 0.000000e+00 : f32
    %1328 = vector.broadcast %cst_579 : f32 to vector<64x32xf32>
    %1329 = arith.cmpf ogt, %1327, %1328 : vector<64x32xf32>
    %cst_580 = arith.constant 0.00999999977 : f32
    %1330 = vector.broadcast %cst_580 : f32 to vector<64x32xf32>
    %1331 = arith.mulf %1330, %1327 : vector<64x32xf32>
    %1332 = arith.select %1329, %1327, %1331 : vector<64x32xi1>, vector<64x32xf32>
    %c0_581 = arith.constant 0 : index
    %c0_582 = arith.constant 0 : index
    %1333 = vector.load %arg11[%c0_581, %c0_582] : memref<32x128xf32, #tpu.memory_space<vmem>>, vector<32x128xf32>
    %cst_583 = arith.constant dense<0.000000e+00> : vector<64x128xf32>
    %1334 = tpu.matmul %1332, %1333, %cst_583 {dimension_numbers = #tpu.dot_dimension_numbers<[1], [0], [0], [1], [0, 0, 1, 1], [], []>} : vector<64x32xf32>, vector<32x128xf32>, vector<64x128xf32> -> vector<64x128xf32>
    %c0_584 = arith.constant 0 : index
    %c0_585 = arith.constant 0 : index
    %1335 = vector.load %arg12[%c0_584, %c0_585] : memref<1x128xf32, #tpu.memory_space<vmem>>, vector<1x128xf32>
    %1336 = vector.broadcast %1335 : vector<1x128xf32> to vector<64x128xf32>
    %1337 = arith.addf %1334, %1336 : vector<64x128xf32>
    %c0_586 = arith.constant 0 : index
    %c0_587 = arith.constant 0 : index
    %1338 = vector.load %arg13[%c0_586, %c0_587] : memref<64x128xf32, #tpu.memory_space<vmem>>, vector<64x128xf32>
    tpu.vector_store %arg13[%c0_586, %c0_587], %1337 {strides = array<i32>} : memref<64x128xf32, #tpu.memory_space<vmem>>, vector<64x128xf32>,
    return
  }
}

</mosaic_0001>

<llo_original>
// kernel: lstm_model_forward.1
$region0: #{lstm_model_forward.1}
  #allocation0 [shape = 'u32[]', space=smem, size = 0x4, offset = 0x4, fixed_abs, tag = 'smem constant byte address 0x4 - core index']
  #allocation1 [shape = 'u32[72,128]{1,0:T(1,128)}', space=vmem, size = 0x9000, scoped, tag = 'internal scratch']
  #allocation2 [shape = 'f32[64,32]{1,0:T(8,128)}', space=vmem, size = 0x8000, scoped, tag = 'scratch operand']
  %s0 = inlined_call_operand.vmem [shape: f32[64,16], index: 0, kind: input, shape index: {}]
  %s1 = inlined_call_operand.vmem [shape: f32[16,128], index: 1, kind: input, shape index: {}]
  %s2 = inlined_call_operand.hbm [shape: f32[5,32,128], index: 2, kind: input, shape index: {}]
  %s3 = inlined_call_operand.hbm [shape: f32[6,32,128], index: 3, kind: input, shape index: {}]
  %s4 = inlined_call_operand.vmem [shape: f32[6,1,128], index: 4, kind: input, shape index: {}]
  %s5 = inlined_call_operand.vmem [shape: f32[32,64], index: 5, kind: input, shape index: {}]
  %s6 = inlined_call_operand.vmem [shape: f32[1,64], index: 6, kind: input, shape index: {}]
  %s7 = inlined_call_operand.vmem [shape: f32[64,64], index: 7, kind: input, shape index: {}]
  %s8 = inlined_call_operand.vmem [shape: f32[1,64], index: 8, kind: input, shape index: {}]
  %s9 = inlined_call_operand.vmem [shape: f32[64,32], index: 9, kind: input, shape index: {}]
  %s10 = inlined_call_operand.vmem [shape: f32[1,32], index: 10, kind: input, shape index: {}]
  %s11 = inlined_call_operand.vmem [shape: f32[32,128], index: 11, kind: input, shape index: {}]
  %s12 = inlined_call_operand.vmem [shape: f32[1,128], index: 12, kind: input, shape index: {}]
  %s13 = inlined_call_operand.vmem [shape: f32[64,128], index: 13, kind: output, shape index: {0}]
  %s14 = inlined_call_operand.vmem [shape: f32[6,8,32], index: 14, kind: output, shape index: {1}]
  %s15 = inlined_call_operand.vmem [shape: f32[6,8,32], index: 15, kind: output, shape index: {2}]
  %16 = xla_tuple %s13, %s14, %s15
  %s17 = sld [smem:[#allocation0]]
  $region86: #{lstm_model_forward.1} parent=0
    _
  %s19 = ssub.s32 1, %s17
  %s20 = scalar_select 0, %s19, %s17
  $region1: #{lstm_model_forward.1} parent=0
    #allocation3 [shape = 'u8[81920]{0}', space=vmem, size = 0x14000, scoped, tag = 'input window, operand 2, single buffered']
    #allocation4 [shape = 's32[1]{0}', space=sflag, size = 0x4, scoped, tag = 'scoped memory for lstm_model_forward.1']
    #allocation5 [shape = 'u8[98304]{0}', space=vmem, size = 0x18000, scoped, tag = 'input window, operand 3, single buffered']
    #allocation6 [shape = 's32[1]{0}', space=sflag, size = 0x4, scoped, tag = 'scoped memory for lstm_model_forward.1']
    %21 = vsyncpa [#allocation4], 0
    %22 = vsyncpa [#allocation6], 0
    // Predicated region
    $region2: #{lstm_model_forward.1} parent=1 // pred_check
      _
    $region3: #{lstm_model_forward.1} parent=1 // pred_check_branch
      %24 = sbr.rel (0) target = $region5
    $region4: #{lstm_model_forward.1} parent=1 // pred_region
      _
    $region5: #{lstm_model_forward.1} parent=1 // pred_fallthru
      _
    // Predicated region
    $region6: #{lstm_model_forward.1} parent=1 // pred_check
      _
    $region7: #{lstm_model_forward.1} parent=1 // pred_check_branch
      %26 = sbr.rel (0) target = $region9
    $region8: #{lstm_model_forward.1} parent=1 // pred_region
      _
    $region9: #{lstm_model_forward.1} parent=1 // pred_fallthru
      _
    // Predicated region
    $region10: #{lstm_model_forward.1} parent=1 // pred_check
      _
    $region11: #{lstm_model_forward.1} parent=1 // pred_check_branch
      %28 = sbr.rel (0) target = $region13
    $region12: #{lstm_model_forward.1} parent=1 // pred_region
      %30 = vsyncadd [#allocation4], 0
      %s31 = sshll.u32 %s2, 4
      %s32 = int_to_ptr.hbm [resolvable:$true] %s31
      %s33 = sshll.u32 [#allocation3], 4
      %s34 = int_to_ptr.vmem [resolvable:$true] %s33
      %39 = dma.hbm_to_vmem [thread:$0]  %s32, 2560, %s34, [#allocation4], 128, 128, 8
    $region13: #{lstm_model_forward.1} parent=1 // pred_fallthru
      _
    // Predicated region
    $region14: #{lstm_model_forward.1} parent=1 // pred_check
      _
    $region15: #{lstm_model_forward.1} parent=1 // pred_check_branch
      %41 = sbr.rel (0) target = $region17
    $region16: #{lstm_model_forward.1} parent=1 // pred_region
      %43 = vsyncadd [#allocation6], 0
      %s44 = sshll.u32 %s3, 4
      %s45 = int_to_ptr.hbm [resolvable:$true] %s44
      %s46 = sshll.u32 [#allocation5], 4
      %s47 = int_to_ptr.vmem [resolvable:$true] %s46
      %52 = dma.hbm_to_vmem [thread:$0]  %s45, 3072, %s47, [#allocation6], 128, 128, 8
    $region17: #{lstm_model_forward.1} parent=1 // pred_fallthru
      _
    // Predicated region
    $region18: #{lstm_model_forward.1} parent=1 // pred_check
      _
    $region19: #{lstm_model_forward.1} parent=1 // pred_check_branch
      %54 = sbr.rel (0) target = $region21
    $region20: #{lstm_model_forward.1} parent=1 // pred_region
      _
    $region21: #{lstm_model_forward.1} parent=1 // pred_fallthru
      _
    // Predicated region
    $region22: #{lstm_model_forward.1} parent=1 // pred_check
      _
    $region23: #{lstm_model_forward.1} parent=1 // pred_check_branch
      %56 = sbr.rel (0) target = $region25
    $region24: #{lstm_model_forward.1} parent=1 // pred_region
      _
    $region25: #{lstm_model_forward.1} parent=1 // pred_fallthru
      _
    // Predicated region
    $region26: #{lstm_model_forward.1} parent=1 // pred_check
      _
    $region27: #{lstm_model_forward.1} parent=1 // pred_check_branch
      %58 = sbr.rel (0) target = $region29
    $region28: #{lstm_model_forward.1} parent=1 // pred_region
      _
    $region29: #{lstm_model_forward.1} parent=1 // pred_fallthru
      _
    // Predicated region
    $region30: #{lstm_model_forward.1} parent=1 // pred_check
      _
    $region31: #{lstm_model_forward.1} parent=1 // pred_check_branch
      %60 = sbr.rel (0) target = $region33
    $region32: #{lstm_model_forward.1} parent=1 // pred_region
      _
    $region33: #{lstm_model_forward.1} parent=1 // pred_fallthru
      _
    // Predicated region
    $region34: #{lstm_model_forward.1} parent=1 // pred_check
      _
    $region35: #{lstm_model_forward.1} parent=1 // pred_check_branch
      %62 = sbr.rel (0) target = $region37
    $region36: #{lstm_model_forward.1} parent=1 // pred_region
      _
    $region37: #{lstm_model_forward.1} parent=1 // pred_fallthru
      _
    // Predicated region
    $region38: #{lstm_model_forward.1} parent=1 // pred_check
      _
    $region39: #{lstm_model_forward.1} parent=1 // pred_check_branch
      %64 = sbr.rel (0) target = $region41
    $region40: #{lstm_model_forward.1} parent=1 // pred_region
      _
    $region41: #{lstm_model_forward.1} parent=1 // pred_fallthru
      _
    // Predicated region
    $region42: #{lstm_model_forward.1} parent=1 // pred_check
      _
    $region43: #{lstm_model_forward.1} parent=1 // pred_check_branch
      %66 = sbr.rel (0) target = $region45
    $region44: #{lstm_model_forward.1} parent=1 // pred_region
      _
    $region45: #{lstm_model_forward.1} parent=1 // pred_fallthru
      _
    // Predicated region
    $region46: #{lstm_model_forward.1} parent=1 // pred_check
      _
    $region47: #{lstm_model_forward.1} parent=1 // pred_check_branch
      %68 = sbr.rel (0) target = $region49
    $region48: #{lstm_model_forward.1} parent=1 // pred_region
      _
    $region49: #{lstm_model_forward.1} parent=1 // pred_fallthru
      _
    // Predicated region
    $region50: #{lstm_model_forward.1} parent=1 // pred_check
      _
    $region51: #{lstm_model_forward.1} parent=1 // pred_check_branch
      %70 = sbr.rel (0) target = $region53
    $region52: #{lstm_model_forward.1} parent=1 // pred_region
      _
    $region53: #{lstm_model_forward.1} parent=1 // pred_fallthru
      _
    // Predicated region
    $region54: #{lstm_model_forward.1} parent=1 // pred_check
      _
    $region55: #{lstm_model_forward.1} parent=1 // pred_check_branch
      %72 = sbr.rel (0) target = $region57
    $region56: #{lstm_model_forward.1} parent=1 // pred_region
      %74 = dma.done [#allocation4], 2560
    $region57: #{lstm_model_forward.1} parent=1 // pred_fallthru
      _
    // Predicated region
    $region58: #{lstm_model_forward.1} parent=1 // pred_check
      _
    $region59: #{lstm_model_forward.1} parent=1 // pred_check_branch
      %76 = sbr.rel (0) target = $region61
    $region60: #{lstm_model_forward.1} parent=1 // pred_region
      %78 = dma.done [#allocation6], 3072
    $region61: #{lstm_model_forward.1} parent=1 // pred_fallthru
      _
    %v79 = vlaneseq
    %v80 = vand.u32 %v79, 127
    %vm81 = vcmp.ge.s32.totalorder %v80, 64
    %vm82 = vcmp.lt.s32.totalorder %v80, 96
    %vm83 = vmand %vm81, %vm82
    %s84 = scalar_lea.vmem %s4, 1
    %v85 = vld [vmem:[%s84] sm:$0x1]
    %v87 = vperm.slane %v85, 0
    %s89 = scalar_lea.vmem %s4, 2
    %v90 = vld [vmem:[%s89] sm:$0x1]
    %v92 = vperm.slane %v90, 0
    %s94 = scalar_lea.vmem %s4, 3
    %v95 = vld [vmem:[%s94] sm:$0x1]
    %v97 = vperm.slane %v95, 0
    %s99 = scalar_lea.vmem %s4, 4
    %v100 = vld [vmem:[%s99] sm:$0x1]
    %v102 = vperm.slane %v100, 0
    %s104 = scalar_lea.vmem %s4, 5
    %v105 = vld [vmem:[%s104] sm:$0x1]
    %v107 = vperm.slane %v105, 0
    %v109 = vld [vmem:[%s0] sm:$0xff]
    %v110 = vld [vmem:[%s0 + $0x8] sm:$0xff]
    %v111 = vld [vmem:[%s0 + $0x10] sm:$0xff]
    %v112 = vld [vmem:[%s0 + $0x18] sm:$0xff]
    %v113 = vld [vmem:[%s0 + $0x20] sm:$0xff]
    %v114 = vld [vmem:[%s0 + $0x28] sm:$0xff]
    %v115 = vld [vmem:[%s0 + $0x30] sm:$0xff]
    %v116 = vld [vmem:[%s0 + $0x38] sm:$0xff]
    %v117 = vld [vmem:[%s1] sm:$0xff]
    %v118 = vld [vmem:[%s1 + $0x8] sm:$0xff]
    %v119 = vld [vmem:[%s4] sm:$0x1]
    %v121 = vperm.slane %v119, 0
    %vm123 = vcmask 130048
    %v125 = vsel %vm123, %v109, 0
    %v128 = vsel %vm123, %v110, 0
    %v131 = vsel %vm123, %v111, 0
    %v134 = vsel %vm123, %v112, 0
    %v137 = vsel %vm123, %v113, 0
    %v140 = vsel %vm123, %v114, 0
    %v143 = vsel %vm123, %v115, 0
    %v146 = vsel %vm123, %v116, 0
    %148 = vmatpush.msra.mxu0 0.0
    %149 = vmatpush.msra.mxu0 0.0
    %150 = vmatpush.msra.mxu0 0.0
    %151 = vmatpush.msra.mxu0 0.0
    %152 = vmatpush.msra.mxu0 0.0
    %153 = vmatpush.msra.mxu0 0.0
    %154 = vmatpush.msra.mxu0 0.0
    %155 = vmatpush.msra.mxu0 0.0
    %156 = vmatpush.msra.mxu0 0.0
    %157 = vmatpush.msra.mxu0 0.0
    %158 = vmatpush.msra.mxu0 0.0
    %159 = vmatpush.msra.mxu0 0.0
    %160 = vmatpush.msra.mxu0 0.0
    %161 = vmatpush.msra.mxu0 0.0
    %162 = vmatpush.msra.mxu0 %v118
    %163 = vmatpush.msra.mxu0 %v117
    %164 = vmatmul.f32.gmra.mxu0 %v125
    %v165 = vpop.f32.mrf.mxu0
    %v166 = vadd.f32 %v121, %v165
    %167 = vmatmul.f32.gmra.mxu0 %v128
    %v168 = vpop.f32.mrf.mxu0
    %v169 = vadd.f32 %v121, %v168
    %170 = vmatmul.f32.gmra.mxu0 %v131
    %v171 = vpop.f32.mrf.mxu0
    %v172 = vadd.f32 %v121, %v171
    %173 = vmatmul.f32.gmra.mxu0 %v134
    %v174 = vpop.f32.mrf.mxu0
    %v175 = vadd.f32 %v121, %v174
    %176 = vmatmul.f32.gmra.mxu0 %v137
    %v177 = vpop.f32.mrf.mxu0
    %v178 = vadd.f32 %v121, %v177
    %179 = vmatmul.f32.gmra.mxu0 %v140
    %v180 = vpop.f32.mrf.mxu0
    %v181 = vadd.f32 %v121, %v180
    %182 = vmatmul.f32.gmra.mxu0 %v143
    %v183 = vpop.f32.mrf.mxu0
    %v184 = vadd.f32 %v121, %v183
    %185 = vmatmul.f32.gmra.mxu0 %v146
    %v186 = vpop.f32.mrf.mxu0
    %v187 = vadd.f32 %v121, %v186
    %188 = vdwg.mxu0
    %v189 = vld [vmem:[#allocation5] sm:$0xff]
    %v190 = vld [vmem:[#allocation5 + $0x8] sm:$0xff]
    %v191 = vld [vmem:[#allocation5 + $0x10] sm:$0xff]
    %v192 = vld [vmem:[#allocation5 + $0x18] sm:$0xff]
    %vm193 = vcmask 261120
    %v195 = vsel %vm193, 0.0, 0
    %197 = vmatpush.msra.mxu0 0.0
    %198 = vmatpush.msra.mxu0 0.0
    %199 = vmatpush.msra.mxu0 0.0
    %200 = vmatpush.msra.mxu0 0.0
    %201 = vmatpush.msra.mxu0 0.0
    %202 = vmatpush.msra.mxu0 0.0
    %203 = vmatpush.msra.mxu0 0.0
    %204 = vmatpush.msra.mxu0 0.0
    %205 = vmatpush.msra.mxu0 0.0
    %206 = vmatpush.msra.mxu0 0.0
    %207 = vmatpush.msra.mxu0 0.0
    %208 = vmatpush.msra.mxu0 0.0
    %209 = vmatpush.msra.mxu0 %v192
    %210 = vmatpush.msra.mxu0 %v191
    %211 = vmatpush.msra.mxu0 %v190
    %212 = vmatpush.msra.mxu0 %v189
    %213 = vmatmul.f32.gmra.mxu0 %v195
    %v214 = vpop.f32.mrf.mxu0
    %v215 = vadd.f32 0.0, %v214
    %216 = vdwg.mxu0
    %v217 = vadd.f32 %v166, %v215
    %v218 = vmul.f32 %v217, 0.5
    %v219 = vsel %vm83, %v217, %v218
    %v220 = vtanh.pop %v219
    %v221 = vmul.f32 %v220, 0.5
    %v222 = vadd.f32 %v221, 0.5
    %v223 = vsel %vm83, %v220, %v222
    %v224 = vmul.f32 %v223, 0.0
    %226 = vrot.lane.b32.xlu0 %v223, 64
    %v227 = vpop.permute.xlu0 %226
    %v229 = vmul.f32 %v223, %v227
    %231 = vrot.lane.b32.xlu0 %v229, 32
    %v232 = vpop.permute.xlu0 %231
    %v234 = vadd.f32 %v224, %v232
    %v235 = vtanh.pop %v234
    %237 = vrot.lane.b32.xlu0 %v235, 64
    %v238 = vpop.permute.xlu0 %237
    %v240 = vmul.f32 %v223, %v238
    %242 = vrot.lane.b32.xlu0 %v240, 32
    %v243 = vpop.permute.xlu0 %242
    %v244 = vsel %vm193, %v243, 0
    %246 = vmatpush.msra.mxu0 0.0
    %247 = vmatpush.msra.mxu0 0.0
    %248 = vmatpush.msra.mxu0 0.0
    %249 = vmatpush.msra.mxu0 0.0
    %250 = vmatpush.msra.mxu0 0.0
    %251 = vmatpush.msra.mxu0 0.0
    %252 = vmatpush.msra.mxu0 0.0
    %253 = vmatpush.msra.mxu0 0.0
    %254 = vmatpush.msra.mxu0 0.0
    %255 = vmatpush.msra.mxu0 0.0
    %256 = vmatpush.msra.mxu0 0.0
    %257 = vmatpush.msra.mxu0 0.0
    %258 = vmatpush.msra.mxu0 %v192
    %259 = vmatpush.msra.mxu0 %v191
    %260 = vmatpush.msra.mxu0 %v190
    %261 = vmatpush.msra.mxu0 %v189
    %262 = vmatmul.f32.gmra.mxu0 %v244
    %v263 = vpop.f32.mrf.mxu0
    %v264 = vadd.f32 0.0, %v263
    %265 = vdwg.mxu0
    %v266 = vadd.f32 %v169, %v264
    %v267 = vmul.f32 %v266, 0.5
    %v268 = vsel %vm83, %v266, %v267
    %v269 = vtanh.pop %v268
    %v270 = vmul.f32 %v269, 0.5
    %v271 = vadd.f32 %v270, 0.5
    %v272 = vsel %vm83, %v269, %v271
    %v273 = vmul.f32 %v272, %v234
    %275 = vrot.lane.b32.xlu0 %v272, 64
    %v276 = vpop.permute.xlu0 %275
    %v278 = vmul.f32 %v272, %v276
    %280 = vrot.lane.b32.xlu0 %v278, 32
    %v281 = vpop.permute.xlu0 %280
    %v283 = vadd.f32 %v273, %v281
    %v284 = vtanh.pop %v283
    %286 = vrot.lane.b32.xlu0 %v284, 64
    %v287 = vpop.permute.xlu0 %286
    %v289 = vmul.f32 %v272, %v287
    %v290 = vld [vmem:[#allocation3] sm:$0xff]
    %v291 = vld [vmem:[#allocation3 + $0x8] sm:$0xff]
    %v292 = vld [vmem:[#allocation3 + $0x10] sm:$0xff]
    %v293 = vld [vmem:[#allocation3 + $0x18] sm:$0xff]
    %s294 = scalar_lea.vmem [#allocation5], 32
    %v295 = vld [vmem:[%s294] sm:$0xff]
    %v296 = vld [vmem:[%s294 + $0x8] sm:$0xff]
    %v297 = vld [vmem:[%s294 + $0x10] sm:$0xff]
    %v298 = vld [vmem:[%s294 + $0x18] sm:$0xff]
    %299 = vmatpush.msra.mxu0 0.0
    %300 = vmatpush.msra.mxu0 0.0
    %301 = vmatpush.msra.mxu0 0.0
    %302 = vmatpush.msra.mxu0 0.0
    %303 = vmatpush.msra.mxu0 0.0
    %304 = vmatpush.msra.mxu0 0.0
    %305 = vmatpush.msra.mxu0 0.0
    %306 = vmatpush.msra.mxu0 0.0
    %307 = vmatpush.msra.mxu0 0.0
    %308 = vmatpush.msra.mxu0 0.0
    %309 = vmatpush.msra.mxu0 0.0
    %310 = vmatpush.msra.mxu0 0.0
    %311 = vmatpush.msra.mxu0 %v298
    %312 = vmatpush.msra.mxu0 %v297
    %313 = vmatpush.msra.mxu0 %v296
    %314 = vmatpush.msra.mxu0 %v295
    %315 = vmatmul.f32.gmra.mxu0 %v195
    %v316 = vpop.f32.mrf.mxu0
    %v317 = vadd.f32 0.0, %v316
    %318 = vdwg.mxu0
    %319 = vmatpush.msra.mxu0 0.0
    %320 = vmatpush.msra.mxu0 0.0
    %321 = vmatpush.msra.mxu0 0.0
    %322 = vmatpush.msra.mxu0 0.0
    %323 = vmatpush.msra.mxu0 0.0
    %324 = vmatpush.msra.mxu0 0.0
    %325 = vmatpush.msra.mxu0 0.0
    %326 = vmatpush.msra.mxu0 0.0
    %327 = vmatpush.msra.mxu0 0.0
    %328 = vmatpush.msra.mxu0 0.0
    %329 = vmatpush.msra.mxu0 0.0
    %330 = vmatpush.msra.mxu0 0.0
    %331 = vmatpush.msra.mxu0 %v293
    %332 = vmatpush.msra.mxu0 %v292
    %333 = vmatpush.msra.mxu0 %v291
    %334 = vmatpush.msra.mxu0 %v290
    %335 = vmatmul.f32.gmra.mxu0 %v244
    %v336 = vpop.f32.mrf.mxu0
    %v337 = vadd.f32 %v317, %v336
    %338 = vdwg.mxu0
    %v339 = vadd.f32 %v337, %v87
    %v340 = vmul.f32 %v339, 0.5
    %v341 = vsel %vm83, %v339, %v340
    %v342 = vtanh.pop %v341
    %v343 = vmul.f32 %v342, 0.5
    %v344 = vadd.f32 %v343, 0.5
    %v345 = vsel %vm83, %v342, %v344
    %v346 = vmul.f32 %v345, 0.0
    %348 = vrot.lane.b32.xlu0 %v345, 64
    %v349 = vpop.permute.xlu0 %348
    %v351 = vmul.f32 %v345, %v349
    %353 = vrot.lane.b32.xlu0 %v351, 32
    %v354 = vpop.permute.xlu0 %353
    %v356 = vadd.f32 %v346, %v354
    %v357 = vtanh.pop %v356
    %359 = vrot.lane.b32.xlu0 %v357, 64
    %v360 = vpop.permute.xlu0 %359
    %v362 = vmul.f32 %v345, %v360
    %364 = vrot.lane.b32.xlu0 %v289, 32
    %v365 = vpop.permute.xlu0 %364
    %v366 = vsel %vm193, %v365, 0
    %368 = vmatpush.msra.mxu0 0.0
    %369 = vmatpush.msra.mxu0 0.0
    %370 = vmatpush.msra.mxu0 0.0
    %371 = vmatpush.msra.mxu0 0.0
    %372 = vmatpush.msra.mxu0 0.0
    %373 = vmatpush.msra.mxu0 0.0
    %374 = vmatpush.msra.mxu0 0.0
    %375 = vmatpush.msra.mxu0 0.0
    %376 = vmatpush.msra.mxu0 0.0
    %377 = vmatpush.msra.mxu0 0.0
    %378 = vmatpush.msra.mxu0 0.0
    %379 = vmatpush.msra.mxu0 0.0
    %380 = vmatpush.msra.mxu0 %v192
    %381 = vmatpush.msra.mxu0 %v191
    %382 = vmatpush.msra.mxu0 %v190
    %383 = vmatpush.msra.mxu0 %v189
    %384 = vmatmul.f32.gmra.mxu0 %v366
    %v385 = vpop.f32.mrf.mxu0
    %v386 = vadd.f32 0.0, %v385
    %387 = vdwg.mxu0
    %v388 = vadd.f32 %v172, %v386
    %v389 = vmul.f32 %v388, 0.5
    %v390 = vsel %vm83, %v388, %v389
    %v391 = vtanh.pop %v390
    %v392 = vmul.f32 %v391, 0.5
    %v393 = vadd.f32 %v392, 0.5
    %v394 = vsel %vm83, %v391, %v393
    %v395 = vmul.f32 %v394, %v283
    %397 = vrot.lane.b32.xlu0 %v394, 64
    %v398 = vpop.permute.xlu0 %397
    %v400 = vmul.f32 %v394, %v398
    %402 = vrot.lane.b32.xlu0 %v400, 32
    %v403 = vpop.permute.xlu0 %402
    %v405 = vadd.f32 %v395, %v403
    %v406 = vtanh.pop %v405
    %408 = vrot.lane.b32.xlu0 %v406, 64
    %v409 = vpop.permute.xlu0 %408
    %v411 = vmul.f32 %v394, %v409
    %413 = vrot.lane.b32.xlu0 %v362, 32
    %v414 = vpop.permute.xlu0 %413
    %v415 = vsel %vm193, %v414, 0
    %417 = vmatpush.msra.mxu0 0.0
    %418 = vmatpush.msra.mxu0 0.0
    %419 = vmatpush.msra.mxu0 0.0
    %420 = vmatpush.msra.mxu0 0.0
    %421 = vmatpush.msra.mxu0 0.0
    %422 = vmatpush.msra.mxu0 0.0
    %423 = vmatpush.msra.mxu0 0.0
    %424 = vmatpush.msra.mxu0 0.0
    %425 = vmatpush.msra.mxu0 0.0
    %426 = vmatpush.msra.mxu0 0.0
    %427 = vmatpush.msra.mxu0 0.0
    %428 = vmatpush.msra.mxu0 0.0
    %429 = vmatpush.msra.mxu0 %v298
    %430 = vmatpush.msra.mxu0 %v297
    %431 = vmatpush.msra.mxu0 %v296
    %432 = vmatpush.msra.mxu0 %v295
    %433 = vmatmul.f32.gmra.mxu0 %v415
    %v434 = vpop.f32.mrf.mxu0
    %v435 = vadd.f32 0.0, %v434
    %436 = vdwg.mxu0
    %437 = vmatpush.msra.mxu0 0.0
    %438 = vmatpush.msra.mxu0 0.0
    %439 = vmatpush.msra.mxu0 0.0
    %440 = vmatpush.msra.mxu0 0.0
    %441 = vmatpush.msra.mxu0 0.0
    %442 = vmatpush.msra.mxu0 0.0
    %443 = vmatpush.msra.mxu0 0.0
    %444 = vmatpush.msra.mxu0 0.0
    %445 = vmatpush.msra.mxu0 0.0
    %446 = vmatpush.msra.mxu0 0.0
    %447 = vmatpush.msra.mxu0 0.0
    %448 = vmatpush.msra.mxu0 0.0
    %449 = vmatpush.msra.mxu0 %v293
    %450 = vmatpush.msra.mxu0 %v292
    %451 = vmatpush.msra.mxu0 %v291
    %452 = vmatpush.msra.mxu0 %v290
    %453 = vmatmul.f32.gmra.mxu0 %v366
    %v454 = vpop.f32.mrf.mxu0
    %v455 = vadd.f32 %v435, %v454
    %456 = vdwg.mxu0
    %v457 = vadd.f32 %v455, %v87
    %v458 = vmul.f32 %v457, 0.5
    %v459 = vsel %vm83, %v457, %v458
    %v460 = vtanh.pop %v459
    %v461 = vmul.f32 %v460, 0.5
    %v462 = vadd.f32 %v461, 0.5
    %v463 = vsel %vm83, %v460, %v462
    %v464 = vmul.f32 %v463, %v356
    %466 = vrot.lane.b32.xlu0 %v463, 64
    %v467 = vpop.permute.xlu0 %466
    %v469 = vmul.f32 %v463, %v467
    %471 = vrot.lane.b32.xlu0 %v469, 32
    %v472 = vpop.permute.xlu0 %471
    %v474 = vadd.f32 %v464, %v472
    %v475 = vtanh.pop %v474
    %477 = vrot.lane.b32.xlu0 %v475, 64
    %v478 = vpop.permute.xlu0 %477
    %v480 = vmul.f32 %v463, %v478
    %s481 = scalar_lea.vmem [#allocation3], 32
    %v482 = vld [vmem:[%s481] sm:$0xff]
    %v483 = vld [vmem:[%s481 + $0x8] sm:$0xff]
    %v484 = vld [vmem:[%s481 + $0x10] sm:$0xff]
    %v485 = vld [vmem:[%s481 + $0x18] sm:$0xff]
    %s486 = scalar_lea.vmem [#allocation5], 64
    %v487 = vld [vmem:[%s486] sm:$0xff]
    %v488 = vld [vmem:[%s486 + $0x8] sm:$0xff]
    %v489 = vld [vmem:[%s486 + $0x10] sm:$0xff]
    %v490 = vld [vmem:[%s486 + $0x18] sm:$0xff]
    %491 = vmatpush.msra.mxu0 0.0
    %492 = vmatpush.msra.mxu0 0.0
    %493 = vmatpush.msra.mxu0 0.0
    %494 = vmatpush.msra.mxu0 0.0
    %495 = vmatpush.msra.mxu0 0.0
    %496 = vmatpush.msra.mxu0 0.0
    %497 = vmatpush.msra.mxu0 0.0
    %498 = vmatpush.msra.mxu0 0.0
    %499 = vmatpush.msra.mxu0 0.0
    %500 = vmatpush.msra.mxu0 0.0
    %501 = vmatpush.msra.mxu0 0.0
    %502 = vmatpush.msra.mxu0 0.0
    %503 = vmatpush.msra.mxu0 %v490
    %504 = vmatpush.msra.mxu0 %v489
    %505 = vmatpush.msra.mxu0 %v488
    %506 = vmatpush.msra.mxu0 %v487
    %507 = vmatmul.f32.gmra.mxu0 %v195
    %v508 = vpop.f32.mrf.mxu0
    %v509 = vadd.f32 0.0, %v508
    %510 = vdwg.mxu0
    %511 = vmatpush.msra.mxu0 0.0
    %512 = vmatpush.msra.mxu0 0.0
    %513 = vmatpush.msra.mxu0 0.0
    %514 = vmatpush.msra.mxu0 0.0
    %515 = vmatpush.msra.mxu0 0.0
    %516 = vmatpush.msra.mxu0 0.0
    %517 = vmatpush.msra.mxu0 0.0
    %518 = vmatpush.msra.mxu0 0.0
    %519 = vmatpush.msra.mxu0 0.0
    %520 = vmatpush.msra.mxu0 0.0
    %521 = vmatpush.msra.mxu0 0.0
    %522 = vmatpush.msra.mxu0 0.0
    %523 = vmatpush.msra.mxu0 %v485
    %524 = vmatpush.msra.mxu0 %v484
    %525 = vmatpush.msra.mxu0 %v483
    %526 = vmatpush.msra.mxu0 %v482
    %527 = vmatmul.f32.gmra.mxu0 %v415
    %v528 = vpop.f32.mrf.mxu0
    %v529 = vadd.f32 %v509, %v528
    %530 = vdwg.mxu0
    %v531 = vadd.f32 %v529, %v92
    %v532 = vmul.f32 %v531, 0.5
    %v533 = vsel %vm83, %v531, %v532
    %v534 = vtanh.pop %v533
    %v535 = vmul.f32 %v534, 0.5
    %v536 = vadd.f32 %v535, 0.5
    %v537 = vsel %vm83, %v534, %v536
    %v538 = vmul.f32 %v537, 0.0
    %540 = vrot.lane.b32.xlu0 %v537, 64
    %v541 = vpop.permute.xlu0 %540
    %v543 = vmul.f32 %v537, %v541
    %545 = vrot.lane.b32.xlu0 %v543, 32
    %v546 = vpop.permute.xlu0 %545
    %v548 = vadd.f32 %v538, %v546
    %v549 = vtanh.pop %v548
    %551 = vrot.lane.b32.xlu0 %v549, 64
    %v552 = vpop.permute.xlu0 %551
    %v554 = vmul.f32 %v537, %v552
    %556 = vrot.lane.b32.xlu0 %v411, 32
    %v557 = vpop.permute.xlu0 %556
    %v558 = vsel %vm193, %v557, 0
    %560 = vmatpush.msra.mxu0 0.0
    %561 = vmatpush.msra.mxu0 0.0
    %562 = vmatpush.msra.mxu0 0.0
    %563 = vmatpush.msra.mxu0 0.0
    %564 = vmatpush.msra.mxu0 0.0
    %565 = vmatpush.msra.mxu0 0.0
    %566 = vmatpush.msra.mxu0 0.0
    %567 = vmatpush.msra.mxu0 0.0
    %568 = vmatpush.msra.mxu0 0.0
    %569 = vmatpush.msra.mxu0 0.0
    %570 = vmatpush.msra.mxu0 0.0
    %571 = vmatpush.msra.mxu0 0.0
    %572 = vmatpush.msra.mxu0 %v192
    %573 = vmatpush.msra.mxu0 %v191
    %574 = vmatpush.msra.mxu0 %v190
    %575 = vmatpush.msra.mxu0 %v189
    %576 = vmatmul.f32.gmra.mxu0 %v558
    %v577 = vpop.f32.mrf.mxu0
    %v578 = vadd.f32 0.0, %v577
    %579 = vdwg.mxu0
    %v580 = vadd.f32 %v175, %v578
    %v581 = vmul.f32 %v580, 0.5
    %v582 = vsel %vm83, %v580, %v581
    %v583 = vtanh.pop %v582
    %v584 = vmul.f32 %v583, 0.5
    %v585 = vadd.f32 %v584, 0.5
    %v586 = vsel %vm83, %v583, %v585
    %v587 = vmul.f32 %v586, %v405
    %589 = vrot.lane.b32.xlu0 %v586, 64
    %v590 = vpop.permute.xlu0 %589
    %v592 = vmul.f32 %v586, %v590
    %594 = vrot.lane.b32.xlu0 %v592, 32
    %v595 = vpop.permute.xlu0 %594
    %v597 = vadd.f32 %v587, %v595
    %v598 = vtanh.pop %v597
    %600 = vrot.lane.b32.xlu0 %v598, 64
    %v601 = vpop.permute.xlu0 %600
    %v603 = vmul.f32 %v586, %v601
    %605 = vrot.lane.b32.xlu0 %v480, 32
    %v606 = vpop.permute.xlu0 %605
    %v607 = vsel %vm193, %v606, 0
    %609 = vmatpush.msra.mxu0 0.0
    %610 = vmatpush.msra.mxu0 0.0
    %611 = vmatpush.msra.mxu0 0.0
    %612 = vmatpush.msra.mxu0 0.0
    %613 = vmatpush.msra.mxu0 0.0
    %614 = vmatpush.msra.mxu0 0.0
    %615 = vmatpush.msra.mxu0 0.0
    %616 = vmatpush.msra.mxu0 0.0
    %617 = vmatpush.msra.mxu0 0.0
    %618 = vmatpush.msra.mxu0 0.0
    %619 = vmatpush.msra.mxu0 0.0
    %620 = vmatpush.msra.mxu0 0.0
    %621 = vmatpush.msra.mxu0 %v298
    %622 = vmatpush.msra.mxu0 %v297
    %623 = vmatpush.msra.mxu0 %v296
    %624 = vmatpush.msra.mxu0 %v295
    %625 = vmatmul.f32.gmra.mxu0 %v607
    %v626 = vpop.f32.mrf.mxu0
    %v627 = vadd.f32 0.0, %v626
    %628 = vdwg.mxu0
    %629 = vmatpush.msra.mxu0 0.0
    %630 = vmatpush.msra.mxu0 0.0
    %631 = vmatpush.msra.mxu0 0.0
    %632 = vmatpush.msra.mxu0 0.0
    %633 = vmatpush.msra.mxu0 0.0
    %634 = vmatpush.msra.mxu0 0.0
    %635 = vmatpush.msra.mxu0 0.0
    %636 = vmatpush.msra.mxu0 0.0
    %637 = vmatpush.msra.mxu0 0.0
    %638 = vmatpush.msra.mxu0 0.0
    %639 = vmatpush.msra.mxu0 0.0
    %640 = vmatpush.msra.mxu0 0.0
    %641 = vmatpush.msra.mxu0 %v293
    %642 = vmatpush.msra.mxu0 %v292
    %643 = vmatpush.msra.mxu0 %v291
    %644 = vmatpush.msra.mxu0 %v290
    %645 = vmatmul.f32.gmra.mxu0 %v558
    %v646 = vpop.f32.mrf.mxu0
    %v647 = vadd.f32 %v627, %v646
    %648 = vdwg.mxu0
    %v649 = vadd.f32 %v647, %v87
    %v650 = vmul.f32 %v649, 0.5
    %v651 = vsel %vm83, %v649, %v650
    %v652 = vtanh.pop %v651
    %v653 = vmul.f32 %v652, 0.5
    %v654 = vadd.f32 %v653, 0.5
    %v655 = vsel %vm83, %v652, %v654
    %v656 = vmul.f32 %v655, %v474
    %658 = vrot.lane.b32.xlu0 %v655, 64
    %v659 = vpop.permute.xlu0 %658
    %v661 = vmul.f32 %v655, %v659
    %663 = vrot.lane.b32.xlu0 %v661, 32
    %v664 = vpop.permute.xlu0 %663
    %v666 = vadd.f32 %v656, %v664
    %v667 = vtanh.pop %v666
    %669 = vrot.lane.b32.xlu0 %v667, 64
    %v670 = vpop.permute.xlu0 %669
    %v672 = vmul.f32 %v655, %v670
    %674 = vrot.lane.b32.xlu0 %v554, 32
    %v675 = vpop.permute.xlu0 %674
    %v676 = vsel %vm193, %v675, 0
    %678 = vmatpush.msra.mxu0 0.0
    %679 = vmatpush.msra.mxu0 0.0
    %680 = vmatpush.msra.mxu0 0.0
    %681 = vmatpush.msra.mxu0 0.0
    %682 = vmatpush.msra.mxu0 0.0
    %683 = vmatpush.msra.mxu0 0.0
    %684 = vmatpush.msra.mxu0 0.0
    %685 = vmatpush.msra.mxu0 0.0
    %686 = vmatpush.msra.mxu0 0.0
    %687 = vmatpush.msra.mxu0 0.0
    %688 = vmatpush.msra.mxu0 0.0
    %689 = vmatpush.msra.mxu0 0.0
    %690 = vmatpush.msra.mxu0 %v490
    %691 = vmatpush.msra.mxu0 %v489
    %692 = vmatpush.msra.mxu0 %v488
    %693 = vmatpush.msra.mxu0 %v487
    %694 = vmatmul.f32.gmra.mxu0 %v676
    %v695 = vpop.f32.mrf.mxu0
    %v696 = vadd.f32 0.0, %v695
    %697 = vdwg.mxu0
    %698 = vmatpush.msra.mxu0 0.0
    %699 = vmatpush.msra.mxu0 0.0
    %700 = vmatpush.msra.mxu0 0.0
    %701 = vmatpush.msra.mxu0 0.0
    %702 = vmatpush.msra.mxu0 0.0
    %703 = vmatpush.msra.mxu0 0.0
    %704 = vmatpush.msra.mxu0 0.0
    %705 = vmatpush.msra.mxu0 0.0
    %706 = vmatpush.msra.mxu0 0.0
    %707 = vmatpush.msra.mxu0 0.0
    %708 = vmatpush.msra.mxu0 0.0
    %709 = vmatpush.msra.mxu0 0.0
    %710 = vmatpush.msra.mxu0 %v485
    %711 = vmatpush.msra.mxu0 %v484
    %712 = vmatpush.msra.mxu0 %v483
    %713 = vmatpush.msra.mxu0 %v482
    %714 = vmatmul.f32.gmra.mxu0 %v607
    %v715 = vpop.f32.mrf.mxu0
    %v716 = vadd.f32 %v696, %v715
    %717 = vdwg.mxu0
    %v718 = vadd.f32 %v716, %v92
    %v719 = vmul.f32 %v718, 0.5
    %v720 = vsel %vm83, %v718, %v719
    %v721 = vtanh.pop %v720
    %v722 = vmul.f32 %v721, 0.5
    %v723 = vadd.f32 %v722, 0.5
    %v724 = vsel %vm83, %v721, %v723
    %v725 = vmul.f32 %v724, %v548
    %727 = vrot.lane.b32.xlu0 %v724, 64
    %v728 = vpop.permute.xlu0 %727
    %v730 = vmul.f32 %v724, %v728
    %732 = vrot.lane.b32.xlu0 %v730, 32
    %v733 = vpop.permute.xlu0 %732
    %v735 = vadd.f32 %v725, %v733
    %v736 = vtanh.pop %v735
    %738 = vrot.lane.b32.xlu0 %v736, 64
    %v739 = vpop.permute.xlu0 %738
    %v741 = vmul.f32 %v724, %v739
    %s742 = scalar_lea.vmem [#allocation3], 64
    %v743 = vld [vmem:[%s742] sm:$0xff]
    %v744 = vld [vmem:[%s742 + $0x8] sm:$0xff]
    %v745 = vld [vmem:[%s742 + $0x10] sm:$0xff]
    %v746 = vld [vmem:[%s742 + $0x18] sm:$0xff]
    %s747 = scalar_lea.vmem [#allocation5], 96
    %v748 = vld [vmem:[%s747] sm:$0xff]
    %v749 = vld [vmem:[%s747 + $0x8] sm:$0xff]
    %v750 = vld [vmem:[%s747 + $0x10] sm:$0xff]
    %v751 = vld [vmem:[%s747 + $0x18] sm:$0xff]
    %752 = vmatpush.msra.mxu0 0.0
    %753 = vmatpush.msra.mxu0 0.0
    %754 = vmatpush.msra.mxu0 0.0
    %755 = vmatpush.msra.mxu0 0.0
    %756 = vmatpush.msra.mxu0 0.0
    %757 = vmatpush.msra.mxu0 0.0
    %758 = vmatpush.msra.mxu0 0.0
    %759 = vmatpush.msra.mxu0 0.0
    %760 = vmatpush.msra.mxu0 0.0
    %761 = vmatpush.msra.mxu0 0.0
    %762 = vmatpush.msra.mxu0 0.0
    %763 = vmatpush.msra.mxu0 0.0
    %764 = vmatpush.msra.mxu0 %v751
    %765 = vmatpush.msra.mxu0 %v750
    %766 = vmatpush.msra.mxu0 %v749
    %767 = vmatpush.msra.mxu0 %v748
    %768 = vmatmul.f32.gmra.mxu0 %v195
    %v769 = vpop.f32.mrf.mxu0
    %v770 = vadd.f32 0.0, %v769
    %771 = vdwg.mxu0
    %772 = vmatpush.msra.mxu0 0.0
    %773 = vmatpush.msra.mxu0 0.0
    %774 = vmatpush.msra.mxu0 0.0
    %775 = vmatpush.msra.mxu0 0.0
    %776 = vmatpush.msra.mxu0 0.0
    %777 = vmatpush.msra.mxu0 0.0
    %778 = vmatpush.msra.mxu0 0.0
    %779 = vmatpush.msra.mxu0 0.0
    %780 = vmatpush.msra.mxu0 0.0
    %781 = vmatpush.msra.mxu0 0.0
    %782 = vmatpush.msra.mxu0 0.0
    %783 = vmatpush.msra.mxu0 0.0
    %784 = vmatpush.msra.mxu0 %v746
    %785 = vmatpush.msra.mxu0 %v745
    %786 = vmatpush.msra.mxu0 %v744
    %787 = vmatpush.msra.mxu0 %v743
    %788 = vmatmul.f32.gmra.mxu0 %v676
    %v789 = vpop.f32.mrf.mxu0
    %v790 = vadd.f32 %v770, %v789
    %791 = vdwg.mxu0
    %v792 = vadd.f32 %v790, %v97
    %v793 = vmul.f32 %v792, 0.5
    %v794 = vsel %vm83, %v792, %v793
    %v795 = vtanh.pop %v794
    %v796 = vmul.f32 %v795, 0.5
    %v797 = vadd.f32 %v796, 0.5
    %v798 = vsel %vm83, %v795, %v797
    %v799 = vmul.f32 %v798, 0.0
    %801 = vrot.lane.b32.xlu0 %v798, 64
    %v802 = vpop.permute.xlu0 %801
    %v804 = vmul.f32 %v798, %v802
    %806 = vrot.lane.b32.xlu0 %v804, 32
    %v807 = vpop.permute.xlu0 %806
    %v809 = vadd.f32 %v799, %v807
    %v810 = vtanh.pop %v809
    %812 = vrot.lane.b32.xlu0 %v810, 64
    %v813 = vpop.permute.xlu0 %812
    %v815 = vmul.f32 %v798, %v813
    %817 = vrot.lane.b32.xlu0 %v603, 32
    %v818 = vpop.permute.xlu0 %817
    %v819 = vsel %vm193, %v818, 0
    %821 = vmatpush.msra.mxu0 0.0
    %822 = vmatpush.msra.mxu0 0.0
    %823 = vmatpush.msra.mxu0 0.0
    %824 = vmatpush.msra.mxu0 0.0
    %825 = vmatpush.msra.mxu0 0.0
    %826 = vmatpush.msra.mxu0 0.0
    %827 = vmatpush.msra.mxu0 0.0
    %828 = vmatpush.msra.mxu0 0.0
    %829 = vmatpush.msra.mxu0 0.0
    %830 = vmatpush.msra.mxu0 0.0
    %831 = vmatpush.msra.mxu0 0.0
    %832 = vmatpush.msra.mxu0 0.0
    %833 = vmatpush.msra.mxu0 %v192
    %834 = vmatpush.msra.mxu0 %v191
    %835 = vmatpush.msra.mxu0 %v190
    %836 = vmatpush.msra.mxu0 %v189
    %837 = vmatmul.f32.gmra.mxu0 %v819
    %v838 = vpop.f32.mrf.mxu0
    %v839 = vadd.f32 0.0, %v838
    %840 = vdwg.mxu0
    %v841 = vadd.f32 %v178, %v839
    %v842 = vmul.f32 %v841, 0.5
    %v843 = vsel %vm83, %v841, %v842
    %v844 = vtanh.pop %v843
    %v845 = vmul.f32 %v844, 0.5
    %v846 = vadd.f32 %v845, 0.5
    %v847 = vsel %vm83, %v844, %v846
    %v848 = vmul.f32 %v847, %v597
    %850 = vrot.lane.b32.xlu0 %v847, 64
    %v851 = vpop.permute.xlu0 %850
    %v853 = vmul.f32 %v847, %v851
    %855 = vrot.lane.b32.xlu0 %v853, 32
    %v856 = vpop.permute.xlu0 %855
    %v858 = vadd.f32 %v848, %v856
    %v859 = vtanh.pop %v858
    %861 = vrot.lane.b32.xlu0 %v859, 64
    %v862 = vpop.permute.xlu0 %861
    %v864 = vmul.f32 %v847, %v862
    %866 = vrot.lane.b32.xlu0 %v672, 32
    %v867 = vpop.permute.xlu0 %866
    %v868 = vsel %vm193, %v867, 0
    %870 = vmatpush.msra.mxu0 0.0
    %871 = vmatpush.msra.mxu0 0.0
    %872 = vmatpush.msra.mxu0 0.0
    %873 = vmatpush.msra.mxu0 0.0
    %874 = vmatpush.msra.mxu0 0.0
    %875 = vmatpush.msra.mxu0 0.0
    %876 = vmatpush.msra.mxu0 0.0
    %877 = vmatpush.msra.mxu0 0.0
    %878 = vmatpush.msra.mxu0 0.0
    %879 = vmatpush.msra.mxu0 0.0
    %880 = vmatpush.msra.mxu0 0.0
    %881 = vmatpush.msra.mxu0 0.0
    %882 = vmatpush.msra.mxu0 %v298
    %883 = vmatpush.msra.mxu0 %v297
    %884 = vmatpush.msra.mxu0 %v296
    %885 = vmatpush.msra.mxu0 %v295
    %886 = vmatmul.f32.gmra.mxu0 %v868
    %v887 = vpop.f32.mrf.mxu0
    %v888 = vadd.f32 0.0, %v887
    %889 = vdwg.mxu0
    %890 = vmatpush.msra.mxu0 0.0
    %891 = vmatpush.msra.mxu0 0.0
    %892 = vmatpush.msra.mxu0 0.0
    %893 = vmatpush.msra.mxu0 0.0
    %894 = vmatpush.msra.mxu0 0.0
    %895 = vmatpush.msra.mxu0 0.0
    %896 = vmatpush.msra.mxu0 0.0
    %897 = vmatpush.msra.mxu0 0.0
    %898 = vmatpush.msra.mxu0 0.0
    %899 = vmatpush.msra.mxu0 0.0
    %900 = vmatpush.msra.mxu0 0.0
    %901 = vmatpush.msra.mxu0 0.0
    %902 = vmatpush.msra.mxu0 %v293
    %903 = vmatpush.msra.mxu0 %v292
    %904 = vmatpush.msra.mxu0 %v291
    %905 = vmatpush.msra.mxu0 %v290
    %906 = vmatmul.f32.gmra.mxu0 %v819
    %v907 = vpop.f32.mrf.mxu0
    %v908 = vadd.f32 %v888, %v907
    %909 = vdwg.mxu0
    %v910 = vadd.f32 %v908, %v87
    %v911 = vmul.f32 %v910, 0.5
    %v912 = vsel %vm83, %v910, %v911
    %v913 = vtanh.pop %v912
    %v914 = vmul.f32 %v913, 0.5
    %v915 = vadd.f32 %v914, 0.5
    %v916 = vsel %vm83, %v913, %v915
    %v917 = vmul.f32 %v916, %v666
    %919 = vrot.lane.b32.xlu0 %v916, 64
    %v920 = vpop.permute.xlu0 %919
    %v922 = vmul.f32 %v916, %v920
    %924 = vrot.lane.b32.xlu0 %v922, 32
    %v925 = vpop.permute.xlu0 %924
    %v927 = vadd.f32 %v917, %v925
    %v928 = vtanh.pop %v927
    %930 = vrot.lane.b32.xlu0 %v928, 64
    %v931 = vpop.permute.xlu0 %930
    %v933 = vmul.f32 %v916, %v931
    %935 = vrot.lane.b32.xlu0 %v741, 32
    %v936 = vpop.permute.xlu0 %935
    %v937 = vsel %vm193, %v936, 0
    %939 = vmatpush.msra.mxu0 0.0
    %940 = vmatpush.msra.mxu0 0.0
    %941 = vmatpush.msra.mxu0 0.0
    %942 = vmatpush.msra.mxu0 0.0
    %943 = vmatpush.msra.mxu0 0.0
    %944 = vmatpush.msra.mxu0 0.0
    %945 = vmatpush.msra.mxu0 0.0
    %946 = vmatpush.msra.mxu0 0.0
    %947 = vmatpush.msra.mxu0 0.0
    %948 = vmatpush.msra.mxu0 0.0
    %949 = vmatpush.msra.mxu0 0.0
    %950 = vmatpush.msra.mxu0 0.0
    %951 = vmatpush.msra.mxu0 %v490
    %952 = vmatpush.msra.mxu0 %v489
    %953 = vmatpush.msra.mxu0 %v488
    %954 = vmatpush.msra.mxu0 %v487
    %955 = vmatmul.f32.gmra.mxu0 %v937
    %v956 = vpop.f32.mrf.mxu0
    %v957 = vadd.f32 0.0, %v956
    %958 = vdwg.mxu0
    %959 = vmatpush.msra.mxu0 0.0
    %960 = vmatpush.msra.mxu0 0.0
    %961 = vmatpush.msra.mxu0 0.0
    %962 = vmatpush.msra.mxu0 0.0
    %963 = vmatpush.msra.mxu0 0.0
    %964 = vmatpush.msra.mxu0 0.0
    %965 = vmatpush.msra.mxu0 0.0
    %966 = vmatpush.msra.mxu0 0.0
    %967 = vmatpush.msra.mxu0 0.0
    %968 = vmatpush.msra.mxu0 0.0
    %969 = vmatpush.msra.mxu0 0.0
    %970 = vmatpush.msra.mxu0 0.0
    %971 = vmatpush.msra.mxu0 %v485
    %972 = vmatpush.msra.mxu0 %v484
    %973 = vmatpush.msra.mxu0 %v483
    %974 = vmatpush.msra.mxu0 %v482
    %975 = vmatmul.f32.gmra.mxu0 %v868
    %v976 = vpop.f32.mrf.mxu0
    %v977 = vadd.f32 %v957, %v976
    %978 = vdwg.mxu0
    %v979 = vadd.f32 %v977, %v92
    %v980 = vmul.f32 %v979, 0.5
    %v981 = vsel %vm83, %v979, %v980
    %v982 = vtanh.pop %v981
    %v983 = vmul.f32 %v982, 0.5
    %v984 = vadd.f32 %v983, 0.5
    %v985 = vsel %vm83, %v982, %v984
    %v986 = vmul.f32 %v985, %v735
    %988 = vrot.lane.b32.xlu0 %v985, 64
    %v989 = vpop.permute.xlu0 %988
    %v991 = vmul.f32 %v985, %v989
    %993 = vrot.lane.b32.xlu0 %v991, 32
    %v994 = vpop.permute.xlu0 %993
    %v996 = vadd.f32 %v986, %v994
    %v997 = vtanh.pop %v996
    %999 = vrot.lane.b32.xlu0 %v997, 64
    %v1000 = vpop.permute.xlu0 %999
    %v1002 = vmul.f32 %v985, %v1000
    %1004 = vrot.lane.b32.xlu0 %v815, 32
    %v1005 = vpop.permute.xlu0 %1004
    %v1006 = vsel %vm193, %v1005, 0
    %1008 = vmatpush.msra.mxu0 0.0
    %1009 = vmatpush.msra.mxu0 0.0
    %1010 = vmatpush.msra.mxu0 0.0
    %1011 = vmatpush.msra.mxu0 0.0
    %1012 = vmatpush.msra.mxu0 0.0
    %1013 = vmatpush.msra.mxu0 0.0
    %1014 = vmatpush.msra.mxu0 0.0
    %1015 = vmatpush.msra.mxu0 0.0
    %1016 = vmatpush.msra.mxu0 0.0
    %1017 = vmatpush.msra.mxu0 0.0
    %1018 = vmatpush.msra.mxu0 0.0
    %1019 = vmatpush.msra.mxu0 0.0
    %1020 = vmatpush.msra.mxu0 %v751
    %1021 = vmatpush.msra.mxu0 %v750
    %1022 = vmatpush.msra.mxu0 %v749
    %1023 = vmatpush.msra.mxu0 %v748
    %1024 = vmatmul.f32.gmra.mxu0 %v1006
    %v1025 = vpop.f32.mrf.mxu0
    %v1026 = vadd.f32 0.0, %v1025
    %1027 = vdwg.mxu0
    %1028 = vmatpush.msra.mxu0 0.0
    %1029 = vmatpush.msra.mxu0 0.0
    %1030 = vmatpush.msra.mxu0 0.0
    %1031 = vmatpush.msra.mxu0 0.0
    %1032 = vmatpush.msra.mxu0 0.0
    %1033 = vmatpush.msra.mxu0 0.0
    %1034 = vmatpush.msra.mxu0 0.0
    %1035 = vmatpush.msra.mxu0 0.0
    %1036 = vmatpush.msra.mxu0 0.0
    %1037 = vmatpush.msra.mxu0 0.0
    %1038 = vmatpush.msra.mxu0 0.0
    %1039 = vmatpush.msra.mxu0 0.0
    %1040 = vmatpush.msra.mxu0 %v746
    %1041 = vmatpush.msra.mxu0 %v745
    %1042 = vmatpush.msra.mxu0 %v744
    %1043 = vmatpush.msra.mxu0 %v743
    %1044 = vmatmul.f32.gmra.mxu0 %v937
    %v1045 = vpop.f32.mrf.mxu0
    %v1046 = vadd.f32 %v1026, %v1045
    %1047 = vdwg.mxu0
    %v1048 = vadd.f32 %v1046, %v97
    %v1049 = vmul.f32 %v1048, 0.5
    %v1050 = vsel %vm83, %v1048, %v1049
    %v1051 = vtanh.pop %v1050
    %v1052 = vmul.f32 %v1051, 0.5
    %v1053 = vadd.f32 %v1052, 0.5
    %v1054 = vsel %vm83, %v1051, %v1053
    %v1055 = vmul.f32 %v1054, %v809
    %1057 = vrot.lane.b32.xlu0 %v1054, 64
    %v1058 = vpop.permute.xlu0 %1057
    %v1060 = vmul.f32 %v1054, %v1058
    %1062 = vrot.lane.b32.xlu0 %v1060, 32
    %v1063 = vpop.permute.xlu0 %1062
    %v1065 = vadd.f32 %v1055, %v1063
    %v1066 = vtanh.pop %v1065
    %1068 = vrot.lane.b32.xlu0 %v1066, 64
    %v1069 = vpop.permute.xlu0 %1068
    %v1071 = vmul.f32 %v1054, %v1069
    %s1072 = scalar_lea.vmem [#allocation3], 96
    %v1073 = vld [vmem:[%s1072] sm:$0xff]
    %v1074 = vld [vmem:[%s1072 + $0x8] sm:$0xff]
    %v1075 = vld [vmem:[%s1072 + $0x10] sm:$0xff]
    %v1076 = vld [vmem:[%s1072 + $0x18] sm:$0xff]
    %s1077 = scalar_lea.vmem [#allocation5], 128
    %v1078 = vld [vmem:[%s1077] sm:$0xff]
    %v1079 = vld [vmem:[%s1077 + $0x8] sm:$0xff]
    %v1080 = vld [vmem:[%s1077 + $0x10] sm:$0xff]
    %v1081 = vld [vmem:[%s1077 + $0x18] sm:$0xff]
    %1082 = vmatpush.msra.mxu0 0.0
    %1083 = vmatpush.msra.mxu0 0.0
    %1084 = vmatpush.msra.mxu0 0.0
    %1085 = vmatpush.msra.mxu0 0.0
    %1086 = vmatpush.msra.mxu0 0.0
    %1087 = vmatpush.msra.mxu0 0.0
    %1088 = vmatpush.msra.mxu0 0.0
    %1089 = vmatpush.msra.mxu0 0.0
    %1090 = vmatpush.msra.mxu0 0.0
    %1091 = vmatpush.msra.mxu0 0.0
    %1092 = vmatpush.msra.mxu0 0.0
    %1093 = vmatpush.msra.mxu0 0.0
    %1094 = vmatpush.msra.mxu0 %v1081
    %1095 = vmatpush.msra.mxu0 %v1080
    %1096 = vmatpush.msra.mxu0 %v1079
    %1097 = vmatpush.msra.mxu0 %v1078
    %1098 = vmatmul.f32.gmra.mxu0 %v195
    %v1099 = vpop.f32.mrf.mxu0
    %v1100 = vadd.f32 0.0, %v1099
    %1101 = vdwg.mxu0
    %1102 = vmatpush.msra.mxu0 0.0
    %1103 = vmatpush.msra.mxu0 0.0
    %1104 = vmatpush.msra.mxu0 0.0
    %1105 = vmatpush.msra.mxu0 0.0
    %1106 = vmatpush.msra.mxu0 0.0
    %1107 = vmatpush.msra.mxu0 0.0
    %1108 = vmatpush.msra.mxu0 0.0
    %1109 = vmatpush.msra.mxu0 0.0
    %1110 = vmatpush.msra.mxu0 0.0
    %1111 = vmatpush.msra.mxu0 0.0
    %1112 = vmatpush.msra.mxu0 0.0
    %1113 = vmatpush.msra.mxu0 0.0
    %1114 = vmatpush.msra.mxu0 %v1076
    %1115 = vmatpush.msra.mxu0 %v1075
    %1116 = vmatpush.msra.mxu0 %v1074
    %1117 = vmatpush.msra.mxu0 %v1073
    %1118 = vmatmul.f32.gmra.mxu0 %v1006
    %v1119 = vpop.f32.mrf.mxu0
    %v1120 = vadd.f32 %v1100, %v1119
    %1121 = vdwg.mxu0
    %v1122 = vadd.f32 %v1120, %v102
    %v1123 = vmul.f32 %v1122, 0.5
    %v1124 = vsel %vm83, %v1122, %v1123
    %v1125 = vtanh.pop %v1124
    %v1126 = vmul.f32 %v1125, 0.5
    %v1127 = vadd.f32 %v1126, 0.5
    %v1128 = vsel %vm83, %v1125, %v1127
    %v1129 = vmul.f32 %v1128, 0.0
    %1131 = vrot.lane.b32.xlu0 %v1128, 64
    %v1132 = vpop.permute.xlu0 %1131
    %v1134 = vmul.f32 %v1128, %v1132
    %1136 = vrot.lane.b32.xlu0 %v1134, 32
    %v1137 = vpop.permute.xlu0 %1136
    %v1139 = vadd.f32 %v1129, %v1137
    %v1140 = vtanh.pop %v1139
    %1142 = vrot.lane.b32.xlu0 %v1140, 64
    %v1143 = vpop.permute.xlu0 %1142
    %v1145 = vmul.f32 %v1128, %v1143
    %1147 = vrot.lane.b32.xlu0 %v864, 32
    %v1148 = vpop.permute.xlu0 %1147
    %v1149 = vsel %vm193, %v1148, 0
    %1151 = vmatpush.msra.mxu0 0.0
    %1152 = vmatpush.msra.mxu0 0.0
    %1153 = vmatpush.msra.mxu0 0.0
    %1154 = vmatpush.msra.mxu0 0.0
    %1155 = vmatpush.msra.mxu0 0.0
    %1156 = vmatpush.msra.mxu0 0.0
    %1157 = vmatpush.msra.mxu0 0.0
    %1158 = vmatpush.msra.mxu0 0.0
    %1159 = vmatpush.msra.mxu0 0.0
    %1160 = vmatpush.msra.mxu0 0.0
    %1161 = vmatpush.msra.mxu0 0.0
    %1162 = vmatpush.msra.mxu0 0.0
    %1163 = vmatpush.msra.mxu0 %v192
    %1164 = vmatpush.msra.mxu0 %v191
    %1165 = vmatpush.msra.mxu0 %v190
    %1166 = vmatpush.msra.mxu0 %v189
    %1167 = vmatmul.f32.gmra.mxu0 %v1149
    %v1168 = vpop.f32.mrf.mxu0
    %v1169 = vadd.f32 0.0, %v1168
    %1170 = vdwg.mxu0
    %v1171 = vadd.f32 %v181, %v1169
    %v1172 = vmul.f32 %v1171, 0.5
    %v1173 = vsel %vm83, %v1171, %v1172
    %v1174 = vtanh.pop %v1173
    %v1175 = vmul.f32 %v1174, 0.5
    %v1176 = vadd.f32 %v1175, 0.5
    %v1177 = vsel %vm83, %v1174, %v1176
    %v1178 = vmul.f32 %v1177, %v858
    %1180 = vrot.lane.b32.xlu0 %v1177, 64
    %v1181 = vpop.permute.xlu0 %1180
    %v1183 = vmul.f32 %v1177, %v1181
    %1185 = vrot.lane.b32.xlu0 %v1183, 32
    %v1186 = vpop.permute.xlu0 %1185
    %v1188 = vadd.f32 %v1178, %v1186
    %v1189 = vtanh.pop %v1188
    %1191 = vrot.lane.b32.xlu0 %v1189, 64
    %v1192 = vpop.permute.xlu0 %1191
    %v1194 = vmul.f32 %v1177, %v1192
    %1196 = vrot.lane.b32.xlu0 %v933, 32
    %v1197 = vpop.permute.xlu0 %1196
    %v1198 = vsel %vm193, %v1197, 0
    %1200 = vmatpush.msra.mxu0 0.0
    %1201 = vmatpush.msra.mxu0 0.0
    %1202 = vmatpush.msra.mxu0 0.0
    %1203 = vmatpush.msra.mxu0 0.0
    %1204 = vmatpush.msra.mxu0 0.0
    %1205 = vmatpush.msra.mxu0 0.0
    %1206 = vmatpush.msra.mxu0 0.0
    %1207 = vmatpush.msra.mxu0 0.0
    %1208 = vmatpush.msra.mxu0 0.0
    %1209 = vmatpush.msra.mxu0 0.0
    %1210 = vmatpush.msra.mxu0 0.0
    %1211 = vmatpush.msra.mxu0 0.0
    %1212 = vmatpush.msra.mxu0 %v298
    %1213 = vmatpush.msra.mxu0 %v297
    %1214 = vmatpush.msra.mxu0 %v296
    %1215 = vmatpush.msra.mxu0 %v295
    %1216 = vmatmul.f32.gmra.mxu0 %v1198
    %v1217 = vpop.f32.mrf.mxu0
    %v1218 = vadd.f32 0.0, %v1217
    %1219 = vdwg.mxu0
    %1220 = vmatpush.msra.mxu0 0.0
    %1221 = vmatpush.msra.mxu0 0.0
    %1222 = vmatpush.msra.mxu0 0.0
    %1223 = vmatpush.msra.mxu0 0.0
    %1224 = vmatpush.msra.mxu0 0.0
    %1225 = vmatpush.msra.mxu0 0.0
    %1226 = vmatpush.msra.mxu0 0.0
    %1227 = vmatpush.msra.mxu0 0.0
    %1228 = vmatpush.msra.mxu0 0.0
    %1229 = vmatpush.msra.mxu0 0.0
    %1230 = vmatpush.msra.mxu0 0.0
    %1231 = vmatpush.msra.mxu0 0.0
    %1232 = vmatpush.msra.mxu0 %v293
    %1233 = vmatpush.msra.mxu0 %v292
    %1234 = vmatpush.msra.mxu0 %v291
    %1235 = vmatpush.msra.mxu0 %v290
    %1236 = vmatmul.f32.gmra.mxu0 %v1149
    %v1237 = vpop.f32.mrf.mxu0
    %v1238 = vadd.f32 %v1218, %v1237
    %1239 = vdwg.mxu0
    %v1240 = vadd.f32 %v1238, %v87
    %v1241 = vmul.f32 %v1240, 0.5
    %v1242 = vsel %vm83, %v1240, %v1241
    %v1243 = vtanh.pop %v1242
    %v1244 = vmul.f32 %v1243, 0.5
    %v1245 = vadd.f32 %v1244, 0.5
    %v1246 = vsel %vm83, %v1243, %v1245
    %v1247 = vmul.f32 %v1246, %v927
    %1249 = vrot.lane.b32.xlu0 %v1246, 64
    %v1250 = vpop.permute.xlu0 %1249
    %v1252 = vmul.f32 %v1246, %v1250
    %1254 = vrot.lane.b32.xlu0 %v1252, 32
    %v1255 = vpop.permute.xlu0 %1254
    %v1257 = vadd.f32 %v1247, %v1255
    %v1258 = vtanh.pop %v1257
    %1260 = vrot.lane.b32.xlu0 %v1258, 64
    %v1261 = vpop.permute.xlu0 %1260
    %v1263 = vmul.f32 %v1246, %v1261
    %1265 = vrot.lane.b32.xlu0 %v1002, 32
    %v1266 = vpop.permute.xlu0 %1265
    %v1267 = vsel %vm193, %v1266, 0
    %1269 = vmatpush.msra.mxu0 0.0
    %1270 = vmatpush.msra.mxu0 0.0
    %1271 = vmatpush.msra.mxu0 0.0
    %1272 = vmatpush.msra.mxu0 0.0
    %1273 = vmatpush.msra.mxu0 0.0
    %1274 = vmatpush.msra.mxu0 0.0
    %1275 = vmatpush.msra.mxu0 0.0
    %1276 = vmatpush.msra.mxu0 0.0
    %1277 = vmatpush.msra.mxu0 0.0
    %1278 = vmatpush.msra.mxu0 0.0
    %1279 = vmatpush.msra.mxu0 0.0
    %1280 = vmatpush.msra.mxu0 0.0
    %1281 = vmatpush.msra.mxu0 %v490
    %1282 = vmatpush.msra.mxu0 %v489
    %1283 = vmatpush.msra.mxu0 %v488
    %1284 = vmatpush.msra.mxu0 %v487
    %1285 = vmatmul.f32.gmra.mxu0 %v1267
    %v1286 = vpop.f32.mrf.mxu0
    %v1287 = vadd.f32 0.0, %v1286
    %1288 = vdwg.mxu0
    %1289 = vmatpush.msra.mxu0 0.0
    %1290 = vmatpush.msra.mxu0 0.0
    %1291 = vmatpush.msra.mxu0 0.0
    %1292 = vmatpush.msra.mxu0 0.0
    %1293 = vmatpush.msra.mxu0 0.0
    %1294 = vmatpush.msra.mxu0 0.0
    %1295 = vmatpush.msra.mxu0 0.0
    %1296 = vmatpush.msra.mxu0 0.0
    %1297 = vmatpush.msra.mxu0 0.0
    %1298 = vmatpush.msra.mxu0 0.0
    %1299 = vmatpush.msra.mxu0 0.0
    %1300 = vmatpush.msra.mxu0 0.0
    %1301 = vmatpush.msra.mxu0 %v485
    %1302 = vmatpush.msra.mxu0 %v484
    %1303 = vmatpush.msra.mxu0 %v483
    %1304 = vmatpush.msra.mxu0 %v482
    %1305 = vmatmul.f32.gmra.mxu0 %v1198
    %v1306 = vpop.f32.mrf.mxu0
    %v1307 = vadd.f32 %v1287, %v1306
    %1308 = vdwg.mxu0
    %v1309 = vadd.f32 %v1307, %v92
    %v1310 = vmul.f32 %v1309, 0.5
    %v1311 = vsel %vm83, %v1309, %v1310
    %v1312 = vtanh.pop %v1311
    %v1313 = vmul.f32 %v1312, 0.5
    %v1314 = vadd.f32 %v1313, 0.5
    %v1315 = vsel %vm83, %v1312, %v1314
    %v1316 = vmul.f32 %v1315, %v996
    %1318 = vrot.lane.b32.xlu0 %v1315, 64
    %v1319 = vpop.permute.xlu0 %1318
    %v1321 = vmul.f32 %v1315, %v1319
    %1323 = vrot.lane.b32.xlu0 %v1321, 32
    %v1324 = vpop.permute.xlu0 %1323
    %v1326 = vadd.f32 %v1316, %v1324
    %v1327 = vtanh.pop %v1326
    %1329 = vrot.lane.b32.xlu0 %v1327, 64
    %v1330 = vpop.permute.xlu0 %1329
    %v1332 = vmul.f32 %v1315, %v1330
    %1334 = vrot.lane.b32.xlu0 %v1071, 32
    %v1335 = vpop.permute.xlu0 %1334
    %v1336 = vsel %vm193, %v1335, 0
    %1338 = vmatpush.msra.mxu0 0.0
    %1339 = vmatpush.msra.mxu0 0.0
    %1340 = vmatpush.msra.mxu0 0.0
    %1341 = vmatpush.msra.mxu0 0.0
    %1342 = vmatpush.msra.mxu0 0.0
    %1343 = vmatpush.msra.mxu0 0.0
    %1344 = vmatpush.msra.mxu0 0.0
    %1345 = vmatpush.msra.mxu0 0.0
    %1346 = vmatpush.msra.mxu0 0.0
    %1347 = vmatpush.msra.mxu0 0.0
    %1348 = vmatpush.msra.mxu0 0.0
    %1349 = vmatpush.msra.mxu0 0.0
    %1350 = vmatpush.msra.mxu0 %v751
    %1351 = vmatpush.msra.mxu0 %v750
    %1352 = vmatpush.msra.mxu0 %v749
    %1353 = vmatpush.msra.mxu0 %v748
    %1354 = vmatmul.f32.gmra.mxu0 %v1336
    %v1355 = vpop.f32.mrf.mxu0
    %v1356 = vadd.f32 0.0, %v1355
    %1357 = vdwg.mxu0
    %1358 = vmatpush.msra.mxu0 0.0
    %1359 = vmatpush.msra.mxu0 0.0
    %1360 = vmatpush.msra.mxu0 0.0
    %1361 = vmatpush.msra.mxu0 0.0
    %1362 = vmatpush.msra.mxu0 0.0
    %1363 = vmatpush.msra.mxu0 0.0
    %1364 = vmatpush.msra.mxu0 0.0
    %1365 = vmatpush.msra.mxu0 0.0
    %1366 = vmatpush.msra.mxu0 0.0
    %1367 = vmatpush.msra.mxu0 0.0
    %1368 = vmatpush.msra.mxu0 0.0
    %1369 = vmatpush.msra.mxu0 0.0
    %1370 = vmatpush.msra.mxu0 %v746
    %1371 = vmatpush.msra.mxu0 %v745
    %1372 = vmatpush.msra.mxu0 %v744
    %1373 = vmatpush.msra.mxu0 %v743
    %1374 = vmatmul.f32.gmra.mxu0 %v1267
    %v1375 = vpop.f32.mrf.mxu0
    %v1376 = vadd.f32 %v1356, %v1375
    %1377 = vdwg.mxu0
    %v1378 = vadd.f32 %v1376, %v97
    %v1379 = vmul.f32 %v1378, 0.5
    %v1380 = vsel %vm83, %v1378, %v1379
    %v1381 = vtanh.pop %v1380
    %v1382 = vmul.f32 %v1381, 0.5
    %v1383 = vadd.f32 %v1382, 0.5
    %v1384 = vsel %vm83, %v1381, %v1383
    %v1385 = vmul.f32 %v1384, %v1065
    %1387 = vrot.lane.b32.xlu0 %v1384, 64
    %v1388 = vpop.permute.xlu0 %1387
    %v1390 = vmul.f32 %v1384, %v1388
    %1392 = vrot.lane.b32.xlu0 %v1390, 32
    %v1393 = vpop.permute.xlu0 %1392
    %v1395 = vadd.f32 %v1385, %v1393
    %v1396 = vtanh.pop %v1395
    %1398 = vrot.lane.b32.xlu0 %v1396, 64
    %v1399 = vpop.permute.xlu0 %1398
    %v1401 = vmul.f32 %v1384, %v1399
    %1403 = vrot.lane.b32.xlu0 %v1145, 32
    %v1404 = vpop.permute.xlu0 %1403
    %v1405 = vsel %vm193, %v1404, 0
    %1407 = vmatpush.msra.mxu0 0.0
    %1408 = vmatpush.msra.mxu0 0.0
    %1409 = vmatpush.msra.mxu0 0.0
    %1410 = vmatpush.msra.mxu0 0.0
    %1411 = vmatpush.msra.mxu0 0.0
    %1412 = vmatpush.msra.mxu0 0.0
    %1413 = vmatpush.msra.mxu0 0.0
    %1414 = vmatpush.msra.mxu0 0.0
    %1415 = vmatpush.msra.mxu0 0.0
    %1416 = vmatpush.msra.mxu0 0.0
    %1417 = vmatpush.msra.mxu0 0.0
    %1418 = vmatpush.msra.mxu0 0.0
    %1419 = vmatpush.msra.mxu0 %v1081
    %1420 = vmatpush.msra.mxu0 %v1080
    %1421 = vmatpush.msra.mxu0 %v1079
    %1422 = vmatpush.msra.mxu0 %v1078
    %1423 = vmatmul.f32.gmra.mxu0 %v1405
    %v1424 = vpop.f32.mrf.mxu0
    %v1425 = vadd.f32 0.0, %v1424
    %1426 = vdwg.mxu0
    %1427 = vmatpush.msra.mxu0 0.0
    %1428 = vmatpush.msra.mxu0 0.0
    %1429 = vmatpush.msra.mxu0 0.0
    %1430 = vmatpush.msra.mxu0 0.0
    %1431 = vmatpush.msra.mxu0 0.0
    %1432 = vmatpush.msra.mxu0 0.0
    %1433 = vmatpush.msra.mxu0 0.0
    %1434 = vmatpush.msra.mxu0 0.0
    %1435 = vmatpush.msra.mxu0 0.0
    %1436 = vmatpush.msra.mxu0 0.0
    %1437 = vmatpush.msra.mxu0 0.0
    %1438 = vmatpush.msra.mxu0 0.0
    %1439 = vmatpush.msra.mxu0 %v1076
    %1440 = vmatpush.msra.mxu0 %v1075
    %1441 = vmatpush.msra.mxu0 %v1074
    %1442 = vmatpush.msra.mxu0 %v1073
    %1443 = vmatmul.f32.gmra.mxu0 %v1336
    %v1444 = vpop.f32.mrf.mxu0
    %v1445 = vadd.f32 %v1425, %v1444
    %1446 = vdwg.mxu0
    %v1447 = vadd.f32 %v1445, %v102
    %v1448 = vmul.f32 %v1447, 0.5
    %v1449 = vsel %vm83, %v1447, %v1448
    %v1450 = vtanh.pop %v1449
    %v1451 = vmul.f32 %v1450, 0.5
    %v1452 = vadd.f32 %v1451, 0.5
    %v1453 = vsel %vm83, %v1450, %v1452
    %v1454 = vmul.f32 %v1453, %v1139
    %1456 = vrot.lane.b32.xlu0 %v1453, 64
    %v1457 = vpop.permute.xlu0 %1456
    %v1459 = vmul.f32 %v1453, %v1457
    %1461 = vrot.lane.b32.xlu0 %v1459, 32
    %v1462 = vpop.permute.xlu0 %1461
    %v1464 = vadd.f32 %v1454, %v1462
    %v1465 = vtanh.pop %v1464
    %1467 = vrot.lane.b32.xlu0 %v1465, 64
    %v1468 = vpop.permute.xlu0 %1467
    %v1470 = vmul.f32 %v1453, %v1468
    %s1471 = scalar_lea.vmem [#allocation3], 128
    %v1472 = vld [vmem:[%s1471] sm:$0xff]
    %v1473 = vld [vmem:[%s1471 + $0x8] sm:$0xff]
    %v1474 = vld [vmem:[%s1471 + $0x10] sm:$0xff]
    %v1475 = vld [vmem:[%s1471 + $0x18] sm:$0xff]
    %s1476 = scalar_lea.vmem [#allocation5], 160
    %v1477 = vld [vmem:[%s1476] sm:$0xff]
    %v1478 = vld [vmem:[%s1476 + $0x8] sm:$0xff]
    %v1479 = vld [vmem:[%s1476 + $0x10] sm:$0xff]
    %v1480 = vld [vmem:[%s1476 + $0x18] sm:$0xff]
    %1481 = vmatpush.msra.mxu0 0.0
    %1482 = vmatpush.msra.mxu0 0.0
    %1483 = vmatpush.msra.mxu0 0.0
    %1484 = vmatpush.msra.mxu0 0.0
    %1485 = vmatpush.msra.mxu0 0.0
    %1486 = vmatpush.msra.mxu0 0.0
    %1487 = vmatpush.msra.mxu0 0.0
    %1488 = vmatpush.msra.mxu0 0.0
    %1489 = vmatpush.msra.mxu0 0.0
    %1490 = vmatpush.msra.mxu0 0.0
    %1491 = vmatpush.msra.mxu0 0.0
    %1492 = vmatpush.msra.mxu0 0.0
    %1493 = vmatpush.msra.mxu0 %v1480
    %1494 = vmatpush.msra.mxu0 %v1479
    %1495 = vmatpush.msra.mxu0 %v1478
    %1496 = vmatpush.msra.mxu0 %v1477
    %1497 = vmatmul.f32.gmra.mxu0 %v195
    %v1498 = vpop.f32.mrf.mxu0
    %v1499 = vadd.f32 0.0, %v1498
    %1500 = vdwg.mxu0
    %1501 = vmatpush.msra.mxu0 0.0
    %1502 = vmatpush.msra.mxu0 0.0
    %1503 = vmatpush.msra.mxu0 0.0
    %1504 = vmatpush.msra.mxu0 0.0
    %1505 = vmatpush.msra.mxu0 0.0
    %1506 = vmatpush.msra.mxu0 0.0
    %1507 = vmatpush.msra.mxu0 0.0
    %1508 = vmatpush.msra.mxu0 0.0
    %1509 = vmatpush.msra.mxu0 0.0
    %1510 = vmatpush.msra.mxu0 0.0
    %1511 = vmatpush.msra.mxu0 0.0
    %1512 = vmatpush.msra.mxu0 0.0
    %1513 = vmatpush.msra.mxu0 %v1475
    %1514 = vmatpush.msra.mxu0 %v1474
    %1515 = vmatpush.msra.mxu0 %v1473
    %1516 = vmatpush.msra.mxu0 %v1472
    %1517 = vmatmul.f32.gmra.mxu0 %v1405
    %v1518 = vpop.f32.mrf.mxu0
    %v1519 = vadd.f32 %v1499, %v1518
    %1520 = vdwg.mxu0
    %v1521 = vadd.f32 %v1519, %v107
    %v1522 = vmul.f32 %v1521, 0.5
    %v1523 = vsel %vm83, %v1521, %v1522
    %v1524 = vtanh.pop %v1523
    %v1525 = vmul.f32 %v1524, 0.5
    %v1526 = vadd.f32 %v1525, 0.5
    %v1527 = vsel %vm83, %v1524, %v1526
    %v1528 = vmul.f32 %v1527, 0.0
    %1530 = vrot.lane.b32.xlu0 %v1527, 64
    %v1531 = vpop.permute.xlu0 %1530
    %v1533 = vmul.f32 %v1527, %v1531
    %1535 = vrot.lane.b32.xlu0 %v1533, 32
    %v1536 = vpop.permute.xlu0 %1535
    %v1538 = vadd.f32 %v1528, %v1536
    %v1539 = vtanh.pop %v1538
    %1541 = vrot.lane.b32.xlu0 %v1539, 64
    %v1542 = vpop.permute.xlu0 %1541
    %v1544 = vmul.f32 %v1527, %v1542
    %1546 = vrot.lane.b32.xlu0 %v1544, 32
    %v1547 = vpop.permute.xlu0 %1546
    %1549 = vst.msk [vmem:[#allocation2] sm:$0xff] %vm193, %v1547
    %v1550 = vld [vmem:[#allocation5] sm:$0xff]
    %v1551 = vld [vmem:[#allocation5 + $0x8] sm:$0xff]
    %v1552 = vld [vmem:[#allocation5 + $0x10] sm:$0xff]
    %v1553 = vld [vmem:[#allocation5 + $0x18] sm:$0xff]
    %1555 = vrot.lane.b32.xlu0 %v1194, 32
    %v1556 = vpop.permute.xlu0 %1555
    %v1557 = vsel %vm193, %v1556, 0
    %1559 = vmatpush.msra.mxu0 0.0
    %1560 = vmatpush.msra.mxu0 0.0
    %1561 = vmatpush.msra.mxu0 0.0
    %1562 = vmatpush.msra.mxu0 0.0
    %1563 = vmatpush.msra.mxu0 0.0
    %1564 = vmatpush.msra.mxu0 0.0
    %1565 = vmatpush.msra.mxu0 0.0
    %1566 = vmatpush.msra.mxu0 0.0
    %1567 = vmatpush.msra.mxu0 0.0
    %1568 = vmatpush.msra.mxu0 0.0
    %1569 = vmatpush.msra.mxu0 0.0
    %1570 = vmatpush.msra.mxu0 0.0
    %1571 = vmatpush.msra.mxu0 %v1553
    %1572 = vmatpush.msra.mxu0 %v1552
    %1573 = vmatpush.msra.mxu0 %v1551
    %1574 = vmatpush.msra.mxu0 %v1550
    %1575 = vmatmul.f32.gmra.mxu0 %v1557
    %v1576 = vpop.f32.mrf.mxu0
    %v1577 = vadd.f32 0.0, %v1576
    %1578 = vdwg.mxu0
    %v1579 = vadd.f32 %v184, %v1577
    %v1580 = vmul.f32 %v1579, 0.5
    %v1581 = vsel %vm83, %v1579, %v1580
    %v1582 = vtanh.pop %v1581
    %v1583 = vmul.f32 %v1582, 0.5
    %v1584 = vadd.f32 %v1583, 0.5
    %v1585 = vsel %vm83, %v1582, %v1584
    %v1586 = vmul.f32 %v1585, %v1188
    %1588 = vrot.lane.b32.xlu0 %v1585, 64
    %v1589 = vpop.permute.xlu0 %1588
    %v1591 = vmul.f32 %v1585, %v1589
    %1593 = vrot.lane.b32.xlu0 %v1591, 32
    %v1594 = vpop.permute.xlu0 %1593
    %v1596 = vadd.f32 %v1586, %v1594
    %v1597 = vtanh.pop %v1596
    %1599 = vrot.lane.b32.xlu0 %v1597, 64
    %v1600 = vpop.permute.xlu0 %1599
    %v1602 = vmul.f32 %v1585, %v1600
    %v1603 = vld [vmem:[#allocation3] sm:$0xff]
    %v1604 = vld [vmem:[#allocation3 + $0x8] sm:$0xff]
    %v1605 = vld [vmem:[#allocation3 + $0x10] sm:$0xff]
    %v1606 = vld [vmem:[#allocation3 + $0x18] sm:$0xff]
    %v1607 = vld [vmem:[%s294] sm:$0xff]
    %v1608 = vld [vmem:[%s294 + $0x8] sm:$0xff]
    %v1609 = vld [vmem:[%s294 + $0x10] sm:$0xff]
    %v1610 = vld [vmem:[%s294 + $0x18] sm:$0xff]
    %1612 = vrot.lane.b32.xlu0 %v1263, 32
    %v1613 = vpop.permute.xlu0 %1612
    %v1614 = vsel %vm193, %v1613, 0
    %1616 = vmatpush.msra.mxu0 0.0
    %1617 = vmatpush.msra.mxu0 0.0
    %1618 = vmatpush.msra.mxu0 0.0
    %1619 = vmatpush.msra.mxu0 0.0
    %1620 = vmatpush.msra.mxu0 0.0
    %1621 = vmatpush.msra.mxu0 0.0
    %1622 = vmatpush.msra.mxu0 0.0
    %1623 = vmatpush.msra.mxu0 0.0
    %1624 = vmatpush.msra.mxu0 0.0
    %1625 = vmatpush.msra.mxu0 0.0
    %1626 = vmatpush.msra.mxu0 0.0
    %1627 = vmatpush.msra.mxu0 0.0
    %1628 = vmatpush.msra.mxu0 %v1610
    %1629 = vmatpush.msra.mxu0 %v1609
    %1630 = vmatpush.msra.mxu0 %v1608
    %1631 = vmatpush.msra.mxu0 %v1607
    %1632 = vmatmul.f32.gmra.mxu0 %v1614
    %v1633 = vpop.f32.mrf.mxu0
    %v1634 = vadd.f32 0.0, %v1633
    %1635 = vdwg.mxu0
    %1636 = vmatpush.msra.mxu0 0.0
    %1637 = vmatpush.msra.mxu0 0.0
    %1638 = vmatpush.msra.mxu0 0.0
    %1639 = vmatpush.msra.mxu0 0.0
    %1640 = vmatpush.msra.mxu0 0.0
    %1641 = vmatpush.msra.mxu0 0.0
    %1642 = vmatpush.msra.mxu0 0.0
    %1643 = vmatpush.msra.mxu0 0.0
    %1644 = vmatpush.msra.mxu0 0.0
    %1645 = vmatpush.msra.mxu0 0.0
    %1646 = vmatpush.msra.mxu0 0.0
    %1647 = vmatpush.msra.mxu0 0.0
    %1648 = vmatpush.msra.mxu0 %v1606
    %1649 = vmatpush.msra.mxu0 %v1605
    %1650 = vmatpush.msra.mxu0 %v1604
    %1651 = vmatpush.msra.mxu0 %v1603
    %1652 = vmatmul.f32.gmra.mxu0 %v1557
    %v1653 = vpop.f32.mrf.mxu0
    %v1654 = vadd.f32 %v1634, %v1653
    %1655 = vdwg.mxu0
    %v1656 = vadd.f32 %v1654, %v87
    %v1657 = vmul.f32 %v1656, 0.5
    %v1658 = vsel %vm83, %v1656, %v1657
    %v1659 = vtanh.pop %v1658
    %v1660 = vmul.f32 %v1659, 0.5
    %v1661 = vadd.f32 %v1660, 0.5
    %v1662 = vsel %vm83, %v1659, %v1661
    %v1663 = vmul.f32 %v1662, %v1257
    %1665 = vrot.lane.b32.xlu0 %v1662, 64
    %v1666 = vpop.permute.xlu0 %1665
    %v1668 = vmul.f32 %v1662, %v1666
    %1670 = vrot.lane.b32.xlu0 %v1668, 32
    %v1671 = vpop.permute.xlu0 %1670
    %v1673 = vadd.f32 %v1663, %v1671
    %v1674 = vtanh.pop %v1673
    %1676 = vrot.lane.b32.xlu0 %v1674, 64
    %v1677 = vpop.permute.xlu0 %1676
    %v1679 = vmul.f32 %v1662, %v1677
    %v1680 = vld [vmem:[%s481] sm:$0xff]
    %v1681 = vld [vmem:[%s481 + $0x8] sm:$0xff]
    %v1682 = vld [vmem:[%s481 + $0x10] sm:$0xff]
    %v1683 = vld [vmem:[%s481 + $0x18] sm:$0xff]
    %v1684 = vld [vmem:[%s486] sm:$0xff]
    %v1685 = vld [vmem:[%s486 + $0x8] sm:$0xff]
    %v1686 = vld [vmem:[%s486 + $0x10] sm:$0xff]
    %v1687 = vld [vmem:[%s486 + $0x18] sm:$0xff]
    %1689 = vrot.lane.b32.xlu0 %v1332, 32
    %v1690 = vpop.permute.xlu0 %1689
    %v1691 = vsel %vm193, %v1690, 0
    %1693 = vmatpush.msra.mxu0 0.0
    %1694 = vmatpush.msra.mxu0 0.0
    %1695 = vmatpush.msra.mxu0 0.0
    %1696 = vmatpush.msra.mxu0 0.0
    %1697 = vmatpush.msra.mxu0 0.0
    %1698 = vmatpush.msra.mxu0 0.0
    %1699 = vmatpush.msra.mxu0 0.0
    %1700 = vmatpush.msra.mxu0 0.0
    %1701 = vmatpush.msra.mxu0 0.0
    %1702 = vmatpush.msra.mxu0 0.0
    %1703 = vmatpush.msra.mxu0 0.0
    %1704 = vmatpush.msra.mxu0 0.0
    %1705 = vmatpush.msra.mxu0 %v1687
    %1706 = vmatpush.msra.mxu0 %v1686
    %1707 = vmatpush.msra.mxu0 %v1685
    %1708 = vmatpush.msra.mxu0 %v1684
    %1709 = vmatmul.f32.gmra.mxu0 %v1691
    %v1710 = vpop.f32.mrf.mxu0
    %v1711 = vadd.f32 0.0, %v1710
    %1712 = vdwg.mxu0
    %1713 = vmatpush.msra.mxu0 0.0
    %1714 = vmatpush.msra.mxu0 0.0
    %1715 = vmatpush.msra.mxu0 0.0
    %1716 = vmatpush.msra.mxu0 0.0
    %1717 = vmatpush.msra.mxu0 0.0
    %1718 = vmatpush.msra.mxu0 0.0
    %1719 = vmatpush.msra.mxu0 0.0
    %1720 = vmatpush.msra.mxu0 0.0
    %1721 = vmatpush.msra.mxu0 0.0
    %1722 = vmatpush.msra.mxu0 0.0
    %1723 = vmatpush.msra.mxu0 0.0
    %1724 = vmatpush.msra.mxu0 0.0
    %1725 = vmatpush.msra.mxu0 %v1683
    %1726 = vmatpush.msra.mxu0 %v1682
    %1727 = vmatpush.msra.mxu0 %v1681
    %1728 = vmatpush.msra.mxu0 %v1680
    %1729 = vmatmul.f32.gmra.mxu0 %v1614
    %v1730 = vpop.f32.mrf.mxu0
    %v1731 = vadd.f32 %v1711, %v1730
    %1732 = vdwg.mxu0
    %v1733 = vadd.f32 %v1731, %v92
    %v1734 = vmul.f32 %v1733, 0.5
    %v1735 = vsel %vm83, %v1733, %v1734
    %v1736 = vtanh.pop %v1735
    %v1737 = vmul.f32 %v1736, 0.5
    %v1738 = vadd.f32 %v1737, 0.5
    %v1739 = vsel %vm83, %v1736, %v1738
    %v1740 = vmul.f32 %v1739, %v1326
    %1742 = vrot.lane.b32.xlu0 %v1739, 64
    %v1743 = vpop.permute.xlu0 %1742
    %v1745 = vmul.f32 %v1739, %v1743
    %1747 = vrot.lane.b32.xlu0 %v1745, 32
    %v1748 = vpop.permute.xlu0 %1747
    %v1750 = vadd.f32 %v1740, %v1748
    %v1751 = vtanh.pop %v1750
    %1753 = vrot.lane.b32.xlu0 %v1751, 64
    %v1754 = vpop.permute.xlu0 %1753
    %v1756 = vmul.f32 %v1739, %v1754
    %v1757 = vld [vmem:[%s742] sm:$0xff]
    %v1758 = vld [vmem:[%s742 + $0x8] sm:$0xff]
    %v1759 = vld [vmem:[%s742 + $0x10] sm:$0xff]
    %v1760 = vld [vmem:[%s742 + $0x18] sm:$0xff]
    %v1761 = vld [vmem:[%s747] sm:$0xff]
    %v1762 = vld [vmem:[%s747 + $0x8] sm:$0xff]
    %v1763 = vld [vmem:[%s747 + $0x10] sm:$0xff]
    %v1764 = vld [vmem:[%s747 + $0x18] sm:$0xff]
    %1766 = vrot.lane.b32.xlu0 %v1401, 32
    %v1767 = vpop.permute.xlu0 %1766
    %v1768 = vsel %vm193, %v1767, 0
    %1770 = vmatpush.msra.mxu0 0.0
    %1771 = vmatpush.msra.mxu0 0.0
    %1772 = vmatpush.msra.mxu0 0.0
    %1773 = vmatpush.msra.mxu0 0.0
    %1774 = vmatpush.msra.mxu0 0.0
    %1775 = vmatpush.msra.mxu0 0.0
    %1776 = vmatpush.msra.mxu0 0.0
    %1777 = vmatpush.msra.mxu0 0.0
    %1778 = vmatpush.msra.mxu0 0.0
    %1779 = vmatpush.msra.mxu0 0.0
    %1780 = vmatpush.msra.mxu0 0.0
    %1781 = vmatpush.msra.mxu0 0.0
    %1782 = vmatpush.msra.mxu0 %v1764
    %1783 = vmatpush.msra.mxu0 %v1763
    %1784 = vmatpush.msra.mxu0 %v1762
    %1785 = vmatpush.msra.mxu0 %v1761
    %1786 = vmatmul.f32.gmra.mxu0 %v1768
    %v1787 = vpop.f32.mrf.mxu0
    %v1788 = vadd.f32 0.0, %v1787
    %1789 = vdwg.mxu0
    %1790 = vmatpush.msra.mxu0 0.0
    %1791 = vmatpush.msra.mxu0 0.0
    %1792 = vmatpush.msra.mxu0 0.0
    %1793 = vmatpush.msra.mxu0 0.0
    %1794 = vmatpush.msra.mxu0 0.0
    %1795 = vmatpush.msra.mxu0 0.0
    %1796 = vmatpush.msra.mxu0 0.0
    %1797 = vmatpush.msra.mxu0 0.0
    %1798 = vmatpush.msra.mxu0 0.0
    %1799 = vmatpush.msra.mxu0 0.0
    %1800 = vmatpush.msra.mxu0 0.0
    %1801 = vmatpush.msra.mxu0 0.0
    %1802 = vmatpush.msra.mxu0 %v1760
    %1803 = vmatpush.msra.mxu0 %v1759
    %1804 = vmatpush.msra.mxu0 %v1758
    %1805 = vmatpush.msra.mxu0 %v1757
    %1806 = vmatmul.f32.gmra.mxu0 %v1691
    %v1807 = vpop.f32.mrf.mxu0
    %v1808 = vadd.f32 %v1788, %v1807
    %1809 = vdwg.mxu0
    %v1810 = vadd.f32 %v1808, %v97
    %v1811 = vmul.f32 %v1810, 0.5
    %v1812 = vsel %vm83, %v1810, %v1811
    %v1813 = vtanh.pop %v1812
    %v1814 = vmul.f32 %v1813, 0.5
    %v1815 = vadd.f32 %v1814, 0.5
    %v1816 = vsel %vm83, %v1813, %v1815
    %v1817 = vmul.f32 %v1816, %v1395
    %1819 = vrot.lane.b32.xlu0 %v1816, 64
    %v1820 = vpop.permute.xlu0 %1819
    %v1822 = vmul.f32 %v1816, %v1820
    %1824 = vrot.lane.b32.xlu0 %v1822, 32
    %v1825 = vpop.permute.xlu0 %1824
    %v1827 = vadd.f32 %v1817, %v1825
    %v1828 = vtanh.pop %v1827
    %1830 = vrot.lane.b32.xlu0 %v1828, 64
    %v1831 = vpop.permute.xlu0 %1830
    %v1833 = vmul.f32 %v1816, %v1831
    %v1834 = vld [vmem:[%s1072] sm:$0xff]
    %v1835 = vld [vmem:[%s1072 + $0x8] sm:$0xff]
    %v1836 = vld [vmem:[%s1072 + $0x10] sm:$0xff]
    %v1837 = vld [vmem:[%s1072 + $0x18] sm:$0xff]
    %v1838 = vld [vmem:[%s1077] sm:$0xff]
    %v1839 = vld [vmem:[%s1077 + $0x8] sm:$0xff]
    %v1840 = vld [vmem:[%s1077 + $0x10] sm:$0xff]
    %v1841 = vld [vmem:[%s1077 + $0x18] sm:$0xff]
    %1843 = vrot.lane.b32.xlu0 %v1470, 32
    %v1844 = vpop.permute.xlu0 %1843
    %v1845 = vsel %vm193, %v1844, 0
    %1847 = vmatpush.msra.mxu0 0.0
    %1848 = vmatpush.msra.mxu0 0.0
    %1849 = vmatpush.msra.mxu0 0.0
    %1850 = vmatpush.msra.mxu0 0.0
    %1851 = vmatpush.msra.mxu0 0.0
    %1852 = vmatpush.msra.mxu0 0.0
    %1853 = vmatpush.msra.mxu0 0.0
    %1854 = vmatpush.msra.mxu0 0.0
    %1855 = vmatpush.msra.mxu0 0.0
    %1856 = vmatpush.msra.mxu0 0.0
    %1857 = vmatpush.msra.mxu0 0.0
    %1858 = vmatpush.msra.mxu0 0.0
    %1859 = vmatpush.msra.mxu0 %v1841
    %1860 = vmatpush.msra.mxu0 %v1840
    %1861 = vmatpush.msra.mxu0 %v1839
    %1862 = vmatpush.msra.mxu0 %v1838
    %1863 = vmatmul.f32.gmra.mxu0 %v1845
    %v1864 = vpop.f32.mrf.mxu0
    %v1865 = vadd.f32 0.0, %v1864
    %1866 = vdwg.mxu0
    %1867 = vmatpush.msra.mxu0 0.0
    %1868 = vmatpush.msra.mxu0 0.0
    %1869 = vmatpush.msra.mxu0 0.0
    %1870 = vmatpush.msra.mxu0 0.0
    %1871 = vmatpush.msra.mxu0 0.0
    %1872 = vmatpush.msra.mxu0 0.0
    %1873 = vmatpush.msra.mxu0 0.0
    %1874 = vmatpush.msra.mxu0 0.0
    %1875 = vmatpush.msra.mxu0 0.0
    %1876 = vmatpush.msra.mxu0 0.0
    %1877 = vmatpush.msra.mxu0 0.0
    %1878 = vmatpush.msra.mxu0 0.0
    %1879 = vmatpush.msra.mxu0 %v1837
    %1880 = vmatpush.msra.mxu0 %v1836
    %1881 = vmatpush.msra.mxu0 %v1835
    %1882 = vmatpush.msra.mxu0 %v1834
    %1883 = vmatmul.f32.gmra.mxu0 %v1768
    %v1884 = vpop.f32.mrf.mxu0
    %v1885 = vadd.f32 %v1865, %v1884
    %1886 = vdwg.mxu0
    %v1887 = vadd.f32 %v1885, %v102
    %v1888 = vmul.f32 %v1887, 0.5
    %v1889 = vsel %vm83, %v1887, %v1888
    %v1890 = vtanh.pop %v1889
    %v1891 = vmul.f32 %v1890, 0.5
    %v1892 = vadd.f32 %v1891, 0.5
    %v1893 = vsel %vm83, %v1890, %v1892
    %v1894 = vmul.f32 %v1893, %v1464
    %1896 = vrot.lane.b32.xlu0 %v1893, 64
    %v1897 = vpop.permute.xlu0 %1896
    %v1899 = vmul.f32 %v1893, %v1897
    %1901 = vrot.lane.b32.xlu0 %v1899, 32
    %v1902 = vpop.permute.xlu0 %1901
    %v1904 = vadd.f32 %v1894, %v1902
    %v1905 = vtanh.pop %v1904
    %1907 = vrot.lane.b32.xlu0 %v1905, 64
    %v1908 = vpop.permute.xlu0 %1907
    %v1910 = vmul.f32 %v1893, %v1908
    %v1911 = vld [vmem:[%s1471] sm:$0xff]
    %v1912 = vld [vmem:[%s1471 + $0x8] sm:$0xff]
    %v1913 = vld [vmem:[%s1471 + $0x10] sm:$0xff]
    %v1914 = vld [vmem:[%s1471 + $0x18] sm:$0xff]
    %v1915 = vld [vmem:[%s1476] sm:$0xff]
    %v1916 = vld [vmem:[%s1476 + $0x8] sm:$0xff]
    %v1917 = vld [vmem:[%s1476 + $0x10] sm:$0xff]
    %v1918 = vld [vmem:[%s1476 + $0x18] sm:$0xff]
    %v1919 = vsel %vm193, %v1547, 0
    %1921 = vmatpush.msra.mxu0 0.0
    %1922 = vmatpush.msra.mxu0 0.0
    %1923 = vmatpush.msra.mxu0 0.0
    %1924 = vmatpush.msra.mxu0 0.0
    %1925 = vmatpush.msra.mxu0 0.0
    %1926 = vmatpush.msra.mxu0 0.0
    %1927 = vmatpush.msra.mxu0 0.0
    %1928 = vmatpush.msra.mxu0 0.0
    %1929 = vmatpush.msra.mxu0 0.0
    %1930 = vmatpush.msra.mxu0 0.0
    %1931 = vmatpush.msra.mxu0 0.0
    %1932 = vmatpush.msra.mxu0 0.0
    %1933 = vmatpush.msra.mxu0 %v1918
    %1934 = vmatpush.msra.mxu0 %v1917
    %1935 = vmatpush.msra.mxu0 %v1916
    %1936 = vmatpush.msra.mxu0 %v1915
    %1937 = vmatmul.f32.gmra.mxu0 %v1919
    %v1938 = vpop.f32.mrf.mxu0
    %v1939 = vadd.f32 0.0, %v1938
    %1940 = vdwg.mxu0
    %1941 = vmatpush.msra.mxu0 0.0
    %1942 = vmatpush.msra.mxu0 0.0
    %1943 = vmatpush.msra.mxu0 0.0
    %1944 = vmatpush.msra.mxu0 0.0
    %1945 = vmatpush.msra.mxu0 0.0
    %1946 = vmatpush.msra.mxu0 0.0
    %1947 = vmatpush.msra.mxu0 0.0
    %1948 = vmatpush.msra.mxu0 0.0
    %1949 = vmatpush.msra.mxu0 0.0
    %1950 = vmatpush.msra.mxu0 0.0
    %1951 = vmatpush.msra.mxu0 0.0
    %1952 = vmatpush.msra.mxu0 0.0
    %1953 = vmatpush.msra.mxu0 %v1914
    %1954 = vmatpush.msra.mxu0 %v1913
    %1955 = vmatpush.msra.mxu0 %v1912
    %1956 = vmatpush.msra.mxu0 %v1911
    %1957 = vmatmul.f32.gmra.mxu0 %v1845
    %v1958 = vpop.f32.mrf.mxu0
    %v1959 = vadd.f32 %v1939, %v1958
    %1960 = vdwg.mxu0
    %v1961 = vadd.f32 %v1959, %v107
    %v1962 = vmul.f32 %v1961, 0.5
    %v1963 = vsel %vm83, %v1961, %v1962
    %v1964 = vtanh.pop %v1963
    %v1965 = vmul.f32 %v1964, 0.5
    %v1966 = vadd.f32 %v1965, 0.5
    %v1967 = vsel %vm83, %v1964, %v1966
    %v1968 = vmul.f32 %v1967, %v1538
    %1970 = vrot.lane.b32.xlu0 %v1967, 64
    %v1971 = vpop.permute.xlu0 %1970
    %v1973 = vmul.f32 %v1967, %v1971
    %1975 = vrot.lane.b32.xlu0 %v1973, 32
    %v1976 = vpop.permute.xlu0 %1975
    %v1978 = vadd.f32 %v1968, %v1976
    %v1979 = vtanh.pop %v1978
    %1981 = vrot.lane.b32.xlu0 %v1979, 64
    %v1982 = vpop.permute.xlu0 %1981
    %v1984 = vmul.f32 %v1967, %v1982
    %1986 = vrot.lane.b32.xlu0 %v1984, 32
    %v1987 = vpop.permute.xlu0 %1986
    %1989 = vst.msk [vmem:[#allocation2 + $0x8] sm:$0xff] %vm193, %v1987
    %v1990 = vld [vmem:[#allocation5] sm:$0xff]
    %v1991 = vld [vmem:[#allocation5 + $0x8] sm:$0xff]
    %v1992 = vld [vmem:[#allocation5 + $0x10] sm:$0xff]
    %v1993 = vld [vmem:[#allocation5 + $0x18] sm:$0xff]
    %1995 = vrot.lane.b32.xlu0 %v1602, 32
    %v1996 = vpop.permute.xlu0 %1995
    %v1997 = vsel %vm193, %v1996, 0
    %1999 = vmatpush.msra.mxu0 0.0
    %2000 = vmatpush.msra.mxu0 0.0
    %2001 = vmatpush.msra.mxu0 0.0
    %2002 = vmatpush.msra.mxu0 0.0
    %2003 = vmatpush.msra.mxu0 0.0
    %2004 = vmatpush.msra.mxu0 0.0
    %2005 = vmatpush.msra.mxu0 0.0
    %2006 = vmatpush.msra.mxu0 0.0
    %2007 = vmatpush.msra.mxu0 0.0
    %2008 = vmatpush.msra.mxu0 0.0
    %2009 = vmatpush.msra.mxu0 0.0
    %2010 = vmatpush.msra.mxu0 0.0
    %2011 = vmatpush.msra.mxu0 %v1993
    %2012 = vmatpush.msra.mxu0 %v1992
    %2013 = vmatpush.msra.mxu0 %v1991
    %2014 = vmatpush.msra.mxu0 %v1990
    %2015 = vmatmul.f32.gmra.mxu0 %v1997
    %v2016 = vpop.f32.mrf.mxu0
    %v2017 = vadd.f32 0.0, %v2016
    %2018 = vdwg.mxu0
    %v2019 = vadd.f32 %v187, %v2017
    %v2020 = vmul.f32 %v2019, 0.5
    %v2021 = vsel %vm83, %v2019, %v2020
    %v2022 = vtanh.pop %v2021
    %v2023 = vmul.f32 %v2022, 0.5
    %v2024 = vadd.f32 %v2023, 0.5
    %v2025 = vsel %vm83, %v2022, %v2024
    %v2026 = vmul.f32 %v2025, %v1596
    %2028 = vrot.lane.b32.xlu0 %v2025, 64
    %v2029 = vpop.permute.xlu0 %2028
    %v2031 = vmul.f32 %v2025, %v2029
    %2033 = vrot.lane.b32.xlu0 %v2031, 32
    %v2034 = vpop.permute.xlu0 %2033
    %v2036 = vadd.f32 %v2026, %v2034
    %v2037 = vtanh.pop %v2036
    %2039 = vrot.lane.b32.xlu0 %v2037, 64
    %v2040 = vpop.permute.xlu0 %2039
    %v2042 = vmul.f32 %v2025, %v2040
    %2044 = vrot.lane.b32.xlu0 %v2042, 32
    %v2045 = vpop.permute.xlu0 %2044
    %2047 = vst.msk [vmem:[%s14] sm:$0xff] %vm193, %v2045
    %2049 = vrot.lane.b32.xlu0 %v2036, 96
    %v2050 = vpop.permute.xlu0 %2049
    %2052 = vst.msk [vmem:[%s15] sm:$0xff] %vm193, %v2050
    %v2053 = vld [vmem:[#allocation3] sm:$0xff]
    %v2054 = vld [vmem:[#allocation3 + $0x8] sm:$0xff]
    %v2055 = vld [vmem:[#allocation3 + $0x10] sm:$0xff]
    %v2056 = vld [vmem:[#allocation3 + $0x18] sm:$0xff]
    %v2057 = vld [vmem:[%s294] sm:$0xff]
    %v2058 = vld [vmem:[%s294 + $0x8] sm:$0xff]
    %v2059 = vld [vmem:[%s294 + $0x10] sm:$0xff]
    %v2060 = vld [vmem:[%s294 + $0x18] sm:$0xff]
    %2062 = vrot.lane.b32.xlu0 %v1679, 32
    %v2063 = vpop.permute.xlu0 %2062
    %v2064 = vsel %vm193, %v2063, 0
    %2066 = vmatpush.msra.mxu0 0.0
    %2067 = vmatpush.msra.mxu0 0.0
    %2068 = vmatpush.msra.mxu0 0.0
    %2069 = vmatpush.msra.mxu0 0.0
    %2070 = vmatpush.msra.mxu0 0.0
    %2071 = vmatpush.msra.mxu0 0.0
    %2072 = vmatpush.msra.mxu0 0.0
    %2073 = vmatpush.msra.mxu0 0.0
    %2074 = vmatpush.msra.mxu0 0.0
    %2075 = vmatpush.msra.mxu0 0.0
    %2076 = vmatpush.msra.mxu0 0.0
    %2077 = vmatpush.msra.mxu0 0.0
    %2078 = vmatpush.msra.mxu0 %v2060
    %2079 = vmatpush.msra.mxu0 %v2059
    %2080 = vmatpush.msra.mxu0 %v2058
    %2081 = vmatpush.msra.mxu0 %v2057
    %2082 = vmatmul.f32.gmra.mxu0 %v2064
    %v2083 = vpop.f32.mrf.mxu0
    %v2084 = vadd.f32 0.0, %v2083
    %2085 = vdwg.mxu0
    %2086 = vmatpush.msra.mxu0 0.0
    %2087 = vmatpush.msra.mxu0 0.0
    %2088 = vmatpush.msra.mxu0 0.0
    %2089 = vmatpush.msra.mxu0 0.0
    %2090 = vmatpush.msra.mxu0 0.0
    %2091 = vmatpush.msra.mxu0 0.0
    %2092 = vmatpush.msra.mxu0 0.0
    %2093 = vmatpush.msra.mxu0 0.0
    %2094 = vmatpush.msra.mxu0 0.0
    %2095 = vmatpush.msra.mxu0 0.0
    %2096 = vmatpush.msra.mxu0 0.0
    %2097 = vmatpush.msra.mxu0 0.0
    %2098 = vmatpush.msra.mxu0 %v2056
    %2099 = vmatpush.msra.mxu0 %v2055
    %2100 = vmatpush.msra.mxu0 %v2054
    %2101 = vmatpush.msra.mxu0 %v2053
    %2102 = vmatmul.f32.gmra.mxu0 %v1997
    %v2103 = vpop.f32.mrf.mxu0
    %v2104 = vadd.f32 %v2084, %v2103
    %2105 = vdwg.mxu0
    %v2106 = vadd.f32 %v2104, %v87
    %v2107 = vmul.f32 %v2106, 0.5
    %v2108 = vsel %vm83, %v2106, %v2107
    %v2109 = vtanh.pop %v2108
    %v2110 = vmul.f32 %v2109, 0.5
    %v2111 = vadd.f32 %v2110, 0.5
    %v2112 = vsel %vm83, %v2109, %v2111
    %v2113 = vmul.f32 %v2112, %v1673
    %2115 = vrot.lane.b32.xlu0 %v2112, 64
    %v2116 = vpop.permute.xlu0 %2115
    %v2118 = vmul.f32 %v2112, %v2116
    %2120 = vrot.lane.b32.xlu0 %v2118, 32
    %v2121 = vpop.permute.xlu0 %2120
    %v2123 = vadd.f32 %v2113, %v2121
    %v2124 = vtanh.pop %v2123
    %2126 = vrot.lane.b32.xlu0 %v2124, 64
    %v2127 = vpop.permute.xlu0 %2126
    %v2129 = vmul.f32 %v2112, %v2127
    %v2130 = vld [vmem:[%s481] sm:$0xff]
    %v2131 = vld [vmem:[%s481 + $0x8] sm:$0xff]
    %v2132 = vld [vmem:[%s481 + $0x10] sm:$0xff]
    %v2133 = vld [vmem:[%s481 + $0x18] sm:$0xff]
    %v2134 = vld [vmem:[%s486] sm:$0xff]
    %v2135 = vld [vmem:[%s486 + $0x8] sm:$0xff]
    %v2136 = vld [vmem:[%s486 + $0x10] sm:$0xff]
    %v2137 = vld [vmem:[%s486 + $0x18] sm:$0xff]
    %2139 = vrot.lane.b32.xlu0 %v1756, 32
    %v2140 = vpop.permute.xlu0 %2139
    %v2141 = vsel %vm193, %v2140, 0
    %2143 = vmatpush.msra.mxu0 0.0
    %2144 = vmatpush.msra.mxu0 0.0
    %2145 = vmatpush.msra.mxu0 0.0
    %2146 = vmatpush.msra.mxu0 0.0
    %2147 = vmatpush.msra.mxu0 0.0
    %2148 = vmatpush.msra.mxu0 0.0
    %2149 = vmatpush.msra.mxu0 0.0
    %2150 = vmatpush.msra.mxu0 0.0
    %2151 = vmatpush.msra.mxu0 0.0
    %2152 = vmatpush.msra.mxu0 0.0
    %2153 = vmatpush.msra.mxu0 0.0
    %2154 = vmatpush.msra.mxu0 0.0
    %2155 = vmatpush.msra.mxu0 %v2137
    %2156 = vmatpush.msra.mxu0 %v2136
    %2157 = vmatpush.msra.mxu0 %v2135
    %2158 = vmatpush.msra.mxu0 %v2134
    %2159 = vmatmul.f32.gmra.mxu0 %v2141
    %v2160 = vpop.f32.mrf.mxu0
    %v2161 = vadd.f32 0.0, %v2160
    %2162 = vdwg.mxu0
    %2163 = vmatpush.msra.mxu0 0.0
    %2164 = vmatpush.msra.mxu0 0.0
    %2165 = vmatpush.msra.mxu0 0.0
    %2166 = vmatpush.msra.mxu0 0.0
    %2167 = vmatpush.msra.mxu0 0.0
    %2168 = vmatpush.msra.mxu0 0.0
    %2169 = vmatpush.msra.mxu0 0.0
    %2170 = vmatpush.msra.mxu0 0.0
    %2171 = vmatpush.msra.mxu0 0.0
    %2172 = vmatpush.msra.mxu0 0.0
    %2173 = vmatpush.msra.mxu0 0.0
    %2174 = vmatpush.msra.mxu0 0.0
    %2175 = vmatpush.msra.mxu0 %v2133
    %2176 = vmatpush.msra.mxu0 %v2132
    %2177 = vmatpush.msra.mxu0 %v2131
    %2178 = vmatpush.msra.mxu0 %v2130
    %2179 = vmatmul.f32.gmra.mxu0 %v2064
    %v2180 = vpop.f32.mrf.mxu0
    %v2181 = vadd.f32 %v2161, %v2180
    %2182 = vdwg.mxu0
    %v2183 = vadd.f32 %v2181, %v92
    %v2184 = vmul.f32 %v2183, 0.5
    %v2185 = vsel %vm83, %v2183, %v2184
    %v2186 = vtanh.pop %v2185
    %v2187 = vmul.f32 %v2186, 0.5
    %v2188 = vadd.f32 %v2187, 0.5
    %v2189 = vsel %vm83, %v2186, %v2188
    %v2190 = vmul.f32 %v2189, %v1750
    %2192 = vrot.lane.b32.xlu0 %v2189, 64
    %v2193 = vpop.permute.xlu0 %2192
    %v2195 = vmul.f32 %v2189, %v2193
    %2197 = vrot.lane.b32.xlu0 %v2195, 32
    %v2198 = vpop.permute.xlu0 %2197
    %v2200 = vadd.f32 %v2190, %v2198
    %v2201 = vtanh.pop %v2200
    %2203 = vrot.lane.b32.xlu0 %v2201, 64
    %v2204 = vpop.permute.xlu0 %2203
    %v2206 = vmul.f32 %v2189, %v2204
    %v2207 = vld [vmem:[%s742] sm:$0xff]
    %v2208 = vld [vmem:[%s742 + $0x8] sm:$0xff]
    %v2209 = vld [vmem:[%s742 + $0x10] sm:$0xff]
    %v2210 = vld [vmem:[%s742 + $0x18] sm:$0xff]
    %v2211 = vld [vmem:[%s747] sm:$0xff]
    %v2212 = vld [vmem:[%s747 + $0x8] sm:$0xff]
    %v2213 = vld [vmem:[%s747 + $0x10] sm:$0xff]
    %v2214 = vld [vmem:[%s747 + $0x18] sm:$0xff]
    %2216 = vrot.lane.b32.xlu0 %v1833, 32
    %v2217 = vpop.permute.xlu0 %2216
    %v2218 = vsel %vm193, %v2217, 0
    %2220 = vmatpush.msra.mxu0 0.0
    %2221 = vmatpush.msra.mxu0 0.0
    %2222 = vmatpush.msra.mxu0 0.0
    %2223 = vmatpush.msra.mxu0 0.0
    %2224 = vmatpush.msra.mxu0 0.0
    %2225 = vmatpush.msra.mxu0 0.0
    %2226 = vmatpush.msra.mxu0 0.0
    %2227 = vmatpush.msra.mxu0 0.0
    %2228 = vmatpush.msra.mxu0 0.0
    %2229 = vmatpush.msra.mxu0 0.0
    %2230 = vmatpush.msra.mxu0 0.0
    %2231 = vmatpush.msra.mxu0 0.0
    %2232 = vmatpush.msra.mxu0 %v2214
    %2233 = vmatpush.msra.mxu0 %v2213
    %2234 = vmatpush.msra.mxu0 %v2212
    %2235 = vmatpush.msra.mxu0 %v2211
    %2236 = vmatmul.f32.gmra.mxu0 %v2218
    %v2237 = vpop.f32.mrf.mxu0
    %v2238 = vadd.f32 0.0, %v2237
    %2239 = vdwg.mxu0
    %2240 = vmatpush.msra.mxu0 0.0
    %2241 = vmatpush.msra.mxu0 0.0
    %2242 = vmatpush.msra.mxu0 0.0
    %2243 = vmatpush.msra.mxu0 0.0
    %2244 = vmatpush.msra.mxu0 0.0
    %2245 = vmatpush.msra.mxu0 0.0
    %2246 = vmatpush.msra.mxu0 0.0
    %2247 = vmatpush.msra.mxu0 0.0
    %2248 = vmatpush.msra.mxu0 0.0
    %2249 = vmatpush.msra.mxu0 0.0
    %2250 = vmatpush.msra.mxu0 0.0
    %2251 = vmatpush.msra.mxu0 0.0
    %2252 = vmatpush.msra.mxu0 %v2210
    %2253 = vmatpush.msra.mxu0 %v2209
    %2254 = vmatpush.msra.mxu0 %v2208
    %2255 = vmatpush.msra.mxu0 %v2207
    %2256 = vmatmul.f32.gmra.mxu0 %v2141
    %v2257 = vpop.f32.mrf.mxu0
    %v2258 = vadd.f32 %v2238, %v2257
    %2259 = vdwg.mxu0
    %v2260 = vadd.f32 %v2258, %v97
    %v2261 = vmul.f32 %v2260, 0.5
    %v2262 = vsel %vm83, %v2260, %v2261
    %v2263 = vtanh.pop %v2262
    %v2264 = vmul.f32 %v2263, 0.5
    %v2265 = vadd.f32 %v2264, 0.5
    %v2266 = vsel %vm83, %v2263, %v2265
    %v2267 = vmul.f32 %v2266, %v1827
    %2269 = vrot.lane.b32.xlu0 %v2266, 64
    %v2270 = vpop.permute.xlu0 %2269
    %v2272 = vmul.f32 %v2266, %v2270
    %2274 = vrot.lane.b32.xlu0 %v2272, 32
    %v2275 = vpop.permute.xlu0 %2274
    %v2277 = vadd.f32 %v2267, %v2275
    %v2278 = vtanh.pop %v2277
    %2280 = vrot.lane.b32.xlu0 %v2278, 64
    %v2281 = vpop.permute.xlu0 %2280
    %v2283 = vmul.f32 %v2266, %v2281
    %v2284 = vld [vmem:[%s1072] sm:$0xff]
    %v2285 = vld [vmem:[%s1072 + $0x8] sm:$0xff]
    %v2286 = vld [vmem:[%s1072 + $0x10] sm:$0xff]
    %v2287 = vld [vmem:[%s1072 + $0x18] sm:$0xff]
    %v2288 = vld [vmem:[%s1077] sm:$0xff]
    %v2289 = vld [vmem:[%s1077 + $0x8] sm:$0xff]
    %v2290 = vld [vmem:[%s1077 + $0x10] sm:$0xff]
    %v2291 = vld [vmem:[%s1077 + $0x18] sm:$0xff]
    %2293 = vrot.lane.b32.xlu0 %v1910, 32
    %v2294 = vpop.permute.xlu0 %2293
    %v2295 = vsel %vm193, %v2294, 0
    %2297 = vmatpush.msra.mxu0 0.0
    %2298 = vmatpush.msra.mxu0 0.0
    %2299 = vmatpush.msra.mxu0 0.0
    %2300 = vmatpush.msra.mxu0 0.0
    %2301 = vmatpush.msra.mxu0 0.0
    %2302 = vmatpush.msra.mxu0 0.0
    %2303 = vmatpush.msra.mxu0 0.0
    %2304 = vmatpush.msra.mxu0 0.0
    %2305 = vmatpush.msra.mxu0 0.0
    %2306 = vmatpush.msra.mxu0 0.0
    %2307 = vmatpush.msra.mxu0 0.0
    %2308 = vmatpush.msra.mxu0 0.0
    %2309 = vmatpush.msra.mxu0 %v2291
    %2310 = vmatpush.msra.mxu0 %v2290
    %2311 = vmatpush.msra.mxu0 %v2289
    %2312 = vmatpush.msra.mxu0 %v2288
    %2313 = vmatmul.f32.gmra.mxu0 %v2295
    %v2314 = vpop.f32.mrf.mxu0
    %v2315 = vadd.f32 0.0, %v2314
    %2316 = vdwg.mxu0
    %2317 = vmatpush.msra.mxu0 0.0
    %2318 = vmatpush.msra.mxu0 0.0
    %2319 = vmatpush.msra.mxu0 0.0
    %2320 = vmatpush.msra.mxu0 0.0
    %2321 = vmatpush.msra.mxu0 0.0
    %2322 = vmatpush.msra.mxu0 0.0
    %2323 = vmatpush.msra.mxu0 0.0
    %2324 = vmatpush.msra.mxu0 0.0
    %2325 = vmatpush.msra.mxu0 0.0
    %2326 = vmatpush.msra.mxu0 0.0
    %2327 = vmatpush.msra.mxu0 0.0
    %2328 = vmatpush.msra.mxu0 0.0
    %2329 = vmatpush.msra.mxu0 %v2287
    %2330 = vmatpush.msra.mxu0 %v2286
    %2331 = vmatpush.msra.mxu0 %v2285
    %2332 = vmatpush.msra.mxu0 %v2284
    %2333 = vmatmul.f32.gmra.mxu0 %v2218
    %v2334 = vpop.f32.mrf.mxu0
    %v2335 = vadd.f32 %v2315, %v2334
    %2336 = vdwg.mxu0
    %v2337 = vadd.f32 %v2335, %v102
    %v2338 = vmul.f32 %v2337, 0.5
    %v2339 = vsel %vm83, %v2337, %v2338
    %v2340 = vtanh.pop %v2339
    %v2341 = vmul.f32 %v2340, 0.5
    %v2342 = vadd.f32 %v2341, 0.5
    %v2343 = vsel %vm83, %v2340, %v2342
    %v2344 = vmul.f32 %v2343, %v1904
    %2346 = vrot.lane.b32.xlu0 %v2343, 64
    %v2347 = vpop.permute.xlu0 %2346
    %v2349 = vmul.f32 %v2343, %v2347
    %2351 = vrot.lane.b32.xlu0 %v2349, 32
    %v2352 = vpop.permute.xlu0 %2351
    %v2354 = vadd.f32 %v2344, %v2352
    %v2355 = vtanh.pop %v2354
    %2357 = vrot.lane.b32.xlu0 %v2355, 64
    %v2358 = vpop.permute.xlu0 %2357
    %v2360 = vmul.f32 %v2343, %v2358
    %v2361 = vld [vmem:[%s1471] sm:$0xff]
    %v2362 = vld [vmem:[%s1471 + $0x8] sm:$0xff]
    %v2363 = vld [vmem:[%s1471 + $0x10] sm:$0xff]
    %v2364 = vld [vmem:[%s1471 + $0x18] sm:$0xff]
    %v2365 = vld [vmem:[%s1476] sm:$0xff]
    %v2366 = vld [vmem:[%s1476 + $0x8] sm:$0xff]
    %v2367 = vld [vmem:[%s1476 + $0x10] sm:$0xff]
    %v2368 = vld [vmem:[%s1476 + $0x18] sm:$0xff]
    %v2369 = vsel %vm193, %v1987, 0
    %2371 = vmatpush.msra.mxu0 0.0
    %2372 = vmatpush.msra.mxu0 0.0
    %2373 = vmatpush.msra.mxu0 0.0
    %2374 = vmatpush.msra.mxu0 0.0
    %2375 = vmatpush.msra.mxu0 0.0
    %2376 = vmatpush.msra.mxu0 0.0
    %2377 = vmatpush.msra.mxu0 0.0
    %2378 = vmatpush.msra.mxu0 0.0
    %2379 = vmatpush.msra.mxu0 0.0
    %2380 = vmatpush.msra.mxu0 0.0
    %2381 = vmatpush.msra.mxu0 0.0
    %2382 = vmatpush.msra.mxu0 0.0
    %2383 = vmatpush.msra.mxu0 %v2368
    %2384 = vmatpush.msra.mxu0 %v2367
    %2385 = vmatpush.msra.mxu0 %v2366
    %2386 = vmatpush.msra.mxu0 %v2365
    %2387 = vmatmul.f32.gmra.mxu0 %v2369
    %v2388 = vpop.f32.mrf.mxu0
    %v2389 = vadd.f32 0.0, %v2388
    %2390 = vdwg.mxu0
    %2391 = vmatpush.msra.mxu0 0.0
    %2392 = vmatpush.msra.mxu0 0.0
    %2393 = vmatpush.msra.mxu0 0.0
    %2394 = vmatpush.msra.mxu0 0.0
    %2395 = vmatpush.msra.mxu0 0.0
    %2396 = vmatpush.msra.mxu0 0.0
    %2397 = vmatpush.msra.mxu0 0.0
    %2398 = vmatpush.msra.mxu0 0.0
    %2399 = vmatpush.msra.mxu0 0.0
    %2400 = vmatpush.msra.mxu0 0.0
    %2401 = vmatpush.msra.mxu0 0.0
    %2402 = vmatpush.msra.mxu0 0.0
    %2403 = vmatpush.msra.mxu0 %v2364
    %2404 = vmatpush.msra.mxu0 %v2363
    %2405 = vmatpush.msra.mxu0 %v2362
    %2406 = vmatpush.msra.mxu0 %v2361
    %2407 = vmatmul.f32.gmra.mxu0 %v2295
    %v2408 = vpop.f32.mrf.mxu0
    %v2409 = vadd.f32 %v2389, %v2408
    %2410 = vdwg.mxu0
    %v2411 = vadd.f32 %v2409, %v107
    %v2412 = vmul.f32 %v2411, 0.5
    %v2413 = vsel %vm83, %v2411, %v2412
    %v2414 = vtanh.pop %v2413
    %v2415 = vmul.f32 %v2414, 0.5
    %v2416 = vadd.f32 %v2415, 0.5
    %v2417 = vsel %vm83, %v2414, %v2416
    %v2418 = vmul.f32 %v2417, %v1978
    %2420 = vrot.lane.b32.xlu0 %v2417, 64
    %v2421 = vpop.permute.xlu0 %2420
    %v2423 = vmul.f32 %v2417, %v2421
    %2425 = vrot.lane.b32.xlu0 %v2423, 32
    %v2426 = vpop.permute.xlu0 %2425
    %v2428 = vadd.f32 %v2418, %v2426
    %v2429 = vtanh.pop %v2428
    %2431 = vrot.lane.b32.xlu0 %v2429, 64
    %v2432 = vpop.permute.xlu0 %2431
    %v2434 = vmul.f32 %v2417, %v2432
    %2436 = vrot.lane.b32.xlu0 %v2434, 32
    %v2437 = vpop.permute.xlu0 %2436
    %2439 = vst.msk [vmem:[#allocation2 + $0x10] sm:$0xff] %vm193, %v2437
    %v2440 = vld [vmem:[#allocation3] sm:$0xff]
    %v2441 = vld [vmem:[#allocation3 + $0x8] sm:$0xff]
    %v2442 = vld [vmem:[#allocation3 + $0x10] sm:$0xff]
    %v2443 = vld [vmem:[#allocation3 + $0x18] sm:$0xff]
    %v2444 = vld [vmem:[%s294] sm:$0xff]
    %v2445 = vld [vmem:[%s294 + $0x8] sm:$0xff]
    %v2446 = vld [vmem:[%s294 + $0x10] sm:$0xff]
    %v2447 = vld [vmem:[%s294 + $0x18] sm:$0xff]
    %2449 = vrot.lane.b32.xlu0 %v2129, 32
    %v2450 = vpop.permute.xlu0 %2449
    %v2451 = vsel %vm193, %v2450, 0
    %2453 = vmatpush.msra.mxu0 0.0
    %2454 = vmatpush.msra.mxu0 0.0
    %2455 = vmatpush.msra.mxu0 0.0
    %2456 = vmatpush.msra.mxu0 0.0
    %2457 = vmatpush.msra.mxu0 0.0
    %2458 = vmatpush.msra.mxu0 0.0
    %2459 = vmatpush.msra.mxu0 0.0
    %2460 = vmatpush.msra.mxu0 0.0
    %2461 = vmatpush.msra.mxu0 0.0
    %2462 = vmatpush.msra.mxu0 0.0
    %2463 = vmatpush.msra.mxu0 0.0
    %2464 = vmatpush.msra.mxu0 0.0
    %2465 = vmatpush.msra.mxu0 %v2447
    %2466 = vmatpush.msra.mxu0 %v2446
    %2467 = vmatpush.msra.mxu0 %v2445
    %2468 = vmatpush.msra.mxu0 %v2444
    %2469 = vmatmul.f32.gmra.mxu0 %v2451
    %v2470 = vpop.f32.mrf.mxu0
    %v2471 = vadd.f32 0.0, %v2470
    %2472 = vdwg.mxu0
    %v2473 = vsel %vm193, %v2045, 0
    %2475 = vmatpush.msra.mxu0 0.0
    %2476 = vmatpush.msra.mxu0 0.0
    %2477 = vmatpush.msra.mxu0 0.0
    %2478 = vmatpush.msra.mxu0 0.0
    %2479 = vmatpush.msra.mxu0 0.0
    %2480 = vmatpush.msra.mxu0 0.0
    %2481 = vmatpush.msra.mxu0 0.0
    %2482 = vmatpush.msra.mxu0 0.0
    %2483 = vmatpush.msra.mxu0 0.0
    %2484 = vmatpush.msra.mxu0 0.0
    %2485 = vmatpush.msra.mxu0 0.0
    %2486 = vmatpush.msra.mxu0 0.0
    %2487 = vmatpush.msra.mxu0 %v2443
    %2488 = vmatpush.msra.mxu0 %v2442
    %2489 = vmatpush.msra.mxu0 %v2441
    %2490 = vmatpush.msra.mxu0 %v2440
    %2491 = vmatmul.f32.gmra.mxu0 %v2473
    %v2492 = vpop.f32.mrf.mxu0
    %v2493 = vadd.f32 %v2471, %v2492
    %2494 = vdwg.mxu0
    %v2495 = vadd.f32 %v2493, %v87
    %v2496 = vmul.f32 %v2495, 0.5
    %v2497 = vsel %vm83, %v2495, %v2496
    %v2498 = vtanh.pop %v2497
    %v2499 = vmul.f32 %v2498, 0.5
    %v2500 = vadd.f32 %v2499, 0.5
    %v2501 = vsel %vm83, %v2498, %v2500
    %v2502 = vmul.f32 %v2501, %v2123
    %2504 = vrot.lane.b32.xlu0 %v2501, 64
    %v2505 = vpop.permute.xlu0 %2504
    %v2507 = vmul.f32 %v2501, %v2505
    %2509 = vrot.lane.b32.xlu0 %v2507, 32
    %v2510 = vpop.permute.xlu0 %2509
    %v2512 = vadd.f32 %v2502, %v2510
    %v2513 = vtanh.pop %v2512
    %2515 = vrot.lane.b32.xlu0 %v2513, 64
    %v2516 = vpop.permute.xlu0 %2515
    %v2518 = vmul.f32 %v2501, %v2516
    %2520 = vrot.lane.b32.xlu0 %v2518, 32
    %v2521 = vpop.permute.xlu0 %2520
    %s2523 = scalar_lea.vmem %s14, 8
    %2524 = vst.msk [vmem:[%s2523] sm:$0xff] %vm193, %v2521
    %2526 = vrot.lane.b32.xlu0 %v2512, 96
    %v2527 = vpop.permute.xlu0 %2526
    %s2529 = scalar_lea.vmem %s15, 8
    %2530 = vst.msk [vmem:[%s2529] sm:$0xff] %vm193, %v2527
    %v2531 = vld [vmem:[%s481] sm:$0xff]
    %v2532 = vld [vmem:[%s481 + $0x8] sm:$0xff]
    %v2533 = vld [vmem:[%s481 + $0x10] sm:$0xff]
    %v2534 = vld [vmem:[%s481 + $0x18] sm:$0xff]
    %v2535 = vld [vmem:[%s486] sm:$0xff]
    %v2536 = vld [vmem:[%s486 + $0x8] sm:$0xff]
    %v2537 = vld [vmem:[%s486 + $0x10] sm:$0xff]
    %v2538 = vld [vmem:[%s486 + $0x18] sm:$0xff]
    %2540 = vrot.lane.b32.xlu0 %v2206, 32
    %v2541 = vpop.permute.xlu0 %2540
    %v2542 = vsel %vm193, %v2541, 0
    %2544 = vmatpush.msra.mxu0 0.0
    %2545 = vmatpush.msra.mxu0 0.0
    %2546 = vmatpush.msra.mxu0 0.0
    %2547 = vmatpush.msra.mxu0 0.0
    %2548 = vmatpush.msra.mxu0 0.0
    %2549 = vmatpush.msra.mxu0 0.0
    %2550 = vmatpush.msra.mxu0 0.0
    %2551 = vmatpush.msra.mxu0 0.0
    %2552 = vmatpush.msra.mxu0 0.0
    %2553 = vmatpush.msra.mxu0 0.0
    %2554 = vmatpush.msra.mxu0 0.0
    %2555 = vmatpush.msra.mxu0 0.0
    %2556 = vmatpush.msra.mxu0 %v2538
    %2557 = vmatpush.msra.mxu0 %v2537
    %2558 = vmatpush.msra.mxu0 %v2536
    %2559 = vmatpush.msra.mxu0 %v2535
    %2560 = vmatmul.f32.gmra.mxu0 %v2542
    %v2561 = vpop.f32.mrf.mxu0
    %v2562 = vadd.f32 0.0, %v2561
    %2563 = vdwg.mxu0
    %2564 = vmatpush.msra.mxu0 0.0
    %2565 = vmatpush.msra.mxu0 0.0
    %2566 = vmatpush.msra.mxu0 0.0
    %2567 = vmatpush.msra.mxu0 0.0
    %2568 = vmatpush.msra.mxu0 0.0
    %2569 = vmatpush.msra.mxu0 0.0
    %2570 = vmatpush.msra.mxu0 0.0
    %2571 = vmatpush.msra.mxu0 0.0
    %2572 = vmatpush.msra.mxu0 0.0
    %2573 = vmatpush.msra.mxu0 0.0
    %2574 = vmatpush.msra.mxu0 0.0
    %2575 = vmatpush.msra.mxu0 0.0
    %2576 = vmatpush.msra.mxu0 %v2534
    %2577 = vmatpush.msra.mxu0 %v2533
    %2578 = vmatpush.msra.mxu0 %v2532
    %2579 = vmatpush.msra.mxu0 %v2531
    %2580 = vmatmul.f32.gmra.mxu0 %v2451
    %v2581 = vpop.f32.mrf.mxu0
    %v2582 = vadd.f32 %v2562, %v2581
    %2583 = vdwg.mxu0
    %v2584 = vadd.f32 %v2582, %v92
    %v2585 = vmul.f32 %v2584, 0.5
    %v2586 = vsel %vm83, %v2584, %v2585
    %v2587 = vtanh.pop %v2586
    %v2588 = vmul.f32 %v2587, 0.5
    %v2589 = vadd.f32 %v2588, 0.5
    %v2590 = vsel %vm83, %v2587, %v2589
    %v2591 = vmul.f32 %v2590, %v2200
    %2593 = vrot.lane.b32.xlu0 %v2590, 64
    %v2594 = vpop.permute.xlu0 %2593
    %v2596 = vmul.f32 %v2590, %v2594
    %2598 = vrot.lane.b32.xlu0 %v2596, 32
    %v2599 = vpop.permute.xlu0 %2598
    %v2601 = vadd.f32 %v2591, %v2599
    %v2602 = vtanh.pop %v2601
    %2604 = vrot.lane.b32.xlu0 %v2602, 64
    %v2605 = vpop.permute.xlu0 %2604
    %v2607 = vmul.f32 %v2590, %v2605
    %v2608 = vld [vmem:[%s742] sm:$0xff]
    %v2609 = vld [vmem:[%s742 + $0x8] sm:$0xff]
    %v2610 = vld [vmem:[%s742 + $0x10] sm:$0xff]
    %v2611 = vld [vmem:[%s742 + $0x18] sm:$0xff]
    %v2612 = vld [vmem:[%s747] sm:$0xff]
    %v2613 = vld [vmem:[%s747 + $0x8] sm:$0xff]
    %v2614 = vld [vmem:[%s747 + $0x10] sm:$0xff]
    %v2615 = vld [vmem:[%s747 + $0x18] sm:$0xff]
    %2617 = vrot.lane.b32.xlu0 %v2283, 32
    %v2618 = vpop.permute.xlu0 %2617
    %v2619 = vsel %vm193, %v2618, 0
    %2621 = vmatpush.msra.mxu0 0.0
    %2622 = vmatpush.msra.mxu0 0.0
    %2623 = vmatpush.msra.mxu0 0.0
    %2624 = vmatpush.msra.mxu0 0.0
    %2625 = vmatpush.msra.mxu0 0.0
    %2626 = vmatpush.msra.mxu0 0.0
    %2627 = vmatpush.msra.mxu0 0.0
    %2628 = vmatpush.msra.mxu0 0.0
    %2629 = vmatpush.msra.mxu0 0.0
    %2630 = vmatpush.msra.mxu0 0.0
    %2631 = vmatpush.msra.mxu0 0.0
    %2632 = vmatpush.msra.mxu0 0.0
    %2633 = vmatpush.msra.mxu0 %v2615
    %2634 = vmatpush.msra.mxu0 %v2614
    %2635 = vmatpush.msra.mxu0 %v2613
    %2636 = vmatpush.msra.mxu0 %v2612
    %2637 = vmatmul.f32.gmra.mxu0 %v2619
    %v2638 = vpop.f32.mrf.mxu0
    %v2639 = vadd.f32 0.0, %v2638
    %2640 = vdwg.mxu0
    %2641 = vmatpush.msra.mxu0 0.0
    %2642 = vmatpush.msra.mxu0 0.0
    %2643 = vmatpush.msra.mxu0 0.0
    %2644 = vmatpush.msra.mxu0 0.0
    %2645 = vmatpush.msra.mxu0 0.0
    %2646 = vmatpush.msra.mxu0 0.0
    %2647 = vmatpush.msra.mxu0 0.0
    %2648 = vmatpush.msra.mxu0 0.0
    %2649 = vmatpush.msra.mxu0 0.0
    %2650 = vmatpush.msra.mxu0 0.0
    %2651 = vmatpush.msra.mxu0 0.0
    %2652 = vmatpush.msra.mxu0 0.0
    %2653 = vmatpush.msra.mxu0 %v2611
    %2654 = vmatpush.msra.mxu0 %v2610
    %2655 = vmatpush.msra.mxu0 %v2609
    %2656 = vmatpush.msra.mxu0 %v2608
    %2657 = vmatmul.f32.gmra.mxu0 %v2542
    %v2658 = vpop.f32.mrf.mxu0
    %v2659 = vadd.f32 %v2639, %v2658
    %2660 = vdwg.mxu0
    %v2661 = vadd.f32 %v2659, %v97
    %v2662 = vmul.f32 %v2661, 0.5
    %v2663 = vsel %vm83, %v2661, %v2662
    %v2664 = vtanh.pop %v2663
    %v2665 = vmul.f32 %v2664, 0.5
    %v2666 = vadd.f32 %v2665, 0.5
    %v2667 = vsel %vm83, %v2664, %v2666
    %v2668 = vmul.f32 %v2667, %v2277
    %2670 = vrot.lane.b32.xlu0 %v2667, 64
    %v2671 = vpop.permute.xlu0 %2670
    %v2673 = vmul.f32 %v2667, %v2671
    %2675 = vrot.lane.b32.xlu0 %v2673, 32
    %v2676 = vpop.permute.xlu0 %2675
    %v2678 = vadd.f32 %v2668, %v2676
    %v2679 = vtanh.pop %v2678
    %2681 = vrot.lane.b32.xlu0 %v2679, 64
    %v2682 = vpop.permute.xlu0 %2681
    %v2684 = vmul.f32 %v2667, %v2682
    %v2685 = vld [vmem:[%s1072] sm:$0xff]
    %v2686 = vld [vmem:[%s1072 + $0x8] sm:$0xff]
    %v2687 = vld [vmem:[%s1072 + $0x10] sm:$0xff]
    %v2688 = vld [vmem:[%s1072 + $0x18] sm:$0xff]
    %v2689 = vld [vmem:[%s1077] sm:$0xff]
    %v2690 = vld [vmem:[%s1077 + $0x8] sm:$0xff]
    %v2691 = vld [vmem:[%s1077 + $0x10] sm:$0xff]
    %v2692 = vld [vmem:[%s1077 + $0x18] sm:$0xff]
    %2694 = vrot.lane.b32.xlu0 %v2360, 32
    %v2695 = vpop.permute.xlu0 %2694
    %v2696 = vsel %vm193, %v2695, 0
    %2698 = vmatpush.msra.mxu0 0.0
    %2699 = vmatpush.msra.mxu0 0.0
    %2700 = vmatpush.msra.mxu0 0.0
    %2701 = vmatpush.msra.mxu0 0.0
    %2702 = vmatpush.msra.mxu0 0.0
    %2703 = vmatpush.msra.mxu0 0.0
    %2704 = vmatpush.msra.mxu0 0.0
    %2705 = vmatpush.msra.mxu0 0.0
    %2706 = vmatpush.msra.mxu0 0.0
    %2707 = vmatpush.msra.mxu0 0.0
    %2708 = vmatpush.msra.mxu0 0.0
    %2709 = vmatpush.msra.mxu0 0.0
    %2710 = vmatpush.msra.mxu0 %v2692
    %2711 = vmatpush.msra.mxu0 %v2691
    %2712 = vmatpush.msra.mxu0 %v2690
    %2713 = vmatpush.msra.mxu0 %v2689
    %2714 = vmatmul.f32.gmra.mxu0 %v2696
    %v2715 = vpop.f32.mrf.mxu0
    %v2716 = vadd.f32 0.0, %v2715
    %2717 = vdwg.mxu0
    %2718 = vmatpush.msra.mxu0 0.0
    %2719 = vmatpush.msra.mxu0 0.0
    %2720 = vmatpush.msra.mxu0 0.0
    %2721 = vmatpush.msra.mxu0 0.0
    %2722 = vmatpush.msra.mxu0 0.0
    %2723 = vmatpush.msra.mxu0 0.0
    %2724 = vmatpush.msra.mxu0 0.0
    %2725 = vmatpush.msra.mxu0 0.0
    %2726 = vmatpush.msra.mxu0 0.0
    %2727 = vmatpush.msra.mxu0 0.0
    %2728 = vmatpush.msra.mxu0 0.0
    %2729 = vmatpush.msra.mxu0 0.0
    %2730 = vmatpush.msra.mxu0 %v2688
    %2731 = vmatpush.msra.mxu0 %v2687
    %2732 = vmatpush.msra.mxu0 %v2686
    %2733 = vmatpush.msra.mxu0 %v2685
    %2734 = vmatmul.f32.gmra.mxu0 %v2619
    %v2735 = vpop.f32.mrf.mxu0
    %v2736 = vadd.f32 %v2716, %v2735
    %2737 = vdwg.mxu0
    %v2738 = vadd.f32 %v2736, %v102
    %v2739 = vmul.f32 %v2738, 0.5
    %v2740 = vsel %vm83, %v2738, %v2739
    %v2741 = vtanh.pop %v2740
    %v2742 = vmul.f32 %v2741, 0.5
    %v2743 = vadd.f32 %v2742, 0.5
    %v2744 = vsel %vm83, %v2741, %v2743
    %v2745 = vmul.f32 %v2744, %v2354
    %2747 = vrot.lane.b32.xlu0 %v2744, 64
    %v2748 = vpop.permute.xlu0 %2747
    %v2750 = vmul.f32 %v2744, %v2748
    %2752 = vrot.lane.b32.xlu0 %v2750, 32
    %v2753 = vpop.permute.xlu0 %2752
    %v2755 = vadd.f32 %v2745, %v2753
    %v2756 = vtanh.pop %v2755
    %2758 = vrot.lane.b32.xlu0 %v2756, 64
    %v2759 = vpop.permute.xlu0 %2758
    %v2761 = vmul.f32 %v2744, %v2759
    %v2762 = vld [vmem:[%s1471] sm:$0xff]
    %v2763 = vld [vmem:[%s1471 + $0x8] sm:$0xff]
    %v2764 = vld [vmem:[%s1471 + $0x10] sm:$0xff]
    %v2765 = vld [vmem:[%s1471 + $0x18] sm:$0xff]
    %v2766 = vld [vmem:[%s1476] sm:$0xff]
    %v2767 = vld [vmem:[%s1476 + $0x8] sm:$0xff]
    %v2768 = vld [vmem:[%s1476 + $0x10] sm:$0xff]
    %v2769 = vld [vmem:[%s1476 + $0x18] sm:$0xff]
    %v2770 = vsel %vm193, %v2437, 0
    %2772 = vmatpush.msra.mxu0 0.0
    %2773 = vmatpush.msra.mxu0 0.0
    %2774 = vmatpush.msra.mxu0 0.0
    %2775 = vmatpush.msra.mxu0 0.0
    %2776 = vmatpush.msra.mxu0 0.0
    %2777 = vmatpush.msra.mxu0 0.0
    %2778 = vmatpush.msra.mxu0 0.0
    %2779 = vmatpush.msra.mxu0 0.0
    %2780 = vmatpush.msra.mxu0 0.0
    %2781 = vmatpush.msra.mxu0 0.0
    %2782 = vmatpush.msra.mxu0 0.0
    %2783 = vmatpush.msra.mxu0 0.0
    %2784 = vmatpush.msra.mxu0 %v2769
    %2785 = vmatpush.msra.mxu0 %v2768
    %2786 = vmatpush.msra.mxu0 %v2767
    %2787 = vmatpush.msra.mxu0 %v2766
    %2788 = vmatmul.f32.gmra.mxu0 %v2770
    %v2789 = vpop.f32.mrf.mxu0
    %v2790 = vadd.f32 0.0, %v2789
    %2791 = vdwg.mxu0
    %2792 = vmatpush.msra.mxu0 0.0
    %2793 = vmatpush.msra.mxu0 0.0
    %2794 = vmatpush.msra.mxu0 0.0
    %2795 = vmatpush.msra.mxu0 0.0
    %2796 = vmatpush.msra.mxu0 0.0
    %2797 = vmatpush.msra.mxu0 0.0
    %2798 = vmatpush.msra.mxu0 0.0
    %2799 = vmatpush.msra.mxu0 0.0
    %2800 = vmatpush.msra.mxu0 0.0
    %2801 = vmatpush.msra.mxu0 0.0
    %2802 = vmatpush.msra.mxu0 0.0
    %2803 = vmatpush.msra.mxu0 0.0
    %2804 = vmatpush.msra.mxu0 %v2765
    %2805 = vmatpush.msra.mxu0 %v2764
    %2806 = vmatpush.msra.mxu0 %v2763
    %2807 = vmatpush.msra.mxu0 %v2762
    %2808 = vmatmul.f32.gmra.mxu0 %v2696
    %v2809 = vpop.f32.mrf.mxu0
    %v2810 = vadd.f32 %v2790, %v2809
    %2811 = vdwg.mxu0
    %v2812 = vadd.f32 %v2810, %v107
    %v2813 = vmul.f32 %v2812, 0.5
    %v2814 = vsel %vm83, %v2812, %v2813
    %v2815 = vtanh.pop %v2814
    %v2816 = vmul.f32 %v2815, 0.5
    %v2817 = vadd.f32 %v2816, 0.5
    %v2818 = vsel %vm83, %v2815, %v2817
    %v2819 = vmul.f32 %v2818, %v2428
    %2821 = vrot.lane.b32.xlu0 %v2818, 64
    %v2822 = vpop.permute.xlu0 %2821
    %v2824 = vmul.f32 %v2818, %v2822
    %2826 = vrot.lane.b32.xlu0 %v2824, 32
    %v2827 = vpop.permute.xlu0 %2826
    %v2829 = vadd.f32 %v2819, %v2827
    %v2830 = vtanh.pop %v2829
    %2832 = vrot.lane.b32.xlu0 %v2830, 64
    %v2833 = vpop.permute.xlu0 %2832
    %v2835 = vmul.f32 %v2818, %v2833
    %2837 = vrot.lane.b32.xlu0 %v2835, 32
    %v2838 = vpop.permute.xlu0 %2837
    %2840 = vst.msk [vmem:[#allocation2 + $0x18] sm:$0xff] %vm193, %v2838
    %v2841 = vld [vmem:[%s481] sm:$0xff]
    %v2842 = vld [vmem:[%s481 + $0x8] sm:$0xff]
    %v2843 = vld [vmem:[%s481 + $0x10] sm:$0xff]
    %v2844 = vld [vmem:[%s481 + $0x18] sm:$0xff]
    %v2845 = vld [vmem:[%s486] sm:$0xff]
    %v2846 = vld [vmem:[%s486 + $0x8] sm:$0xff]
    %v2847 = vld [vmem:[%s486 + $0x10] sm:$0xff]
    %v2848 = vld [vmem:[%s486 + $0x18] sm:$0xff]
    %2850 = vrot.lane.b32.xlu0 %v2607, 32
    %v2851 = vpop.permute.xlu0 %2850
    %v2852 = vsel %vm193, %v2851, 0
    %2854 = vmatpush.msra.mxu0 0.0
    %2855 = vmatpush.msra.mxu0 0.0
    %2856 = vmatpush.msra.mxu0 0.0
    %2857 = vmatpush.msra.mxu0 0.0
    %2858 = vmatpush.msra.mxu0 0.0
    %2859 = vmatpush.msra.mxu0 0.0
    %2860 = vmatpush.msra.mxu0 0.0
    %2861 = vmatpush.msra.mxu0 0.0
    %2862 = vmatpush.msra.mxu0 0.0
    %2863 = vmatpush.msra.mxu0 0.0
    %2864 = vmatpush.msra.mxu0 0.0
    %2865 = vmatpush.msra.mxu0 0.0
    %2866 = vmatpush.msra.mxu0 %v2848
    %2867 = vmatpush.msra.mxu0 %v2847
    %2868 = vmatpush.msra.mxu0 %v2846
    %2869 = vmatpush.msra.mxu0 %v2845
    %2870 = vmatmul.f32.gmra.mxu0 %v2852
    %v2871 = vpop.f32.mrf.mxu0
    %v2872 = vadd.f32 0.0, %v2871
    %2873 = vdwg.mxu0
    %v2874 = vsel %vm193, %v2521, 0
    %2876 = vmatpush.msra.mxu0 0.0
    %2877 = vmatpush.msra.mxu0 0.0
    %2878 = vmatpush.msra.mxu0 0.0
    %2879 = vmatpush.msra.mxu0 0.0
    %2880 = vmatpush.msra.mxu0 0.0
    %2881 = vmatpush.msra.mxu0 0.0
    %2882 = vmatpush.msra.mxu0 0.0
    %2883 = vmatpush.msra.mxu0 0.0
    %2884 = vmatpush.msra.mxu0 0.0
    %2885 = vmatpush.msra.mxu0 0.0
    %2886 = vmatpush.msra.mxu0 0.0
    %2887 = vmatpush.msra.mxu0 0.0
    %2888 = vmatpush.msra.mxu0 %v2844
    %2889 = vmatpush.msra.mxu0 %v2843
    %2890 = vmatpush.msra.mxu0 %v2842
    %2891 = vmatpush.msra.mxu0 %v2841
    %2892 = vmatmul.f32.gmra.mxu0 %v2874
    %v2893 = vpop.f32.mrf.mxu0
    %v2894 = vadd.f32 %v2872, %v2893
    %2895 = vdwg.mxu0
    %v2896 = vadd.f32 %v2894, %v92
    %v2897 = vmul.f32 %v2896, 0.5
    %v2898 = vsel %vm83, %v2896, %v2897
    %v2899 = vtanh.pop %v2898
    %v2900 = vmul.f32 %v2899, 0.5
    %v2901 = vadd.f32 %v2900, 0.5
    %v2902 = vsel %vm83, %v2899, %v2901
    %v2903 = vmul.f32 %v2902, %v2601
    %2905 = vrot.lane.b32.xlu0 %v2902, 64
    %v2906 = vpop.permute.xlu0 %2905
    %v2908 = vmul.f32 %v2902, %v2906
    %2910 = vrot.lane.b32.xlu0 %v2908, 32
    %v2911 = vpop.permute.xlu0 %2910
    %v2913 = vadd.f32 %v2903, %v2911
    %v2914 = vtanh.pop %v2913
    %2916 = vrot.lane.b32.xlu0 %v2914, 64
    %v2917 = vpop.permute.xlu0 %2916
    %v2919 = vmul.f32 %v2902, %v2917
    %2921 = vrot.lane.b32.xlu0 %v2919, 32
    %v2922 = vpop.permute.xlu0 %2921
    %s2924 = scalar_lea.vmem %s14, 16
    %2925 = vst.msk [vmem:[%s2924] sm:$0xff] %vm193, %v2922
    %2927 = vrot.lane.b32.xlu0 %v2913, 96
    %v2928 = vpop.permute.xlu0 %2927
    %s2930 = scalar_lea.vmem %s15, 16
    %2931 = vst.msk [vmem:[%s2930] sm:$0xff] %vm193, %v2928
    %v2932 = vld [vmem:[%s742] sm:$0xff]
    %v2933 = vld [vmem:[%s742 + $0x8] sm:$0xff]
    %v2934 = vld [vmem:[%s742 + $0x10] sm:$0xff]
    %v2935 = vld [vmem:[%s742 + $0x18] sm:$0xff]
    %v2936 = vld [vmem:[%s747] sm:$0xff]
    %v2937 = vld [vmem:[%s747 + $0x8] sm:$0xff]
    %v2938 = vld [vmem:[%s747 + $0x10] sm:$0xff]
    %v2939 = vld [vmem:[%s747 + $0x18] sm:$0xff]
    %2941 = vrot.lane.b32.xlu0 %v2684, 32
    %v2942 = vpop.permute.xlu0 %2941
    %v2943 = vsel %vm193, %v2942, 0
    %2945 = vmatpush.msra.mxu0 0.0
    %2946 = vmatpush.msra.mxu0 0.0
    %2947 = vmatpush.msra.mxu0 0.0
    %2948 = vmatpush.msra.mxu0 0.0
    %2949 = vmatpush.msra.mxu0 0.0
    %2950 = vmatpush.msra.mxu0 0.0
    %2951 = vmatpush.msra.mxu0 0.0
    %2952 = vmatpush.msra.mxu0 0.0
    %2953 = vmatpush.msra.mxu0 0.0
    %2954 = vmatpush.msra.mxu0 0.0
    %2955 = vmatpush.msra.mxu0 0.0
    %2956 = vmatpush.msra.mxu0 0.0
    %2957 = vmatpush.msra.mxu0 %v2939
    %2958 = vmatpush.msra.mxu0 %v2938
    %2959 = vmatpush.msra.mxu0 %v2937
    %2960 = vmatpush.msra.mxu0 %v2936
    %2961 = vmatmul.f32.gmra.mxu0 %v2943
    %v2962 = vpop.f32.mrf.mxu0
    %v2963 = vadd.f32 0.0, %v2962
    %2964 = vdwg.mxu0
    %2965 = vmatpush.msra.mxu0 0.0
    %2966 = vmatpush.msra.mxu0 0.0
    %2967 = vmatpush.msra.mxu0 0.0
    %2968 = vmatpush.msra.mxu0 0.0
    %2969 = vmatpush.msra.mxu0 0.0
    %2970 = vmatpush.msra.mxu0 0.0
    %2971 = vmatpush.msra.mxu0 0.0
    %2972 = vmatpush.msra.mxu0 0.0
    %2973 = vmatpush.msra.mxu0 0.0
    %2974 = vmatpush.msra.mxu0 0.0
    %2975 = vmatpush.msra.mxu0 0.0
    %2976 = vmatpush.msra.mxu0 0.0
    %2977 = vmatpush.msra.mxu0 %v2935
    %2978 = vmatpush.msra.mxu0 %v2934
    %2979 = vmatpush.msra.mxu0 %v2933
    %2980 = vmatpush.msra.mxu0 %v2932
    %2981 = vmatmul.f32.gmra.mxu0 %v2852
    %v2982 = vpop.f32.mrf.mxu0
    %v2983 = vadd.f32 %v2963, %v2982
    %2984 = vdwg.mxu0
    %v2985 = vadd.f32 %v2983, %v97
    %v2986 = vmul.f32 %v2985, 0.5
    %v2987 = vsel %vm83, %v2985, %v2986
    %v2988 = vtanh.pop %v2987
    %v2989 = vmul.f32 %v2988, 0.5
    %v2990 = vadd.f32 %v2989, 0.5
    %v2991 = vsel %vm83, %v2988, %v2990
    %v2992 = vmul.f32 %v2991, %v2678
    %2994 = vrot.lane.b32.xlu0 %v2991, 64
    %v2995 = vpop.permute.xlu0 %2994
    %v2997 = vmul.f32 %v2991, %v2995
    %2999 = vrot.lane.b32.xlu0 %v2997, 32
    %v3000 = vpop.permute.xlu0 %2999
    %v3002 = vadd.f32 %v2992, %v3000
    %v3003 = vtanh.pop %v3002
    %3005 = vrot.lane.b32.xlu0 %v3003, 64
    %v3006 = vpop.permute.xlu0 %3005
    %v3008 = vmul.f32 %v2991, %v3006
    %v3009 = vld [vmem:[%s1072] sm:$0xff]
    %v3010 = vld [vmem:[%s1072 + $0x8] sm:$0xff]
    %v3011 = vld [vmem:[%s1072 + $0x10] sm:$0xff]
    %v3012 = vld [vmem:[%s1072 + $0x18] sm:$0xff]
    %v3013 = vld [vmem:[%s1077] sm:$0xff]
    %v3014 = vld [vmem:[%s1077 + $0x8] sm:$0xff]
    %v3015 = vld [vmem:[%s1077 + $0x10] sm:$0xff]
    %v3016 = vld [vmem:[%s1077 + $0x18] sm:$0xff]
    %3018 = vrot.lane.b32.xlu0 %v2761, 32
    %v3019 = vpop.permute.xlu0 %3018
    %v3020 = vsel %vm193, %v3019, 0
    %3022 = vmatpush.msra.mxu0 0.0
    %3023 = vmatpush.msra.mxu0 0.0
    %3024 = vmatpush.msra.mxu0 0.0
    %3025 = vmatpush.msra.mxu0 0.0
    %3026 = vmatpush.msra.mxu0 0.0
    %3027 = vmatpush.msra.mxu0 0.0
    %3028 = vmatpush.msra.mxu0 0.0
    %3029 = vmatpush.msra.mxu0 0.0
    %3030 = vmatpush.msra.mxu0 0.0
    %3031 = vmatpush.msra.mxu0 0.0
    %3032 = vmatpush.msra.mxu0 0.0
    %3033 = vmatpush.msra.mxu0 0.0
    %3034 = vmatpush.msra.mxu0 %v3016
    %3035 = vmatpush.msra.mxu0 %v3015
    %3036 = vmatpush.msra.mxu0 %v3014
    %3037 = vmatpush.msra.mxu0 %v3013
    %3038 = vmatmul.f32.gmra.mxu0 %v3020
    %v3039 = vpop.f32.mrf.mxu0
    %v3040 = vadd.f32 0.0, %v3039
    %3041 = vdwg.mxu0
    %3042 = vmatpush.msra.mxu0 0.0
    %3043 = vmatpush.msra.mxu0 0.0
    %3044 = vmatpush.msra.mxu0 0.0
    %3045 = vmatpush.msra.mxu0 0.0
    %3046 = vmatpush.msra.mxu0 0.0
    %3047 = vmatpush.msra.mxu0 0.0
    %3048 = vmatpush.msra.mxu0 0.0
    %3049 = vmatpush.msra.mxu0 0.0
    %3050 = vmatpush.msra.mxu0 0.0
    %3051 = vmatpush.msra.mxu0 0.0
    %3052 = vmatpush.msra.mxu0 0.0
    %3053 = vmatpush.msra.mxu0 0.0
    %3054 = vmatpush.msra.mxu0 %v3012
    %3055 = vmatpush.msra.mxu0 %v3011
    %3056 = vmatpush.msra.mxu0 %v3010
    %3057 = vmatpush.msra.mxu0 %v3009
    %3058 = vmatmul.f32.gmra.mxu0 %v2943
    %v3059 = vpop.f32.mrf.mxu0
    %v3060 = vadd.f32 %v3040, %v3059
    %3061 = vdwg.mxu0
    %v3062 = vadd.f32 %v3060, %v102
    %v3063 = vmul.f32 %v3062, 0.5
    %v3064 = vsel %vm83, %v3062, %v3063
    %v3065 = vtanh.pop %v3064
    %v3066 = vmul.f32 %v3065, 0.5
    %v3067 = vadd.f32 %v3066, 0.5
    %v3068 = vsel %vm83, %v3065, %v3067
    %v3069 = vmul.f32 %v3068, %v2755
    %3071 = vrot.lane.b32.xlu0 %v3068, 64
    %v3072 = vpop.permute.xlu0 %3071
    %v3074 = vmul.f32 %v3068, %v3072
    %3076 = vrot.lane.b32.xlu0 %v3074, 32
    %v3077 = vpop.permute.xlu0 %3076
    %v3079 = vadd.f32 %v3069, %v3077
    %v3080 = vtanh.pop %v3079
    %3082 = vrot.lane.b32.xlu0 %v3080, 64
    %v3083 = vpop.permute.xlu0 %3082
    %v3085 = vmul.f32 %v3068, %v3083
    %v3086 = vld [vmem:[%s1471] sm:$0xff]
    %v3087 = vld [vmem:[%s1471 + $0x8] sm:$0xff]
    %v3088 = vld [vmem:[%s1471 + $0x10] sm:$0xff]
    %v3089 = vld [vmem:[%s1471 + $0x18] sm:$0xff]
    %v3090 = vld [vmem:[%s1476] sm:$0xff]
    %v3091 = vld [vmem:[%s1476 + $0x8] sm:$0xff]
    %v3092 = vld [vmem:[%s1476 + $0x10] sm:$0xff]
    %v3093 = vld [vmem:[%s1476 + $0x18] sm:$0xff]
    %v3094 = vsel %vm193, %v2838, 0
    %3096 = vmatpush.msra.mxu0 0.0
    %3097 = vmatpush.msra.mxu0 0.0
    %3098 = vmatpush.msra.mxu0 0.0
    %3099 = vmatpush.msra.mxu0 0.0
    %3100 = vmatpush.msra.mxu0 0.0
    %3101 = vmatpush.msra.mxu0 0.0
    %3102 = vmatpush.msra.mxu0 0.0
    %3103 = vmatpush.msra.mxu0 0.0
    %3104 = vmatpush.msra.mxu0 0.0
    %3105 = vmatpush.msra.mxu0 0.0
    %3106 = vmatpush.msra.mxu0 0.0
    %3107 = vmatpush.msra.mxu0 0.0
    %3108 = vmatpush.msra.mxu0 %v3093
    %3109 = vmatpush.msra.mxu0 %v3092
    %3110 = vmatpush.msra.mxu0 %v3091
    %3111 = vmatpush.msra.mxu0 %v3090
    %3112 = vmatmul.f32.gmra.mxu0 %v3094
    %v3113 = vpop.f32.mrf.mxu0
    %v3114 = vadd.f32 0.0, %v3113
    %3115 = vdwg.mxu0
    %3116 = vmatpush.msra.mxu0 0.0
    %3117 = vmatpush.msra.mxu0 0.0
    %3118 = vmatpush.msra.mxu0 0.0
    %3119 = vmatpush.msra.mxu0 0.0
    %3120 = vmatpush.msra.mxu0 0.0
    %3121 = vmatpush.msra.mxu0 0.0
    %3122 = vmatpush.msra.mxu0 0.0
    %3123 = vmatpush.msra.mxu0 0.0
    %3124 = vmatpush.msra.mxu0 0.0
    %3125 = vmatpush.msra.mxu0 0.0
    %3126 = vmatpush.msra.mxu0 0.0
    %3127 = vmatpush.msra.mxu0 0.0
    %3128 = vmatpush.msra.mxu0 %v3089
    %3129 = vmatpush.msra.mxu0 %v3088
    %3130 = vmatpush.msra.mxu0 %v3087
    %3131 = vmatpush.msra.mxu0 %v3086
    %3132 = vmatmul.f32.gmra.mxu0 %v3020
    %v3133 = vpop.f32.mrf.mxu0
    %v3134 = vadd.f32 %v3114, %v3133
    %3135 = vdwg.mxu0
    %v3136 = vadd.f32 %v3134, %v107
    %v3137 = vmul.f32 %v3136, 0.5
    %v3138 = vsel %vm83, %v3136, %v3137
    %v3139 = vtanh.pop %v3138
    %v3140 = vmul.f32 %v3139, 0.5
    %v3141 = vadd.f32 %v3140, 0.5
    %v3142 = vsel %vm83, %v3139, %v3141
    %v3143 = vmul.f32 %v3142, %v2829
    %3145 = vrot.lane.b32.xlu0 %v3142, 64
    %v3146 = vpop.permute.xlu0 %3145
    %v3148 = vmul.f32 %v3142, %v3146
    %3150 = vrot.lane.b32.xlu0 %v3148, 32
    %v3151 = vpop.permute.xlu0 %3150
    %v3153 = vadd.f32 %v3143, %v3151
    %v3154 = vtanh.pop %v3153
    %3156 = vrot.lane.b32.xlu0 %v3154, 64
    %v3157 = vpop.permute.xlu0 %3156
    %v3159 = vmul.f32 %v3142, %v3157
    %3161 = vrot.lane.b32.xlu0 %v3159, 32
    %v3162 = vpop.permute.xlu0 %3161
    %3164 = vst.msk [vmem:[#allocation2 + $0x20] sm:$0xff] %vm193, %v3162
    %v3165 = vld [vmem:[%s742] sm:$0xff]
    %v3166 = vld [vmem:[%s742 + $0x8] sm:$0xff]
    %v3167 = vld [vmem:[%s742 + $0x10] sm:$0xff]
    %v3168 = vld [vmem:[%s742 + $0x18] sm:$0xff]
    %v3169 = vld [vmem:[%s747] sm:$0xff]
    %v3170 = vld [vmem:[%s747 + $0x8] sm:$0xff]
    %v3171 = vld [vmem:[%s747 + $0x10] sm:$0xff]
    %v3172 = vld [vmem:[%s747 + $0x18] sm:$0xff]
    %3174 = vrot.lane.b32.xlu0 %v3008, 32
    %v3175 = vpop.permute.xlu0 %3174
    %v3176 = vsel %vm193, %v3175, 0
    %3178 = vmatpush.msra.mxu0 0.0
    %3179 = vmatpush.msra.mxu0 0.0
    %3180 = vmatpush.msra.mxu0 0.0
    %3181 = vmatpush.msra.mxu0 0.0
    %3182 = vmatpush.msra.mxu0 0.0
    %3183 = vmatpush.msra.mxu0 0.0
    %3184 = vmatpush.msra.mxu0 0.0
    %3185 = vmatpush.msra.mxu0 0.0
    %3186 = vmatpush.msra.mxu0 0.0
    %3187 = vmatpush.msra.mxu0 0.0
    %3188 = vmatpush.msra.mxu0 0.0
    %3189 = vmatpush.msra.mxu0 0.0
    %3190 = vmatpush.msra.mxu0 %v3172
    %3191 = vmatpush.msra.mxu0 %v3171
    %3192 = vmatpush.msra.mxu0 %v3170
    %3193 = vmatpush.msra.mxu0 %v3169
    %3194 = vmatmul.f32.gmra.mxu0 %v3176
    %v3195 = vpop.f32.mrf.mxu0
    %v3196 = vadd.f32 0.0, %v3195
    %3197 = vdwg.mxu0
    %v3198 = vsel %vm193, %v2922, 0
    %3200 = vmatpush.msra.mxu0 0.0
    %3201 = vmatpush.msra.mxu0 0.0
    %3202 = vmatpush.msra.mxu0 0.0
    %3203 = vmatpush.msra.mxu0 0.0
    %3204 = vmatpush.msra.mxu0 0.0
    %3205 = vmatpush.msra.mxu0 0.0
    %3206 = vmatpush.msra.mxu0 0.0
    %3207 = vmatpush.msra.mxu0 0.0
    %3208 = vmatpush.msra.mxu0 0.0
    %3209 = vmatpush.msra.mxu0 0.0
    %3210 = vmatpush.msra.mxu0 0.0
    %3211 = vmatpush.msra.mxu0 0.0
    %3212 = vmatpush.msra.mxu0 %v3168
    %3213 = vmatpush.msra.mxu0 %v3167
    %3214 = vmatpush.msra.mxu0 %v3166
    %3215 = vmatpush.msra.mxu0 %v3165
    %3216 = vmatmul.f32.gmra.mxu0 %v3198
    %v3217 = vpop.f32.mrf.mxu0
    %v3218 = vadd.f32 %v3196, %v3217
    %3219 = vdwg.mxu0
    %v3220 = vadd.f32 %v3218, %v97
    %v3221 = vmul.f32 %v3220, 0.5
    %v3222 = vsel %vm83, %v3220, %v3221
    %v3223 = vtanh.pop %v3222
    %v3224 = vmul.f32 %v3223, 0.5
    %v3225 = vadd.f32 %v3224, 0.5
    %v3226 = vsel %vm83, %v3223, %v3225
    %v3227 = vmul.f32 %v3226, %v3002
    %3229 = vrot.lane.b32.xlu0 %v3226, 64
    %v3230 = vpop.permute.xlu0 %3229
    %v3232 = vmul.f32 %v3226, %v3230
    %3234 = vrot.lane.b32.xlu0 %v3232, 32
    %v3235 = vpop.permute.xlu0 %3234
    %v3237 = vadd.f32 %v3227, %v3235
    %v3238 = vtanh.pop %v3237
    %3240 = vrot.lane.b32.xlu0 %v3238, 64
    %v3241 = vpop.permute.xlu0 %3240
    %v3243 = vmul.f32 %v3226, %v3241
    %3245 = vrot.lane.b32.xlu0 %v3243, 32
    %v3246 = vpop.permute.xlu0 %3245
    %s3248 = scalar_lea.vmem %s14, 24
    %3249 = vst.msk [vmem:[%s3248] sm:$0xff] %vm193, %v3246
    %3251 = vrot.lane.b32.xlu0 %v3237, 96
    %v3252 = vpop.permute.xlu0 %3251
    %s3254 = scalar_lea.vmem %s15, 24
    %3255 = vst.msk [vmem:[%s3254] sm:$0xff] %vm193, %v3252
    %v3256 = vld [vmem:[%s1072] sm:$0xff]
    %v3257 = vld [vmem:[%s1072 + $0x8] sm:$0xff]
    %v3258 = vld [vmem:[%s1072 + $0x10] sm:$0xff]
    %v3259 = vld [vmem:[%s1072 + $0x18] sm:$0xff]
    %v3260 = vld [vmem:[%s1077] sm:$0xff]
    %v3261 = vld [vmem:[%s1077 + $0x8] sm:$0xff]
    %v3262 = vld [vmem:[%s1077 + $0x10] sm:$0xff]
    %v3263 = vld [vmem:[%s1077 + $0x18] sm:$0xff]
    %3265 = vrot.lane.b32.xlu0 %v3085, 32
    %v3266 = vpop.permute.xlu0 %3265
    %v3267 = vsel %vm193, %v3266, 0
    %3269 = vmatpush.msra.mxu0 0.0
    %3270 = vmatpush.msra.mxu0 0.0
    %3271 = vmatpush.msra.mxu0 0.0
    %3272 = vmatpush.msra.mxu0 0.0
    %3273 = vmatpush.msra.mxu0 0.0
    %3274 = vmatpush.msra.mxu0 0.0
    %3275 = vmatpush.msra.mxu0 0.0
    %3276 = vmatpush.msra.mxu0 0.0
    %3277 = vmatpush.msra.mxu0 0.0
    %3278 = vmatpush.msra.mxu0 0.0
    %3279 = vmatpush.msra.mxu0 0.0
    %3280 = vmatpush.msra.mxu0 0.0
    %3281 = vmatpush.msra.mxu0 %v3263
    %3282 = vmatpush.msra.mxu0 %v3262
    %3283 = vmatpush.msra.mxu0 %v3261
    %3284 = vmatpush.msra.mxu0 %v3260
    %3285 = vmatmul.f32.gmra.mxu0 %v3267
    %v3286 = vpop.f32.mrf.mxu0
    %v3287 = vadd.f32 0.0, %v3286
    %3288 = vdwg.mxu0
    %3289 = vmatpush.msra.mxu0 0.0
    %3290 = vmatpush.msra.mxu0 0.0
    %3291 = vmatpush.msra.mxu0 0.0
    %3292 = vmatpush.msra.mxu0 0.0
    %3293 = vmatpush.msra.mxu0 0.0
    %3294 = vmatpush.msra.mxu0 0.0
    %3295 = vmatpush.msra.mxu0 0.0
    %3296 = vmatpush.msra.mxu0 0.0
    %3297 = vmatpush.msra.mxu0 0.0
    %3298 = vmatpush.msra.mxu0 0.0
    %3299 = vmatpush.msra.mxu0 0.0
    %3300 = vmatpush.msra.mxu0 0.0
    %3301 = vmatpush.msra.mxu0 %v3259
    %3302 = vmatpush.msra.mxu0 %v3258
    %3303 = vmatpush.msra.mxu0 %v3257
    %3304 = vmatpush.msra.mxu0 %v3256
    %3305 = vmatmul.f32.gmra.mxu0 %v3176
    %v3306 = vpop.f32.mrf.mxu0
    %v3307 = vadd.f32 %v3287, %v3306
    %3308 = vdwg.mxu0
    %v3309 = vadd.f32 %v3307, %v102
    %v3310 = vmul.f32 %v3309, 0.5
    %v3311 = vsel %vm83, %v3309, %v3310
    %v3312 = vtanh.pop %v3311
    %v3313 = vmul.f32 %v3312, 0.5
    %v3314 = vadd.f32 %v3313, 0.5
    %v3315 = vsel %vm83, %v3312, %v3314
    %v3316 = vmul.f32 %v3315, %v3079
    %3318 = vrot.lane.b32.xlu0 %v3315, 64
    %v3319 = vpop.permute.xlu0 %3318
    %v3321 = vmul.f32 %v3315, %v3319
    %3323 = vrot.lane.b32.xlu0 %v3321, 32
    %v3324 = vpop.permute.xlu0 %3323
    %v3326 = vadd.f32 %v3316, %v3324
    %v3327 = vtanh.pop %v3326
    %3329 = vrot.lane.b32.xlu0 %v3327, 64
    %v3330 = vpop.permute.xlu0 %3329
    %v3332 = vmul.f32 %v3315, %v3330
    %v3333 = vld [vmem:[%s1471] sm:$0xff]
    %v3334 = vld [vmem:[%s1471 + $0x8] sm:$0xff]
    %v3335 = vld [vmem:[%s1471 + $0x10] sm:$0xff]
    %v3336 = vld [vmem:[%s1471 + $0x18] sm:$0xff]
    %v3337 = vld [vmem:[%s1476] sm:$0xff]
    %v3338 = vld [vmem:[%s1476 + $0x8] sm:$0xff]
    %v3339 = vld [vmem:[%s1476 + $0x10] sm:$0xff]
    %v3340 = vld [vmem:[%s1476 + $0x18] sm:$0xff]
    %v3341 = vsel %vm193, %v3162, 0
    %3343 = vmatpush.msra.mxu0 0.0
    %3344 = vmatpush.msra.mxu0 0.0
    %3345 = vmatpush.msra.mxu0 0.0
    %3346 = vmatpush.msra.mxu0 0.0
    %3347 = vmatpush.msra.mxu0 0.0
    %3348 = vmatpush.msra.mxu0 0.0
    %3349 = vmatpush.msra.mxu0 0.0
    %3350 = vmatpush.msra.mxu0 0.0
    %3351 = vmatpush.msra.mxu0 0.0
    %3352 = vmatpush.msra.mxu0 0.0
    %3353 = vmatpush.msra.mxu0 0.0
    %3354 = vmatpush.msra.mxu0 0.0
    %3355 = vmatpush.msra.mxu0 %v3340
    %3356 = vmatpush.msra.mxu0 %v3339
    %3357 = vmatpush.msra.mxu0 %v3338
    %3358 = vmatpush.msra.mxu0 %v3337
    %3359 = vmatmul.f32.gmra.mxu0 %v3341
    %v3360 = vpop.f32.mrf.mxu0
    %v3361 = vadd.f32 0.0, %v3360
    %3362 = vdwg.mxu0
    %3363 = vmatpush.msra.mxu0 0.0
    %3364 = vmatpush.msra.mxu0 0.0
    %3365 = vmatpush.msra.mxu0 0.0
    %3366 = vmatpush.msra.mxu0 0.0
    %3367 = vmatpush.msra.mxu0 0.0
    %3368 = vmatpush.msra.mxu0 0.0
    %3369 = vmatpush.msra.mxu0 0.0
    %3370 = vmatpush.msra.mxu0 0.0
    %3371 = vmatpush.msra.mxu0 0.0
    %3372 = vmatpush.msra.mxu0 0.0
    %3373 = vmatpush.msra.mxu0 0.0
    %3374 = vmatpush.msra.mxu0 0.0
    %3375 = vmatpush.msra.mxu0 %v3336
    %3376 = vmatpush.msra.mxu0 %v3335
    %3377 = vmatpush.msra.mxu0 %v3334
    %3378 = vmatpush.msra.mxu0 %v3333
    %3379 = vmatmul.f32.gmra.mxu0 %v3267
    %v3380 = vpop.f32.mrf.mxu0
    %v3381 = vadd.f32 %v3361, %v3380
    %3382 = vdwg.mxu0
    %v3383 = vadd.f32 %v3381, %v107
    %v3384 = vmul.f32 %v3383, 0.5
    %v3385 = vsel %vm83, %v3383, %v3384
    %v3386 = vtanh.pop %v3385
    %v3387 = vmul.f32 %v3386, 0.5
    %v3388 = vadd.f32 %v3387, 0.5
    %v3389 = vsel %vm83, %v3386, %v3388
    %v3390 = vmul.f32 %v3389, %v3153
    %3392 = vrot.lane.b32.xlu0 %v3389, 64
    %v3393 = vpop.permute.xlu0 %3392
    %v3395 = vmul.f32 %v3389, %v3393
    %3397 = vrot.lane.b32.xlu0 %v3395, 32
    %v3398 = vpop.permute.xlu0 %3397
    %v3400 = vadd.f32 %v3390, %v3398
    %v3401 = vtanh.pop %v3400
    %3403 = vrot.lane.b32.xlu0 %v3401, 64
    %v3404 = vpop.permute.xlu0 %3403
    %v3406 = vmul.f32 %v3389, %v3404
    %3408 = vrot.lane.b32.xlu0 %v3406, 32
    %v3409 = vpop.permute.xlu0 %3408
    %3411 = vst.msk [vmem:[#allocation2 + $0x28] sm:$0xff] %vm193, %v3409
    %v3412 = vld [vmem:[%s1072] sm:$0xff]
    %v3413 = vld [vmem:[%s1072 + $0x8] sm:$0xff]
    %v3414 = vld [vmem:[%s1072 + $0x10] sm:$0xff]
    %v3415 = vld [vmem:[%s1072 + $0x18] sm:$0xff]
    %v3416 = vld [vmem:[%s1077] sm:$0xff]
    %v3417 = vld [vmem:[%s1077 + $0x8] sm:$0xff]
    %v3418 = vld [vmem:[%s1077 + $0x10] sm:$0xff]
    %v3419 = vld [vmem:[%s1077 + $0x18] sm:$0xff]
    %3421 = vrot.lane.b32.xlu0 %v3332, 32
    %v3422 = vpop.permute.xlu0 %3421
    %v3423 = vsel %vm193, %v3422, 0
    %3425 = vmatpush.msra.mxu0 0.0
    %3426 = vmatpush.msra.mxu0 0.0
    %3427 = vmatpush.msra.mxu0 0.0
    %3428 = vmatpush.msra.mxu0 0.0
    %3429 = vmatpush.msra.mxu0 0.0
    %3430 = vmatpush.msra.mxu0 0.0
    %3431 = vmatpush.msra.mxu0 0.0
    %3432 = vmatpush.msra.mxu0 0.0
    %3433 = vmatpush.msra.mxu0 0.0
    %3434 = vmatpush.msra.mxu0 0.0
    %3435 = vmatpush.msra.mxu0 0.0
    %3436 = vmatpush.msra.mxu0 0.0
    %3437 = vmatpush.msra.mxu0 %v3419
    %3438 = vmatpush.msra.mxu0 %v3418
    %3439 = vmatpush.msra.mxu0 %v3417
    %3440 = vmatpush.msra.mxu0 %v3416
    %3441 = vmatmul.f32.gmra.mxu0 %v3423
    %v3442 = vpop.f32.mrf.mxu0
    %v3443 = vadd.f32 0.0, %v3442
    %3444 = vdwg.mxu0
    %v3445 = vsel %vm193, %v3246, 0
    %3447 = vmatpush.msra.mxu0 0.0
    %3448 = vmatpush.msra.mxu0 0.0
    %3449 = vmatpush.msra.mxu0 0.0
    %3450 = vmatpush.msra.mxu0 0.0
    %3451 = vmatpush.msra.mxu0 0.0
    %3452 = vmatpush.msra.mxu0 0.0
    %3453 = vmatpush.msra.mxu0 0.0
    %3454 = vmatpush.msra.mxu0 0.0
    %3455 = vmatpush.msra.mxu0 0.0
    %3456 = vmatpush.msra.mxu0 0.0
    %3457 = vmatpush.msra.mxu0 0.0
    %3458 = vmatpush.msra.mxu0 0.0
    %3459 = vmatpush.msra.mxu0 %v3415
    %3460 = vmatpush.msra.mxu0 %v3414
    %3461 = vmatpush.msra.mxu0 %v3413
    %3462 = vmatpush.msra.mxu0 %v3412
    %3463 = vmatmul.f32.gmra.mxu0 %v3445
    %v3464 = vpop.f32.mrf.mxu0
    %v3465 = vadd.f32 %v3443, %v3464
    %3466 = vdwg.mxu0
    %v3467 = vadd.f32 %v3465, %v102
    %v3468 = vmul.f32 %v3467, 0.5
    %v3469 = vsel %vm83, %v3467, %v3468
    %v3470 = vtanh.pop %v3469
    %v3471 = vmul.f32 %v3470, 0.5
    %v3472 = vadd.f32 %v3471, 0.5
    %v3473 = vsel %vm83, %v3470, %v3472
    %v3474 = vmul.f32 %v3473, %v3326
    %3476 = vrot.lane.b32.xlu0 %v3473, 64
    %v3477 = vpop.permute.xlu0 %3476
    %v3479 = vmul.f32 %v3473, %v3477
    %3481 = vrot.lane.b32.xlu0 %v3479, 32
    %v3482 = vpop.permute.xlu0 %3481
    %v3484 = vadd.f32 %v3474, %v3482
    %v3485 = vtanh.pop %v3484
    %3487 = vrot.lane.b32.xlu0 %v3485, 64
    %v3488 = vpop.permute.xlu0 %3487
    %v3490 = vmul.f32 %v3473, %v3488
    %3492 = vrot.lane.b32.xlu0 %v3490, 32
    %v3493 = vpop.permute.xlu0 %3492
    %s3495 = scalar_lea.vmem %s14, 32
    %3496 = vst.msk [vmem:[%s3495] sm:$0xff] %vm193, %v3493
    %3498 = vrot.lane.b32.xlu0 %v3484, 96
    %v3499 = vpop.permute.xlu0 %3498
    %s3501 = scalar_lea.vmem %s15, 32
    %3502 = vst.msk [vmem:[%s3501] sm:$0xff] %vm193, %v3499
    %v3503 = vld [vmem:[%s1471] sm:$0xff]
    %v3504 = vld [vmem:[%s1471 + $0x8] sm:$0xff]
    %v3505 = vld [vmem:[%s1471 + $0x10] sm:$0xff]
    %v3506 = vld [vmem:[%s1471 + $0x18] sm:$0xff]
    %v3507 = vld [vmem:[%s1476] sm:$0xff]
    %v3508 = vld [vmem:[%s1476 + $0x8] sm:$0xff]
    %v3509 = vld [vmem:[%s1476 + $0x10] sm:$0xff]
    %v3510 = vld [vmem:[%s1476 + $0x18] sm:$0xff]
    %v3511 = vsel %vm193, %v3409, 0
    %3513 = vmatpush.msra.mxu0 0.0
    %3514 = vmatpush.msra.mxu0 0.0
    %3515 = vmatpush.msra.mxu0 0.0
    %3516 = vmatpush.msra.mxu0 0.0
    %3517 = vmatpush.msra.mxu0 0.0
    %3518 = vmatpush.msra.mxu0 0.0
    %3519 = vmatpush.msra.mxu0 0.0
    %3520 = vmatpush.msra.mxu0 0.0
    %3521 = vmatpush.msra.mxu0 0.0
    %3522 = vmatpush.msra.mxu0 0.0
    %3523 = vmatpush.msra.mxu0 0.0
    %3524 = vmatpush.msra.mxu0 0.0
    %3525 = vmatpush.msra.mxu0 %v3510
    %3526 = vmatpush.msra.mxu0 %v3509
    %3527 = vmatpush.msra.mxu0 %v3508
    %3528 = vmatpush.msra.mxu0 %v3507
    %3529 = vmatmul.f32.gmra.mxu0 %v3511
    %v3530 = vpop.f32.mrf.mxu0
    %v3531 = vadd.f32 0.0, %v3530
    %3532 = vdwg.mxu0
    %3533 = vmatpush.msra.mxu0 0.0
    %3534 = vmatpush.msra.mxu0 0.0
    %3535 = vmatpush.msra.mxu0 0.0
    %3536 = vmatpush.msra.mxu0 0.0
    %3537 = vmatpush.msra.mxu0 0.0
    %3538 = vmatpush.msra.mxu0 0.0
    %3539 = vmatpush.msra.mxu0 0.0
    %3540 = vmatpush.msra.mxu0 0.0
    %3541 = vmatpush.msra.mxu0 0.0
    %3542 = vmatpush.msra.mxu0 0.0
    %3543 = vmatpush.msra.mxu0 0.0
    %3544 = vmatpush.msra.mxu0 0.0
    %3545 = vmatpush.msra.mxu0 %v3506
    %3546 = vmatpush.msra.mxu0 %v3505
    %3547 = vmatpush.msra.mxu0 %v3504
    %3548 = vmatpush.msra.mxu0 %v3503
    %3549 = vmatmul.f32.gmra.mxu0 %v3423
    %v3550 = vpop.f32.mrf.mxu0
    %v3551 = vadd.f32 %v3531, %v3550
    %3552 = vdwg.mxu0
    %v3553 = vadd.f32 %v3551, %v107
    %v3554 = vmul.f32 %v3553, 0.5
    %v3555 = vsel %vm83, %v3553, %v3554
    %v3556 = vtanh.pop %v3555
    %v3557 = vmul.f32 %v3556, 0.5
    %v3558 = vadd.f32 %v3557, 0.5
    %v3559 = vsel %vm83, %v3556, %v3558
    %v3560 = vmul.f32 %v3559, %v3400
    %3562 = vrot.lane.b32.xlu0 %v3559, 64
    %v3563 = vpop.permute.xlu0 %3562
    %v3565 = vmul.f32 %v3559, %v3563
    %3567 = vrot.lane.b32.xlu0 %v3565, 32
    %v3568 = vpop.permute.xlu0 %3567
    %v3570 = vadd.f32 %v3560, %v3568
    %v3571 = vtanh.pop %v3570
    %3573 = vrot.lane.b32.xlu0 %v3571, 64
    %v3574 = vpop.permute.xlu0 %3573
    %v3576 = vmul.f32 %v3559, %v3574
    %3578 = vrot.lane.b32.xlu0 %v3576, 32
    %v3579 = vpop.permute.xlu0 %3578
    %3581 = vst.msk [vmem:[#allocation2 + $0x30] sm:$0xff] %vm193, %v3579
    %v3582 = vld [vmem:[%s1471] sm:$0xff]
    %v3583 = vld [vmem:[%s1471 + $0x8] sm:$0xff]
    %v3584 = vld [vmem:[%s1471 + $0x10] sm:$0xff]
    %v3585 = vld [vmem:[%s1471 + $0x18] sm:$0xff]
    %v3586 = vld [vmem:[%s1476] sm:$0xff]
    %v3587 = vld [vmem:[%s1476 + $0x8] sm:$0xff]
    %v3588 = vld [vmem:[%s1476 + $0x10] sm:$0xff]
    %v3589 = vld [vmem:[%s1476 + $0x18] sm:$0xff]
    %v3590 = vsel %vm193, %v3579, 0
    %3592 = vmatpush.msra.mxu0 0.0
    %3593 = vmatpush.msra.mxu0 0.0
    %3594 = vmatpush.msra.mxu0 0.0
    %3595 = vmatpush.msra.mxu0 0.0
    %3596 = vmatpush.msra.mxu0 0.0
    %3597 = vmatpush.msra.mxu0 0.0
    %3598 = vmatpush.msra.mxu0 0.0
    %3599 = vmatpush.msra.mxu0 0.0
    %3600 = vmatpush.msra.mxu0 0.0
    %3601 = vmatpush.msra.mxu0 0.0
    %3602 = vmatpush.msra.mxu0 0.0
    %3603 = vmatpush.msra.mxu0 0.0
    %3604 = vmatpush.msra.mxu0 %v3589
    %3605 = vmatpush.msra.mxu0 %v3588
    %3606 = vmatpush.msra.mxu0 %v3587
    %3607 = vmatpush.msra.mxu0 %v3586
    %3608 = vmatmul.f32.gmra.mxu0 %v3590
    %v3609 = vpop.f32.mrf.mxu0
    %v3610 = vadd.f32 0.0, %v3609
    %3611 = vdwg.mxu0
    %v3612 = vsel %vm193, %v3493, 0
    %3614 = vmatpush.msra.mxu0 0.0
    %3615 = vmatpush.msra.mxu0 0.0
    %3616 = vmatpush.msra.mxu0 0.0
    %3617 = vmatpush.msra.mxu0 0.0
    %3618 = vmatpush.msra.mxu0 0.0
    %3619 = vmatpush.msra.mxu0 0.0
    %3620 = vmatpush.msra.mxu0 0.0
    %3621 = vmatpush.msra.mxu0 0.0
    %3622 = vmatpush.msra.mxu0 0.0
    %3623 = vmatpush.msra.mxu0 0.0
    %3624 = vmatpush.msra.mxu0 0.0
    %3625 = vmatpush.msra.mxu0 0.0
    %3626 = vmatpush.msra.mxu0 %v3585
    %3627 = vmatpush.msra.mxu0 %v3584
    %3628 = vmatpush.msra.mxu0 %v3583
    %3629 = vmatpush.msra.mxu0 %v3582
    %3630 = vmatmul.f32.gmra.mxu0 %v3612
    %v3631 = vpop.f32.mrf.mxu0
    %v3632 = vadd.f32 %v3610, %v3631
    %3633 = vdwg.mxu0
    %v3634 = vadd.f32 %v3632, %v107
    %v3635 = vmul.f32 %v3634, 0.5
    %v3636 = vsel %vm83, %v3634, %v3635
    %v3637 = vtanh.pop %v3636
    %v3638 = vmul.f32 %v3637, 0.5
    %v3639 = vadd.f32 %v3638, 0.5
    %v3640 = vsel %vm83, %v3637, %v3639
    %v3641 = vmul.f32 %v3640, %v3570
    %3643 = vrot.lane.b32.xlu0 %v3640, 64
    %v3644 = vpop.permute.xlu0 %3643
    %v3646 = vmul.f32 %v3640, %v3644
    %3648 = vrot.lane.b32.xlu0 %v3646, 32
    %v3649 = vpop.permute.xlu0 %3648
    %v3651 = vadd.f32 %v3641, %v3649
    %v3652 = vtanh.pop %v3651
    %3654 = vrot.lane.b32.xlu0 %v3652, 64
    %v3655 = vpop.permute.xlu0 %3654
    %v3657 = vmul.f32 %v3640, %v3655
    %3659 = vrot.lane.b32.xlu0 %v3657, 32
    %v3660 = vpop.permute.xlu0 %3659
    %3662 = vst.msk [vmem:[#allocation2 + $0x38] sm:$0xff] %vm193, %v3660
    %s3663 = scalar_lea.vmem %s14, 40
    %3664 = vst.msk [vmem:[%s3663] sm:$0xff] %vm193, %v3660
    %3666 = vrot.lane.b32.xlu0 %v3651, 96
    %v3667 = vpop.permute.xlu0 %3666
    %s3669 = scalar_lea.vmem %s15, 40
    %3670 = vst.msk [vmem:[%s3669] sm:$0xff] %vm193, %v3667
    %v3671 = vld [vmem:[#allocation2] sm:$0xff]
    %v3672 = vld [vmem:[#allocation2 + $0x8] sm:$0xff]
    %v3673 = vld [vmem:[#allocation2 + $0x10] sm:$0xff]
    %v3674 = vld [vmem:[#allocation2 + $0x18] sm:$0xff]
    %v3675 = vld [vmem:[#allocation2 + $0x20] sm:$0xff]
    %v3676 = vld [vmem:[#allocation2 + $0x28] sm:$0xff]
    %v3677 = vld [vmem:[#allocation2 + $0x30] sm:$0xff]
    %v3678 = vld [vmem:[#allocation2 + $0x38] sm:$0xff]
    %v3679 = vld [vmem:[%s5] sm:$0xff]
    %v3680 = vld [vmem:[%s5 + $0x8] sm:$0xff]
    %v3681 = vld [vmem:[%s5 + $0x10] sm:$0xff]
    %v3682 = vld [vmem:[%s5 + $0x18] sm:$0xff]
    %v3683 = vld [vmem:[%s6] sm:$0x1]
    %v3685 = vperm.slane %v3683, 0
    %v3688 = vsel %vm193, %v3671, 0
    %v3691 = vsel %vm193, %v3672, 0
    %v3694 = vsel %vm193, %v3673, 0
    %v3697 = vsel %vm193, %v3674, 0
    %v3700 = vsel %vm193, %v3675, 0
    %v3703 = vsel %vm193, %v3676, 0
    %v3706 = vsel %vm193, %v3677, 0
    %v3709 = vsel %vm193, %v3678, 0
    %3711 = vmatpush.msra.mxu0 0.0
    %3712 = vmatpush.msra.mxu0 0.0
    %3713 = vmatpush.msra.mxu0 0.0
    %3714 = vmatpush.msra.mxu0 0.0
    %3715 = vmatpush.msra.mxu0 0.0
    %3716 = vmatpush.msra.mxu0 0.0
    %3717 = vmatpush.msra.mxu0 0.0
    %3718 = vmatpush.msra.mxu0 0.0
    %3719 = vmatpush.msra.mxu0 0.0
    %3720 = vmatpush.msra.mxu0 0.0
    %3721 = vmatpush.msra.mxu0 0.0
    %3722 = vmatpush.msra.mxu0 0.0
    %3723 = vmatpush.msra.mxu0 %v3682
    %3724 = vmatpush.msra.mxu0 %v3681
    %3725 = vmatpush.msra.mxu0 %v3680
    %3726 = vmatpush.msra.mxu0 %v3679
    %3727 = vmatmul.f32.gmra.mxu0 %v3688
    %v3728 = vpop.f32.mrf.mxu0
    %v3729 = vadd.f32 %v3685, %v3728
    %3730 = vmatmul.f32.gmra.mxu0 %v3691
    %v3731 = vpop.f32.mrf.mxu0
    %v3732 = vadd.f32 %v3685, %v3731
    %3733 = vmatmul.f32.gmra.mxu0 %v3694
    %v3734 = vpop.f32.mrf.mxu0
    %v3735 = vadd.f32 %v3685, %v3734
    %3736 = vmatmul.f32.gmra.mxu0 %v3697
    %v3737 = vpop.f32.mrf.mxu0
    %v3738 = vadd.f32 %v3685, %v3737
    %3739 = vmatmul.f32.gmra.mxu0 %v3700
    %v3740 = vpop.f32.mrf.mxu0
    %v3741 = vadd.f32 %v3685, %v3740
    %3742 = vmatmul.f32.gmra.mxu0 %v3703
    %v3743 = vpop.f32.mrf.mxu0
    %v3744 = vadd.f32 %v3685, %v3743
    %3745 = vmatmul.f32.gmra.mxu0 %v3706
    %v3746 = vpop.f32.mrf.mxu0
    %v3747 = vadd.f32 %v3685, %v3746
    %3748 = vmatmul.f32.gmra.mxu0 %v3709
    %v3749 = vpop.f32.mrf.mxu0
    %v3750 = vadd.f32 %v3685, %v3749
    %3751 = vdwg.mxu0
    %vm3752 = vcmp.gt.f32.partialorder %v3729, 0.0
    %vm3753 = vcmp.gt.f32.partialorder %v3732, 0.0
    %vm3754 = vcmp.gt.f32.partialorder %v3735, 0.0
    %vm3755 = vcmp.gt.f32.partialorder %v3738, 0.0
    %vm3756 = vcmp.gt.f32.partialorder %v3741, 0.0
    %vm3757 = vcmp.gt.f32.partialorder %v3744, 0.0
    %vm3758 = vcmp.gt.f32.partialorder %v3747, 0.0
    %vm3759 = vcmp.gt.f32.partialorder %v3750, 0.0
    %v3760 = vmul.f32 %v3729, 0.01
    %v3761 = vmul.f32 %v3732, 0.01
    %v3762 = vmul.f32 %v3735, 0.01
    %v3763 = vmul.f32 %v3738, 0.01
    %v3764 = vmul.f32 %v3741, 0.01
    %v3765 = vmul.f32 %v3744, 0.01
    %v3766 = vmul.f32 %v3747, 0.01
    %v3767 = vmul.f32 %v3750, 0.01
    %v3768 = vsel %vm3752, %v3729, %v3760
    %v3769 = vsel %vm3753, %v3732, %v3761
    %v3770 = vsel %vm3754, %v3735, %v3762
    %v3771 = vsel %vm3755, %v3738, %v3763
    %v3772 = vsel %vm3756, %v3741, %v3764
    %v3773 = vsel %vm3757, %v3744, %v3765
    %v3774 = vsel %vm3758, %v3747, %v3766
    %v3775 = vsel %vm3759, %v3750, %v3767
    %v3776 = vld [vmem:[%s7] sm:$0xff]
    %v3777 = vld [vmem:[%s7 + $0x8] sm:$0xff]
    %v3778 = vld [vmem:[%s7 + $0x10] sm:$0xff]
    %v3779 = vld [vmem:[%s7 + $0x18] sm:$0xff]
    %v3780 = vld [vmem:[%s7 + $0x20] sm:$0xff]
    %v3781 = vld [vmem:[%s7 + $0x28] sm:$0xff]
    %v3782 = vld [vmem:[%s7 + $0x30] sm:$0xff]
    %v3783 = vld [vmem:[%s7 + $0x38] sm:$0xff]
    %v3784 = vld [vmem:[%s8] sm:$0x1]
    %v3786 = vperm.slane %v3784, 0
    %vm3788 = vcmask 523264
    %v3790 = vsel %vm3788, %v3768, 0
    %v3793 = vsel %vm3788, %v3769, 0
    %v3796 = vsel %vm3788, %v3770, 0
    %v3799 = vsel %vm3788, %v3771, 0
    %v3802 = vsel %vm3788, %v3772, 0
    %v3805 = vsel %vm3788, %v3773, 0
    %v3808 = vsel %vm3788, %v3774, 0
    %v3811 = vsel %vm3788, %v3775, 0
    %3813 = vmatpush.msra.mxu0 0.0
    %3814 = vmatpush.msra.mxu0 0.0
    %3815 = vmatpush.msra.mxu0 0.0
    %3816 = vmatpush.msra.mxu0 0.0
    %3817 = vmatpush.msra.mxu0 0.0
    %3818 = vmatpush.msra.mxu0 0.0
    %3819 = vmatpush.msra.mxu0 0.0
    %3820 = vmatpush.msra.mxu0 0.0
    %3821 = vmatpush.msra.mxu0 %v3783
    %3822 = vmatpush.msra.mxu0 %v3782
    %3823 = vmatpush.msra.mxu0 %v3781
    %3824 = vmatpush.msra.mxu0 %v3780
    %3825 = vmatpush.msra.mxu0 %v3779
    %3826 = vmatpush.msra.mxu0 %v3778
    %3827 = vmatpush.msra.mxu0 %v3777
    %3828 = vmatpush.msra.mxu0 %v3776
    %3829 = vmatmul.f32.gmra.mxu0 %v3790
    %v3830 = vpop.f32.mrf.mxu0
    %v3831 = vadd.f32 %v3786, %v3830
    %3832 = vmatmul.f32.gmra.mxu0 %v3793
    %v3833 = vpop.f32.mrf.mxu0
    %v3834 = vadd.f32 %v3786, %v3833
    %3835 = vmatmul.f32.gmra.mxu0 %v3796
    %v3836 = vpop.f32.mrf.mxu0
    %v3837 = vadd.f32 %v3786, %v3836
    %3838 = vmatmul.f32.gmra.mxu0 %v3799
    %v3839 = vpop.f32.mrf.mxu0
    %v3840 = vadd.f32 %v3786, %v3839
    %3841 = vmatmul.f32.gmra.mxu0 %v3802
    %v3842 = vpop.f32.mrf.mxu0
    %v3843 = vadd.f32 %v3786, %v3842
    %3844 = vmatmul.f32.gmra.mxu0 %v3805
    %v3845 = vpop.f32.mrf.mxu0
    %v3846 = vadd.f32 %v3786, %v3845
    %3847 = vmatmul.f32.gmra.mxu0 %v3808
    %v3848 = vpop.f32.mrf.mxu0
    %v3849 = vadd.f32 %v3786, %v3848
    %3850 = vmatmul.f32.gmra.mxu0 %v3811
    %v3851 = vpop.f32.mrf.mxu0
    %v3852 = vadd.f32 %v3786, %v3851
    %3853 = vdwg.mxu0
    %vm3854 = vcmp.gt.f32.partialorder %v3831, 0.0
    %vm3855 = vcmp.gt.f32.partialorder %v3834, 0.0
    %vm3856 = vcmp.gt.f32.partialorder %v3837, 0.0
    %vm3857 = vcmp.gt.f32.partialorder %v3840, 0.0
    %vm3858 = vcmp.gt.f32.partialorder %v3843, 0.0
    %vm3859 = vcmp.gt.f32.partialorder %v3846, 0.0
    %vm3860 = vcmp.gt.f32.partialorder %v3849, 0.0
    %vm3861 = vcmp.gt.f32.partialorder %v3852, 0.0
    %v3862 = vmul.f32 %v3831, 0.01
    %v3863 = vmul.f32 %v3834, 0.01
    %v3864 = vmul.f32 %v3837, 0.01
    %v3865 = vmul.f32 %v3840, 0.01
    %v3866 = vmul.f32 %v3843, 0.01
    %v3867 = vmul.f32 %v3846, 0.01
    %v3868 = vmul.f32 %v3849, 0.01
    %v3869 = vmul.f32 %v3852, 0.01
    %v3870 = vsel %vm3854, %v3831, %v3862
    %v3871 = vsel %vm3855, %v3834, %v3863
    %v3872 = vsel %vm3856, %v3837, %v3864
    %v3873 = vsel %vm3857, %v3840, %v3865
    %v3874 = vsel %vm3858, %v3843, %v3866
    %v3875 = vsel %vm3859, %v3846, %v3867
    %v3876 = vsel %vm3860, %v3849, %v3868
    %v3877 = vsel %vm3861, %v3852, %v3869
    %v3878 = vld [vmem:[%s9] sm:$0xff]
    %v3879 = vld [vmem:[%s9 + $0x8] sm:$0xff]
    %v3880 = vld [vmem:[%s9 + $0x10] sm:$0xff]
    %v3881 = vld [vmem:[%s9 + $0x18] sm:$0xff]
    %v3882 = vld [vmem:[%s9 + $0x20] sm:$0xff]
    %v3883 = vld [vmem:[%s9 + $0x28] sm:$0xff]
    %v3884 = vld [vmem:[%s9 + $0x30] sm:$0xff]
    %v3885 = vld [vmem:[%s9 + $0x38] sm:$0xff]
    %v3886 = vld [vmem:[%s10] sm:$0x1]
    %v3888 = vperm.slane %v3886, 0
    %v3891 = vsel %vm3788, %v3870, 0
    %v3894 = vsel %vm3788, %v3871, 0
    %v3897 = vsel %vm3788, %v3872, 0
    %v3900 = vsel %vm3788, %v3873, 0
    %v3903 = vsel %vm3788, %v3874, 0
    %v3906 = vsel %vm3788, %v3875, 0
    %v3909 = vsel %vm3788, %v3876, 0
    %v3912 = vsel %vm3788, %v3877, 0
    %3914 = vmatpush.msra.mxu0 0.0
    %3915 = vmatpush.msra.mxu0 0.0
    %3916 = vmatpush.msra.mxu0 0.0
    %3917 = vmatpush.msra.mxu0 0.0
    %3918 = vmatpush.msra.mxu0 0.0
    %3919 = vmatpush.msra.mxu0 0.0
    %3920 = vmatpush.msra.mxu0 0.0
    %3921 = vmatpush.msra.mxu0 0.0
    %3922 = vmatpush.msra.mxu0 %v3885
    %3923 = vmatpush.msra.mxu0 %v3884
    %3924 = vmatpush.msra.mxu0 %v3883
    %3925 = vmatpush.msra.mxu0 %v3882
    %3926 = vmatpush.msra.mxu0 %v3881
    %3927 = vmatpush.msra.mxu0 %v3880
    %3928 = vmatpush.msra.mxu0 %v3879
    %3929 = vmatpush.msra.mxu0 %v3878
    %3930 = vmatmul.f32.gmra.mxu0 %v3891
    %v3931 = vpop.f32.mrf.mxu0
    %v3932 = vadd.f32 %v3888, %v3931
    %3933 = vmatmul.f32.gmra.mxu0 %v3894
    %v3934 = vpop.f32.mrf.mxu0
    %v3935 = vadd.f32 %v3888, %v3934
    %3936 = vmatmul.f32.gmra.mxu0 %v3897
    %v3937 = vpop.f32.mrf.mxu0
    %v3938 = vadd.f32 %v3888, %v3937
    %3939 = vmatmul.f32.gmra.mxu0 %v3900
    %v3940 = vpop.f32.mrf.mxu0
    %v3941 = vadd.f32 %v3888, %v3940
    %3942 = vmatmul.f32.gmra.mxu0 %v3903
    %v3943 = vpop.f32.mrf.mxu0
    %v3944 = vadd.f32 %v3888, %v3943
    %3945 = vmatmul.f32.gmra.mxu0 %v3906
    %v3946 = vpop.f32.mrf.mxu0
    %v3947 = vadd.f32 %v3888, %v3946
    %3948 = vmatmul.f32.gmra.mxu0 %v3909
    %v3949 = vpop.f32.mrf.mxu0
    %v3950 = vadd.f32 %v3888, %v3949
    %3951 = vmatmul.f32.gmra.mxu0 %v3912
    %v3952 = vpop.f32.mrf.mxu0
    %v3953 = vadd.f32 %v3888, %v3952
    %3954 = vdwg.mxu0
    %vm3955 = vcmp.gt.f32.partialorder %v3932, 0.0
    %vm3956 = vcmp.gt.f32.partialorder %v3935, 0.0
    %vm3957 = vcmp.gt.f32.partialorder %v3938, 0.0
    %vm3958 = vcmp.gt.f32.partialorder %v3941, 0.0
    %vm3959 = vcmp.gt.f32.partialorder %v3944, 0.0
    %vm3960 = vcmp.gt.f32.partialorder %v3947, 0.0
    %vm3961 = vcmp.gt.f32.partialorder %v3950, 0.0
    %vm3962 = vcmp.gt.f32.partialorder %v3953, 0.0
    %v3963 = vmul.f32 %v3932, 0.01
    %v3964 = vmul.f32 %v3935, 0.01
    %v3965 = vmul.f32 %v3938, 0.01
    %v3966 = vmul.f32 %v3941, 0.01
    %v3967 = vmul.f32 %v3944, 0.01
    %v3968 = vmul.f32 %v3947, 0.01
    %v3969 = vmul.f32 %v3950, 0.01
    %v3970 = vmul.f32 %v3953, 0.01
    %v3971 = vsel %vm3955, %v3932, %v3963
    %v3972 = vsel %vm3956, %v3935, %v3964
    %v3973 = vsel %vm3957, %v3938, %v3965
    %v3974 = vsel %vm3958, %v3941, %v3966
    %v3975 = vsel %vm3959, %v3944, %v3967
    %v3976 = vsel %vm3960, %v3947, %v3968
    %v3977 = vsel %vm3961, %v3950, %v3969
    %v3978 = vsel %vm3962, %v3953, %v3970
    %v3979 = vld [vmem:[%s11] sm:$0xff]
    %v3980 = vld [vmem:[%s11 + $0x8] sm:$0xff]
    %v3981 = vld [vmem:[%s11 + $0x10] sm:$0xff]
    %v3982 = vld [vmem:[%s11 + $0x18] sm:$0xff]
    %v3983 = vld [vmem:[%s12] sm:$0x1]
    %v3985 = vperm.slane %v3983, 0
    %v3988 = vsel %vm193, %v3971, 0
    %v3991 = vsel %vm193, %v3972, 0
    %v3994 = vsel %vm193, %v3973, 0
    %v3997 = vsel %vm193, %v3974, 0
    %v4000 = vsel %vm193, %v3975, 0
    %v4003 = vsel %vm193, %v3976, 0
    %v4006 = vsel %vm193, %v3977, 0
    %v4009 = vsel %vm193, %v3978, 0
    %4011 = vmatpush.msra.mxu0 0.0
    %4012 = vmatpush.msra.mxu0 0.0
    %4013 = vmatpush.msra.mxu0 0.0
    %4014 = vmatpush.msra.mxu0 0.0
    %4015 = vmatpush.msra.mxu0 0.0
    %4016 = vmatpush.msra.mxu0 0.0
    %4017 = vmatpush.msra.mxu0 0.0
    %4018 = vmatpush.msra.mxu0 0.0
    %4019 = vmatpush.msra.mxu0 0.0
    %4020 = vmatpush.msra.mxu0 0.0
    %4021 = vmatpush.msra.mxu0 0.0
    %4022 = vmatpush.msra.mxu0 0.0
    %4023 = vmatpush.msra.mxu0 %v3982
    %4024 = vmatpush.msra.mxu0 %v3981
    %4025 = vmatpush.msra.mxu0 %v3980
    %4026 = vmatpush.msra.mxu0 %v3979
    %4027 = vmatmul.f32.gmra.mxu0 %v3988
    %v4028 = vpop.f32.mrf.mxu0
    %v4029 = vadd.f32 %v3985, %v4028
    %4030 = vmatmul.f32.gmra.mxu0 %v3991
    %v4031 = vpop.f32.mrf.mxu0
    %v4032 = vadd.f32 %v3985, %v4031
    %4033 = vmatmul.f32.gmra.mxu0 %v3994
    %v4034 = vpop.f32.mrf.mxu0
    %v4035 = vadd.f32 %v3985, %v4034
    %4036 = vmatmul.f32.gmra.mxu0 %v3997
    %v4037 = vpop.f32.mrf.mxu0
    %v4038 = vadd.f32 %v3985, %v4037
    %4039 = vmatmul.f32.gmra.mxu0 %v4000
    %v4040 = vpop.f32.mrf.mxu0
    %v4041 = vadd.f32 %v3985, %v4040
    %4042 = vmatmul.f32.gmra.mxu0 %v4003
    %v4043 = vpop.f32.mrf.mxu0
    %v4044 = vadd.f32 %v3985, %v4043
    %4045 = vmatmul.f32.gmra.mxu0 %v4006
    %v4046 = vpop.f32.mrf.mxu0
    %v4047 = vadd.f32 %v3985, %v4046
    %4048 = vmatmul.f32.gmra.mxu0 %v4009
    %v4049 = vpop.f32.mrf.mxu0
    %v4050 = vadd.f32 %v3985, %v4049
    %4051 = vdwg.mxu0
    %4052 = vst [vmem:[%s13] sm:$0xff] %v4029
    %4053 = vst [vmem:[%s13 + $0x8] sm:$0xff] %v4032
    %4054 = vst [vmem:[%s13 + $0x10] sm:$0xff] %v4035
    %4055 = vst [vmem:[%s13 + $0x18] sm:$0xff] %v4038
    %4056 = vst [vmem:[%s13 + $0x20] sm:$0xff] %v4041
    %4057 = vst [vmem:[%s13 + $0x28] sm:$0xff] %v4044
    %4058 = vst [vmem:[%s13 + $0x30] sm:$0xff] %v4047
    %4059 = vst [vmem:[%s13 + $0x38] sm:$0xff] %v4050
    // Predicated region
    $region62: #{lstm_model_forward.1} parent=1 // pred_check
      _
    $region63: #{lstm_model_forward.1} parent=1 // pred_check_branch
      %4061 = sbr.rel (0) target = $region65
    $region64: #{lstm_model_forward.1} parent=1 // pred_region
      _
    $region65: #{lstm_model_forward.1} parent=1 // pred_fallthru
      _
    // Predicated region
    $region66: #{lstm_model_forward.1} parent=1 // pred_check
      _
    $region67: #{lstm_model_forward.1} parent=1 // pred_check_branch
      %4063 = sbr.rel (0) target = $region69
    $region68: #{lstm_model_forward.1} parent=1 // pred_region
      _
    $region69: #{lstm_model_forward.1} parent=1 // pred_fallthru
      _
    // Predicated region
    $region70: #{lstm_model_forward.1} parent=1 // pred_check
      _
    $region71: #{lstm_model_forward.1} parent=1 // pred_check_branch
      %4065 = sbr.rel (0) target = $region73
    $region72: #{lstm_model_forward.1} parent=1 // pred_region
      _
    $region73: #{lstm_model_forward.1} parent=1 // pred_fallthru
      _
    // Predicated region
    $region74: #{lstm_model_forward.1} parent=1 // pred_check
      _
    $region75: #{lstm_model_forward.1} parent=1 // pred_check_branch
      %4067 = sbr.rel (0) target = $region77
    $region76: #{lstm_model_forward.1} parent=1 // pred_region
      _
    $region77: #{lstm_model_forward.1} parent=1 // pred_fallthru
      _
    // Predicated region
    $region78: #{lstm_model_forward.1} parent=1 // pred_check
      _
    $region79: #{lstm_model_forward.1} parent=1 // pred_check_branch
      %4069 = sbr.rel (0) target = $region81
    $region80: #{lstm_model_forward.1} parent=1 // pred_region
      _
    $region81: #{lstm_model_forward.1} parent=1 // pred_fallthru
      _
    // Predicated region
    $region82: #{lstm_model_forward.1} parent=1 // pred_check
      _
    $region83: #{lstm_model_forward.1} parent=1 // pred_check_branch
      %4071 = sbr.rel (0) target = $region85
    $region84: #{lstm_model_forward.1} parent=1 // pred_region
      _
    $region85: #{lstm_model_forward.1} parent=1 // pred_fallthru
      _
    %4072 = vsyncpa [#allocation4], 1
    %4073 = vsyncpa [#allocation6], 1

</llo_original>
